<compile_context>
chip_gen: v7x
topology: tpu7x:2x2x1
jax: 0.10.0
libtpu: 0.0.40
codegen_flags: <defaults>
</compile_context>

<pallas_src>
import functools

import jax
import jax.numpy as jnp
from jax.experimental import pallas as pl
from jax.experimental.pallas import tpu as pltpu

PRIMITIVES = [
    "none",
    "max_pool_3x3",
    "avg_pool_3x3",
    "skip_connect",
    "sep_conv_3x3",
    "sep_conv_5x5",
    "dil_conv_3x3",
    "dil_conv_5x5",
]

EPS = 1e-5                               # PyTorch BatchNorm2d default eps
INTERMEDIATE_DTYPE = jnp.bfloat16        # producer->combine maps; stats stay f32
VMEM_LIMIT_BYTES = 32 * 1024 * 1024
COMBINE_TILE_BUDGET = 12 * 1024 * 1024   # conservative: fits v5e scoped VMEM too


# ----------------------------------------------------------------------------
# In-kernel helpers (all values kept >= 2-D, last dim = W*C on the lane axis)
# ----------------------------------------------------------------------------
def _fill_border(pad_ref, pad_rows, pad_lanes, h, wc, value):
    """Write only the halo border of a padded scratch (interior written later)."""
    hp, wpc = pad_ref.shape
    if pad_rows > 0:
        pad_ref[0:pad_rows, :] = jnp.full((pad_rows, wpc), value, jnp.float32)
        pad_ref[pad_rows + h:hp, :] = jnp.full((hp - pad_rows - h, wpc), value,
                                               jnp.float32)
    if pad_lanes > 0:
        pad_ref[pad_rows:pad_rows + h, 0:pad_lanes] = jnp.full(
            (h, pad_lanes), value, jnp.float32)
        pad_ref[pad_rows:pad_rows + h, pad_lanes + wc:wpc] = jnp.full(
            (h, wpc - pad_lanes - wc), value, jnp.float32)


def _dw_taps(pad_ref, dw_ref, *, k, dil, p, big_p, h, w, c):
    """Depthwise k x k (dilation dil) conv over a zero-halo scratch.

    The un-padded image sits at row offset big_p / lane offset big_p*c inside
    pad_ref; dw_ref row (dh*k + dwi) holds the tap weight tiled per lane.
    Returns the f32 (h, w*c) result.
    """
    wc = w * c
    acc = None
    t = 0
    for dh in range(k):
        r0 = big_p - p + dh * dil
        for dwi in range(k):
            l0 = (big_p - p + dwi * dil) * c
            tap = pad_ref[r0:r0 + h, l0:l0 + wc] * dw_ref[t:t + 1, :]
            acc = tap if acc is None else acc + tap
            t += 1
    return acc


def _pw_mix(acc, pw_ref, acc_pad, *, h, w, c):
    """1x1 pointwise conv in the lane-dense (h, w*c) layout.

    pw_ref row s holds pw[co + s - (c-1), co] per lane (zero when the source
    channel is out of range), so the channel mix is 2c-1 statically shifted
    FMAs against a (c-1)-lane zero-padded copy of the depthwise result.
    """
    wc = w * c
    cp = c - 1
    if cp > 0:
        acc_pad[:, 0:cp] = jnp.zeros((h, cp), jnp.float32)
        acc_pad[:, cp + wc:cp + wc + cp] = jnp.zeros((h, cp), jnp.float32)
    acc_pad[:, cp:cp + wc] = acc
    y = None
    for s_idx in range(2 * c - 1):
        term = acc_pad[:, s_idx:s_idx + wc] * pw_ref[s_idx:s_idx + 1, :]
        y = term if y is None else y + term
    return y


def _emit(st_ref, idx, y, out_ref, out_dtype):
    """Store the op's map (cast to out_dtype) + f32 partial BN stats rows."""
    h, wc = y.shape
    st_ref[:, 2 * idx:2 * idx + 1, :] = jnp.sum(
        y, axis=0, keepdims=True).reshape(1, 1, wc)
    st_ref[:, 2 * idx + 1:2 * idx + 2, :] = jnp.sum(
        y * y, axis=0, keepdims=True).reshape(1, 1, wc)
    out_ref[...] = y.astype(out_dtype).reshape(1, h, wc)


def _emit_zero(st_ref, idx, out_ref):
    """Gumbel-inactive op: keep outputs defined (avoid 0 * uninitialized HBM)."""
    _, h, wc = out_ref.shape
    st_ref[:, 2 * idx:2 * idx + 2, :] = jnp.zeros((1, 2, wc), jnp.float32)
    out_ref[...] = jnp.zeros((1, h, wc), out_ref.dtype)


# ----------------------------------------------------------------------------
# Stage 1: pools + first-stage convs (shared x DMA / ReLU / halo scratch)
# ----------------------------------------------------------------------------
def _stage1_kernel(act_ref, x_ref, inv_ref,
                   dw_s3, pw_s3, dw_s5, pw_s5, dw_d3, pw_d3, dw_d5, pw_d5,
                   pmax_ref, pavg_ref, cs3_ref, cs5_ref, yd3_ref, yd5_ref,
                   st_ref, relu_pad, max_pad, avg_pad, acc_pad,
                   *, h, w, c, out_dtype):
    wc = w * c
    big_p = 4                      # shared halo sized for dil_conv_5x5 (pad=4)

    x2 = x_ref[0]                  # (h, w*c) f32, lane-dense

    # ---- 3x3 stride-1 pools (pre-BN output; their BN is folded into combine)
    def pool(flag_idx, st_idx, pad_scr, fill, is_max, out_ref):
        @pl.when(act_ref[flag_idx] != 0)
        def _():
            _fill_border(pad_scr, 1, c, h, wc, fill)
            pad_scr[1:1 + h, c:c + wc] = x2
            acc = None
            for dh in range(3):
                for dwi in range(3):
                    tap = pad_scr[dh:dh + h, dwi * c:dwi * c + wc]
                    if acc is None:
                        acc = tap
                    elif is_max:
                        acc = jnp.maximum(acc, tap)
                    else:
                        acc = acc + tap
            # count_include_pad=False divisor folded as a precomputed reciprocal
            y = acc if is_max else acc * inv_ref[...]
            _emit(st_ref, st_idx, y, out_ref, out_dtype)

        @pl.when(act_ref[flag_idx] == 0)
        def _():
            _emit_zero(st_ref, st_idx, out_ref)

    pool(1, 0, max_pad, -jnp.inf, True, pmax_ref)
    pool(2, 1, avg_pad, 0.0, False, pavg_ref)

    # ---- shared ReLU(x) zero-halo scratch for all four conv branches
    any_conv = (act_ref[4] + act_ref[5] + act_ref[6] + act_ref[7]) > 0

    @pl.when(any_conv)
    def _():
        _fill_border(relu_pad, big_p, big_p * c, h, wc, 0.0)
        relu_pad[big_p:big_p + h, big_p * c:big_p * c + wc] = jnp.maximum(x2, 0.0)

    def conv(flag_idx, st_idx, dw_ref, pw_ref, k, dil, out_ref):
        p = dil * (k - 1) // 2

        @pl.when(act_ref[flag_idx] != 0)
        def _():
            acc = _dw_taps(relu_pad, dw_ref, k=k, dil=dil, p=p, big_p=big_p,
                           h=h, w=w, c=c)
            y = _pw_mix(acc, pw_ref, acc_pad, h=h, w=w, c=c)
            _emit(st_ref, st_idx, y, out_ref, out_dtype)

        @pl.when(act_ref[flag_idx] == 0)
        def _():
            _emit_zero(st_ref, st_idx, out_ref)

    conv(4, 2, dw_s3, pw_s3, 3, 1, cs3_ref)   # sep_conv_3x3 stage 1
    conv(5, 3, dw_s5, pw_s5, 5, 1, cs5_ref)   # sep_conv_5x5 stage 1
    conv(6, 4, dw_d3, pw_d3, 3, 2, yd3_ref)   # dil_conv_3x3
    conv(7, 5, dw_d5, pw_d5, 5, 2, yd5_ref)   # dil_conv_5x5


def _stage1(active, x3, inv_cnt, lanes, *, n, h, w, c, inter_dtype):
    wc = w * c
    big_p = 4
    row_spec = pl.BlockSpec((1, h, wc), lambda i: (i, 0, 0))

    def const(shape):
        return pl.BlockSpec(shape, lambda i: tuple(0 for _ in shape))

    map_shape = jax.ShapeDtypeStruct((n, h, wc), inter_dtype)
    kern = functools.partial(_stage1_kernel, h=h, w=w, c=c, out_dtype=inter_dtype)
    return pl.pallas_call(
        kern,
        out_shape=(map_shape,) * 6 + (
            jax.ShapeDtypeStruct((n, 12, wc), jnp.float32),),
        grid=(n,),
        in_specs=[pl.BlockSpec(memory_space=pltpu.MemorySpace.SMEM),
                  row_spec,
                  const((h, wc))] + [const(l.shape) for l in lanes],
        out_specs=(row_spec,) * 6 + (
            pl.BlockSpec((1, 12, wc), lambda i: (i, 0, 0)),),
        scratch_shapes=[
            pltpu.VMEM((h + 2 * big_p, (w + 2 * big_p) * c), jnp.float32),
            pltpu.VMEM((h + 2, (w + 2) * c), jnp.float32),
            pltpu.VMEM((h + 2, (w + 2) * c), jnp.float32),
            pltpu.VMEM((h, wc + 2 * (c - 1)), jnp.float32),
        ],
        compiler_params=pltpu.CompilerParams(
            dimension_semantics=("parallel",),
            vmem_limit_bytes=VMEM_LIMIT_BYTES),
    )(active, x3, inv_cnt, *lanes)


# ----------------------------------------------------------------------------
# Stage 2: second separable-conv stages (intermediate BN folded into prologue)
# ----------------------------------------------------------------------------
def _stage2_kernel(act_ref, bn_ref, c3_ref, c5_ref,
                   dw3, pw3, dw5, pw5,
                   y3_ref, y5_ref, st_ref,
                   pad3, pad5, acc_pad, *, h, w, c, out_dtype):
    wc = w * c

    def run(flag_idx, st_idx, src_ref, bn_row, pad_scr, p, dw_ref, pw_ref, k,
            out_ref):
        @pl.when(act_ref[flag_idx] != 0)
        def _():
            mean = bn_ref[bn_row:bn_row + 1, :]
            scale = bn_ref[bn_row + 1:bn_row + 2, :]
            xb = (src_ref[0].astype(jnp.float32) - mean) * scale   # folded BN
            _fill_border(pad_scr, p, p * c, h, wc, 0.0)
            pad_scr[p:p + h, p * c:p * c + wc] = jnp.maximum(xb, 0.0)
            acc = _dw_taps(pad_scr, dw_ref, k=k, dil=1, p=p, big_p=p,
                           h=h, w=w, c=c)
            y = _pw_mix(acc, pw_ref, acc_pad, h=h, w=w, c=c)
            _emit(st_ref, st_idx, y, out_ref, out_dtype)

        @pl.when(act_ref[flag_idx] == 0)
        def _():
            _emit_zero(st_ref, st_idx, out_ref)

    run(4, 0, c3_ref, 0, pad3, 1, dw3, pw3, 3, y3_ref)   # sep_conv_3x3 stage 2
    run(5, 1, c5_ref, 2, pad5, 2, dw5, pw5, 5, y5_ref)   # sep_conv_5x5 stage 2


def _stage2(active, c1_s3, c1_s5, bn_lane, lanes, *, n, h, w, c, inter_dtype):
    wc = w * c
    row_spec = pl.BlockSpec((1, h, wc), lambda i: (i, 0, 0))

    def const(shape):
        return pl.BlockSpec(shape, lambda i: tuple(0 for _ in shape))

    map_shape = jax.ShapeDtypeStruct((n, h, wc), inter_dtype)
    kern = functools.partial(_stage2_kernel, h=h, w=w, c=c, out_dtype=inter_dtype)
    return pl.pallas_call(
        kern,
        out_shape=(map_shape, map_shape,
                   jax.ShapeDtypeStruct((n, 4, wc), jnp.float32)),
        grid=(n,),
        in_specs=[pl.BlockSpec(memory_space=pltpu.MemorySpace.SMEM),
                  const(bn_lane.shape),
                  row_spec, row_spec] + [const(l.shape) for l in lanes],
        out_specs=(row_spec, row_spec,
                   pl.BlockSpec((1, 4, wc), lambda i: (i, 0, 0))),
        scratch_shapes=[
            pltpu.VMEM((h + 2, (w + 2) * c), jnp.float32),
            pltpu.VMEM((h + 4, (w + 4) * c), jnp.float32),
            pltpu.VMEM((h, wc + 2 * (c - 1)), jnp.float32),
        ],
        compiler_params=pltpu.CompilerParams(
            dimension_semantics=("parallel",),
            vmem_limit_bytes=VMEM_LIMIT_BYTES),
    )(active, bn_lane, c1_s3, c1_s5, *lanes)


# ----------------------------------------------------------------------------
# Combine: arch-weighted sum + every final BN + skip_connect, lane-dense
# ----------------------------------------------------------------------------
def _combine_kernel(a_ref, b_ref, x_ref, y1_ref, y2_ref, y3_ref, y4_ref,
                    y5_ref, y6_ref, o_ref):
    a = a_ref[...]                                   # (7, L)
    acc = x_ref[...] * a[0:1, :]                     # skip_connect (identity)
    for i, yr in enumerate((y1_ref, y2_ref, y3_ref, y4_ref, y5_ref, y6_ref)):
        acc = acc + yr[...].astype(jnp.float32) * a[i + 1:i + 2, :]
    o_ref[...] = acc - b_ref[...]                    # 'none' contributes 0


def _combine_view(n, h, w, c):
    """Pick a lane-dense (rows, L) flattening: L % 128 == 0 and L % C == 0."""
    total = n * h * w * c
    for cand in range(2048, 0, -128):
        if total % cand == 0 and cand % c == 0 and total // cand >= 8:
            return total // cand, cand
    for cand in range(2048, 0, -128):
        if total % cand == 0 and cand % c == 0:
            return total // cand, cand
    return n * h, w * c          # fallback: always valid, not fully lane-dense


def _row_tile(rows, lanes, n_arrays):
    """Largest row tile (multiple of 16, divisor of rows) within the budget."""
    if rows % 16 != 0:
        return rows
    bytes_per_row = lanes * 4 * 2 * n_arrays          # f32, double-buffered
    cap = max(16, (COMBINE_TILE_BUDGET // bytes_per_row) // 16 * 16)
    divs = [d for d in range(16, min(rows, cap) + 1, 16) if rows % d == 0]
    return max(divs) if divs else rows


def _combine(x_flat, ys_flat, a_lane, b_lane):
    r, l = x_flat.shape
    tr = _row_tile(r, l, n_arrays=len(ys_flat) + 2)
    row_spec = pl.BlockSpec((tr, l), lambda i: (i, 0))
    return pl.pallas_call(
        _combine_kernel,
        out_shape=jax.ShapeDtypeStruct((r, l), jnp.float32),
        grid=(r // tr,),
        in_specs=[pl.BlockSpec((7, l), lambda i: (0, 0)),
                  pl.BlockSpec((1, l), lambda i: (0, 0))]
                 + [row_spec] * (len(ys_flat) + 1),
        out_specs=row_spec,
        compiler_params=pltpu.CompilerParams(
            dimension_semantics=("parallel",),
            vmem_limit_bytes=VMEM_LIMIT_BYTES),
    )(a_lane, b_lane, x_flat, *ys_flat)


# ----------------------------------------------------------------------------
# Host-side (pure JAX) weight / stats plumbing
# ----------------------------------------------------------------------------
def _prep_dw_lane(dw, w):
    """(k,k,C) depthwise weights -> (k*k, W*C) per-lane tap rows."""
    k, _, c = dw.shape
    return jnp.tile(dw.reshape(k * k, c), (1, w)).astype(jnp.float32)


def _prep_pw_lane(pw, w):
    """(Cin,Cout) 1x1 weights -> (2C-1, W*C) shifted-FMA rows (zero if invalid)."""
    c = pw.shape[0]
    co = jnp.arange(c)
    rows = []
    for s in range(-(c - 1), c):
        ci = co + s
        valid = (ci >= 0) & (ci < c)
        rows.append(jnp.where(valid, pw[jnp.clip(ci, 0, c - 1), co], 0.0))
    return jnp.tile(jnp.stack(rows, axis=0), (1, w)).astype(jnp.float32)


def _avg_inv_count(h, w, c):
    """Reciprocal of the count_include_pad=False divisor, (H, W*C)."""
    ih = jnp.arange(h)[:, None]
    iw = jnp.arange(w)[None, :]
    ch = jnp.minimum(ih + 1, h - 1) - jnp.maximum(ih - 1, 0) + 1
    cw = jnp.minimum(iw + 1, w - 1) - jnp.maximum(iw - 1, 0) + 1
    inv = 1.0 / (ch * cw).astype(jnp.float32)
    return jnp.repeat(inv, c, axis=1)


def _bn_from_stats(st_pair, count, w, c):
    """(N, 2, W*C) partial rows -> per-channel (mean, rsqrt(var+eps))."""
    s1 = jnp.sum(st_pair[:, 0, :], axis=0).reshape(w, c).sum(axis=0)
    s2 = jnp.sum(st_pair[:, 1, :], axis=0).reshape(w, c).sum(axis=0)
    mean = s1 / count
    var = jnp.maximum(s2 / count - mean * mean, 0.0)   # biased var, as PyTorch
    return mean, jax.lax.rsqrt(var + EPS)


# ----------------------------------------------------------------------------
# MixedOp forward (stride = 1)
# ----------------------------------------------------------------------------
def mixed_op_forward(x_nchw, weights, params, gumbel=False,
                     inter_dtype=INTERMEDIATE_DTYPE):
    """Equivalent of MixedOp.forward(x, weights, gumbel). x is NCHW."""
    x = jnp.transpose(x_nchw, (0, 2, 3, 1)).astype(jnp.float32)   # NCHW -> NHWC
    n, h, w, c = x.shape
    wc = w * c
    x3 = x.reshape(n, h, wc)                                      # lane-dense view
    count = float(n * h * w)

    wt = weights.astype(jnp.float32)
    if gumbel:
        # PyTorch skips ops with |w| <= 1e-10; all op outputs are finite, so
        # zero-masking those weights + skipping their compute is identical.
        wt = jnp.where(jnp.abs(wt) > 1e-10, wt, 0.0)
        active = (jnp.abs(weights) > 1e-10).astype(jnp.int32)
    else:
        active = jnp.ones((len(PRIMITIVES),), jnp.int32)

    inv_cnt = _avg_inv_count(h, w, c)

    s3, s5 = params["sep_conv_3x3"], params["sep_conv_5x5"]
    d3, d5 = params["dil_conv_3x3"], params["dil_conv_5x5"]
    lanes1 = [
        _prep_dw_lane(s3["dw1"], w), _prep_pw_lane(s3["pw1"], w),
        _prep_dw_lane(s5["dw1"], w), _prep_pw_lane(s5["pw1"], w),
        _prep_dw_lane(d3["dw"], w), _prep_pw_lane(d3["pw"], w),
        _prep_dw_lane(d5["dw"], w), _prep_pw_lane(d5["pw"], w),
    ]
    lanes2 = [
        _prep_dw_lane(s3["dw2"], w), _prep_pw_lane(s3["pw2"], w),
        _prep_dw_lane(s5["dw2"], w), _prep_pw_lane(s5["pw2"], w),
    ]

    (pmax, pavg, c1_s3, c1_s5, y_d3, y_d5, st1) = _stage1(
        active, x3, inv_cnt, lanes1, n=n, h=h, w=w, c=c, inter_dtype=inter_dtype)

    # Intermediate BN of both separable convs -> per-lane mean/scale for stage 2.
    m3, sc3 = _bn_from_stats(st1[:, 4:6], count, w, c)
    m5, sc5 = _bn_from_stats(st1[:, 6:8], count, w, c)
    bn_lane = jnp.stack([jnp.tile(m3, w), jnp.tile(sc3, w),
                         jnp.tile(m5, w), jnp.tile(sc5, w)], axis=0)

    y_s3, y_s5, st2 = _stage2(active, c1_s3, c1_s5, bn_lane, lanes2,
                              n=n, h=h, w=w, c=c, inter_dtype=inter_dtype)

    # Fold every final BN + the arch-weighted sum:
    #   out = w_skip*x + sum_j (w_j*scale_j)*y_j - sum_j (w_j*scale_j*mean_j)
    op_stats = [(1, st1[:, 0:2]), (2, st1[:, 2:4]),
                (4, st2[:, 0:2]), (5, st2[:, 2:4]),
                (6, st1[:, 8:10]), (7, st1[:, 10:12])]
    a_rows = [wt[3] * jnp.ones((c,), jnp.float32)]      # skip_connect (no BN)
    b_tot = jnp.zeros((c,), jnp.float32)
    for idx, st_pair in op_stats:
        mean, scale = _bn_from_stats(st_pair, count, w, c)
        a = wt[idx] * scale
        a_rows.append(a)
        b_tot = b_tot + a * mean

    r, l = _combine_view(n, h, w, c)
    rep = l // c
    a_lane = jnp.tile(jnp.stack(a_rows, axis=0), (1, rep))    # (7, L)
    b_lane = jnp.tile(b_tot[None, :], (1, rep))               # (1, L)

    flats = [x.reshape(r, l)] + [v.reshape(r, l)
                                 for v in (pmax, pavg, y_s3, y_s5, y_d3, y_d5)]
    out = _combine(flats[0], flats[1:], a_lane, b_lane)
    return jnp.transpose(out.reshape(n, h, w, c), (0, 3, 1, 2))   # back to NCHW


# ----------------------------------------------------------------------------
# Deterministic parameter init (shapes from the PyTorch module's __init__)
# ----------------------------------------------------------------------------
def init_params(key, C):
    def _w(k, shape, fan_in):
        return jax.random.normal(k, shape, jnp.float32) / jnp.sqrt(float(fan_in))

    ks = jax.random.split(key, 12)
    return {
        "sep_conv_3x3": {
            "dw1": _w(ks[0], (3, 3, C), 9), "pw1": _w(ks[1], (C, C), C),
            "dw2": _w(ks[2], (3, 3, C), 9), "pw2": _w(ks[3], (C, C), C),
        },
        "sep_conv_5x5": {
            "dw1": _w(ks[4], (5, 5, C), 25), "pw1": _w(ks[5], (C, C), C),
            "dw2": _w(ks[6], (5, 5, C), 25), "pw2": _w(ks[7], (C, C), C),
        },
        "dil_conv_3x3": {"dw": _w(ks[8], (3, 3, C), 9), "pw": _w(ks[9], (C, C), C)},
        "dil_conv_5x5": {"dw": _w(ks[10], (5, 5, C), 25), "pw": _w(ks[11], (C, C), C)},
    }


if __name__ == "__main__":
    key = jax.random.PRNGKey(0)
    kx, kw, kp = jax.random.split(key, 3)

    N, C, H, W = 2, 4, 16, 16                 # small NCHW input (PyTorch layout)
    x = jax.random.normal(kx, (N, C, H, W), jnp.float32)
    alphas = jax.nn.softmax(jax.random.normal(kw, (len(PRIMITIVES),), jnp.float32))
    params = init_params(kp, C)

    fwd = jax.jit(mixed_op_forward, static_argnames=("gumbel", "inter_dtype"))

    y = jax.block_until_ready(fwd(x, alphas, params, gumbel=False))
    assert y.shape == (N, C, H, W) and bool(jnp.all(jnp.isfinite(y)))

    # gumbel path with a one-hot weight vector -> exercises the op-skip branch
    gw = jnp.zeros((len(PRIMITIVES),), jnp.float32).at[4].set(1.0)
    y2 = jax.block_until_ready(fwd(x, gw, params, gumbel=True))
    assert y2.shape == (N, C, H, W) and bool(jnp.all(jnp.isfinite(y2)))

    # gumbel path with dense weights (all ops active)
    y3 = jax.block_until_ready(fwd(x, alphas, params, gumbel=True))
    assert y3.shape == (N, C, H, W) and bool(jnp.all(jnp.isfinite(y3)))

    print("KERNEL_OK")
</pallas_src>

<mosaic_0001>
module attributes {stable_mosaic.version = 11 : i64} {
  func.func @_stage1_kernel(%arg0: i32, %arg1: memref<8xi32, #tpu.memory_space<smem>>, %arg2: memref<1x16x64xf32, #tpu.memory_space<vmem>>, %arg3: memref<16x64xf32, #tpu.memory_space<vmem>>, %arg4: memref<9x64xf32, #tpu.memory_space<vmem>>, %arg5: memref<7x64xf32, #tpu.memory_space<vmem>>, %arg6: memref<25x64xf32, #tpu.memory_space<vmem>>, %arg7: memref<7x64xf32, #tpu.memory_space<vmem>>, %arg8: memref<9x64xf32, #tpu.memory_space<vmem>>, %arg9: memref<7x64xf32, #tpu.memory_space<vmem>>, %arg10: memref<25x64xf32, #tpu.memory_space<vmem>>, %arg11: memref<7x64xf32, #tpu.memory_space<vmem>>, %arg12: memref<1x16x64xbf16, #tpu.memory_space<vmem>>, %arg13: memref<1x16x64xbf16, #tpu.memory_space<vmem>>, %arg14: memref<1x16x64xbf16, #tpu.memory_space<vmem>>, %arg15: memref<1x16x64xbf16, #tpu.memory_space<vmem>>, %arg16: memref<1x16x64xbf16, #tpu.memory_space<vmem>>, %arg17: memref<1x16x64xbf16, #tpu.memory_space<vmem>>, %arg18: memref<1x12x64xf32, #tpu.memory_space<vmem>>, %arg19: memref<24x96xf32, #tpu.memory_space<vmem>>, %arg20: memref<18x72xf32, #tpu.memory_space<vmem>>, %arg21: memref<18x72xf32, #tpu.memory_space<vmem>>, %arg22: memref<16x70xf32, #tpu.memory_space<vmem>>) attributes {dimension_semantics = [#tpu.dimension_semantics<parallel>], iteration_bounds = array<i64: 2>, scalar_prefetch = 0 : i64, scratch_operands = 4 : i64, tpu.core_type = #tpu.core_type<tc>, window_params = [{transform_indices = @transform_0, window_bounds = array<i64: 8>}, {transform_indices = @transform_1, window_bounds = array<i64: 1, 16, 64>}, {pipeline_mode = #tpu.pipeline_mode<synchronous>, transform_indices = @transform_2, window_bounds = array<i64: 16, 64>}, {pipeline_mode = #tpu.pipeline_mode<synchronous>, transform_indices = @transform_3, window_bounds = array<i64: 9, 64>}, {pipeline_mode = #tpu.pipeline_mode<synchronous>, transform_indices = @transform_4, window_bounds = array<i64: 7, 64>}, {pipeline_mode = #tpu.pipeline_mode<synchronous>, transform_indices = @transform_5, window_bounds = array<i64: 25, 64>}, {pipeline_mode = #tpu.pipeline_mode<synchronous>, transform_indices = @transform_6, window_bounds = array<i64: 7, 64>}, {pipeline_mode = #tpu.pipeline_mode<synchronous>, transform_indices = @transform_7, window_bounds = array<i64: 9, 64>}, {pipeline_mode = #tpu.pipeline_mode<synchronous>, transform_indices = @transform_8, window_bounds = array<i64: 7, 64>}, {pipeline_mode = #tpu.pipeline_mode<synchronous>, transform_indices = @transform_9, window_bounds = array<i64: 25, 64>}, {pipeline_mode = #tpu.pipeline_mode<synchronous>, transform_indices = @transform_10, window_bounds = array<i64: 7, 64>}, {transform_indices = @transform_11, window_bounds = array<i64: 1, 16, 64>}, {transform_indices = @transform_12, window_bounds = array<i64: 1, 16, 64>}, {transform_indices = @transform_13, window_bounds = array<i64: 1, 16, 64>}, {transform_indices = @transform_14, window_bounds = array<i64: 1, 16, 64>}, {transform_indices = @transform_15, window_bounds = array<i64: 1, 16, 64>}, {transform_indices = @transform_16, window_bounds = array<i64: 1, 16, 64>}, {transform_indices = @transform_17, window_bounds = array<i64: 1, 12, 64>}]} {
    %c0 = arith.constant 0 : index
    %c0_0 = arith.constant 0 : index
    %c0_1 = arith.constant 0 : index
    %0 = vector.load %arg2[%c0, %c0_0, %c0_1] : memref<1x16x64xf32, #tpu.memory_space<vmem>>, vector<1x16x64xf32>
    %1 = vector.shape_cast %0 : vector<1x16x64xf32> to vector<16x64xf32>
    %c1 = arith.constant 1 : index
    %2 = memref.load %arg1[%c1] : memref<8xi32, #tpu.memory_space<smem>>
    %c0_i32 = arith.constant 0 : i32
    %3 = arith.cmpi ne, %2, %c0_i32 : i32
    %4 = arith.extui %3 : i1 to i32
    %c0_i32_2 = arith.constant 0 : i32
    %5 = arith.cmpi ne, %4, %c0_i32_2 : i32
    scf.if %5 {
      %cst = arith.constant 0xFF800000 : f32
      %60 = vector.broadcast %cst : f32 to vector<1x72xf32>
      %c0_37 = arith.constant 0 : index
      %c0_38 = arith.constant 0 : index
      %61 = vector.load %arg20[%c0_37, %c0_38] : memref<18x72xf32, #tpu.memory_space<vmem>>, vector<1x72xf32>
      tpu.vector_store %arg20[%c0_37, %c0_38], %60 {strides = array<i32>} : memref<18x72xf32, #tpu.memory_space<vmem>>, vector<1x72xf32>,
      %cst_39 = arith.constant 0xFF800000 : f32
      %62 = vector.broadcast %cst_39 : f32 to vector<1x72xf32>
      %c17 = arith.constant 17 : index
      %c0_40 = arith.constant 0 : index
      %63 = vector.load %arg20[%c17, %c0_40] : memref<18x72xf32, #tpu.memory_space<vmem>>, vector<1x72xf32>
      tpu.vector_store %arg20[%c17, %c0_40], %62 {strides = array<i32>} : memref<18x72xf32, #tpu.memory_space<vmem>>, vector<1x72xf32>,
      %cst_41 = arith.constant 0xFF800000 : f32
      %64 = vector.broadcast %cst_41 : f32 to vector<16x4xf32>
      %c1_42 = arith.constant 1 : index
      %c0_43 = arith.constant 0 : index
      %65 = vector.load %arg20[%c1_42, %c0_43] : memref<18x72xf32, #tpu.memory_space<vmem>>, vector<16x4xf32>
      tpu.vector_store %arg20[%c1_42, %c0_43], %64 {strides = array<i32>} : memref<18x72xf32, #tpu.memory_space<vmem>>, vector<16x4xf32>,
      %cst_44 = arith.constant 0xFF800000 : f32
      %66 = vector.broadcast %cst_44 : f32 to vector<16x4xf32>
      %c1_45 = arith.constant 1 : index
      %c68 = arith.constant 68 : index
      %67 = vector.load %arg20[%c1_45, %c68] : memref<18x72xf32, #tpu.memory_space<vmem>>, vector<16x4xf32>
      tpu.vector_store %arg20[%c1_45, %c68], %66 {strides = array<i32>} : memref<18x72xf32, #tpu.memory_space<vmem>>, vector<16x4xf32>,
      %c1_46 = arith.constant 1 : index
      %c4_47 = arith.constant 4 : index
      %68 = vector.load %arg20[%c1_46, %c4_47] : memref<18x72xf32, #tpu.memory_space<vmem>>, vector<16x64xf32>
      tpu.vector_store %arg20[%c1_46, %c4_47], %1 {strides = array<i32>} : memref<18x72xf32, #tpu.memory_space<vmem>>, vector<16x64xf32>,
      %c0_48 = arith.constant 0 : index
      %c0_49 = arith.constant 0 : index
      %69 = vector.load %arg20[%c0_48, %c0_49] : memref<18x72xf32, #tpu.memory_space<vmem>>, vector<16x64xf32>
      %c0_50 = arith.constant 0 : index
      %c4_51 = arith.constant 4 : index
      %70 = vector.load %arg20[%c0_50, %c4_51] : memref<18x72xf32, #tpu.memory_space<vmem>>, vector<16x64xf32>
      %71 = arith.maximumf %69, %70 : vector<16x64xf32>
      %c0_52 = arith.constant 0 : index
      %c8 = arith.constant 8 : index
      %72 = vector.load %arg20[%c0_52, %c8] : memref<18x72xf32, #tpu.memory_space<vmem>>, vector<16x64xf32>
      %73 = arith.maximumf %71, %72 : vector<16x64xf32>
      %c1_53 = arith.constant 1 : index
      %c0_54 = arith.constant 0 : index
      %74 = vector.load %arg20[%c1_53, %c0_54] : memref<18x72xf32, #tpu.memory_space<vmem>>, vector<16x64xf32>
      %75 = arith.maximumf %73, %74 : vector<16x64xf32>
      %c1_55 = arith.constant 1 : index
      %c4_56 = arith.constant 4 : index
      %76 = vector.load %arg20[%c1_55, %c4_56] : memref<18x72xf32, #tpu.memory_space<vmem>>, vector<16x64xf32>
      %77 = arith.maximumf %75, %76 : vector<16x64xf32>
      %c1_57 = arith.constant 1 : index
      %c8_58 = arith.constant 8 : index
      %78 = vector.load %arg20[%c1_57, %c8_58] : memref<18x72xf32, #tpu.memory_space<vmem>>, vector<16x64xf32>
      %79 = arith.maximumf %77, %78 : vector<16x64xf32>
      %c2_59 = arith.constant 2 : index
      %c0_60 = arith.constant 0 : index
      %80 = vector.load %arg20[%c2_59, %c0_60] : memref<18x72xf32, #tpu.memory_space<vmem>>, vector<16x64xf32>
      %81 = arith.maximumf %79, %80 : vector<16x64xf32>
      %c2_61 = arith.constant 2 : index
      %c4_62 = arith.constant 4 : index
      %82 = vector.load %arg20[%c2_61, %c4_62] : memref<18x72xf32, #tpu.memory_space<vmem>>, vector<16x64xf32>
      %83 = arith.maximumf %81, %82 : vector<16x64xf32>
      %c2_63 = arith.constant 2 : index
      %c8_64 = arith.constant 8 : index
      %84 = vector.load %arg20[%c2_63, %c8_64] : memref<18x72xf32, #tpu.memory_space<vmem>>, vector<16x64xf32>
      %85 = arith.maximumf %83, %84 : vector<16x64xf32>
      %cst_65 = arith.constant dense<0.000000e+00> : vector<64xf32>
      %86 = vector.multi_reduction <add>, %85, %cst_65 [0] : vector<16x64xf32> to vector<64xf32>
      %87 = vector.shape_cast %86 : vector<64xf32> to vector<1x64xf32>
      %88 = vector.shape_cast %87 : vector<1x64xf32> to vector<1x1x64xf32>
      %c0_66 = arith.constant 0 : index
      %c0_67 = arith.constant 0 : index
      %c0_68 = arith.constant 0 : index
      %89 = vector.load %arg18[%c0_66, %c0_67, %c0_68] : memref<1x12x64xf32, #tpu.memory_space<vmem>>, vector<1x1x64xf32>
      tpu.vector_store %arg18[%c0_66, %c0_67, %c0_68], %88 {strides = array<i32>} : memref<1x12x64xf32, #tpu.memory_space<vmem>>, vector<1x1x64xf32>,
      %90 = arith.mulf %85, %85 : vector<16x64xf32>
      %cst_69 = arith.constant dense<0.000000e+00> : vector<64xf32>
      %91 = vector.multi_reduction <add>, %90, %cst_69 [0] : vector<16x64xf32> to vector<64xf32>
      %92 = vector.shape_cast %91 : vector<64xf32> to vector<1x64xf32>
      %93 = vector.shape_cast %92 : vector<1x64xf32> to vector<1x1x64xf32>
      %c0_70 = arith.constant 0 : index
      %c1_71 = arith.constant 1 : index
      %c0_72 = arith.constant 0 : index
      %94 = vector.load %arg18[%c0_70, %c1_71, %c0_72] : memref<1x12x64xf32, #tpu.memory_space<vmem>>, vector<1x1x64xf32>
      tpu.vector_store %arg18[%c0_70, %c1_71, %c0_72], %93 {strides = array<i32>} : memref<1x12x64xf32, #tpu.memory_space<vmem>>, vector<1x1x64xf32>,
      %95 = arith.truncf %85 : vector<16x64xf32> to vector<16x64xbf16>
      %96 = vector.shape_cast %95 : vector<16x64xbf16> to vector<1x16x64xbf16>
      %c0_73 = arith.constant 0 : index
      %c0_74 = arith.constant 0 : index
      %c0_75 = arith.constant 0 : index
      %97 = vector.load %arg12[%c0_73, %c0_74, %c0_75] : memref<1x16x64xbf16, #tpu.memory_space<vmem>>, vector<1x16x64xbf16>
      tpu.vector_store %arg12[%c0_73, %c0_74, %c0_75], %96 {strides = array<i32>} : memref<1x16x64xbf16, #tpu.memory_space<vmem>>, vector<1x16x64xbf16>,
    } else {
    }
    %c1_3 = arith.constant 1 : index
    %6 = memref.load %arg1[%c1_3] : memref<8xi32, #tpu.memory_space<smem>>
    %c0_i32_4 = arith.constant 0 : i32
    %7 = arith.cmpi eq, %6, %c0_i32_4 : i32
    %8 = arith.extui %7 : i1 to i32
    %c0_i32_5 = arith.constant 0 : i32
    %9 = arith.cmpi ne, %8, %c0_i32_5 : i32
    scf.if %9 {
      %cst = arith.constant 0.000000e+00 : f32
      %60 = vector.broadcast %cst : f32 to vector<1x2x64xf32>
      %c0_37 = arith.constant 0 : index
      %c0_38 = arith.constant 0 : index
      %c0_39 = arith.constant 0 : index
      %61 = vector.load %arg18[%c0_37, %c0_38, %c0_39] : memref<1x12x64xf32, #tpu.memory_space<vmem>>, vector<1x2x64xf32>
      tpu.vector_store %arg18[%c0_37, %c0_38, %c0_39], %60 {strides = array<i32>} : memref<1x12x64xf32, #tpu.memory_space<vmem>>, vector<1x2x64xf32>,
      %cst_40 = arith.constant 0.000000e+00 : bf16
      %62 = vector.broadcast %cst_40 : bf16 to vector<1x16x64xbf16>
      %c0_41 = arith.constant 0 : index
      %c0_42 = arith.constant 0 : index
      %c0_43 = arith.constant 0 : index
      %63 = vector.load %arg12[%c0_41, %c0_42, %c0_43] : memref<1x16x64xbf16, #tpu.memory_space<vmem>>, vector<1x16x64xbf16>
      tpu.vector_store %arg12[%c0_41, %c0_42, %c0_43], %62 {strides = array<i32>} : memref<1x16x64xbf16, #tpu.memory_space<vmem>>, vector<1x16x64xbf16>,
    } else {
    }
    %c2 = arith.constant 2 : index
    %10 = memref.load %arg1[%c2] : memref<8xi32, #tpu.memory_space<smem>>
    %c0_i32_6 = arith.constant 0 : i32
    %11 = arith.cmpi ne, %10, %c0_i32_6 : i32
    %12 = arith.extui %11 : i1 to i32
    %c0_i32_7 = arith.constant 0 : i32
    %13 = arith.cmpi ne, %12, %c0_i32_7 : i32
    scf.if %13 {
      %cst = arith.constant 0.000000e+00 : f32
      %60 = vector.broadcast %cst : f32 to vector<1x72xf32>
      %c0_37 = arith.constant 0 : index
      %c0_38 = arith.constant 0 : index
      %61 = vector.load %arg21[%c0_37, %c0_38] : memref<18x72xf32, #tpu.memory_space<vmem>>, vector<1x72xf32>
      tpu.vector_store %arg21[%c0_37, %c0_38], %60 {strides = array<i32>} : memref<18x72xf32, #tpu.memory_space<vmem>>, vector<1x72xf32>,
      %cst_39 = arith.constant 0.000000e+00 : f32
      %62 = vector.broadcast %cst_39 : f32 to vector<1x72xf32>
      %c17 = arith.constant 17 : index
      %c0_40 = arith.constant 0 : index
      %63 = vector.load %arg21[%c17, %c0_40] : memref<18x72xf32, #tpu.memory_space<vmem>>, vector<1x72xf32>
      tpu.vector_store %arg21[%c17, %c0_40], %62 {strides = array<i32>} : memref<18x72xf32, #tpu.memory_space<vmem>>, vector<1x72xf32>,
      %cst_41 = arith.constant 0.000000e+00 : f32
      %64 = vector.broadcast %cst_41 : f32 to vector<16x4xf32>
      %c1_42 = arith.constant 1 : index
      %c0_43 = arith.constant 0 : index
      %65 = vector.load %arg21[%c1_42, %c0_43] : memref<18x72xf32, #tpu.memory_space<vmem>>, vector<16x4xf32>
      tpu.vector_store %arg21[%c1_42, %c0_43], %64 {strides = array<i32>} : memref<18x72xf32, #tpu.memory_space<vmem>>, vector<16x4xf32>,
      %cst_44 = arith.constant 0.000000e+00 : f32
      %66 = vector.broadcast %cst_44 : f32 to vector<16x4xf32>
      %c1_45 = arith.constant 1 : index
      %c68 = arith.constant 68 : index
      %67 = vector.load %arg21[%c1_45, %c68] : memref<18x72xf32, #tpu.memory_space<vmem>>, vector<16x4xf32>
      tpu.vector_store %arg21[%c1_45, %c68], %66 {strides = array<i32>} : memref<18x72xf32, #tpu.memory_space<vmem>>, vector<16x4xf32>,
      %c1_46 = arith.constant 1 : index
      %c4_47 = arith.constant 4 : index
      %68 = vector.load %arg21[%c1_46, %c4_47] : memref<18x72xf32, #tpu.memory_space<vmem>>, vector<16x64xf32>
      tpu.vector_store %arg21[%c1_46, %c4_47], %1 {strides = array<i32>} : memref<18x72xf32, #tpu.memory_space<vmem>>, vector<16x64xf32>,
      %c0_48 = arith.constant 0 : index
      %c0_49 = arith.constant 0 : index
      %69 = vector.load %arg21[%c0_48, %c0_49] : memref<18x72xf32, #tpu.memory_space<vmem>>, vector<16x64xf32>
      %c0_50 = arith.constant 0 : index
      %c4_51 = arith.constant 4 : index
      %70 = vector.load %arg21[%c0_50, %c4_51] : memref<18x72xf32, #tpu.memory_space<vmem>>, vector<16x64xf32>
      %71 = arith.addf %69, %70 : vector<16x64xf32>
      %c0_52 = arith.constant 0 : index
      %c8 = arith.constant 8 : index
      %72 = vector.load %arg21[%c0_52, %c8] : memref<18x72xf32, #tpu.memory_space<vmem>>, vector<16x64xf32>
      %73 = arith.addf %71, %72 : vector<16x64xf32>
      %c1_53 = arith.constant 1 : index
      %c0_54 = arith.constant 0 : index
      %74 = vector.load %arg21[%c1_53, %c0_54] : memref<18x72xf32, #tpu.memory_space<vmem>>, vector<16x64xf32>
      %75 = arith.addf %73, %74 : vector<16x64xf32>
      %c1_55 = arith.constant 1 : index
      %c4_56 = arith.constant 4 : index
      %76 = vector.load %arg21[%c1_55, %c4_56] : memref<18x72xf32, #tpu.memory_space<vmem>>, vector<16x64xf32>
      %77 = arith.addf %75, %76 : vector<16x64xf32>
      %c1_57 = arith.constant 1 : index
      %c8_58 = arith.constant 8 : index
      %78 = vector.load %arg21[%c1_57, %c8_58] : memref<18x72xf32, #tpu.memory_space<vmem>>, vector<16x64xf32>
      %79 = arith.addf %77, %78 : vector<16x64xf32>
      %c2_59 = arith.constant 2 : index
      %c0_60 = arith.constant 0 : index
      %80 = vector.load %arg21[%c2_59, %c0_60] : memref<18x72xf32, #tpu.memory_space<vmem>>, vector<16x64xf32>
      %81 = arith.addf %79, %80 : vector<16x64xf32>
      %c2_61 = arith.constant 2 : index
      %c4_62 = arith.constant 4 : index
      %82 = vector.load %arg21[%c2_61, %c4_62] : memref<18x72xf32, #tpu.memory_space<vmem>>, vector<16x64xf32>
      %83 = arith.addf %81, %82 : vector<16x64xf32>
      %c2_63 = arith.constant 2 : index
      %c8_64 = arith.constant 8 : index
      %84 = vector.load %arg21[%c2_63, %c8_64] : memref<18x72xf32, #tpu.memory_space<vmem>>, vector<16x64xf32>
      %85 = arith.addf %83, %84 : vector<16x64xf32>
      %c0_65 = arith.constant 0 : index
      %c0_66 = arith.constant 0 : index
      %86 = vector.load %arg3[%c0_65, %c0_66] : memref<16x64xf32, #tpu.memory_space<vmem>>, vector<16x64xf32>
      %87 = arith.mulf %85, %86 : vector<16x64xf32>
      %cst_67 = arith.constant dense<0.000000e+00> : vector<64xf32>
      %88 = vector.multi_reduction <add>, %87, %cst_67 [0] : vector<16x64xf32> to vector<64xf32>
      %89 = vector.shape_cast %88 : vector<64xf32> to vector<1x64xf32>
      %90 = vector.shape_cast %89 : vector<1x64xf32> to vector<1x1x64xf32>
      %c0_68 = arith.constant 0 : index
      %c2_69 = arith.constant 2 : index
      %c0_70 = arith.constant 0 : index
      %91 = vector.load %arg18[%c0_68, %c2_69, %c0_70] : memref<1x12x64xf32, #tpu.memory_space<vmem>>, vector<1x1x64xf32>
      tpu.vector_store %arg18[%c0_68, %c2_69, %c0_70], %90 {strides = array<i32>} : memref<1x12x64xf32, #tpu.memory_space<vmem>>, vector<1x1x64xf32>,
      %92 = arith.mulf %87, %87 : vector<16x64xf32>
      %cst_71 = arith.constant dense<0.000000e+00> : vector<64xf32>
      %93 = vector.multi_reduction <add>, %92, %cst_71 [0] : vector<16x64xf32> to vector<64xf32>
      %94 = vector.shape_cast %93 : vector<64xf32> to vector<1x64xf32>
      %95 = vector.shape_cast %94 : vector<1x64xf32> to vector<1x1x64xf32>
      %c0_72 = arith.constant 0 : index
      %c3 = arith.constant 3 : index
      %c0_73 = arith.constant 0 : index
      %96 = vector.load %arg18[%c0_72, %c3, %c0_73] : memref<1x12x64xf32, #tpu.memory_space<vmem>>, vector<1x1x64xf32>
      tpu.vector_store %arg18[%c0_72, %c3, %c0_73], %95 {strides = array<i32>} : memref<1x12x64xf32, #tpu.memory_space<vmem>>, vector<1x1x64xf32>,
      %97 = arith.truncf %87 : vector<16x64xf32> to vector<16x64xbf16>
      %98 = vector.shape_cast %97 : vector<16x64xbf16> to vector<1x16x64xbf16>
      %c0_74 = arith.constant 0 : index
      %c0_75 = arith.constant 0 : index
      %c0_76 = arith.constant 0 : index
      %99 = vector.load %arg13[%c0_74, %c0_75, %c0_76] : memref<1x16x64xbf16, #tpu.memory_space<vmem>>, vector<1x16x64xbf16>
      tpu.vector_store %arg13[%c0_74, %c0_75, %c0_76], %98 {strides = array<i32>} : memref<1x16x64xbf16, #tpu.memory_space<vmem>>, vector<1x16x64xbf16>,
    } else {
    }
    %c2_8 = arith.constant 2 : index
    %14 = memref.load %arg1[%c2_8] : memref<8xi32, #tpu.memory_space<smem>>
    %c0_i32_9 = arith.constant 0 : i32
    %15 = arith.cmpi eq, %14, %c0_i32_9 : i32
    %16 = arith.extui %15 : i1 to i32
    %c0_i32_10 = arith.constant 0 : i32
    %17 = arith.cmpi ne, %16, %c0_i32_10 : i32
    scf.if %17 {
      %cst = arith.constant 0.000000e+00 : f32
      %60 = vector.broadcast %cst : f32 to vector<1x2x64xf32>
      %c0_37 = arith.constant 0 : index
      %c2_38 = arith.constant 2 : index
      %c0_39 = arith.constant 0 : index
      %61 = vector.load %arg18[%c0_37, %c2_38, %c0_39] : memref<1x12x64xf32, #tpu.memory_space<vmem>>, vector<1x2x64xf32>
      tpu.vector_store %arg18[%c0_37, %c2_38, %c0_39], %60 {strides = array<i32>} : memref<1x12x64xf32, #tpu.memory_space<vmem>>, vector<1x2x64xf32>,
      %cst_40 = arith.constant 0.000000e+00 : bf16
      %62 = vector.broadcast %cst_40 : bf16 to vector<1x16x64xbf16>
      %c0_41 = arith.constant 0 : index
      %c0_42 = arith.constant 0 : index
      %c0_43 = arith.constant 0 : index
      %63 = vector.load %arg13[%c0_41, %c0_42, %c0_43] : memref<1x16x64xbf16, #tpu.memory_space<vmem>>, vector<1x16x64xbf16>
      tpu.vector_store %arg13[%c0_41, %c0_42, %c0_43], %62 {strides = array<i32>} : memref<1x16x64xbf16, #tpu.memory_space<vmem>>, vector<1x16x64xbf16>,
    } else {
    }
    %c4 = arith.constant 4 : index
    %18 = memref.load %arg1[%c4] : memref<8xi32, #tpu.memory_space<smem>>
    %c5 = arith.constant 5 : index
    %19 = memref.load %arg1[%c5] : memref<8xi32, #tpu.memory_space<smem>>
    %20 = arith.addi %18, %19 : i32
    %c6 = arith.constant 6 : index
    %21 = memref.load %arg1[%c6] : memref<8xi32, #tpu.memory_space<smem>>
    %22 = arith.addi %20, %21 : i32
    %c7 = arith.constant 7 : index
    %23 = memref.load %arg1[%c7] : memref<8xi32, #tpu.memory_space<smem>>
    %24 = arith.addi %22, %23 : i32
    %c0_i32_11 = arith.constant 0 : i32
    %25 = arith.cmpi sgt, %24, %c0_i32_11 : i32
    %26 = arith.extui %25 : i1 to i32
    %c0_i32_12 = arith.constant 0 : i32
    %27 = arith.cmpi ne, %26, %c0_i32_12 : i32
    scf.if %27 {
      %cst = arith.constant 0.000000e+00 : f32
      %60 = vector.broadcast %cst : f32 to vector<4x96xf32>
      %c0_37 = arith.constant 0 : index
      %c0_38 = arith.constant 0 : index
      %61 = vector.load %arg19[%c0_37, %c0_38] : memref<24x96xf32, #tpu.memory_space<vmem>>, vector<4x96xf32>
      tpu.vector_store %arg19[%c0_37, %c0_38], %60 {strides = array<i32>} : memref<24x96xf32, #tpu.memory_space<vmem>>, vector<4x96xf32>,
      %cst_39 = arith.constant 0.000000e+00 : f32
      %62 = vector.broadcast %cst_39 : f32 to vector<4x96xf32>
      %c20 = arith.constant 20 : index
      %c0_40 = arith.constant 0 : index
      %63 = vector.load %arg19[%c20, %c0_40] : memref<24x96xf32, #tpu.memory_space<vmem>>, vector<4x96xf32>
      tpu.vector_store %arg19[%c20, %c0_40], %62 {strides = array<i32>} : memref<24x96xf32, #tpu.memory_space<vmem>>, vector<4x96xf32>,
      %cst_41 = arith.constant 0.000000e+00 : f32
      %64 = vector.broadcast %cst_41 : f32 to vector<16x16xf32>
      %c4_42 = arith.constant 4 : index
      %c0_43 = arith.constant 0 : index
      %65 = vector.load %arg19[%c4_42, %c0_43] : memref<24x96xf32, #tpu.memory_space<vmem>>, vector<16x16xf32>
      tpu.vector_store %arg19[%c4_42, %c0_43], %64 {strides = array<i32>} : memref<24x96xf32, #tpu.memory_space<vmem>>, vector<16x16xf32>,
      %cst_44 = arith.constant 0.000000e+00 : f32
      %66 = vector.broadcast %cst_44 : f32 to vector<16x16xf32>
      %c4_45 = arith.constant 4 : index
      %c80 = arith.constant 80 : index
      %67 = vector.load %arg19[%c4_45, %c80] : memref<24x96xf32, #tpu.memory_space<vmem>>, vector<16x16xf32>
      tpu.vector_store %arg19[%c4_45, %c80], %66 {strides = array<i32>} : memref<24x96xf32, #tpu.memory_space<vmem>>, vector<16x16xf32>,
      %cst_46 = arith.constant 0.000000e+00 : f32
      %68 = vector.broadcast %cst_46 : f32 to vector<16x64xf32>
      %69 = arith.maximumf %1, %68 : vector<16x64xf32>
      %c4_47 = arith.constant 4 : index
      %c16 = arith.constant 16 : index
      %70 = vector.load %arg19[%c4_47, %c16] : memref<24x96xf32, #tpu.memory_space<vmem>>, vector<16x64xf32>
      tpu.vector_store %arg19[%c4_47, %c16], %69 {strides = array<i32>} : memref<24x96xf32, #tpu.memory_space<vmem>>, vector<16x64xf32>,
    } else {
    }
    %c4_13 = arith.constant 4 : index
    %28 = memref.load %arg1[%c4_13] : memref<8xi32, #tpu.memory_space<smem>>
    %c0_i32_14 = arith.constant 0 : i32
    %29 = arith.cmpi ne, %28, %c0_i32_14 : i32
    %30 = arith.extui %29 : i1 to i32
    %c0_i32_15 = arith.constant 0 : i32
    %31 = arith.cmpi ne, %30, %c0_i32_15 : i32
    scf.if %31 {
      %c3 = arith.constant 3 : index
      %c12 = arith.constant 12 : index
      %60 = vector.load %arg19[%c3, %c12] : memref<24x96xf32, #tpu.memory_space<vmem>>, vector<16x64xf32>
      %c0_37 = arith.constant 0 : index
      %c0_38 = arith.constant 0 : index
      %61 = vector.load %arg4[%c0_37, %c0_38] : memref<9x64xf32, #tpu.memory_space<vmem>>, vector<1x64xf32>
      %62 = vector.broadcast %61 : vector<1x64xf32> to vector<16x64xf32>
      %63 = arith.mulf %60, %62 : vector<16x64xf32>
      %c3_39 = arith.constant 3 : index
      %c16 = arith.constant 16 : index
      %64 = vector.load %arg19[%c3_39, %c16] : memref<24x96xf32, #tpu.memory_space<vmem>>, vector<16x64xf32>
      %c1_40 = arith.constant 1 : index
      %c0_41 = arith.constant 0 : index
      %65 = vector.load %arg4[%c1_40, %c0_41] : memref<9x64xf32, #tpu.memory_space<vmem>>, vector<1x64xf32>
      %66 = vector.broadcast %65 : vector<1x64xf32> to vector<16x64xf32>
      %67 = arith.mulf %64, %66 : vector<16x64xf32>
      %68 = arith.addf %63, %67 : vector<16x64xf32>
      %c3_42 = arith.constant 3 : index
      %c20 = arith.constant 20 : index
      %69 = vector.load %arg19[%c3_42, %c20] : memref<24x96xf32, #tpu.memory_space<vmem>>, vector<16x64xf32>
      %c2_43 = arith.constant 2 : index
      %c0_44 = arith.constant 0 : index
      %70 = vector.load %arg4[%c2_43, %c0_44] : memref<9x64xf32, #tpu.memory_space<vmem>>, vector<1x64xf32>
      %71 = vector.broadcast %70 : vector<1x64xf32> to vector<16x64xf32>
      %72 = arith.mulf %69, %71 : vector<16x64xf32>
      %73 = arith.addf %68, %72 : vector<16x64xf32>
      %c4_45 = arith.constant 4 : index
      %c12_46 = arith.constant 12 : index
      %74 = vector.load %arg19[%c4_45, %c12_46] : memref<24x96xf32, #tpu.memory_space<vmem>>, vector<16x64xf32>
      %c3_47 = arith.constant 3 : index
      %c0_48 = arith.constant 0 : index
      %75 = vector.load %arg4[%c3_47, %c0_48] : memref<9x64xf32, #tpu.memory_space<vmem>>, vector<1x64xf32>
      %76 = vector.broadcast %75 : vector<1x64xf32> to vector<16x64xf32>
      %77 = arith.mulf %74, %76 : vector<16x64xf32>
      %78 = arith.addf %73, %77 : vector<16x64xf32>
      %c4_49 = arith.constant 4 : index
      %c16_50 = arith.constant 16 : index
      %79 = vector.load %arg19[%c4_49, %c16_50] : memref<24x96xf32, #tpu.memory_space<vmem>>, vector<16x64xf32>
      %c4_51 = arith.constant 4 : index
      %c0_52 = arith.constant 0 : index
      %80 = vector.load %arg4[%c4_51, %c0_52] : memref<9x64xf32, #tpu.memory_space<vmem>>, vector<1x64xf32>
      %81 = vector.broadcast %80 : vector<1x64xf32> to vector<16x64xf32>
      %82 = arith.mulf %79, %81 : vector<16x64xf32>
      %83 = arith.addf %78, %82 : vector<16x64xf32>
      %c4_53 = arith.constant 4 : index
      %c20_54 = arith.constant 20 : index
      %84 = vector.load %arg19[%c4_53, %c20_54] : memref<24x96xf32, #tpu.memory_space<vmem>>, vector<16x64xf32>
      %c5_55 = arith.constant 5 : index
      %c0_56 = arith.constant 0 : index
      %85 = vector.load %arg4[%c5_55, %c0_56] : memref<9x64xf32, #tpu.memory_space<vmem>>, vector<1x64xf32>
      %86 = vector.broadcast %85 : vector<1x64xf32> to vector<16x64xf32>
      %87 = arith.mulf %84, %86 : vector<16x64xf32>
      %88 = arith.addf %83, %87 : vector<16x64xf32>
      %c5_57 = arith.constant 5 : index
      %c12_58 = arith.constant 12 : index
      %89 = vector.load %arg19[%c5_57, %c12_58] : memref<24x96xf32, #tpu.memory_space<vmem>>, vector<16x64xf32>
      %c6_59 = arith.constant 6 : index
      %c0_60 = arith.constant 0 : index
      %90 = vector.load %arg4[%c6_59, %c0_60] : memref<9x64xf32, #tpu.memory_space<vmem>>, vector<1x64xf32>
      %91 = vector.broadcast %90 : vector<1x64xf32> to vector<16x64xf32>
      %92 = arith.mulf %89, %91 : vector<16x64xf32>
      %93 = arith.addf %88, %92 : vector<16x64xf32>
      %c5_61 = arith.constant 5 : index
      %c16_62 = arith.constant 16 : index
      %94 = vector.load %arg19[%c5_61, %c16_62] : memref<24x96xf32, #tpu.memory_space<vmem>>, vector<16x64xf32>
      %c7_63 = arith.constant 7 : index
      %c0_64 = arith.constant 0 : index
      %95 = vector.load %arg4[%c7_63, %c0_64] : memref<9x64xf32, #tpu.memory_space<vmem>>, vector<1x64xf32>
      %96 = vector.broadcast %95 : vector<1x64xf32> to vector<16x64xf32>
      %97 = arith.mulf %94, %96 : vector<16x64xf32>
      %98 = arith.addf %93, %97 : vector<16x64xf32>
      %c5_65 = arith.constant 5 : index
      %c20_66 = arith.constant 20 : index
      %99 = vector.load %arg19[%c5_65, %c20_66] : memref<24x96xf32, #tpu.memory_space<vmem>>, vector<16x64xf32>
      %c8 = arith.constant 8 : index
      %c0_67 = arith.constant 0 : index
      %100 = vector.load %arg4[%c8, %c0_67] : memref<9x64xf32, #tpu.memory_space<vmem>>, vector<1x64xf32>
      %101 = vector.broadcast %100 : vector<1x64xf32> to vector<16x64xf32>
      %102 = arith.mulf %99, %101 : vector<16x64xf32>
      %103 = arith.addf %98, %102 : vector<16x64xf32>
      %cst = arith.constant 0.000000e+00 : f32
      %104 = vector.broadcast %cst : f32 to vector<16x3xf32>
      %c0_68 = arith.constant 0 : index
      %c0_69 = arith.constant 0 : index
      %105 = vector.load %arg22[%c0_68, %c0_69] : memref<16x70xf32, #tpu.memory_space<vmem>>, vector<16x3xf32>
      tpu.vector_store %arg22[%c0_68, %c0_69], %104 {strides = array<i32>} : memref<16x70xf32, #tpu.memory_space<vmem>>, vector<16x3xf32>,
      %cst_70 = arith.constant 0.000000e+00 : f32
      %106 = vector.broadcast %cst_70 : f32 to vector<16x3xf32>
      %c0_71 = arith.constant 0 : index
      %c67 = arith.constant 67 : index
      %107 = vector.load %arg22[%c0_71, %c67] : memref<16x70xf32, #tpu.memory_space<vmem>>, vector<16x3xf32>
      tpu.vector_store %arg22[%c0_71, %c67], %106 {strides = array<i32>} : memref<16x70xf32, #tpu.memory_space<vmem>>, vector<16x3xf32>,
      %c0_72 = arith.constant 0 : index
      %c3_73 = arith.constant 3 : index
      %108 = vector.load %arg22[%c0_72, %c3_73] : memref<16x70xf32, #tpu.memory_space<vmem>>, vector<16x64xf32>
      tpu.vector_store %arg22[%c0_72, %c3_73], %103 {strides = array<i32>} : memref<16x70xf32, #tpu.memory_space<vmem>>, vector<16x64xf32>,
      %c0_74 = arith.constant 0 : index
      %c0_75 = arith.constant 0 : index
      %109 = vector.load %arg22[%c0_74, %c0_75] : memref<16x70xf32, #tpu.memory_space<vmem>>, vector<16x64xf32>
      %c0_76 = arith.constant 0 : index
      %c0_77 = arith.constant 0 : index
      %110 = vector.load %arg5[%c0_76, %c0_77] : memref<7x64xf32, #tpu.memory_space<vmem>>, vector<1x64xf32>
      %111 = vector.broadcast %110 : vector<1x64xf32> to vector<16x64xf32>
      %112 = arith.mulf %109, %111 : vector<16x64xf32>
      %c0_78 = arith.constant 0 : index
      %c1_79 = arith.constant 1 : index
      %113 = vector.load %arg22[%c0_78, %c1_79] : memref<16x70xf32, #tpu.memory_space<vmem>>, vector<16x64xf32>
      %c1_80 = arith.constant 1 : index
      %c0_81 = arith.constant 0 : index
      %114 = vector.load %arg5[%c1_80, %c0_81] : memref<7x64xf32, #tpu.memory_space<vmem>>, vector<1x64xf32>
      %115 = vector.broadcast %114 : vector<1x64xf32> to vector<16x64xf32>
      %116 = arith.mulf %113, %115 : vector<16x64xf32>
      %117 = arith.addf %112, %116 : vector<16x64xf32>
      %c0_82 = arith.constant 0 : index
      %c2_83 = arith.constant 2 : index
      %118 = vector.load %arg22[%c0_82, %c2_83] : memref<16x70xf32, #tpu.memory_space<vmem>>, vector<16x64xf32>
      %c2_84 = arith.constant 2 : index
      %c0_85 = arith.constant 0 : index
      %119 = vector.load %arg5[%c2_84, %c0_85] : memref<7x64xf32, #tpu.memory_space<vmem>>, vector<1x64xf32>
      %120 = vector.broadcast %119 : vector<1x64xf32> to vector<16x64xf32>
      %121 = arith.mulf %118, %120 : vector<16x64xf32>
      %122 = arith.addf %117, %121 : vector<16x64xf32>
      %c0_86 = arith.constant 0 : index
      %c3_87 = arith.constant 3 : index
      %123 = vector.load %arg22[%c0_86, %c3_87] : memref<16x70xf32, #tpu.memory_space<vmem>>, vector<16x64xf32>
      %c3_88 = arith.constant 3 : index
      %c0_89 = arith.constant 0 : index
      %124 = vector.load %arg5[%c3_88, %c0_89] : memref<7x64xf32, #tpu.memory_space<vmem>>, vector<1x64xf32>
      %125 = vector.broadcast %124 : vector<1x64xf32> to vector<16x64xf32>
      %126 = arith.mulf %123, %125 : vector<16x64xf32>
      %127 = arith.addf %122, %126 : vector<16x64xf32>
      %c0_90 = arith.constant 0 : index
      %c4_91 = arith.constant 4 : index
      %128 = vector.load %arg22[%c0_90, %c4_91] : memref<16x70xf32, #tpu.memory_space<vmem>>, vector<16x64xf32>
      %c4_92 = arith.constant 4 : index
      %c0_93 = arith.constant 0 : index
      %129 = vector.load %arg5[%c4_92, %c0_93] : memref<7x64xf32, #tpu.memory_space<vmem>>, vector<1x64xf32>
      %130 = vector.broadcast %129 : vector<1x64xf32> to vector<16x64xf32>
      %131 = arith.mulf %128, %130 : vector<16x64xf32>
      %132 = arith.addf %127, %131 : vector<16x64xf32>
      %c0_94 = arith.constant 0 : index
      %c5_95 = arith.constant 5 : index
      %133 = vector.load %arg22[%c0_94, %c5_95] : memref<16x70xf32, #tpu.memory_space<vmem>>, vector<16x64xf32>
      %c5_96 = arith.constant 5 : index
      %c0_97 = arith.constant 0 : index
      %134 = vector.load %arg5[%c5_96, %c0_97] : memref<7x64xf32, #tpu.memory_space<vmem>>, vector<1x64xf32>
      %135 = vector.broadcast %134 : vector<1x64xf32> to vector<16x64xf32>
      %136 = arith.mulf %133, %135 : vector<16x64xf32>
      %137 = arith.addf %132, %136 : vector<16x64xf32>
      %c0_98 = arith.constant 0 : index
      %c6_99 = arith.constant 6 : index
      %138 = vector.load %arg22[%c0_98, %c6_99] : memref<16x70xf32, #tpu.memory_space<vmem>>, vector<16x64xf32>
      %c6_100 = arith.constant 6 : index
      %c0_101 = arith.constant 0 : index
      %139 = vector.load %arg5[%c6_100, %c0_101] : memref<7x64xf32, #tpu.memory_space<vmem>>, vector<1x64xf32>
      %140 = vector.broadcast %139 : vector<1x64xf32> to vector<16x64xf32>
      %141 = arith.mulf %138, %140 : vector<16x64xf32>
      %142 = arith.addf %137, %141 : vector<16x64xf32>
      %cst_102 = arith.constant dense<0.000000e+00> : vector<64xf32>
      %143 = vector.multi_reduction <add>, %142, %cst_102 [0] : vector<16x64xf32> to vector<64xf32>
      %144 = vector.shape_cast %143 : vector<64xf32> to vector<1x64xf32>
      %145 = vector.shape_cast %144 : vector<1x64xf32> to vector<1x1x64xf32>
      %c0_103 = arith.constant 0 : index
      %c4_104 = arith.constant 4 : index
      %c0_105 = arith.constant 0 : index
      %146 = vector.load %arg18[%c0_103, %c4_104, %c0_105] : memref<1x12x64xf32, #tpu.memory_space<vmem>>, vector<1x1x64xf32>
      tpu.vector_store %arg18[%c0_103, %c4_104, %c0_105], %145 {strides = array<i32>} : memref<1x12x64xf32, #tpu.memory_space<vmem>>, vector<1x1x64xf32>,
      %147 = arith.mulf %142, %142 : vector<16x64xf32>
      %cst_106 = arith.constant dense<0.000000e+00> : vector<64xf32>
      %148 = vector.multi_reduction <add>, %147, %cst_106 [0] : vector<16x64xf32> to vector<64xf32>
      %149 = vector.shape_cast %148 : vector<64xf32> to vector<1x64xf32>
      %150 = vector.shape_cast %149 : vector<1x64xf32> to vector<1x1x64xf32>
      %c0_107 = arith.constant 0 : index
      %c5_108 = arith.constant 5 : index
      %c0_109 = arith.constant 0 : index
      %151 = vector.load %arg18[%c0_107, %c5_108, %c0_109] : memref<1x12x64xf32, #tpu.memory_space<vmem>>, vector<1x1x64xf32>
      tpu.vector_store %arg18[%c0_107, %c5_108, %c0_109], %150 {strides = array<i32>} : memref<1x12x64xf32, #tpu.memory_space<vmem>>, vector<1x1x64xf32>,
      %152 = arith.truncf %142 : vector<16x64xf32> to vector<16x64xbf16>
      %153 = vector.shape_cast %152 : vector<16x64xbf16> to vector<1x16x64xbf16>
      %c0_110 = arith.constant 0 : index
      %c0_111 = arith.constant 0 : index
      %c0_112 = arith.constant 0 : index
      %154 = vector.load %arg14[%c0_110, %c0_111, %c0_112] : memref<1x16x64xbf16, #tpu.memory_space<vmem>>, vector<1x16x64xbf16>
      tpu.vector_store %arg14[%c0_110, %c0_111, %c0_112], %153 {strides = array<i32>} : memref<1x16x64xbf16, #tpu.memory_space<vmem>>, vector<1x16x64xbf16>,
    } else {
    }
    %c4_16 = arith.constant 4 : index
    %32 = memref.load %arg1[%c4_16] : memref<8xi32, #tpu.memory_space<smem>>
    %c0_i32_17 = arith.constant 0 : i32
    %33 = arith.cmpi eq, %32, %c0_i32_17 : i32
    %34 = arith.extui %33 : i1 to i32
    %c0_i32_18 = arith.constant 0 : i32
    %35 = arith.cmpi ne, %34, %c0_i32_18 : i32
    scf.if %35 {
      %cst = arith.constant 0.000000e+00 : f32
      %60 = vector.broadcast %cst : f32 to vector<1x2x64xf32>
      %c0_37 = arith.constant 0 : index
      %c4_38 = arith.constant 4 : index
      %c0_39 = arith.constant 0 : index
      %61 = vector.load %arg18[%c0_37, %c4_38, %c0_39] : memref<1x12x64xf32, #tpu.memory_space<vmem>>, vector<1x2x64xf32>
      tpu.vector_store %arg18[%c0_37, %c4_38, %c0_39], %60 {strides = array<i32>} : memref<1x12x64xf32, #tpu.memory_space<vmem>>, vector<1x2x64xf32>,
      %cst_40 = arith.constant 0.000000e+00 : bf16
      %62 = vector.broadcast %cst_40 : bf16 to vector<1x16x64xbf16>
      %c0_41 = arith.constant 0 : index
      %c0_42 = arith.constant 0 : index
      %c0_43 = arith.constant 0 : index
      %63 = vector.load %arg14[%c0_41, %c0_42, %c0_43] : memref<1x16x64xbf16, #tpu.memory_space<vmem>>, vector<1x16x64xbf16>
      tpu.vector_store %arg14[%c0_41, %c0_42, %c0_43], %62 {strides = array<i32>} : memref<1x16x64xbf16, #tpu.memory_space<vmem>>, vector<1x16x64xbf16>,
    } else {
    }
    %c5_19 = arith.constant 5 : index
    %36 = memref.load %arg1[%c5_19] : memref<8xi32, #tpu.memory_space<smem>>
    %c0_i32_20 = arith.constant 0 : i32
    %37 = arith.cmpi ne, %36, %c0_i32_20 : i32
    %38 = arith.extui %37 : i1 to i32
    %c0_i32_21 = arith.constant 0 : i32
    %39 = arith.cmpi ne, %38, %c0_i32_21 : i32
    scf.if %39 {
      %c2_37 = arith.constant 2 : index
      %c8 = arith.constant 8 : index
      %60 = vector.load %arg19[%c2_37, %c8] : memref<24x96xf32, #tpu.memory_space<vmem>>, vector<16x64xf32>
      %c0_38 = arith.constant 0 : index
      %c0_39 = arith.constant 0 : index
      %61 = vector.load %arg6[%c0_38, %c0_39] : memref<25x64xf32, #tpu.memory_space<vmem>>, vector<1x64xf32>
      %62 = vector.broadcast %61 : vector<1x64xf32> to vector<16x64xf32>
      %63 = arith.mulf %60, %62 : vector<16x64xf32>
      %c2_40 = arith.constant 2 : index
      %c12 = arith.constant 12 : index
      %64 = vector.load %arg19[%c2_40, %c12] : memref<24x96xf32, #tpu.memory_space<vmem>>, vector<16x64xf32>
      %c1_41 = arith.constant 1 : index
      %c0_42 = arith.constant 0 : index
      %65 = vector.load %arg6[%c1_41, %c0_42] : memref<25x64xf32, #tpu.memory_space<vmem>>, vector<1x64xf32>
      %66 = vector.broadcast %65 : vector<1x64xf32> to vector<16x64xf32>
      %67 = arith.mulf %64, %66 : vector<16x64xf32>
      %68 = arith.addf %63, %67 : vector<16x64xf32>
      %c2_43 = arith.constant 2 : index
      %c16 = arith.constant 16 : index
      %69 = vector.load %arg19[%c2_43, %c16] : memref<24x96xf32, #tpu.memory_space<vmem>>, vector<16x64xf32>
      %c2_44 = arith.constant 2 : index
      %c0_45 = arith.constant 0 : index
      %70 = vector.load %arg6[%c2_44, %c0_45] : memref<25x64xf32, #tpu.memory_space<vmem>>, vector<1x64xf32>
      %71 = vector.broadcast %70 : vector<1x64xf32> to vector<16x64xf32>
      %72 = arith.mulf %69, %71 : vector<16x64xf32>
      %73 = arith.addf %68, %72 : vector<16x64xf32>
      %c2_46 = arith.constant 2 : index
      %c20 = arith.constant 20 : index
      %74 = vector.load %arg19[%c2_46, %c20] : memref<24x96xf32, #tpu.memory_space<vmem>>, vector<16x64xf32>
      %c3 = arith.constant 3 : index
      %c0_47 = arith.constant 0 : index
      %75 = vector.load %arg6[%c3, %c0_47] : memref<25x64xf32, #tpu.memory_space<vmem>>, vector<1x64xf32>
      %76 = vector.broadcast %75 : vector<1x64xf32> to vector<16x64xf32>
      %77 = arith.mulf %74, %76 : vector<16x64xf32>
      %78 = arith.addf %73, %77 : vector<16x64xf32>
      %c2_48 = arith.constant 2 : index
      %c24 = arith.constant 24 : index
      %79 = vector.load %arg19[%c2_48, %c24] : memref<24x96xf32, #tpu.memory_space<vmem>>, vector<16x64xf32>
      %c4_49 = arith.constant 4 : index
      %c0_50 = arith.constant 0 : index
      %80 = vector.load %arg6[%c4_49, %c0_50] : memref<25x64xf32, #tpu.memory_space<vmem>>, vector<1x64xf32>
      %81 = vector.broadcast %80 : vector<1x64xf32> to vector<16x64xf32>
      %82 = arith.mulf %79, %81 : vector<16x64xf32>
      %83 = arith.addf %78, %82 : vector<16x64xf32>
      %c3_51 = arith.constant 3 : index
      %c8_52 = arith.constant 8 : index
      %84 = vector.load %arg19[%c3_51, %c8_52] : memref<24x96xf32, #tpu.memory_space<vmem>>, vector<16x64xf32>
      %c5_53 = arith.constant 5 : index
      %c0_54 = arith.constant 0 : index
      %85 = vector.load %arg6[%c5_53, %c0_54] : memref<25x64xf32, #tpu.memory_space<vmem>>, vector<1x64xf32>
      %86 = vector.broadcast %85 : vector<1x64xf32> to vector<16x64xf32>
      %87 = arith.mulf %84, %86 : vector<16x64xf32>
      %88 = arith.addf %83, %87 : vector<16x64xf32>
      %c3_55 = arith.constant 3 : index
      %c12_56 = arith.constant 12 : index
      %89 = vector.load %arg19[%c3_55, %c12_56] : memref<24x96xf32, #tpu.memory_space<vmem>>, vector<16x64xf32>
      %c6_57 = arith.constant 6 : index
      %c0_58 = arith.constant 0 : index
      %90 = vector.load %arg6[%c6_57, %c0_58] : memref<25x64xf32, #tpu.memory_space<vmem>>, vector<1x64xf32>
      %91 = vector.broadcast %90 : vector<1x64xf32> to vector<16x64xf32>
      %92 = arith.mulf %89, %91 : vector<16x64xf32>
      %93 = arith.addf %88, %92 : vector<16x64xf32>
      %c3_59 = arith.constant 3 : index
      %c16_60 = arith.constant 16 : index
      %94 = vector.load %arg19[%c3_59, %c16_60] : memref<24x96xf32, #tpu.memory_space<vmem>>, vector<16x64xf32>
      %c7_61 = arith.constant 7 : index
      %c0_62 = arith.constant 0 : index
      %95 = vector.load %arg6[%c7_61, %c0_62] : memref<25x64xf32, #tpu.memory_space<vmem>>, vector<1x64xf32>
      %96 = vector.broadcast %95 : vector<1x64xf32> to vector<16x64xf32>
      %97 = arith.mulf %94, %96 : vector<16x64xf32>
      %98 = arith.addf %93, %97 : vector<16x64xf32>
      %c3_63 = arith.constant 3 : index
      %c20_64 = arith.constant 20 : index
      %99 = vector.load %arg19[%c3_63, %c20_64] : memref<24x96xf32, #tpu.memory_space<vmem>>, vector<16x64xf32>
      %c8_65 = arith.constant 8 : index
      %c0_66 = arith.constant 0 : index
      %100 = vector.load %arg6[%c8_65, %c0_66] : memref<25x64xf32, #tpu.memory_space<vmem>>, vector<1x64xf32>
      %101 = vector.broadcast %100 : vector<1x64xf32> to vector<16x64xf32>
      %102 = arith.mulf %99, %101 : vector<16x64xf32>
      %103 = arith.addf %98, %102 : vector<16x64xf32>
      %c3_67 = arith.constant 3 : index
      %c24_68 = arith.constant 24 : index
      %104 = vector.load %arg19[%c3_67, %c24_68] : memref<24x96xf32, #tpu.memory_space<vmem>>, vector<16x64xf32>
      %c9 = arith.constant 9 : index
      %c0_69 = arith.constant 0 : index
      %105 = vector.load %arg6[%c9, %c0_69] : memref<25x64xf32, #tpu.memory_space<vmem>>, vector<1x64xf32>
      %106 = vector.broadcast %105 : vector<1x64xf32> to vector<16x64xf32>
      %107 = arith.mulf %104, %106 : vector<16x64xf32>
      %108 = arith.addf %103, %107 : vector<16x64xf32>
      %c4_70 = arith.constant 4 : index
      %c8_71 = arith.constant 8 : index
      %109 = vector.load %arg19[%c4_70, %c8_71] : memref<24x96xf32, #tpu.memory_space<vmem>>, vector<16x64xf32>
      %c10 = arith.constant 10 : index
      %c0_72 = arith.constant 0 : index
      %110 = vector.load %arg6[%c10, %c0_72] : memref<25x64xf32, #tpu.memory_space<vmem>>, vector<1x64xf32>
      %111 = vector.broadcast %110 : vector<1x64xf32> to vector<16x64xf32>
      %112 = arith.mulf %109, %111 : vector<16x64xf32>
      %113 = arith.addf %108, %112 : vector<16x64xf32>
      %c4_73 = arith.constant 4 : index
      %c12_74 = arith.constant 12 : index
      %114 = vector.load %arg19[%c4_73, %c12_74] : memref<24x96xf32, #tpu.memory_space<vmem>>, vector<16x64xf32>
      %c11 = arith.constant 11 : index
      %c0_75 = arith.constant 0 : index
      %115 = vector.load %arg6[%c11, %c0_75] : memref<25x64xf32, #tpu.memory_space<vmem>>, vector<1x64xf32>
      %116 = vector.broadcast %115 : vector<1x64xf32> to vector<16x64xf32>
      %117 = arith.mulf %114, %116 : vector<16x64xf32>
      %118 = arith.addf %113, %117 : vector<16x64xf32>
      %c4_76 = arith.constant 4 : index
      %c16_77 = arith.constant 16 : index
      %119 = vector.load %arg19[%c4_76, %c16_77] : memref<24x96xf32, #tpu.memory_space<vmem>>, vector<16x64xf32>
      %c12_78 = arith.constant 12 : index
      %c0_79 = arith.constant 0 : index
      %120 = vector.load %arg6[%c12_78, %c0_79] : memref<25x64xf32, #tpu.memory_space<vmem>>, vector<1x64xf32>
      %121 = vector.broadcast %120 : vector<1x64xf32> to vector<16x64xf32>
      %122 = arith.mulf %119, %121 : vector<16x64xf32>
      %123 = arith.addf %118, %122 : vector<16x64xf32>
      %c4_80 = arith.constant 4 : index
      %c20_81 = arith.constant 20 : index
      %124 = vector.load %arg19[%c4_80, %c20_81] : memref<24x96xf32, #tpu.memory_space<vmem>>, vector<16x64xf32>
      %c13 = arith.constant 13 : index
      %c0_82 = arith.constant 0 : index
      %125 = vector.load %arg6[%c13, %c0_82] : memref<25x64xf32, #tpu.memory_space<vmem>>, vector<1x64xf32>
      %126 = vector.broadcast %125 : vector<1x64xf32> to vector<16x64xf32>
      %127 = arith.mulf %124, %126 : vector<16x64xf32>
      %128 = arith.addf %123, %127 : vector<16x64xf32>
      %c4_83 = arith.constant 4 : index
      %c24_84 = arith.constant 24 : index
      %129 = vector.load %arg19[%c4_83, %c24_84] : memref<24x96xf32, #tpu.memory_space<vmem>>, vector<16x64xf32>
      %c14 = arith.constant 14 : index
      %c0_85 = arith.constant 0 : index
      %130 = vector.load %arg6[%c14, %c0_85] : memref<25x64xf32, #tpu.memory_space<vmem>>, vector<1x64xf32>
      %131 = vector.broadcast %130 : vector<1x64xf32> to vector<16x64xf32>
      %132 = arith.mulf %129, %131 : vector<16x64xf32>
      %133 = arith.addf %128, %132 : vector<16x64xf32>
      %c5_86 = arith.constant 5 : index
      %c8_87 = arith.constant 8 : index
      %134 = vector.load %arg19[%c5_86, %c8_87] : memref<24x96xf32, #tpu.memory_space<vmem>>, vector<16x64xf32>
      %c15 = arith.constant 15 : index
      %c0_88 = arith.constant 0 : index
      %135 = vector.load %arg6[%c15, %c0_88] : memref<25x64xf32, #tpu.memory_space<vmem>>, vector<1x64xf32>
      %136 = vector.broadcast %135 : vector<1x64xf32> to vector<16x64xf32>
      %137 = arith.mulf %134, %136 : vector<16x64xf32>
      %138 = arith.addf %133, %137 : vector<16x64xf32>
      %c5_89 = arith.constant 5 : index
      %c12_90 = arith.constant 12 : index
      %139 = vector.load %arg19[%c5_89, %c12_90] : memref<24x96xf32, #tpu.memory_space<vmem>>, vector<16x64xf32>
      %c16_91 = arith.constant 16 : index
      %c0_92 = arith.constant 0 : index
      %140 = vector.load %arg6[%c16_91, %c0_92] : memref<25x64xf32, #tpu.memory_space<vmem>>, vector<1x64xf32>
      %141 = vector.broadcast %140 : vector<1x64xf32> to vector<16x64xf32>
      %142 = arith.mulf %139, %141 : vector<16x64xf32>
      %143 = arith.addf %138, %142 : vector<16x64xf32>
      %c5_93 = arith.constant 5 : index
      %c16_94 = arith.constant 16 : index
      %144 = vector.load %arg19[%c5_93, %c16_94] : memref<24x96xf32, #tpu.memory_space<vmem>>, vector<16x64xf32>
      %c17 = arith.constant 17 : index
      %c0_95 = arith.constant 0 : index
      %145 = vector.load %arg6[%c17, %c0_95] : memref<25x64xf32, #tpu.memory_space<vmem>>, vector<1x64xf32>
      %146 = vector.broadcast %145 : vector<1x64xf32> to vector<16x64xf32>
      %147 = arith.mulf %144, %146 : vector<16x64xf32>
      %148 = arith.addf %143, %147 : vector<16x64xf32>
      %c5_96 = arith.constant 5 : index
      %c20_97 = arith.constant 20 : index
      %149 = vector.load %arg19[%c5_96, %c20_97] : memref<24x96xf32, #tpu.memory_space<vmem>>, vector<16x64xf32>
      %c18 = arith.constant 18 : index
      %c0_98 = arith.constant 0 : index
      %150 = vector.load %arg6[%c18, %c0_98] : memref<25x64xf32, #tpu.memory_space<vmem>>, vector<1x64xf32>
      %151 = vector.broadcast %150 : vector<1x64xf32> to vector<16x64xf32>
      %152 = arith.mulf %149, %151 : vector<16x64xf32>
      %153 = arith.addf %148, %152 : vector<16x64xf32>
      %c5_99 = arith.constant 5 : index
      %c24_100 = arith.constant 24 : index
      %154 = vector.load %arg19[%c5_99, %c24_100] : memref<24x96xf32, #tpu.memory_space<vmem>>, vector<16x64xf32>
      %c19 = arith.constant 19 : index
      %c0_101 = arith.constant 0 : index
      %155 = vector.load %arg6[%c19, %c0_101] : memref<25x64xf32, #tpu.memory_space<vmem>>, vector<1x64xf32>
      %156 = vector.broadcast %155 : vector<1x64xf32> to vector<16x64xf32>
      %157 = arith.mulf %154, %156 : vector<16x64xf32>
      %158 = arith.addf %153, %157 : vector<16x64xf32>
      %c6_102 = arith.constant 6 : index
      %c8_103 = arith.constant 8 : index
      %159 = vector.load %arg19[%c6_102, %c8_103] : memref<24x96xf32, #tpu.memory_space<vmem>>, vector<16x64xf32>
      %c20_104 = arith.constant 20 : index
      %c0_105 = arith.constant 0 : index
      %160 = vector.load %arg6[%c20_104, %c0_105] : memref<25x64xf32, #tpu.memory_space<vmem>>, vector<1x64xf32>
      %161 = vector.broadcast %160 : vector<1x64xf32> to vector<16x64xf32>
      %162 = arith.mulf %159, %161 : vector<16x64xf32>
      %163 = arith.addf %158, %162 : vector<16x64xf32>
      %c6_106 = arith.constant 6 : index
      %c12_107 = arith.constant 12 : index
      %164 = vector.load %arg19[%c6_106, %c12_107] : memref<24x96xf32, #tpu.memory_space<vmem>>, vector<16x64xf32>
      %c21 = arith.constant 21 : index
      %c0_108 = arith.constant 0 : index
      %165 = vector.load %arg6[%c21, %c0_108] : memref<25x64xf32, #tpu.memory_space<vmem>>, vector<1x64xf32>
      %166 = vector.broadcast %165 : vector<1x64xf32> to vector<16x64xf32>
      %167 = arith.mulf %164, %166 : vector<16x64xf32>
      %168 = arith.addf %163, %167 : vector<16x64xf32>
      %c6_109 = arith.constant 6 : index
      %c16_110 = arith.constant 16 : index
      %169 = vector.load %arg19[%c6_109, %c16_110] : memref<24x96xf32, #tpu.memory_space<vmem>>, vector<16x64xf32>
      %c22 = arith.constant 22 : index
      %c0_111 = arith.constant 0 : index
      %170 = vector.load %arg6[%c22, %c0_111] : memref<25x64xf32, #tpu.memory_space<vmem>>, vector<1x64xf32>
      %171 = vector.broadcast %170 : vector<1x64xf32> to vector<16x64xf32>
      %172 = arith.mulf %169, %171 : vector<16x64xf32>
      %173 = arith.addf %168, %172 : vector<16x64xf32>
      %c6_112 = arith.constant 6 : index
      %c20_113 = arith.constant 20 : index
      %174 = vector.load %arg19[%c6_112, %c20_113] : memref<24x96xf32, #tpu.memory_space<vmem>>, vector<16x64xf32>
      %c23 = arith.constant 23 : index
      %c0_114 = arith.constant 0 : index
      %175 = vector.load %arg6[%c23, %c0_114] : memref<25x64xf32, #tpu.memory_space<vmem>>, vector<1x64xf32>
      %176 = vector.broadcast %175 : vector<1x64xf32> to vector<16x64xf32>
      %177 = arith.mulf %174, %176 : vector<16x64xf32>
      %178 = arith.addf %173, %177 : vector<16x64xf32>
      %c6_115 = arith.constant 6 : index
      %c24_116 = arith.constant 24 : index
      %179 = vector.load %arg19[%c6_115, %c24_116] : memref<24x96xf32, #tpu.memory_space<vmem>>, vector<16x64xf32>
      %c24_117 = arith.constant 24 : index
      %c0_118 = arith.constant 0 : index
      %180 = vector.load %arg6[%c24_117, %c0_118] : memref<25x64xf32, #tpu.memory_space<vmem>>, vector<1x64xf32>
      %181 = vector.broadcast %180 : vector<1x64xf32> to vector<16x64xf32>
      %182 = arith.mulf %179, %181 : vector<16x64xf32>
      %183 = arith.addf %178, %182 : vector<16x64xf32>
      %cst = arith.constant 0.000000e+00 : f32
      %184 = vector.broadcast %cst : f32 to vector<16x3xf32>
      %c0_119 = arith.constant 0 : index
      %c0_120 = arith.constant 0 : index
      %185 = vector.load %arg22[%c0_119, %c0_120] : memref<16x70xf32, #tpu.memory_space<vmem>>, vector<16x3xf32>
      tpu.vector_store %arg22[%c0_119, %c0_120], %184 {strides = array<i32>} : memref<16x70xf32, #tpu.memory_space<vmem>>, vector<16x3xf32>,
      %cst_121 = arith.constant 0.000000e+00 : f32
      %186 = vector.broadcast %cst_121 : f32 to vector<16x3xf32>
      %c0_122 = arith.constant 0 : index
      %c67 = arith.constant 67 : index
      %187 = vector.load %arg22[%c0_122, %c67] : memref<16x70xf32, #tpu.memory_space<vmem>>, vector<16x3xf32>
      tpu.vector_store %arg22[%c0_122, %c67], %186 {strides = array<i32>} : memref<16x70xf32, #tpu.memory_space<vmem>>, vector<16x3xf32>,
      %c0_123 = arith.constant 0 : index
      %c3_124 = arith.constant 3 : index
      %188 = vector.load %arg22[%c0_123, %c3_124] : memref<16x70xf32, #tpu.memory_space<vmem>>, vector<16x64xf32>
      tpu.vector_store %arg22[%c0_123, %c3_124], %183 {strides = array<i32>} : memref<16x70xf32, #tpu.memory_space<vmem>>, vector<16x64xf32>,
      %c0_125 = arith.constant 0 : index
      %c0_126 = arith.constant 0 : index
      %189 = vector.load %arg22[%c0_125, %c0_126] : memref<16x70xf32, #tpu.memory_space<vmem>>, vector<16x64xf32>
      %c0_127 = arith.constant 0 : index
      %c0_128 = arith.constant 0 : index
      %190 = vector.load %arg7[%c0_127, %c0_128] : memref<7x64xf32, #tpu.memory_space<vmem>>, vector<1x64xf32>
      %191 = vector.broadcast %190 : vector<1x64xf32> to vector<16x64xf32>
      %192 = arith.mulf %189, %191 : vector<16x64xf32>
      %c0_129 = arith.constant 0 : index
      %c1_130 = arith.constant 1 : index
      %193 = vector.load %arg22[%c0_129, %c1_130] : memref<16x70xf32, #tpu.memory_space<vmem>>, vector<16x64xf32>
      %c1_131 = arith.constant 1 : index
      %c0_132 = arith.constant 0 : index
      %194 = vector.load %arg7[%c1_131, %c0_132] : memref<7x64xf32, #tpu.memory_space<vmem>>, vector<1x64xf32>
      %195 = vector.broadcast %194 : vector<1x64xf32> to vector<16x64xf32>
      %196 = arith.mulf %193, %195 : vector<16x64xf32>
      %197 = arith.addf %192, %196 : vector<16x64xf32>
      %c0_133 = arith.constant 0 : index
      %c2_134 = arith.constant 2 : index
      %198 = vector.load %arg22[%c0_133, %c2_134] : memref<16x70xf32, #tpu.memory_space<vmem>>, vector<16x64xf32>
      %c2_135 = arith.constant 2 : index
      %c0_136 = arith.constant 0 : index
      %199 = vector.load %arg7[%c2_135, %c0_136] : memref<7x64xf32, #tpu.memory_space<vmem>>, vector<1x64xf32>
      %200 = vector.broadcast %199 : vector<1x64xf32> to vector<16x64xf32>
      %201 = arith.mulf %198, %200 : vector<16x64xf32>
      %202 = arith.addf %197, %201 : vector<16x64xf32>
      %c0_137 = arith.constant 0 : index
      %c3_138 = arith.constant 3 : index
      %203 = vector.load %arg22[%c0_137, %c3_138] : memref<16x70xf32, #tpu.memory_space<vmem>>, vector<16x64xf32>
      %c3_139 = arith.constant 3 : index
      %c0_140 = arith.constant 0 : index
      %204 = vector.load %arg7[%c3_139, %c0_140] : memref<7x64xf32, #tpu.memory_space<vmem>>, vector<1x64xf32>
      %205 = vector.broadcast %204 : vector<1x64xf32> to vector<16x64xf32>
      %206 = arith.mulf %203, %205 : vector<16x64xf32>
      %207 = arith.addf %202, %206 : vector<16x64xf32>
      %c0_141 = arith.constant 0 : index
      %c4_142 = arith.constant 4 : index
      %208 = vector.load %arg22[%c0_141, %c4_142] : memref<16x70xf32, #tpu.memory_space<vmem>>, vector<16x64xf32>
      %c4_143 = arith.constant 4 : index
      %c0_144 = arith.constant 0 : index
      %209 = vector.load %arg7[%c4_143, %c0_144] : memref<7x64xf32, #tpu.memory_space<vmem>>, vector<1x64xf32>
      %210 = vector.broadcast %209 : vector<1x64xf32> to vector<16x64xf32>
      %211 = arith.mulf %208, %210 : vector<16x64xf32>
      %212 = arith.addf %207, %211 : vector<16x64xf32>
      %c0_145 = arith.constant 0 : index
      %c5_146 = arith.constant 5 : index
      %213 = vector.load %arg22[%c0_145, %c5_146] : memref<16x70xf32, #tpu.memory_space<vmem>>, vector<16x64xf32>
      %c5_147 = arith.constant 5 : index
      %c0_148 = arith.constant 0 : index
      %214 = vector.load %arg7[%c5_147, %c0_148] : memref<7x64xf32, #tpu.memory_space<vmem>>, vector<1x64xf32>
      %215 = vector.broadcast %214 : vector<1x64xf32> to vector<16x64xf32>
      %216 = arith.mulf %213, %215 : vector<16x64xf32>
      %217 = arith.addf %212, %216 : vector<16x64xf32>
      %c0_149 = arith.constant 0 : index
      %c6_150 = arith.constant 6 : index
      %218 = vector.load %arg22[%c0_149, %c6_150] : memref<16x70xf32, #tpu.memory_space<vmem>>, vector<16x64xf32>
      %c6_151 = arith.constant 6 : index
      %c0_152 = arith.constant 0 : index
      %219 = vector.load %arg7[%c6_151, %c0_152] : memref<7x64xf32, #tpu.memory_space<vmem>>, vector<1x64xf32>
      %220 = vector.broadcast %219 : vector<1x64xf32> to vector<16x64xf32>
      %221 = arith.mulf %218, %220 : vector<16x64xf32>
      %222 = arith.addf %217, %221 : vector<16x64xf32>
      %cst_153 = arith.constant dense<0.000000e+00> : vector<64xf32>
      %223 = vector.multi_reduction <add>, %222, %cst_153 [0] : vector<16x64xf32> to vector<64xf32>
      %224 = vector.shape_cast %223 : vector<64xf32> to vector<1x64xf32>
      %225 = vector.shape_cast %224 : vector<1x64xf32> to vector<1x1x64xf32>
      %c0_154 = arith.constant 0 : index
      %c6_155 = arith.constant 6 : index
      %c0_156 = arith.constant 0 : index
      %226 = vector.load %arg18[%c0_154, %c6_155, %c0_156] : memref<1x12x64xf32, #tpu.memory_space<vmem>>, vector<1x1x64xf32>
      tpu.vector_store %arg18[%c0_154, %c6_155, %c0_156], %225 {strides = array<i32>} : memref<1x12x64xf32, #tpu.memory_space<vmem>>, vector<1x1x64xf32>,
      %227 = arith.mulf %222, %222 : vector<16x64xf32>
      %cst_157 = arith.constant dense<0.000000e+00> : vector<64xf32>
      %228 = vector.multi_reduction <add>, %227, %cst_157 [0] : vector<16x64xf32> to vector<64xf32>
      %229 = vector.shape_cast %228 : vector<64xf32> to vector<1x64xf32>
      %230 = vector.shape_cast %229 : vector<1x64xf32> to vector<1x1x64xf32>
      %c0_158 = arith.constant 0 : index
      %c7_159 = arith.constant 7 : index
      %c0_160 = arith.constant 0 : index
      %231 = vector.load %arg18[%c0_158, %c7_159, %c0_160] : memref<1x12x64xf32, #tpu.memory_space<vmem>>, vector<1x1x64xf32>
      tpu.vector_store %arg18[%c0_158, %c7_159, %c0_160], %230 {strides = array<i32>} : memref<1x12x64xf32, #tpu.memory_space<vmem>>, vector<1x1x64xf32>,
      %232 = arith.truncf %222 : vector<16x64xf32> to vector<16x64xbf16>
      %233 = vector.shape_cast %232 : vector<16x64xbf16> to vector<1x16x64xbf16>
      %c0_161 = arith.constant 0 : index
      %c0_162 = arith.constant 0 : index
      %c0_163 = arith.constant 0 : index
      %234 = vector.load %arg15[%c0_161, %c0_162, %c0_163] : memref<1x16x64xbf16, #tpu.memory_space<vmem>>, vector<1x16x64xbf16>
      tpu.vector_store %arg15[%c0_161, %c0_162, %c0_163], %233 {strides = array<i32>} : memref<1x16x64xbf16, #tpu.memory_space<vmem>>, vector<1x16x64xbf16>,
    } else {
    }
    %c5_22 = arith.constant 5 : index
    %40 = memref.load %arg1[%c5_22] : memref<8xi32, #tpu.memory_space<smem>>
    %c0_i32_23 = arith.constant 0 : i32
    %41 = arith.cmpi eq, %40, %c0_i32_23 : i32
    %42 = arith.extui %41 : i1 to i32
    %c0_i32_24 = arith.constant 0 : i32
    %43 = arith.cmpi ne, %42, %c0_i32_24 : i32
    scf.if %43 {
      %cst = arith.constant 0.000000e+00 : f32
      %60 = vector.broadcast %cst : f32 to vector<1x2x64xf32>
      %c0_37 = arith.constant 0 : index
      %c6_38 = arith.constant 6 : index
      %c0_39 = arith.constant 0 : index
      %61 = vector.load %arg18[%c0_37, %c6_38, %c0_39] : memref<1x12x64xf32, #tpu.memory_space<vmem>>, vector<1x2x64xf32>
      tpu.vector_store %arg18[%c0_37, %c6_38, %c0_39], %60 {strides = array<i32>} : memref<1x12x64xf32, #tpu.memory_space<vmem>>, vector<1x2x64xf32>,
      %cst_40 = arith.constant 0.000000e+00 : bf16
      %62 = vector.broadcast %cst_40 : bf16 to vector<1x16x64xbf16>
      %c0_41 = arith.constant 0 : index
      %c0_42 = arith.constant 0 : index
      %c0_43 = arith.constant 0 : index
      %63 = vector.load %arg15[%c0_41, %c0_42, %c0_43] : memref<1x16x64xbf16, #tpu.memory_space<vmem>>, vector<1x16x64xbf16>
      tpu.vector_store %arg15[%c0_41, %c0_42, %c0_43], %62 {strides = array<i32>} : memref<1x16x64xbf16, #tpu.memory_space<vmem>>, vector<1x16x64xbf16>,
    } else {
    }
    %c6_25 = arith.constant 6 : index
    %44 = memref.load %arg1[%c6_25] : memref<8xi32, #tpu.memory_space<smem>>
    %c0_i32_26 = arith.constant 0 : i32
    %45 = arith.cmpi ne, %44, %c0_i32_26 : i32
    %46 = arith.extui %45 : i1 to i32
    %c0_i32_27 = arith.constant 0 : i32
    %47 = arith.cmpi ne, %46, %c0_i32_27 : i32
    scf.if %47 {
      %c2_37 = arith.constant 2 : index
      %c8 = arith.constant 8 : index
      %60 = vector.load %arg19[%c2_37, %c8] : memref<24x96xf32, #tpu.memory_space<vmem>>, vector<16x64xf32>
      %c0_38 = arith.constant 0 : index
      %c0_39 = arith.constant 0 : index
      %61 = vector.load %arg8[%c0_38, %c0_39] : memref<9x64xf32, #tpu.memory_space<vmem>>, vector<1x64xf32>
      %62 = vector.broadcast %61 : vector<1x64xf32> to vector<16x64xf32>
      %63 = arith.mulf %60, %62 : vector<16x64xf32>
      %c2_40 = arith.constant 2 : index
      %c16 = arith.constant 16 : index
      %64 = vector.load %arg19[%c2_40, %c16] : memref<24x96xf32, #tpu.memory_space<vmem>>, vector<16x64xf32>
      %c1_41 = arith.constant 1 : index
      %c0_42 = arith.constant 0 : index
      %65 = vector.load %arg8[%c1_41, %c0_42] : memref<9x64xf32, #tpu.memory_space<vmem>>, vector<1x64xf32>
      %66 = vector.broadcast %65 : vector<1x64xf32> to vector<16x64xf32>
      %67 = arith.mulf %64, %66 : vector<16x64xf32>
      %68 = arith.addf %63, %67 : vector<16x64xf32>
      %c2_43 = arith.constant 2 : index
      %c24 = arith.constant 24 : index
      %69 = vector.load %arg19[%c2_43, %c24] : memref<24x96xf32, #tpu.memory_space<vmem>>, vector<16x64xf32>
      %c2_44 = arith.constant 2 : index
      %c0_45 = arith.constant 0 : index
      %70 = vector.load %arg8[%c2_44, %c0_45] : memref<9x64xf32, #tpu.memory_space<vmem>>, vector<1x64xf32>
      %71 = vector.broadcast %70 : vector<1x64xf32> to vector<16x64xf32>
      %72 = arith.mulf %69, %71 : vector<16x64xf32>
      %73 = arith.addf %68, %72 : vector<16x64xf32>
      %c4_46 = arith.constant 4 : index
      %c8_47 = arith.constant 8 : index
      %74 = vector.load %arg19[%c4_46, %c8_47] : memref<24x96xf32, #tpu.memory_space<vmem>>, vector<16x64xf32>
      %c3 = arith.constant 3 : index
      %c0_48 = arith.constant 0 : index
      %75 = vector.load %arg8[%c3, %c0_48] : memref<9x64xf32, #tpu.memory_space<vmem>>, vector<1x64xf32>
      %76 = vector.broadcast %75 : vector<1x64xf32> to vector<16x64xf32>
      %77 = arith.mulf %74, %76 : vector<16x64xf32>
      %78 = arith.addf %73, %77 : vector<16x64xf32>
      %c4_49 = arith.constant 4 : index
      %c16_50 = arith.constant 16 : index
      %79 = vector.load %arg19[%c4_49, %c16_50] : memref<24x96xf32, #tpu.memory_space<vmem>>, vector<16x64xf32>
      %c4_51 = arith.constant 4 : index
      %c0_52 = arith.constant 0 : index
      %80 = vector.load %arg8[%c4_51, %c0_52] : memref<9x64xf32, #tpu.memory_space<vmem>>, vector<1x64xf32>
      %81 = vector.broadcast %80 : vector<1x64xf32> to vector<16x64xf32>
      %82 = arith.mulf %79, %81 : vector<16x64xf32>
      %83 = arith.addf %78, %82 : vector<16x64xf32>
      %c4_53 = arith.constant 4 : index
      %c24_54 = arith.constant 24 : index
      %84 = vector.load %arg19[%c4_53, %c24_54] : memref<24x96xf32, #tpu.memory_space<vmem>>, vector<16x64xf32>
      %c5_55 = arith.constant 5 : index
      %c0_56 = arith.constant 0 : index
      %85 = vector.load %arg8[%c5_55, %c0_56] : memref<9x64xf32, #tpu.memory_space<vmem>>, vector<1x64xf32>
      %86 = vector.broadcast %85 : vector<1x64xf32> to vector<16x64xf32>
      %87 = arith.mulf %84, %86 : vector<16x64xf32>
      %88 = arith.addf %83, %87 : vector<16x64xf32>
      %c6_57 = arith.constant 6 : index
      %c8_58 = arith.constant 8 : index
      %89 = vector.load %arg19[%c6_57, %c8_58] : memref<24x96xf32, #tpu.memory_space<vmem>>, vector<16x64xf32>
      %c6_59 = arith.constant 6 : index
      %c0_60 = arith.constant 0 : index
      %90 = vector.load %arg8[%c6_59, %c0_60] : memref<9x64xf32, #tpu.memory_space<vmem>>, vector<1x64xf32>
      %91 = vector.broadcast %90 : vector<1x64xf32> to vector<16x64xf32>
      %92 = arith.mulf %89, %91 : vector<16x64xf32>
      %93 = arith.addf %88, %92 : vector<16x64xf32>
      %c6_61 = arith.constant 6 : index
      %c16_62 = arith.constant 16 : index
      %94 = vector.load %arg19[%c6_61, %c16_62] : memref<24x96xf32, #tpu.memory_space<vmem>>, vector<16x64xf32>
      %c7_63 = arith.constant 7 : index
      %c0_64 = arith.constant 0 : index
      %95 = vector.load %arg8[%c7_63, %c0_64] : memref<9x64xf32, #tpu.memory_space<vmem>>, vector<1x64xf32>
      %96 = vector.broadcast %95 : vector<1x64xf32> to vector<16x64xf32>
      %97 = arith.mulf %94, %96 : vector<16x64xf32>
      %98 = arith.addf %93, %97 : vector<16x64xf32>
      %c6_65 = arith.constant 6 : index
      %c24_66 = arith.constant 24 : index
      %99 = vector.load %arg19[%c6_65, %c24_66] : memref<24x96xf32, #tpu.memory_space<vmem>>, vector<16x64xf32>
      %c8_67 = arith.constant 8 : index
      %c0_68 = arith.constant 0 : index
      %100 = vector.load %arg8[%c8_67, %c0_68] : memref<9x64xf32, #tpu.memory_space<vmem>>, vector<1x64xf32>
      %101 = vector.broadcast %100 : vector<1x64xf32> to vector<16x64xf32>
      %102 = arith.mulf %99, %101 : vector<16x64xf32>
      %103 = arith.addf %98, %102 : vector<16x64xf32>
      %cst = arith.constant 0.000000e+00 : f32
      %104 = vector.broadcast %cst : f32 to vector<16x3xf32>
      %c0_69 = arith.constant 0 : index
      %c0_70 = arith.constant 0 : index
      %105 = vector.load %arg22[%c0_69, %c0_70] : memref<16x70xf32, #tpu.memory_space<vmem>>, vector<16x3xf32>
      tpu.vector_store %arg22[%c0_69, %c0_70], %104 {strides = array<i32>} : memref<16x70xf32, #tpu.memory_space<vmem>>, vector<16x3xf32>,
      %cst_71 = arith.constant 0.000000e+00 : f32
      %106 = vector.broadcast %cst_71 : f32 to vector<16x3xf32>
      %c0_72 = arith.constant 0 : index
      %c67 = arith.constant 67 : index
      %107 = vector.load %arg22[%c0_72, %c67] : memref<16x70xf32, #tpu.memory_space<vmem>>, vector<16x3xf32>
      tpu.vector_store %arg22[%c0_72, %c67], %106 {strides = array<i32>} : memref<16x70xf32, #tpu.memory_space<vmem>>, vector<16x3xf32>,
      %c0_73 = arith.constant 0 : index
      %c3_74 = arith.constant 3 : index
      %108 = vector.load %arg22[%c0_73, %c3_74] : memref<16x70xf32, #tpu.memory_space<vmem>>, vector<16x64xf32>
      tpu.vector_store %arg22[%c0_73, %c3_74], %103 {strides = array<i32>} : memref<16x70xf32, #tpu.memory_space<vmem>>, vector<16x64xf32>,
      %c0_75 = arith.constant 0 : index
      %c0_76 = arith.constant 0 : index
      %109 = vector.load %arg22[%c0_75, %c0_76] : memref<16x70xf32, #tpu.memory_space<vmem>>, vector<16x64xf32>
      %c0_77 = arith.constant 0 : index
      %c0_78 = arith.constant 0 : index
      %110 = vector.load %arg9[%c0_77, %c0_78] : memref<7x64xf32, #tpu.memory_space<vmem>>, vector<1x64xf32>
      %111 = vector.broadcast %110 : vector<1x64xf32> to vector<16x64xf32>
      %112 = arith.mulf %109, %111 : vector<16x64xf32>
      %c0_79 = arith.constant 0 : index
      %c1_80 = arith.constant 1 : index
      %113 = vector.load %arg22[%c0_79, %c1_80] : memref<16x70xf32, #tpu.memory_space<vmem>>, vector<16x64xf32>
      %c1_81 = arith.constant 1 : index
      %c0_82 = arith.constant 0 : index
      %114 = vector.load %arg9[%c1_81, %c0_82] : memref<7x64xf32, #tpu.memory_space<vmem>>, vector<1x64xf32>
      %115 = vector.broadcast %114 : vector<1x64xf32> to vector<16x64xf32>
      %116 = arith.mulf %113, %115 : vector<16x64xf32>
      %117 = arith.addf %112, %116 : vector<16x64xf32>
      %c0_83 = arith.constant 0 : index
      %c2_84 = arith.constant 2 : index
      %118 = vector.load %arg22[%c0_83, %c2_84] : memref<16x70xf32, #tpu.memory_space<vmem>>, vector<16x64xf32>
      %c2_85 = arith.constant 2 : index
      %c0_86 = arith.constant 0 : index
      %119 = vector.load %arg9[%c2_85, %c0_86] : memref<7x64xf32, #tpu.memory_space<vmem>>, vector<1x64xf32>
      %120 = vector.broadcast %119 : vector<1x64xf32> to vector<16x64xf32>
      %121 = arith.mulf %118, %120 : vector<16x64xf32>
      %122 = arith.addf %117, %121 : vector<16x64xf32>
      %c0_87 = arith.constant 0 : index
      %c3_88 = arith.constant 3 : index
      %123 = vector.load %arg22[%c0_87, %c3_88] : memref<16x70xf32, #tpu.memory_space<vmem>>, vector<16x64xf32>
      %c3_89 = arith.constant 3 : index
      %c0_90 = arith.constant 0 : index
      %124 = vector.load %arg9[%c3_89, %c0_90] : memref<7x64xf32, #tpu.memory_space<vmem>>, vector<1x64xf32>
      %125 = vector.broadcast %124 : vector<1x64xf32> to vector<16x64xf32>
      %126 = arith.mulf %123, %125 : vector<16x64xf32>
      %127 = arith.addf %122, %126 : vector<16x64xf32>
      %c0_91 = arith.constant 0 : index
      %c4_92 = arith.constant 4 : index
      %128 = vector.load %arg22[%c0_91, %c4_92] : memref<16x70xf32, #tpu.memory_space<vmem>>, vector<16x64xf32>
      %c4_93 = arith.constant 4 : index
      %c0_94 = arith.constant 0 : index
      %129 = vector.load %arg9[%c4_93, %c0_94] : memref<7x64xf32, #tpu.memory_space<vmem>>, vector<1x64xf32>
      %130 = vector.broadcast %129 : vector<1x64xf32> to vector<16x64xf32>
      %131 = arith.mulf %128, %130 : vector<16x64xf32>
      %132 = arith.addf %127, %131 : vector<16x64xf32>
      %c0_95 = arith.constant 0 : index
      %c5_96 = arith.constant 5 : index
      %133 = vector.load %arg22[%c0_95, %c5_96] : memref<16x70xf32, #tpu.memory_space<vmem>>, vector<16x64xf32>
      %c5_97 = arith.constant 5 : index
      %c0_98 = arith.constant 0 : index
      %134 = vector.load %arg9[%c5_97, %c0_98] : memref<7x64xf32, #tpu.memory_space<vmem>>, vector<1x64xf32>
      %135 = vector.broadcast %134 : vector<1x64xf32> to vector<16x64xf32>
      %136 = arith.mulf %133, %135 : vector<16x64xf32>
      %137 = arith.addf %132, %136 : vector<16x64xf32>
      %c0_99 = arith.constant 0 : index
      %c6_100 = arith.constant 6 : index
      %138 = vector.load %arg22[%c0_99, %c6_100] : memref<16x70xf32, #tpu.memory_space<vmem>>, vector<16x64xf32>
      %c6_101 = arith.constant 6 : index
      %c0_102 = arith.constant 0 : index
      %139 = vector.load %arg9[%c6_101, %c0_102] : memref<7x64xf32, #tpu.memory_space<vmem>>, vector<1x64xf32>
      %140 = vector.broadcast %139 : vector<1x64xf32> to vector<16x64xf32>
      %141 = arith.mulf %138, %140 : vector<16x64xf32>
      %142 = arith.addf %137, %141 : vector<16x64xf32>
      %cst_103 = arith.constant dense<0.000000e+00> : vector<64xf32>
      %143 = vector.multi_reduction <add>, %142, %cst_103 [0] : vector<16x64xf32> to vector<64xf32>
      %144 = vector.shape_cast %143 : vector<64xf32> to vector<1x64xf32>
      %145 = vector.shape_cast %144 : vector<1x64xf32> to vector<1x1x64xf32>
      %c0_104 = arith.constant 0 : index
      %c8_105 = arith.constant 8 : index
      %c0_106 = arith.constant 0 : index
      %146 = vector.load %arg18[%c0_104, %c8_105, %c0_106] : memref<1x12x64xf32, #tpu.memory_space<vmem>>, vector<1x1x64xf32>
      tpu.vector_store %arg18[%c0_104, %c8_105, %c0_106], %145 {strides = array<i32>} : memref<1x12x64xf32, #tpu.memory_space<vmem>>, vector<1x1x64xf32>,
      %147 = arith.mulf %142, %142 : vector<16x64xf32>
      %cst_107 = arith.constant dense<0.000000e+00> : vector<64xf32>
      %148 = vector.multi_reduction <add>, %147, %cst_107 [0] : vector<16x64xf32> to vector<64xf32>
      %149 = vector.shape_cast %148 : vector<64xf32> to vector<1x64xf32>
      %150 = vector.shape_cast %149 : vector<1x64xf32> to vector<1x1x64xf32>
      %c0_108 = arith.constant 0 : index
      %c9 = arith.constant 9 : index
      %c0_109 = arith.constant 0 : index
      %151 = vector.load %arg18[%c0_108, %c9, %c0_109] : memref<1x12x64xf32, #tpu.memory_space<vmem>>, vector<1x1x64xf32>
      tpu.vector_store %arg18[%c0_108, %c9, %c0_109], %150 {strides = array<i32>} : memref<1x12x64xf32, #tpu.memory_space<vmem>>, vector<1x1x64xf32>,
      %152 = arith.truncf %142 : vector<16x64xf32> to vector<16x64xbf16>
      %153 = vector.shape_cast %152 : vector<16x64xbf16> to vector<1x16x64xbf16>
      %c0_110 = arith.constant 0 : index
      %c0_111 = arith.constant 0 : index
      %c0_112 = arith.constant 0 : index
      %154 = vector.load %arg16[%c0_110, %c0_111, %c0_112] : memref<1x16x64xbf16, #tpu.memory_space<vmem>>, vector<1x16x64xbf16>
      tpu.vector_store %arg16[%c0_110, %c0_111, %c0_112], %153 {strides = array<i32>} : memref<1x16x64xbf16, #tpu.memory_space<vmem>>, vector<1x16x64xbf16>,
    } else {
    }
    %c6_28 = arith.constant 6 : index
    %48 = memref.load %arg1[%c6_28] : memref<8xi32, #tpu.memory_space<smem>>
    %c0_i32_29 = arith.constant 0 : i32
    %49 = arith.cmpi eq, %48, %c0_i32_29 : i32
    %50 = arith.extui %49 : i1 to i32
    %c0_i32_30 = arith.constant 0 : i32
    %51 = arith.cmpi ne, %50, %c0_i32_30 : i32
    scf.if %51 {
      %cst = arith.constant 0.000000e+00 : f32
      %60 = vector.broadcast %cst : f32 to vector<1x2x64xf32>
      %c0_37 = arith.constant 0 : index
      %c8 = arith.constant 8 : index
      %c0_38 = arith.constant 0 : index
      %61 = vector.load %arg18[%c0_37, %c8, %c0_38] : memref<1x12x64xf32, #tpu.memory_space<vmem>>, vector<1x2x64xf32>
      tpu.vector_store %arg18[%c0_37, %c8, %c0_38], %60 {strides = array<i32>} : memref<1x12x64xf32, #tpu.memory_space<vmem>>, vector<1x2x64xf32>,
      %cst_39 = arith.constant 0.000000e+00 : bf16
      %62 = vector.broadcast %cst_39 : bf16 to vector<1x16x64xbf16>
      %c0_40 = arith.constant 0 : index
      %c0_41 = arith.constant 0 : index
      %c0_42 = arith.constant 0 : index
      %63 = vector.load %arg16[%c0_40, %c0_41, %c0_42] : memref<1x16x64xbf16, #tpu.memory_space<vmem>>, vector<1x16x64xbf16>
      tpu.vector_store %arg16[%c0_40, %c0_41, %c0_42], %62 {strides = array<i32>} : memref<1x16x64xbf16, #tpu.memory_space<vmem>>, vector<1x16x64xbf16>,
    } else {
    }
    %c7_31 = arith.constant 7 : index
    %52 = memref.load %arg1[%c7_31] : memref<8xi32, #tpu.memory_space<smem>>
    %c0_i32_32 = arith.constant 0 : i32
    %53 = arith.cmpi ne, %52, %c0_i32_32 : i32
    %54 = arith.extui %53 : i1 to i32
    %c0_i32_33 = arith.constant 0 : i32
    %55 = arith.cmpi ne, %54, %c0_i32_33 : i32
    scf.if %55 {
      %c0_37 = arith.constant 0 : index
      %c0_38 = arith.constant 0 : index
      %60 = vector.load %arg19[%c0_37, %c0_38] : memref<24x96xf32, #tpu.memory_space<vmem>>, vector<16x64xf32>
      %c0_39 = arith.constant 0 : index
      %c0_40 = arith.constant 0 : index
      %61 = vector.load %arg10[%c0_39, %c0_40] : memref<25x64xf32, #tpu.memory_space<vmem>>, vector<1x64xf32>
      %62 = vector.broadcast %61 : vector<1x64xf32> to vector<16x64xf32>
      %63 = arith.mulf %60, %62 : vector<16x64xf32>
      %c0_41 = arith.constant 0 : index
      %c8 = arith.constant 8 : index
      %64 = vector.load %arg19[%c0_41, %c8] : memref<24x96xf32, #tpu.memory_space<vmem>>, vector<16x64xf32>
      %c1_42 = arith.constant 1 : index
      %c0_43 = arith.constant 0 : index
      %65 = vector.load %arg10[%c1_42, %c0_43] : memref<25x64xf32, #tpu.memory_space<vmem>>, vector<1x64xf32>
      %66 = vector.broadcast %65 : vector<1x64xf32> to vector<16x64xf32>
      %67 = arith.mulf %64, %66 : vector<16x64xf32>
      %68 = arith.addf %63, %67 : vector<16x64xf32>
      %c0_44 = arith.constant 0 : index
      %c16 = arith.constant 16 : index
      %69 = vector.load %arg19[%c0_44, %c16] : memref<24x96xf32, #tpu.memory_space<vmem>>, vector<16x64xf32>
      %c2_45 = arith.constant 2 : index
      %c0_46 = arith.constant 0 : index
      %70 = vector.load %arg10[%c2_45, %c0_46] : memref<25x64xf32, #tpu.memory_space<vmem>>, vector<1x64xf32>
      %71 = vector.broadcast %70 : vector<1x64xf32> to vector<16x64xf32>
      %72 = arith.mulf %69, %71 : vector<16x64xf32>
      %73 = arith.addf %68, %72 : vector<16x64xf32>
      %c0_47 = arith.constant 0 : index
      %c24 = arith.constant 24 : index
      %74 = vector.load %arg19[%c0_47, %c24] : memref<24x96xf32, #tpu.memory_space<vmem>>, vector<16x64xf32>
      %c3 = arith.constant 3 : index
      %c0_48 = arith.constant 0 : index
      %75 = vector.load %arg10[%c3, %c0_48] : memref<25x64xf32, #tpu.memory_space<vmem>>, vector<1x64xf32>
      %76 = vector.broadcast %75 : vector<1x64xf32> to vector<16x64xf32>
      %77 = arith.mulf %74, %76 : vector<16x64xf32>
      %78 = arith.addf %73, %77 : vector<16x64xf32>
      %c0_49 = arith.constant 0 : index
      %c32 = arith.constant 32 : index
      %79 = vector.load %arg19[%c0_49, %c32] : memref<24x96xf32, #tpu.memory_space<vmem>>, vector<16x64xf32>
      %c4_50 = arith.constant 4 : index
      %c0_51 = arith.constant 0 : index
      %80 = vector.load %arg10[%c4_50, %c0_51] : memref<25x64xf32, #tpu.memory_space<vmem>>, vector<1x64xf32>
      %81 = vector.broadcast %80 : vector<1x64xf32> to vector<16x64xf32>
      %82 = arith.mulf %79, %81 : vector<16x64xf32>
      %83 = arith.addf %78, %82 : vector<16x64xf32>
      %c2_52 = arith.constant 2 : index
      %c0_53 = arith.constant 0 : index
      %84 = vector.load %arg19[%c2_52, %c0_53] : memref<24x96xf32, #tpu.memory_space<vmem>>, vector<16x64xf32>
      %c5_54 = arith.constant 5 : index
      %c0_55 = arith.constant 0 : index
      %85 = vector.load %arg10[%c5_54, %c0_55] : memref<25x64xf32, #tpu.memory_space<vmem>>, vector<1x64xf32>
      %86 = vector.broadcast %85 : vector<1x64xf32> to vector<16x64xf32>
      %87 = arith.mulf %84, %86 : vector<16x64xf32>
      %88 = arith.addf %83, %87 : vector<16x64xf32>
      %c2_56 = arith.constant 2 : index
      %c8_57 = arith.constant 8 : index
      %89 = vector.load %arg19[%c2_56, %c8_57] : memref<24x96xf32, #tpu.memory_space<vmem>>, vector<16x64xf32>
      %c6_58 = arith.constant 6 : index
      %c0_59 = arith.constant 0 : index
      %90 = vector.load %arg10[%c6_58, %c0_59] : memref<25x64xf32, #tpu.memory_space<vmem>>, vector<1x64xf32>
      %91 = vector.broadcast %90 : vector<1x64xf32> to vector<16x64xf32>
      %92 = arith.mulf %89, %91 : vector<16x64xf32>
      %93 = arith.addf %88, %92 : vector<16x64xf32>
      %c2_60 = arith.constant 2 : index
      %c16_61 = arith.constant 16 : index
      %94 = vector.load %arg19[%c2_60, %c16_61] : memref<24x96xf32, #tpu.memory_space<vmem>>, vector<16x64xf32>
      %c7_62 = arith.constant 7 : index
      %c0_63 = arith.constant 0 : index
      %95 = vector.load %arg10[%c7_62, %c0_63] : memref<25x64xf32, #tpu.memory_space<vmem>>, vector<1x64xf32>
      %96 = vector.broadcast %95 : vector<1x64xf32> to vector<16x64xf32>
      %97 = arith.mulf %94, %96 : vector<16x64xf32>
      %98 = arith.addf %93, %97 : vector<16x64xf32>
      %c2_64 = arith.constant 2 : index
      %c24_65 = arith.constant 24 : index
      %99 = vector.load %arg19[%c2_64, %c24_65] : memref<24x96xf32, #tpu.memory_space<vmem>>, vector<16x64xf32>
      %c8_66 = arith.constant 8 : index
      %c0_67 = arith.constant 0 : index
      %100 = vector.load %arg10[%c8_66, %c0_67] : memref<25x64xf32, #tpu.memory_space<vmem>>, vector<1x64xf32>
      %101 = vector.broadcast %100 : vector<1x64xf32> to vector<16x64xf32>
      %102 = arith.mulf %99, %101 : vector<16x64xf32>
      %103 = arith.addf %98, %102 : vector<16x64xf32>
      %c2_68 = arith.constant 2 : index
      %c32_69 = arith.constant 32 : index
      %104 = vector.load %arg19[%c2_68, %c32_69] : memref<24x96xf32, #tpu.memory_space<vmem>>, vector<16x64xf32>
      %c9 = arith.constant 9 : index
      %c0_70 = arith.constant 0 : index
      %105 = vector.load %arg10[%c9, %c0_70] : memref<25x64xf32, #tpu.memory_space<vmem>>, vector<1x64xf32>
      %106 = vector.broadcast %105 : vector<1x64xf32> to vector<16x64xf32>
      %107 = arith.mulf %104, %106 : vector<16x64xf32>
      %108 = arith.addf %103, %107 : vector<16x64xf32>
      %c4_71 = arith.constant 4 : index
      %c0_72 = arith.constant 0 : index
      %109 = vector.load %arg19[%c4_71, %c0_72] : memref<24x96xf32, #tpu.memory_space<vmem>>, vector<16x64xf32>
      %c10 = arith.constant 10 : index
      %c0_73 = arith.constant 0 : index
      %110 = vector.load %arg10[%c10, %c0_73] : memref<25x64xf32, #tpu.memory_space<vmem>>, vector<1x64xf32>
      %111 = vector.broadcast %110 : vector<1x64xf32> to vector<16x64xf32>
      %112 = arith.mulf %109, %111 : vector<16x64xf32>
      %113 = arith.addf %108, %112 : vector<16x64xf32>
      %c4_74 = arith.constant 4 : index
      %c8_75 = arith.constant 8 : index
      %114 = vector.load %arg19[%c4_74, %c8_75] : memref<24x96xf32, #tpu.memory_space<vmem>>, vector<16x64xf32>
      %c11 = arith.constant 11 : index
      %c0_76 = arith.constant 0 : index
      %115 = vector.load %arg10[%c11, %c0_76] : memref<25x64xf32, #tpu.memory_space<vmem>>, vector<1x64xf32>
      %116 = vector.broadcast %115 : vector<1x64xf32> to vector<16x64xf32>
      %117 = arith.mulf %114, %116 : vector<16x64xf32>
      %118 = arith.addf %113, %117 : vector<16x64xf32>
      %c4_77 = arith.constant 4 : index
      %c16_78 = arith.constant 16 : index
      %119 = vector.load %arg19[%c4_77, %c16_78] : memref<24x96xf32, #tpu.memory_space<vmem>>, vector<16x64xf32>
      %c12 = arith.constant 12 : index
      %c0_79 = arith.constant 0 : index
      %120 = vector.load %arg10[%c12, %c0_79] : memref<25x64xf32, #tpu.memory_space<vmem>>, vector<1x64xf32>
      %121 = vector.broadcast %120 : vector<1x64xf32> to vector<16x64xf32>
      %122 = arith.mulf %119, %121 : vector<16x64xf32>
      %123 = arith.addf %118, %122 : vector<16x64xf32>
      %c4_80 = arith.constant 4 : index
      %c24_81 = arith.constant 24 : index
      %124 = vector.load %arg19[%c4_80, %c24_81] : memref<24x96xf32, #tpu.memory_space<vmem>>, vector<16x64xf32>
      %c13 = arith.constant 13 : index
      %c0_82 = arith.constant 0 : index
      %125 = vector.load %arg10[%c13, %c0_82] : memref<25x64xf32, #tpu.memory_space<vmem>>, vector<1x64xf32>
      %126 = vector.broadcast %125 : vector<1x64xf32> to vector<16x64xf32>
      %127 = arith.mulf %124, %126 : vector<16x64xf32>
      %128 = arith.addf %123, %127 : vector<16x64xf32>
      %c4_83 = arith.constant 4 : index
      %c32_84 = arith.constant 32 : index
      %129 = vector.load %arg19[%c4_83, %c32_84] : memref<24x96xf32, #tpu.memory_space<vmem>>, vector<16x64xf32>
      %c14 = arith.constant 14 : index
      %c0_85 = arith.constant 0 : index
      %130 = vector.load %arg10[%c14, %c0_85] : memref<25x64xf32, #tpu.memory_space<vmem>>, vector<1x64xf32>
      %131 = vector.broadcast %130 : vector<1x64xf32> to vector<16x64xf32>
      %132 = arith.mulf %129, %131 : vector<16x64xf32>
      %133 = arith.addf %128, %132 : vector<16x64xf32>
      %c6_86 = arith.constant 6 : index
      %c0_87 = arith.constant 0 : index
      %134 = vector.load %arg19[%c6_86, %c0_87] : memref<24x96xf32, #tpu.memory_space<vmem>>, vector<16x64xf32>
      %c15 = arith.constant 15 : index
      %c0_88 = arith.constant 0 : index
      %135 = vector.load %arg10[%c15, %c0_88] : memref<25x64xf32, #tpu.memory_space<vmem>>, vector<1x64xf32>
      %136 = vector.broadcast %135 : vector<1x64xf32> to vector<16x64xf32>
      %137 = arith.mulf %134, %136 : vector<16x64xf32>
      %138 = arith.addf %133, %137 : vector<16x64xf32>
      %c6_89 = arith.constant 6 : index
      %c8_90 = arith.constant 8 : index
      %139 = vector.load %arg19[%c6_89, %c8_90] : memref<24x96xf32, #tpu.memory_space<vmem>>, vector<16x64xf32>
      %c16_91 = arith.constant 16 : index
      %c0_92 = arith.constant 0 : index
      %140 = vector.load %arg10[%c16_91, %c0_92] : memref<25x64xf32, #tpu.memory_space<vmem>>, vector<1x64xf32>
      %141 = vector.broadcast %140 : vector<1x64xf32> to vector<16x64xf32>
      %142 = arith.mulf %139, %141 : vector<16x64xf32>
      %143 = arith.addf %138, %142 : vector<16x64xf32>
      %c6_93 = arith.constant 6 : index
      %c16_94 = arith.constant 16 : index
      %144 = vector.load %arg19[%c6_93, %c16_94] : memref<24x96xf32, #tpu.memory_space<vmem>>, vector<16x64xf32>
      %c17 = arith.constant 17 : index
      %c0_95 = arith.constant 0 : index
      %145 = vector.load %arg10[%c17, %c0_95] : memref<25x64xf32, #tpu.memory_space<vmem>>, vector<1x64xf32>
      %146 = vector.broadcast %145 : vector<1x64xf32> to vector<16x64xf32>
      %147 = arith.mulf %144, %146 : vector<16x64xf32>
      %148 = arith.addf %143, %147 : vector<16x64xf32>
      %c6_96 = arith.constant 6 : index
      %c24_97 = arith.constant 24 : index
      %149 = vector.load %arg19[%c6_96, %c24_97] : memref<24x96xf32, #tpu.memory_space<vmem>>, vector<16x64xf32>
      %c18 = arith.constant 18 : index
      %c0_98 = arith.constant 0 : index
      %150 = vector.load %arg10[%c18, %c0_98] : memref<25x64xf32, #tpu.memory_space<vmem>>, vector<1x64xf32>
      %151 = vector.broadcast %150 : vector<1x64xf32> to vector<16x64xf32>
      %152 = arith.mulf %149, %151 : vector<16x64xf32>
      %153 = arith.addf %148, %152 : vector<16x64xf32>
      %c6_99 = arith.constant 6 : index
      %c32_100 = arith.constant 32 : index
      %154 = vector.load %arg19[%c6_99, %c32_100] : memref<24x96xf32, #tpu.memory_space<vmem>>, vector<16x64xf32>
      %c19 = arith.constant 19 : index
      %c0_101 = arith.constant 0 : index
      %155 = vector.load %arg10[%c19, %c0_101] : memref<25x64xf32, #tpu.memory_space<vmem>>, vector<1x64xf32>
      %156 = vector.broadcast %155 : vector<1x64xf32> to vector<16x64xf32>
      %157 = arith.mulf %154, %156 : vector<16x64xf32>
      %158 = arith.addf %153, %157 : vector<16x64xf32>
      %c8_102 = arith.constant 8 : index
      %c0_103 = arith.constant 0 : index
      %159 = vector.load %arg19[%c8_102, %c0_103] : memref<24x96xf32, #tpu.memory_space<vmem>>, vector<16x64xf32>
      %c20 = arith.constant 20 : index
      %c0_104 = arith.constant 0 : index
      %160 = vector.load %arg10[%c20, %c0_104] : memref<25x64xf32, #tpu.memory_space<vmem>>, vector<1x64xf32>
      %161 = vector.broadcast %160 : vector<1x64xf32> to vector<16x64xf32>
      %162 = arith.mulf %159, %161 : vector<16x64xf32>
      %163 = arith.addf %158, %162 : vector<16x64xf32>
      %c8_105 = arith.constant 8 : index
      %c8_106 = arith.constant 8 : index
      %164 = vector.load %arg19[%c8_105, %c8_106] : memref<24x96xf32, #tpu.memory_space<vmem>>, vector<16x64xf32>
      %c21 = arith.constant 21 : index
      %c0_107 = arith.constant 0 : index
      %165 = vector.load %arg10[%c21, %c0_107] : memref<25x64xf32, #tpu.memory_space<vmem>>, vector<1x64xf32>
      %166 = vector.broadcast %165 : vector<1x64xf32> to vector<16x64xf32>
      %167 = arith.mulf %164, %166 : vector<16x64xf32>
      %168 = arith.addf %163, %167 : vector<16x64xf32>
      %c8_108 = arith.constant 8 : index
      %c16_109 = arith.constant 16 : index
      %169 = vector.load %arg19[%c8_108, %c16_109] : memref<24x96xf32, #tpu.memory_space<vmem>>, vector<16x64xf32>
      %c22 = arith.constant 22 : index
      %c0_110 = arith.constant 0 : index
      %170 = vector.load %arg10[%c22, %c0_110] : memref<25x64xf32, #tpu.memory_space<vmem>>, vector<1x64xf32>
      %171 = vector.broadcast %170 : vector<1x64xf32> to vector<16x64xf32>
      %172 = arith.mulf %169, %171 : vector<16x64xf32>
      %173 = arith.addf %168, %172 : vector<16x64xf32>
      %c8_111 = arith.constant 8 : index
      %c24_112 = arith.constant 24 : index
      %174 = vector.load %arg19[%c8_111, %c24_112] : memref<24x96xf32, #tpu.memory_space<vmem>>, vector<16x64xf32>
      %c23 = arith.constant 23 : index
      %c0_113 = arith.constant 0 : index
      %175 = vector.load %arg10[%c23, %c0_113] : memref<25x64xf32, #tpu.memory_space<vmem>>, vector<1x64xf32>
      %176 = vector.broadcast %175 : vector<1x64xf32> to vector<16x64xf32>
      %177 = arith.mulf %174, %176 : vector<16x64xf32>
      %178 = arith.addf %173, %177 : vector<16x64xf32>
      %c8_114 = arith.constant 8 : index
      %c32_115 = arith.constant 32 : index
      %179 = vector.load %arg19[%c8_114, %c32_115] : memref<24x96xf32, #tpu.memory_space<vmem>>, vector<16x64xf32>
      %c24_116 = arith.constant 24 : index
      %c0_117 = arith.constant 0 : index
      %180 = vector.load %arg10[%c24_116, %c0_117] : memref<25x64xf32, #tpu.memory_space<vmem>>, vector<1x64xf32>
      %181 = vector.broadcast %180 : vector<1x64xf32> to vector<16x64xf32>
      %182 = arith.mulf %179, %181 : vector<16x64xf32>
      %183 = arith.addf %178, %182 : vector<16x64xf32>
      %cst = arith.constant 0.000000e+00 : f32
      %184 = vector.broadcast %cst : f32 to vector<16x3xf32>
      %c0_118 = arith.constant 0 : index
      %c0_119 = arith.constant 0 : index
      %185 = vector.load %arg22[%c0_118, %c0_119] : memref<16x70xf32, #tpu.memory_space<vmem>>, vector<16x3xf32>
      tpu.vector_store %arg22[%c0_118, %c0_119], %184 {strides = array<i32>} : memref<16x70xf32, #tpu.memory_space<vmem>>, vector<16x3xf32>,
      %cst_120 = arith.constant 0.000000e+00 : f32
      %186 = vector.broadcast %cst_120 : f32 to vector<16x3xf32>
      %c0_121 = arith.constant 0 : index
      %c67 = arith.constant 67 : index
      %187 = vector.load %arg22[%c0_121, %c67] : memref<16x70xf32, #tpu.memory_space<vmem>>, vector<16x3xf32>
      tpu.vector_store %arg22[%c0_121, %c67], %186 {strides = array<i32>} : memref<16x70xf32, #tpu.memory_space<vmem>>, vector<16x3xf32>,
      %c0_122 = arith.constant 0 : index
      %c3_123 = arith.constant 3 : index
      %188 = vector.load %arg22[%c0_122, %c3_123] : memref<16x70xf32, #tpu.memory_space<vmem>>, vector<16x64xf32>
      tpu.vector_store %arg22[%c0_122, %c3_123], %183 {strides = array<i32>} : memref<16x70xf32, #tpu.memory_space<vmem>>, vector<16x64xf32>,
      %c0_124 = arith.constant 0 : index
      %c0_125 = arith.constant 0 : index
      %189 = vector.load %arg22[%c0_124, %c0_125] : memref<16x70xf32, #tpu.memory_space<vmem>>, vector<16x64xf32>
      %c0_126 = arith.constant 0 : index
      %c0_127 = arith.constant 0 : index
      %190 = vector.load %arg11[%c0_126, %c0_127] : memref<7x64xf32, #tpu.memory_space<vmem>>, vector<1x64xf32>
      %191 = vector.broadcast %190 : vector<1x64xf32> to vector<16x64xf32>
      %192 = arith.mulf %189, %191 : vector<16x64xf32>
      %c0_128 = arith.constant 0 : index
      %c1_129 = arith.constant 1 : index
      %193 = vector.load %arg22[%c0_128, %c1_129] : memref<16x70xf32, #tpu.memory_space<vmem>>, vector<16x64xf32>
      %c1_130 = arith.constant 1 : index
      %c0_131 = arith.constant 0 : index
      %194 = vector.load %arg11[%c1_130, %c0_131] : memref<7x64xf32, #tpu.memory_space<vmem>>, vector<1x64xf32>
      %195 = vector.broadcast %194 : vector<1x64xf32> to vector<16x64xf32>
      %196 = arith.mulf %193, %195 : vector<16x64xf32>
      %197 = arith.addf %192, %196 : vector<16x64xf32>
      %c0_132 = arith.constant 0 : index
      %c2_133 = arith.constant 2 : index
      %198 = vector.load %arg22[%c0_132, %c2_133] : memref<16x70xf32, #tpu.memory_space<vmem>>, vector<16x64xf32>
      %c2_134 = arith.constant 2 : index
      %c0_135 = arith.constant 0 : index
      %199 = vector.load %arg11[%c2_134, %c0_135] : memref<7x64xf32, #tpu.memory_space<vmem>>, vector<1x64xf32>
      %200 = vector.broadcast %199 : vector<1x64xf32> to vector<16x64xf32>
      %201 = arith.mulf %198, %200 : vector<16x64xf32>
      %202 = arith.addf %197, %201 : vector<16x64xf32>
      %c0_136 = arith.constant 0 : index
      %c3_137 = arith.constant 3 : index
      %203 = vector.load %arg22[%c0_136, %c3_137] : memref<16x70xf32, #tpu.memory_space<vmem>>, vector<16x64xf32>
      %c3_138 = arith.constant 3 : index
      %c0_139 = arith.constant 0 : index
      %204 = vector.load %arg11[%c3_138, %c0_139] : memref<7x64xf32, #tpu.memory_space<vmem>>, vector<1x64xf32>
      %205 = vector.broadcast %204 : vector<1x64xf32> to vector<16x64xf32>
      %206 = arith.mulf %203, %205 : vector<16x64xf32>
      %207 = arith.addf %202, %206 : vector<16x64xf32>
      %c0_140 = arith.constant 0 : index
      %c4_141 = arith.constant 4 : index
      %208 = vector.load %arg22[%c0_140, %c4_141] : memref<16x70xf32, #tpu.memory_space<vmem>>, vector<16x64xf32>
      %c4_142 = arith.constant 4 : index
      %c0_143 = arith.constant 0 : index
      %209 = vector.load %arg11[%c4_142, %c0_143] : memref<7x64xf32, #tpu.memory_space<vmem>>, vector<1x64xf32>
      %210 = vector.broadcast %209 : vector<1x64xf32> to vector<16x64xf32>
      %211 = arith.mulf %208, %210 : vector<16x64xf32>
      %212 = arith.addf %207, %211 : vector<16x64xf32>
      %c0_144 = arith.constant 0 : index
      %c5_145 = arith.constant 5 : index
      %213 = vector.load %arg22[%c0_144, %c5_145] : memref<16x70xf32, #tpu.memory_space<vmem>>, vector<16x64xf32>
      %c5_146 = arith.constant 5 : index
      %c0_147 = arith.constant 0 : index
      %214 = vector.load %arg11[%c5_146, %c0_147] : memref<7x64xf32, #tpu.memory_space<vmem>>, vector<1x64xf32>
      %215 = vector.broadcast %214 : vector<1x64xf32> to vector<16x64xf32>
      %216 = arith.mulf %213, %215 : vector<16x64xf32>
      %217 = arith.addf %212, %216 : vector<16x64xf32>
      %c0_148 = arith.constant 0 : index
      %c6_149 = arith.constant 6 : index
      %218 = vector.load %arg22[%c0_148, %c6_149] : memref<16x70xf32, #tpu.memory_space<vmem>>, vector<16x64xf32>
      %c6_150 = arith.constant 6 : index
      %c0_151 = arith.constant 0 : index
      %219 = vector.load %arg11[%c6_150, %c0_151] : memref<7x64xf32, #tpu.memory_space<vmem>>, vector<1x64xf32>
      %220 = vector.broadcast %219 : vector<1x64xf32> to vector<16x64xf32>
      %221 = arith.mulf %218, %220 : vector<16x64xf32>
      %222 = arith.addf %217, %221 : vector<16x64xf32>
      %cst_152 = arith.constant dense<0.000000e+00> : vector<64xf32>
      %223 = vector.multi_reduction <add>, %222, %cst_152 [0] : vector<16x64xf32> to vector<64xf32>
      %224 = vector.shape_cast %223 : vector<64xf32> to vector<1x64xf32>
      %225 = vector.shape_cast %224 : vector<1x64xf32> to vector<1x1x64xf32>
      %c0_153 = arith.constant 0 : index
      %c10_154 = arith.constant 10 : index
      %c0_155 = arith.constant 0 : index
      %226 = vector.load %arg18[%c0_153, %c10_154, %c0_155] : memref<1x12x64xf32, #tpu.memory_space<vmem>>, vector<1x1x64xf32>
      tpu.vector_store %arg18[%c0_153, %c10_154, %c0_155], %225 {strides = array<i32>} : memref<1x12x64xf32, #tpu.memory_space<vmem>>, vector<1x1x64xf32>,
      %227 = arith.mulf %222, %222 : vector<16x64xf32>
      %cst_156 = arith.constant dense<0.000000e+00> : vector<64xf32>
      %228 = vector.multi_reduction <add>, %227, %cst_156 [0] : vector<16x64xf32> to vector<64xf32>
      %229 = vector.shape_cast %228 : vector<64xf32> to vector<1x64xf32>
      %230 = vector.shape_cast %229 : vector<1x64xf32> to vector<1x1x64xf32>
      %c0_157 = arith.constant 0 : index
      %c11_158 = arith.constant 11 : index
      %c0_159 = arith.constant 0 : index
      %231 = vector.load %arg18[%c0_157, %c11_158, %c0_159] : memref<1x12x64xf32, #tpu.memory_space<vmem>>, vector<1x1x64xf32>
      tpu.vector_store %arg18[%c0_157, %c11_158, %c0_159], %230 {strides = array<i32>} : memref<1x12x64xf32, #tpu.memory_space<vmem>>, vector<1x1x64xf32>,
      %232 = arith.truncf %222 : vector<16x64xf32> to vector<16x64xbf16>
      %233 = vector.shape_cast %232 : vector<16x64xbf16> to vector<1x16x64xbf16>
      %c0_160 = arith.constant 0 : index
      %c0_161 = arith.constant 0 : index
      %c0_162 = arith.constant 0 : index
      %234 = vector.load %arg17[%c0_160, %c0_161, %c0_162] : memref<1x16x64xbf16, #tpu.memory_space<vmem>>, vector<1x16x64xbf16>
      tpu.vector_store %arg17[%c0_160, %c0_161, %c0_162], %233 {strides = array<i32>} : memref<1x16x64xbf16, #tpu.memory_space<vmem>>, vector<1x16x64xbf16>,
    } else {
    }
    %c7_34 = arith.constant 7 : index
    %56 = memref.load %arg1[%c7_34] : memref<8xi32, #tpu.memory_space<smem>>
    %c0_i32_35 = arith.constant 0 : i32
    %57 = arith.cmpi eq, %56, %c0_i32_35 : i32
    %58 = arith.extui %57 : i1 to i32
    %c0_i32_36 = arith.constant 0 : i32
    %59 = arith.cmpi ne, %58, %c0_i32_36 : i32
    scf.if %59 {
      %cst = arith.constant 0.000000e+00 : f32
      %60 = vector.broadcast %cst : f32 to vector<1x2x64xf32>
      %c0_37 = arith.constant 0 : index
      %c10 = arith.constant 10 : index
      %c0_38 = arith.constant 0 : index
      %61 = vector.load %arg18[%c0_37, %c10, %c0_38] : memref<1x12x64xf32, #tpu.memory_space<vmem>>, vector<1x2x64xf32>
      tpu.vector_store %arg18[%c0_37, %c10, %c0_38], %60 {strides = array<i32>} : memref<1x12x64xf32, #tpu.memory_space<vmem>>, vector<1x2x64xf32>,
      %cst_39 = arith.constant 0.000000e+00 : bf16
      %62 = vector.broadcast %cst_39 : bf16 to vector<1x16x64xbf16>
      %c0_40 = arith.constant 0 : index
      %c0_41 = arith.constant 0 : index
      %c0_42 = arith.constant 0 : index
      %63 = vector.load %arg17[%c0_40, %c0_41, %c0_42] : memref<1x16x64xbf16, #tpu.memory_space<vmem>>, vector<1x16x64xbf16>
      tpu.vector_store %arg17[%c0_40, %c0_41, %c0_42], %62 {strides = array<i32>} : memref<1x16x64xbf16, #tpu.memory_space<vmem>>, vector<1x16x64xbf16>,
    } else {
    }
    return
  }
  func.func @transform_0(%arg0: i32) -> i32 {
    %c0_i32 = arith.constant 0 : i32
    %c0_i32_0 = arith.constant 0 : i32
    return %c0_i32 : i32
  }
  func.func @transform_1(%arg0: i32) -> (i32, i32, i32) {
    %c0_i32 = arith.constant 0 : i32
    %c0_i32_0 = arith.constant 0 : i32
    %c0_i32_1 = arith.constant 0 : i32
    return %arg0, %c0_i32, %c0_i32_0 : i32, i32, i32
  }
  func.func @transform_2(%arg0: i32) -> (i32, i32) {
    %c0_i32 = arith.constant 0 : i32
    %c0_i32_0 = arith.constant 0 : i32
    %c0_i32_1 = arith.constant 0 : i32
    return %c0_i32, %c0_i32_0 : i32, i32
  }
  func.func @transform_3(%arg0: i32) -> (i32, i32) {
    %c0_i32 = arith.constant 0 : i32
    %c0_i32_0 = arith.constant 0 : i32
    %c0_i32_1 = arith.constant 0 : i32
    return %c0_i32, %c0_i32_0 : i32, i32
  }
  func.func @transform_4(%arg0: i32) -> (i32, i32) {
    %c0_i32 = arith.constant 0 : i32
    %c0_i32_0 = arith.constant 0 : i32
    %c0_i32_1 = arith.constant 0 : i32
    return %c0_i32, %c0_i32_0 : i32, i32
  }
  func.func @transform_5(%arg0: i32) -> (i32, i32) {
    %c0_i32 = arith.constant 0 : i32
    %c0_i32_0 = arith.constant 0 : i32
    %c0_i32_1 = arith.constant 0 : i32
    return %c0_i32, %c0_i32_0 : i32, i32
  }
  func.func @transform_6(%arg0: i32) -> (i32, i32) {
    %c0_i32 = arith.constant 0 : i32
    %c0_i32_0 = arith.constant 0 : i32
    %c0_i32_1 = arith.constant 0 : i32
    return %c0_i32, %c0_i32_0 : i32, i32
  }
  func.func @transform_7(%arg0: i32) -> (i32, i32) {
    %c0_i32 = arith.constant 0 : i32
    %c0_i32_0 = arith.constant 0 : i32
    %c0_i32_1 = arith.constant 0 : i32
    return %c0_i32, %c0_i32_0 : i32, i32
  }
  func.func @transform_8(%arg0: i32) -> (i32, i32) {
    %c0_i32 = arith.constant 0 : i32
    %c0_i32_0 = arith.constant 0 : i32
    %c0_i32_1 = arith.constant 0 : i32
    return %c0_i32, %c0_i32_0 : i32, i32
  }
  func.func @transform_9(%arg0: i32) -> (i32, i32) {
    %c0_i32 = arith.constant 0 : i32
    %c0_i32_0 = arith.constant 0 : i32
    %c0_i32_1 = arith.constant 0 : i32
    return %c0_i32, %c0_i32_0 : i32, i32
  }
  func.func @transform_10(%arg0: i32) -> (i32, i32) {
    %c0_i32 = arith.constant 0 : i32
    %c0_i32_0 = arith.constant 0 : i32
    %c0_i32_1 = arith.constant 0 : i32
    return %c0_i32, %c0_i32_0 : i32, i32
  }
  func.func @transform_11(%arg0: i32) -> (i32, i32, i32) {
    %c0_i32 = arith.constant 0 : i32
    %c0_i32_0 = arith.constant 0 : i32
    %c0_i32_1 = arith.constant 0 : i32
    return %arg0, %c0_i32, %c0_i32_0 : i32, i32, i32
  }
  func.func @transform_12(%arg0: i32) -> (i32, i32, i32) {
    %c0_i32 = arith.constant 0 : i32
    %c0_i32_0 = arith.constant 0 : i32
    %c0_i32_1 = arith.constant 0 : i32
    return %arg0, %c0_i32, %c0_i32_0 : i32, i32, i32
  }
  func.func @transform_13(%arg0: i32) -> (i32, i32, i32) {
    %c0_i32 = arith.constant 0 : i32
    %c0_i32_0 = arith.constant 0 : i32
    %c0_i32_1 = arith.constant 0 : i32
    return %arg0, %c0_i32, %c0_i32_0 : i32, i32, i32
  }
  func.func @transform_14(%arg0: i32) -> (i32, i32, i32) {
    %c0_i32 = arith.constant 0 : i32
    %c0_i32_0 = arith.constant 0 : i32
    %c0_i32_1 = arith.constant 0 : i32
    return %arg0, %c0_i32, %c0_i32_0 : i32, i32, i32
  }
  func.func @transform_15(%arg0: i32) -> (i32, i32, i32) {
    %c0_i32 = arith.constant 0 : i32
    %c0_i32_0 = arith.constant 0 : i32
    %c0_i32_1 = arith.constant 0 : i32
    return %arg0, %c0_i32, %c0_i32_0 : i32, i32, i32
  }
  func.func @transform_16(%arg0: i32) -> (i32, i32, i32) {
    %c0_i32 = arith.constant 0 : i32
    %c0_i32_0 = arith.constant 0 : i32
    %c0_i32_1 = arith.constant 0 : i32
    return %arg0, %c0_i32, %c0_i32_0 : i32, i32, i32
  }
  func.func @transform_17(%arg0: i32) -> (i32, i32, i32) {
    %c0_i32 = arith.constant 0 : i32
    %c0_i32_0 = arith.constant 0 : i32
    %c0_i32_1 = arith.constant 0 : i32
    return %arg0, %c0_i32, %c0_i32_0 : i32, i32, i32
  }
}

module attributes {stable_mosaic.version = 11 : i64} {
  func.func @_stage2_kernel(%arg0: i32, %arg1: memref<8xi32, #tpu.memory_space<smem>>, %arg2: memref<4x64xf32, #tpu.memory_space<vmem>>, %arg3: memref<1x16x64xbf16, #tpu.memory_space<vmem>>, %arg4: memref<1x16x64xbf16, #tpu.memory_space<vmem>>, %arg5: memref<9x64xf32, #tpu.memory_space<vmem>>, %arg6: memref<7x64xf32, #tpu.memory_space<vmem>>, %arg7: memref<25x64xf32, #tpu.memory_space<vmem>>, %arg8: memref<7x64xf32, #tpu.memory_space<vmem>>, %arg9: memref<1x16x64xbf16, #tpu.memory_space<vmem>>, %arg10: memref<1x16x64xbf16, #tpu.memory_space<vmem>>, %arg11: memref<1x4x64xf32, #tpu.memory_space<vmem>>, %arg12: memref<18x72xf32, #tpu.memory_space<vmem>>, %arg13: memref<20x80xf32, #tpu.memory_space<vmem>>, %arg14: memref<16x70xf32, #tpu.memory_space<vmem>>) attributes {dimension_semantics = [#tpu.dimension_semantics<parallel>], iteration_bounds = array<i64: 2>, scalar_prefetch = 0 : i64, scratch_operands = 3 : i64, tpu.core_type = #tpu.core_type<tc>, window_params = [{transform_indices = @transform_0, window_bounds = array<i64: 8>}, {pipeline_mode = #tpu.pipeline_mode<synchronous>, transform_indices = @transform_1, window_bounds = array<i64: 4, 64>}, {transform_indices = @transform_2, window_bounds = array<i64: 1, 16, 64>}, {transform_indices = @transform_3, window_bounds = array<i64: 1, 16, 64>}, {pipeline_mode = #tpu.pipeline_mode<synchronous>, transform_indices = @transform_4, window_bounds = array<i64: 9, 64>}, {pipeline_mode = #tpu.pipeline_mode<synchronous>, transform_indices = @transform_5, window_bounds = array<i64: 7, 64>}, {pipeline_mode = #tpu.pipeline_mode<synchronous>, transform_indices = @transform_6, window_bounds = array<i64: 25, 64>}, {pipeline_mode = #tpu.pipeline_mode<synchronous>, transform_indices = @transform_7, window_bounds = array<i64: 7, 64>}, {transform_indices = @transform_8, window_bounds = array<i64: 1, 16, 64>}, {transform_indices = @transform_9, window_bounds = array<i64: 1, 16, 64>}, {transform_indices = @transform_10, window_bounds = array<i64: 1, 4, 64>}]} {
    %c4 = arith.constant 4 : index
    %0 = memref.load %arg1[%c4] : memref<8xi32, #tpu.memory_space<smem>>
    %c0_i32 = arith.constant 0 : i32
    %1 = arith.cmpi ne, %0, %c0_i32 : i32
    %2 = arith.extui %1 : i1 to i32
    %c0_i32_0 = arith.constant 0 : i32
    %3 = arith.cmpi ne, %2, %c0_i32_0 : i32
    scf.if %3 {
      %c0 = arith.constant 0 : index
      %c0_9 = arith.constant 0 : index
      %16 = vector.load %arg2[%c0, %c0_9] : memref<4x64xf32, #tpu.memory_space<vmem>>, vector<1x64xf32>
      %c1 = arith.constant 1 : index
      %c0_10 = arith.constant 0 : index
      %17 = vector.load %arg2[%c1, %c0_10] : memref<4x64xf32, #tpu.memory_space<vmem>>, vector<1x64xf32>
      %c0_11 = arith.constant 0 : index
      %c0_12 = arith.constant 0 : index
      %c0_13 = arith.constant 0 : index
      %18 = vector.load %arg3[%c0_11, %c0_12, %c0_13] : memref<1x16x64xbf16, #tpu.memory_space<vmem>>, vector<1x16x64xbf16>
      %19 = vector.shape_cast %18 : vector<1x16x64xbf16> to vector<16x64xbf16>
      %20 = arith.extf %19 : vector<16x64xbf16> to vector<16x64xf32>
      %21 = vector.broadcast %16 : vector<1x64xf32> to vector<16x64xf32>
      %22 = arith.subf %20, %21 : vector<16x64xf32>
      %23 = vector.broadcast %17 : vector<1x64xf32> to vector<16x64xf32>
      %24 = arith.mulf %22, %23 : vector<16x64xf32>
      %cst = arith.constant 0.000000e+00 : f32
      %25 = vector.broadcast %cst : f32 to vector<1x72xf32>
      %c0_14 = arith.constant 0 : index
      %c0_15 = arith.constant 0 : index
      %26 = vector.load %arg12[%c0_14, %c0_15] : memref<18x72xf32, #tpu.memory_space<vmem>>, vector<1x72xf32>
      tpu.vector_store %arg12[%c0_14, %c0_15], %25 {strides = array<i32>} : memref<18x72xf32, #tpu.memory_space<vmem>>, vector<1x72xf32>,
      %cst_16 = arith.constant 0.000000e+00 : f32
      %27 = vector.broadcast %cst_16 : f32 to vector<1x72xf32>
      %c17 = arith.constant 17 : index
      %c0_17 = arith.constant 0 : index
      %28 = vector.load %arg12[%c17, %c0_17] : memref<18x72xf32, #tpu.memory_space<vmem>>, vector<1x72xf32>
      tpu.vector_store %arg12[%c17, %c0_17], %27 {strides = array<i32>} : memref<18x72xf32, #tpu.memory_space<vmem>>, vector<1x72xf32>,
      %cst_18 = arith.constant 0.000000e+00 : f32
      %29 = vector.broadcast %cst_18 : f32 to vector<16x4xf32>
      %c1_19 = arith.constant 1 : index
      %c0_20 = arith.constant 0 : index
      %30 = vector.load %arg12[%c1_19, %c0_20] : memref<18x72xf32, #tpu.memory_space<vmem>>, vector<16x4xf32>
      tpu.vector_store %arg12[%c1_19, %c0_20], %29 {strides = array<i32>} : memref<18x72xf32, #tpu.memory_space<vmem>>, vector<16x4xf32>,
      %cst_21 = arith.constant 0.000000e+00 : f32
      %31 = vector.broadcast %cst_21 : f32 to vector<16x4xf32>
      %c1_22 = arith.constant 1 : index
      %c68 = arith.constant 68 : index
      %32 = vector.load %arg12[%c1_22, %c68] : memref<18x72xf32, #tpu.memory_space<vmem>>, vector<16x4xf32>
      tpu.vector_store %arg12[%c1_22, %c68], %31 {strides = array<i32>} : memref<18x72xf32, #tpu.memory_space<vmem>>, vector<16x4xf32>,
      %cst_23 = arith.constant 0.000000e+00 : f32
      %33 = vector.broadcast %cst_23 : f32 to vector<16x64xf32>
      %34 = arith.maximumf %24, %33 : vector<16x64xf32>
      %c1_24 = arith.constant 1 : index
      %c4_25 = arith.constant 4 : index
      %35 = vector.load %arg12[%c1_24, %c4_25] : memref<18x72xf32, #tpu.memory_space<vmem>>, vector<16x64xf32>
      tpu.vector_store %arg12[%c1_24, %c4_25], %34 {strides = array<i32>} : memref<18x72xf32, #tpu.memory_space<vmem>>, vector<16x64xf32>,
      %c0_26 = arith.constant 0 : index
      %c0_27 = arith.constant 0 : index
      %36 = vector.load %arg12[%c0_26, %c0_27] : memref<18x72xf32, #tpu.memory_space<vmem>>, vector<16x64xf32>
      %c0_28 = arith.constant 0 : index
      %c0_29 = arith.constant 0 : index
      %37 = vector.load %arg5[%c0_28, %c0_29] : memref<9x64xf32, #tpu.memory_space<vmem>>, vector<1x64xf32>
      %38 = vector.broadcast %37 : vector<1x64xf32> to vector<16x64xf32>
      %39 = arith.mulf %36, %38 : vector<16x64xf32>
      %c0_30 = arith.constant 0 : index
      %c4_31 = arith.constant 4 : index
      %40 = vector.load %arg12[%c0_30, %c4_31] : memref<18x72xf32, #tpu.memory_space<vmem>>, vector<16x64xf32>
      %c1_32 = arith.constant 1 : index
      %c0_33 = arith.constant 0 : index
      %41 = vector.load %arg5[%c1_32, %c0_33] : memref<9x64xf32, #tpu.memory_space<vmem>>, vector<1x64xf32>
      %42 = vector.broadcast %41 : vector<1x64xf32> to vector<16x64xf32>
      %43 = arith.mulf %40, %42 : vector<16x64xf32>
      %44 = arith.addf %39, %43 : vector<16x64xf32>
      %c0_34 = arith.constant 0 : index
      %c8 = arith.constant 8 : index
      %45 = vector.load %arg12[%c0_34, %c8] : memref<18x72xf32, #tpu.memory_space<vmem>>, vector<16x64xf32>
      %c2 = arith.constant 2 : index
      %c0_35 = arith.constant 0 : index
      %46 = vector.load %arg5[%c2, %c0_35] : memref<9x64xf32, #tpu.memory_space<vmem>>, vector<1x64xf32>
      %47 = vector.broadcast %46 : vector<1x64xf32> to vector<16x64xf32>
      %48 = arith.mulf %45, %47 : vector<16x64xf32>
      %49 = arith.addf %44, %48 : vector<16x64xf32>
      %c1_36 = arith.constant 1 : index
      %c0_37 = arith.constant 0 : index
      %50 = vector.load %arg12[%c1_36, %c0_37] : memref<18x72xf32, #tpu.memory_space<vmem>>, vector<16x64xf32>
      %c3 = arith.constant 3 : index
      %c0_38 = arith.constant 0 : index
      %51 = vector.load %arg5[%c3, %c0_38] : memref<9x64xf32, #tpu.memory_space<vmem>>, vector<1x64xf32>
      %52 = vector.broadcast %51 : vector<1x64xf32> to vector<16x64xf32>
      %53 = arith.mulf %50, %52 : vector<16x64xf32>
      %54 = arith.addf %49, %53 : vector<16x64xf32>
      %c1_39 = arith.constant 1 : index
      %c4_40 = arith.constant 4 : index
      %55 = vector.load %arg12[%c1_39, %c4_40] : memref<18x72xf32, #tpu.memory_space<vmem>>, vector<16x64xf32>
      %c4_41 = arith.constant 4 : index
      %c0_42 = arith.constant 0 : index
      %56 = vector.load %arg5[%c4_41, %c0_42] : memref<9x64xf32, #tpu.memory_space<vmem>>, vector<1x64xf32>
      %57 = vector.broadcast %56 : vector<1x64xf32> to vector<16x64xf32>
      %58 = arith.mulf %55, %57 : vector<16x64xf32>
      %59 = arith.addf %54, %58 : vector<16x64xf32>
      %c1_43 = arith.constant 1 : index
      %c8_44 = arith.constant 8 : index
      %60 = vector.load %arg12[%c1_43, %c8_44] : memref<18x72xf32, #tpu.memory_space<vmem>>, vector<16x64xf32>
      %c5_45 = arith.constant 5 : index
      %c0_46 = arith.constant 0 : index
      %61 = vector.load %arg5[%c5_45, %c0_46] : memref<9x64xf32, #tpu.memory_space<vmem>>, vector<1x64xf32>
      %62 = vector.broadcast %61 : vector<1x64xf32> to vector<16x64xf32>
      %63 = arith.mulf %60, %62 : vector<16x64xf32>
      %64 = arith.addf %59, %63 : vector<16x64xf32>
      %c2_47 = arith.constant 2 : index
      %c0_48 = arith.constant 0 : index
      %65 = vector.load %arg12[%c2_47, %c0_48] : memref<18x72xf32, #tpu.memory_space<vmem>>, vector<16x64xf32>
      %c6 = arith.constant 6 : index
      %c0_49 = arith.constant 0 : index
      %66 = vector.load %arg5[%c6, %c0_49] : memref<9x64xf32, #tpu.memory_space<vmem>>, vector<1x64xf32>
      %67 = vector.broadcast %66 : vector<1x64xf32> to vector<16x64xf32>
      %68 = arith.mulf %65, %67 : vector<16x64xf32>
      %69 = arith.addf %64, %68 : vector<16x64xf32>
      %c2_50 = arith.constant 2 : index
      %c4_51 = arith.constant 4 : index
      %70 = vector.load %arg12[%c2_50, %c4_51] : memref<18x72xf32, #tpu.memory_space<vmem>>, vector<16x64xf32>
      %c7 = arith.constant 7 : index
      %c0_52 = arith.constant 0 : index
      %71 = vector.load %arg5[%c7, %c0_52] : memref<9x64xf32, #tpu.memory_space<vmem>>, vector<1x64xf32>
      %72 = vector.broadcast %71 : vector<1x64xf32> to vector<16x64xf32>
      %73 = arith.mulf %70, %72 : vector<16x64xf32>
      %74 = arith.addf %69, %73 : vector<16x64xf32>
      %c2_53 = arith.constant 2 : index
      %c8_54 = arith.constant 8 : index
      %75 = vector.load %arg12[%c2_53, %c8_54] : memref<18x72xf32, #tpu.memory_space<vmem>>, vector<16x64xf32>
      %c8_55 = arith.constant 8 : index
      %c0_56 = arith.constant 0 : index
      %76 = vector.load %arg5[%c8_55, %c0_56] : memref<9x64xf32, #tpu.memory_space<vmem>>, vector<1x64xf32>
      %77 = vector.broadcast %76 : vector<1x64xf32> to vector<16x64xf32>
      %78 = arith.mulf %75, %77 : vector<16x64xf32>
      %79 = arith.addf %74, %78 : vector<16x64xf32>
      %cst_57 = arith.constant 0.000000e+00 : f32
      %80 = vector.broadcast %cst_57 : f32 to vector<16x3xf32>
      %c0_58 = arith.constant 0 : index
      %c0_59 = arith.constant 0 : index
      %81 = vector.load %arg14[%c0_58, %c0_59] : memref<16x70xf32, #tpu.memory_space<vmem>>, vector<16x3xf32>
      tpu.vector_store %arg14[%c0_58, %c0_59], %80 {strides = array<i32>} : memref<16x70xf32, #tpu.memory_space<vmem>>, vector<16x3xf32>,
      %cst_60 = arith.constant 0.000000e+00 : f32
      %82 = vector.broadcast %cst_60 : f32 to vector<16x3xf32>
      %c0_61 = arith.constant 0 : index
      %c67 = arith.constant 67 : index
      %83 = vector.load %arg14[%c0_61, %c67] : memref<16x70xf32, #tpu.memory_space<vmem>>, vector<16x3xf32>
      tpu.vector_store %arg14[%c0_61, %c67], %82 {strides = array<i32>} : memref<16x70xf32, #tpu.memory_space<vmem>>, vector<16x3xf32>,
      %c0_62 = arith.constant 0 : index
      %c3_63 = arith.constant 3 : index
      %84 = vector.load %arg14[%c0_62, %c3_63] : memref<16x70xf32, #tpu.memory_space<vmem>>, vector<16x64xf32>
      tpu.vector_store %arg14[%c0_62, %c3_63], %79 {strides = array<i32>} : memref<16x70xf32, #tpu.memory_space<vmem>>, vector<16x64xf32>,
      %c0_64 = arith.constant 0 : index
      %c0_65 = arith.constant 0 : index
      %85 = vector.load %arg14[%c0_64, %c0_65] : memref<16x70xf32, #tpu.memory_space<vmem>>, vector<16x64xf32>
      %c0_66 = arith.constant 0 : index
      %c0_67 = arith.constant 0 : index
      %86 = vector.load %arg6[%c0_66, %c0_67] : memref<7x64xf32, #tpu.memory_space<vmem>>, vector<1x64xf32>
      %87 = vector.broadcast %86 : vector<1x64xf32> to vector<16x64xf32>
      %88 = arith.mulf %85, %87 : vector<16x64xf32>
      %c0_68 = arith.constant 0 : index
      %c1_69 = arith.constant 1 : index
      %89 = vector.load %arg14[%c0_68, %c1_69] : memref<16x70xf32, #tpu.memory_space<vmem>>, vector<16x64xf32>
      %c1_70 = arith.constant 1 : index
      %c0_71 = arith.constant 0 : index
      %90 = vector.load %arg6[%c1_70, %c0_71] : memref<7x64xf32, #tpu.memory_space<vmem>>, vector<1x64xf32>
      %91 = vector.broadcast %90 : vector<1x64xf32> to vector<16x64xf32>
      %92 = arith.mulf %89, %91 : vector<16x64xf32>
      %93 = arith.addf %88, %92 : vector<16x64xf32>
      %c0_72 = arith.constant 0 : index
      %c2_73 = arith.constant 2 : index
      %94 = vector.load %arg14[%c0_72, %c2_73] : memref<16x70xf32, #tpu.memory_space<vmem>>, vector<16x64xf32>
      %c2_74 = arith.constant 2 : index
      %c0_75 = arith.constant 0 : index
      %95 = vector.load %arg6[%c2_74, %c0_75] : memref<7x64xf32, #tpu.memory_space<vmem>>, vector<1x64xf32>
      %96 = vector.broadcast %95 : vector<1x64xf32> to vector<16x64xf32>
      %97 = arith.mulf %94, %96 : vector<16x64xf32>
      %98 = arith.addf %93, %97 : vector<16x64xf32>
      %c0_76 = arith.constant 0 : index
      %c3_77 = arith.constant 3 : index
      %99 = vector.load %arg14[%c0_76, %c3_77] : memref<16x70xf32, #tpu.memory_space<vmem>>, vector<16x64xf32>
      %c3_78 = arith.constant 3 : index
      %c0_79 = arith.constant 0 : index
      %100 = vector.load %arg6[%c3_78, %c0_79] : memref<7x64xf32, #tpu.memory_space<vmem>>, vector<1x64xf32>
      %101 = vector.broadcast %100 : vector<1x64xf32> to vector<16x64xf32>
      %102 = arith.mulf %99, %101 : vector<16x64xf32>
      %103 = arith.addf %98, %102 : vector<16x64xf32>
      %c0_80 = arith.constant 0 : index
      %c4_81 = arith.constant 4 : index
      %104 = vector.load %arg14[%c0_80, %c4_81] : memref<16x70xf32, #tpu.memory_space<vmem>>, vector<16x64xf32>
      %c4_82 = arith.constant 4 : index
      %c0_83 = arith.constant 0 : index
      %105 = vector.load %arg6[%c4_82, %c0_83] : memref<7x64xf32, #tpu.memory_space<vmem>>, vector<1x64xf32>
      %106 = vector.broadcast %105 : vector<1x64xf32> to vector<16x64xf32>
      %107 = arith.mulf %104, %106 : vector<16x64xf32>
      %108 = arith.addf %103, %107 : vector<16x64xf32>
      %c0_84 = arith.constant 0 : index
      %c5_85 = arith.constant 5 : index
      %109 = vector.load %arg14[%c0_84, %c5_85] : memref<16x70xf32, #tpu.memory_space<vmem>>, vector<16x64xf32>
      %c5_86 = arith.constant 5 : index
      %c0_87 = arith.constant 0 : index
      %110 = vector.load %arg6[%c5_86, %c0_87] : memref<7x64xf32, #tpu.memory_space<vmem>>, vector<1x64xf32>
      %111 = vector.broadcast %110 : vector<1x64xf32> to vector<16x64xf32>
      %112 = arith.mulf %109, %111 : vector<16x64xf32>
      %113 = arith.addf %108, %112 : vector<16x64xf32>
      %c0_88 = arith.constant 0 : index
      %c6_89 = arith.constant 6 : index
      %114 = vector.load %arg14[%c0_88, %c6_89] : memref<16x70xf32, #tpu.memory_space<vmem>>, vector<16x64xf32>
      %c6_90 = arith.constant 6 : index
      %c0_91 = arith.constant 0 : index
      %115 = vector.load %arg6[%c6_90, %c0_91] : memref<7x64xf32, #tpu.memory_space<vmem>>, vector<1x64xf32>
      %116 = vector.broadcast %115 : vector<1x64xf32> to vector<16x64xf32>
      %117 = arith.mulf %114, %116 : vector<16x64xf32>
      %118 = arith.addf %113, %117 : vector<16x64xf32>
      %cst_92 = arith.constant dense<0.000000e+00> : vector<64xf32>
      %119 = vector.multi_reduction <add>, %118, %cst_92 [0] : vector<16x64xf32> to vector<64xf32>
      %120 = vector.shape_cast %119 : vector<64xf32> to vector<1x64xf32>
      %121 = vector.shape_cast %120 : vector<1x64xf32> to vector<1x1x64xf32>
      %c0_93 = arith.constant 0 : index
      %c0_94 = arith.constant 0 : index
      %c0_95 = arith.constant 0 : index
      %122 = vector.load %arg11[%c0_93, %c0_94, %c0_95] : memref<1x4x64xf32, #tpu.memory_space<vmem>>, vector<1x1x64xf32>
      tpu.vector_store %arg11[%c0_93, %c0_94, %c0_95], %121 {strides = array<i32>} : memref<1x4x64xf32, #tpu.memory_space<vmem>>, vector<1x1x64xf32>,
      %123 = arith.mulf %118, %118 : vector<16x64xf32>
      %cst_96 = arith.constant dense<0.000000e+00> : vector<64xf32>
      %124 = vector.multi_reduction <add>, %123, %cst_96 [0] : vector<16x64xf32> to vector<64xf32>
      %125 = vector.shape_cast %124 : vector<64xf32> to vector<1x64xf32>
      %126 = vector.shape_cast %125 : vector<1x64xf32> to vector<1x1x64xf32>
      %c0_97 = arith.constant 0 : index
      %c1_98 = arith.constant 1 : index
      %c0_99 = arith.constant 0 : index
      %127 = vector.load %arg11[%c0_97, %c1_98, %c0_99] : memref<1x4x64xf32, #tpu.memory_space<vmem>>, vector<1x1x64xf32>
      tpu.vector_store %arg11[%c0_97, %c1_98, %c0_99], %126 {strides = array<i32>} : memref<1x4x64xf32, #tpu.memory_space<vmem>>, vector<1x1x64xf32>,
      %128 = arith.truncf %118 : vector<16x64xf32> to vector<16x64xbf16>
      %129 = vector.shape_cast %128 : vector<16x64xbf16> to vector<1x16x64xbf16>
      %c0_100 = arith.constant 0 : index
      %c0_101 = arith.constant 0 : index
      %c0_102 = arith.constant 0 : index
      %130 = vector.load %arg9[%c0_100, %c0_101, %c0_102] : memref<1x16x64xbf16, #tpu.memory_space<vmem>>, vector<1x16x64xbf16>
      tpu.vector_store %arg9[%c0_100, %c0_101, %c0_102], %129 {strides = array<i32>} : memref<1x16x64xbf16, #tpu.memory_space<vmem>>, vector<1x16x64xbf16>,
    } else {
    }
    %c4_1 = arith.constant 4 : index
    %4 = memref.load %arg1[%c4_1] : memref<8xi32, #tpu.memory_space<smem>>
    %c0_i32_2 = arith.constant 0 : i32
    %5 = arith.cmpi eq, %4, %c0_i32_2 : i32
    %6 = arith.extui %5 : i1 to i32
    %c0_i32_3 = arith.constant 0 : i32
    %7 = arith.cmpi ne, %6, %c0_i32_3 : i32
    scf.if %7 {
      %cst = arith.constant 0.000000e+00 : f32
      %16 = vector.broadcast %cst : f32 to vector<1x2x64xf32>
      %c0 = arith.constant 0 : index
      %c0_9 = arith.constant 0 : index
      %c0_10 = arith.constant 0 : index
      %17 = vector.load %arg11[%c0, %c0_9, %c0_10] : memref<1x4x64xf32, #tpu.memory_space<vmem>>, vector<1x2x64xf32>
      tpu.vector_store %arg11[%c0, %c0_9, %c0_10], %16 {strides = array<i32>} : memref<1x4x64xf32, #tpu.memory_space<vmem>>, vector<1x2x64xf32>,
      %cst_11 = arith.constant 0.000000e+00 : bf16
      %18 = vector.broadcast %cst_11 : bf16 to vector<1x16x64xbf16>
      %c0_12 = arith.constant 0 : index
      %c0_13 = arith.constant 0 : index
      %c0_14 = arith.constant 0 : index
      %19 = vector.load %arg9[%c0_12, %c0_13, %c0_14] : memref<1x16x64xbf16, #tpu.memory_space<vmem>>, vector<1x16x64xbf16>
      tpu.vector_store %arg9[%c0_12, %c0_13, %c0_14], %18 {strides = array<i32>} : memref<1x16x64xbf16, #tpu.memory_space<vmem>>, vector<1x16x64xbf16>,
    } else {
    }
    %c5 = arith.constant 5 : index
    %8 = memref.load %arg1[%c5] : memref<8xi32, #tpu.memory_space<smem>>
    %c0_i32_4 = arith.constant 0 : i32
    %9 = arith.cmpi ne, %8, %c0_i32_4 : i32
    %10 = arith.extui %9 : i1 to i32
    %c0_i32_5 = arith.constant 0 : i32
    %11 = arith.cmpi ne, %10, %c0_i32_5 : i32
    scf.if %11 {
      %c2 = arith.constant 2 : index
      %c0 = arith.constant 0 : index
      %16 = vector.load %arg2[%c2, %c0] : memref<4x64xf32, #tpu.memory_space<vmem>>, vector<1x64xf32>
      %c3 = arith.constant 3 : index
      %c0_9 = arith.constant 0 : index
      %17 = vector.load %arg2[%c3, %c0_9] : memref<4x64xf32, #tpu.memory_space<vmem>>, vector<1x64xf32>
      %c0_10 = arith.constant 0 : index
      %c0_11 = arith.constant 0 : index
      %c0_12 = arith.constant 0 : index
      %18 = vector.load %arg4[%c0_10, %c0_11, %c0_12] : memref<1x16x64xbf16, #tpu.memory_space<vmem>>, vector<1x16x64xbf16>
      %19 = vector.shape_cast %18 : vector<1x16x64xbf16> to vector<16x64xbf16>
      %20 = arith.extf %19 : vector<16x64xbf16> to vector<16x64xf32>
      %21 = vector.broadcast %16 : vector<1x64xf32> to vector<16x64xf32>
      %22 = arith.subf %20, %21 : vector<16x64xf32>
      %23 = vector.broadcast %17 : vector<1x64xf32> to vector<16x64xf32>
      %24 = arith.mulf %22, %23 : vector<16x64xf32>
      %cst = arith.constant 0.000000e+00 : f32
      %25 = vector.broadcast %cst : f32 to vector<2x80xf32>
      %c0_13 = arith.constant 0 : index
      %c0_14 = arith.constant 0 : index
      %26 = vector.load %arg13[%c0_13, %c0_14] : memref<20x80xf32, #tpu.memory_space<vmem>>, vector<2x80xf32>
      tpu.vector_store %arg13[%c0_13, %c0_14], %25 {strides = array<i32>} : memref<20x80xf32, #tpu.memory_space<vmem>>, vector<2x80xf32>,
      %cst_15 = arith.constant 0.000000e+00 : f32
      %27 = vector.broadcast %cst_15 : f32 to vector<2x80xf32>
      %c18 = arith.constant 18 : index
      %c0_16 = arith.constant 0 : index
      %28 = vector.load %arg13[%c18, %c0_16] : memref<20x80xf32, #tpu.memory_space<vmem>>, vector<2x80xf32>
      tpu.vector_store %arg13[%c18, %c0_16], %27 {strides = array<i32>} : memref<20x80xf32, #tpu.memory_space<vmem>>, vector<2x80xf32>,
      %cst_17 = arith.constant 0.000000e+00 : f32
      %29 = vector.broadcast %cst_17 : f32 to vector<16x8xf32>
      %c2_18 = arith.constant 2 : index
      %c0_19 = arith.constant 0 : index
      %30 = vector.load %arg13[%c2_18, %c0_19] : memref<20x80xf32, #tpu.memory_space<vmem>>, vector<16x8xf32>
      tpu.vector_store %arg13[%c2_18, %c0_19], %29 {strides = array<i32>} : memref<20x80xf32, #tpu.memory_space<vmem>>, vector<16x8xf32>,
      %cst_20 = arith.constant 0.000000e+00 : f32
      %31 = vector.broadcast %cst_20 : f32 to vector<16x8xf32>
      %c2_21 = arith.constant 2 : index
      %c72 = arith.constant 72 : index
      %32 = vector.load %arg13[%c2_21, %c72] : memref<20x80xf32, #tpu.memory_space<vmem>>, vector<16x8xf32>
      tpu.vector_store %arg13[%c2_21, %c72], %31 {strides = array<i32>} : memref<20x80xf32, #tpu.memory_space<vmem>>, vector<16x8xf32>,
      %cst_22 = arith.constant 0.000000e+00 : f32
      %33 = vector.broadcast %cst_22 : f32 to vector<16x64xf32>
      %34 = arith.maximumf %24, %33 : vector<16x64xf32>
      %c2_23 = arith.constant 2 : index
      %c8 = arith.constant 8 : index
      %35 = vector.load %arg13[%c2_23, %c8] : memref<20x80xf32, #tpu.memory_space<vmem>>, vector<16x64xf32>
      tpu.vector_store %arg13[%c2_23, %c8], %34 {strides = array<i32>} : memref<20x80xf32, #tpu.memory_space<vmem>>, vector<16x64xf32>,
      %c0_24 = arith.constant 0 : index
      %c0_25 = arith.constant 0 : index
      %36 = vector.load %arg13[%c0_24, %c0_25] : memref<20x80xf32, #tpu.memory_space<vmem>>, vector<16x64xf32>
      %c0_26 = arith.constant 0 : index
      %c0_27 = arith.constant 0 : index
      %37 = vector.load %arg7[%c0_26, %c0_27] : memref<25x64xf32, #tpu.memory_space<vmem>>, vector<1x64xf32>
      %38 = vector.broadcast %37 : vector<1x64xf32> to vector<16x64xf32>
      %39 = arith.mulf %36, %38 : vector<16x64xf32>
      %c0_28 = arith.constant 0 : index
      %c4_29 = arith.constant 4 : index
      %40 = vector.load %arg13[%c0_28, %c4_29] : memref<20x80xf32, #tpu.memory_space<vmem>>, vector<16x64xf32>
      %c1 = arith.constant 1 : index
      %c0_30 = arith.constant 0 : index
      %41 = vector.load %arg7[%c1, %c0_30] : memref<25x64xf32, #tpu.memory_space<vmem>>, vector<1x64xf32>
      %42 = vector.broadcast %41 : vector<1x64xf32> to vector<16x64xf32>
      %43 = arith.mulf %40, %42 : vector<16x64xf32>
      %44 = arith.addf %39, %43 : vector<16x64xf32>
      %c0_31 = arith.constant 0 : index
      %c8_32 = arith.constant 8 : index
      %45 = vector.load %arg13[%c0_31, %c8_32] : memref<20x80xf32, #tpu.memory_space<vmem>>, vector<16x64xf32>
      %c2_33 = arith.constant 2 : index
      %c0_34 = arith.constant 0 : index
      %46 = vector.load %arg7[%c2_33, %c0_34] : memref<25x64xf32, #tpu.memory_space<vmem>>, vector<1x64xf32>
      %47 = vector.broadcast %46 : vector<1x64xf32> to vector<16x64xf32>
      %48 = arith.mulf %45, %47 : vector<16x64xf32>
      %49 = arith.addf %44, %48 : vector<16x64xf32>
      %c0_35 = arith.constant 0 : index
      %c12 = arith.constant 12 : index
      %50 = vector.load %arg13[%c0_35, %c12] : memref<20x80xf32, #tpu.memory_space<vmem>>, vector<16x64xf32>
      %c3_36 = arith.constant 3 : index
      %c0_37 = arith.constant 0 : index
      %51 = vector.load %arg7[%c3_36, %c0_37] : memref<25x64xf32, #tpu.memory_space<vmem>>, vector<1x64xf32>
      %52 = vector.broadcast %51 : vector<1x64xf32> to vector<16x64xf32>
      %53 = arith.mulf %50, %52 : vector<16x64xf32>
      %54 = arith.addf %49, %53 : vector<16x64xf32>
      %c0_38 = arith.constant 0 : index
      %c16 = arith.constant 16 : index
      %55 = vector.load %arg13[%c0_38, %c16] : memref<20x80xf32, #tpu.memory_space<vmem>>, vector<16x64xf32>
      %c4_39 = arith.constant 4 : index
      %c0_40 = arith.constant 0 : index
      %56 = vector.load %arg7[%c4_39, %c0_40] : memref<25x64xf32, #tpu.memory_space<vmem>>, vector<1x64xf32>
      %57 = vector.broadcast %56 : vector<1x64xf32> to vector<16x64xf32>
      %58 = arith.mulf %55, %57 : vector<16x64xf32>
      %59 = arith.addf %54, %58 : vector<16x64xf32>
      %c1_41 = arith.constant 1 : index
      %c0_42 = arith.constant 0 : index
      %60 = vector.load %arg13[%c1_41, %c0_42] : memref<20x80xf32, #tpu.memory_space<vmem>>, vector<16x64xf32>
      %c5_43 = arith.constant 5 : index
      %c0_44 = arith.constant 0 : index
      %61 = vector.load %arg7[%c5_43, %c0_44] : memref<25x64xf32, #tpu.memory_space<vmem>>, vector<1x64xf32>
      %62 = vector.broadcast %61 : vector<1x64xf32> to vector<16x64xf32>
      %63 = arith.mulf %60, %62 : vector<16x64xf32>
      %64 = arith.addf %59, %63 : vector<16x64xf32>
      %c1_45 = arith.constant 1 : index
      %c4_46 = arith.constant 4 : index
      %65 = vector.load %arg13[%c1_45, %c4_46] : memref<20x80xf32, #tpu.memory_space<vmem>>, vector<16x64xf32>
      %c6 = arith.constant 6 : index
      %c0_47 = arith.constant 0 : index
      %66 = vector.load %arg7[%c6, %c0_47] : memref<25x64xf32, #tpu.memory_space<vmem>>, vector<1x64xf32>
      %67 = vector.broadcast %66 : vector<1x64xf32> to vector<16x64xf32>
      %68 = arith.mulf %65, %67 : vector<16x64xf32>
      %69 = arith.addf %64, %68 : vector<16x64xf32>
      %c1_48 = arith.constant 1 : index
      %c8_49 = arith.constant 8 : index
      %70 = vector.load %arg13[%c1_48, %c8_49] : memref<20x80xf32, #tpu.memory_space<vmem>>, vector<16x64xf32>
      %c7 = arith.constant 7 : index
      %c0_50 = arith.constant 0 : index
      %71 = vector.load %arg7[%c7, %c0_50] : memref<25x64xf32, #tpu.memory_space<vmem>>, vector<1x64xf32>
      %72 = vector.broadcast %71 : vector<1x64xf32> to vector<16x64xf32>
      %73 = arith.mulf %70, %72 : vector<16x64xf32>
      %74 = arith.addf %69, %73 : vector<16x64xf32>
      %c1_51 = arith.constant 1 : index
      %c12_52 = arith.constant 12 : index
      %75 = vector.load %arg13[%c1_51, %c12_52] : memref<20x80xf32, #tpu.memory_space<vmem>>, vector<16x64xf32>
      %c8_53 = arith.constant 8 : index
      %c0_54 = arith.constant 0 : index
      %76 = vector.load %arg7[%c8_53, %c0_54] : memref<25x64xf32, #tpu.memory_space<vmem>>, vector<1x64xf32>
      %77 = vector.broadcast %76 : vector<1x64xf32> to vector<16x64xf32>
      %78 = arith.mulf %75, %77 : vector<16x64xf32>
      %79 = arith.addf %74, %78 : vector<16x64xf32>
      %c1_55 = arith.constant 1 : index
      %c16_56 = arith.constant 16 : index
      %80 = vector.load %arg13[%c1_55, %c16_56] : memref<20x80xf32, #tpu.memory_space<vmem>>, vector<16x64xf32>
      %c9 = arith.constant 9 : index
      %c0_57 = arith.constant 0 : index
      %81 = vector.load %arg7[%c9, %c0_57] : memref<25x64xf32, #tpu.memory_space<vmem>>, vector<1x64xf32>
      %82 = vector.broadcast %81 : vector<1x64xf32> to vector<16x64xf32>
      %83 = arith.mulf %80, %82 : vector<16x64xf32>
      %84 = arith.addf %79, %83 : vector<16x64xf32>
      %c2_58 = arith.constant 2 : index
      %c0_59 = arith.constant 0 : index
      %85 = vector.load %arg13[%c2_58, %c0_59] : memref<20x80xf32, #tpu.memory_space<vmem>>, vector<16x64xf32>
      %c10 = arith.constant 10 : index
      %c0_60 = arith.constant 0 : index
      %86 = vector.load %arg7[%c10, %c0_60] : memref<25x64xf32, #tpu.memory_space<vmem>>, vector<1x64xf32>
      %87 = vector.broadcast %86 : vector<1x64xf32> to vector<16x64xf32>
      %88 = arith.mulf %85, %87 : vector<16x64xf32>
      %89 = arith.addf %84, %88 : vector<16x64xf32>
      %c2_61 = arith.constant 2 : index
      %c4_62 = arith.constant 4 : index
      %90 = vector.load %arg13[%c2_61, %c4_62] : memref<20x80xf32, #tpu.memory_space<vmem>>, vector<16x64xf32>
      %c11 = arith.constant 11 : index
      %c0_63 = arith.constant 0 : index
      %91 = vector.load %arg7[%c11, %c0_63] : memref<25x64xf32, #tpu.memory_space<vmem>>, vector<1x64xf32>
      %92 = vector.broadcast %91 : vector<1x64xf32> to vector<16x64xf32>
      %93 = arith.mulf %90, %92 : vector<16x64xf32>
      %94 = arith.addf %89, %93 : vector<16x64xf32>
      %c2_64 = arith.constant 2 : index
      %c8_65 = arith.constant 8 : index
      %95 = vector.load %arg13[%c2_64, %c8_65] : memref<20x80xf32, #tpu.memory_space<vmem>>, vector<16x64xf32>
      %c12_66 = arith.constant 12 : index
      %c0_67 = arith.constant 0 : index
      %96 = vector.load %arg7[%c12_66, %c0_67] : memref<25x64xf32, #tpu.memory_space<vmem>>, vector<1x64xf32>
      %97 = vector.broadcast %96 : vector<1x64xf32> to vector<16x64xf32>
      %98 = arith.mulf %95, %97 : vector<16x64xf32>
      %99 = arith.addf %94, %98 : vector<16x64xf32>
      %c2_68 = arith.constant 2 : index
      %c12_69 = arith.constant 12 : index
      %100 = vector.load %arg13[%c2_68, %c12_69] : memref<20x80xf32, #tpu.memory_space<vmem>>, vector<16x64xf32>
      %c13 = arith.constant 13 : index
      %c0_70 = arith.constant 0 : index
      %101 = vector.load %arg7[%c13, %c0_70] : memref<25x64xf32, #tpu.memory_space<vmem>>, vector<1x64xf32>
      %102 = vector.broadcast %101 : vector<1x64xf32> to vector<16x64xf32>
      %103 = arith.mulf %100, %102 : vector<16x64xf32>
      %104 = arith.addf %99, %103 : vector<16x64xf32>
      %c2_71 = arith.constant 2 : index
      %c16_72 = arith.constant 16 : index
      %105 = vector.load %arg13[%c2_71, %c16_72] : memref<20x80xf32, #tpu.memory_space<vmem>>, vector<16x64xf32>
      %c14 = arith.constant 14 : index
      %c0_73 = arith.constant 0 : index
      %106 = vector.load %arg7[%c14, %c0_73] : memref<25x64xf32, #tpu.memory_space<vmem>>, vector<1x64xf32>
      %107 = vector.broadcast %106 : vector<1x64xf32> to vector<16x64xf32>
      %108 = arith.mulf %105, %107 : vector<16x64xf32>
      %109 = arith.addf %104, %108 : vector<16x64xf32>
      %c3_74 = arith.constant 3 : index
      %c0_75 = arith.constant 0 : index
      %110 = vector.load %arg13[%c3_74, %c0_75] : memref<20x80xf32, #tpu.memory_space<vmem>>, vector<16x64xf32>
      %c15 = arith.constant 15 : index
      %c0_76 = arith.constant 0 : index
      %111 = vector.load %arg7[%c15, %c0_76] : memref<25x64xf32, #tpu.memory_space<vmem>>, vector<1x64xf32>
      %112 = vector.broadcast %111 : vector<1x64xf32> to vector<16x64xf32>
      %113 = arith.mulf %110, %112 : vector<16x64xf32>
      %114 = arith.addf %109, %113 : vector<16x64xf32>
      %c3_77 = arith.constant 3 : index
      %c4_78 = arith.constant 4 : index
      %115 = vector.load %arg13[%c3_77, %c4_78] : memref<20x80xf32, #tpu.memory_space<vmem>>, vector<16x64xf32>
      %c16_79 = arith.constant 16 : index
      %c0_80 = arith.constant 0 : index
      %116 = vector.load %arg7[%c16_79, %c0_80] : memref<25x64xf32, #tpu.memory_space<vmem>>, vector<1x64xf32>
      %117 = vector.broadcast %116 : vector<1x64xf32> to vector<16x64xf32>
      %118 = arith.mulf %115, %117 : vector<16x64xf32>
      %119 = arith.addf %114, %118 : vector<16x64xf32>
      %c3_81 = arith.constant 3 : index
      %c8_82 = arith.constant 8 : index
      %120 = vector.load %arg13[%c3_81, %c8_82] : memref<20x80xf32, #tpu.memory_space<vmem>>, vector<16x64xf32>
      %c17 = arith.constant 17 : index
      %c0_83 = arith.constant 0 : index
      %121 = vector.load %arg7[%c17, %c0_83] : memref<25x64xf32, #tpu.memory_space<vmem>>, vector<1x64xf32>
      %122 = vector.broadcast %121 : vector<1x64xf32> to vector<16x64xf32>
      %123 = arith.mulf %120, %122 : vector<16x64xf32>
      %124 = arith.addf %119, %123 : vector<16x64xf32>
      %c3_84 = arith.constant 3 : index
      %c12_85 = arith.constant 12 : index
      %125 = vector.load %arg13[%c3_84, %c12_85] : memref<20x80xf32, #tpu.memory_space<vmem>>, vector<16x64xf32>
      %c18_86 = arith.constant 18 : index
      %c0_87 = arith.constant 0 : index
      %126 = vector.load %arg7[%c18_86, %c0_87] : memref<25x64xf32, #tpu.memory_space<vmem>>, vector<1x64xf32>
      %127 = vector.broadcast %126 : vector<1x64xf32> to vector<16x64xf32>
      %128 = arith.mulf %125, %127 : vector<16x64xf32>
      %129 = arith.addf %124, %128 : vector<16x64xf32>
      %c3_88 = arith.constant 3 : index
      %c16_89 = arith.constant 16 : index
      %130 = vector.load %arg13[%c3_88, %c16_89] : memref<20x80xf32, #tpu.memory_space<vmem>>, vector<16x64xf32>
      %c19 = arith.constant 19 : index
      %c0_90 = arith.constant 0 : index
      %131 = vector.load %arg7[%c19, %c0_90] : memref<25x64xf32, #tpu.memory_space<vmem>>, vector<1x64xf32>
      %132 = vector.broadcast %131 : vector<1x64xf32> to vector<16x64xf32>
      %133 = arith.mulf %130, %132 : vector<16x64xf32>
      %134 = arith.addf %129, %133 : vector<16x64xf32>
      %c4_91 = arith.constant 4 : index
      %c0_92 = arith.constant 0 : index
      %135 = vector.load %arg13[%c4_91, %c0_92] : memref<20x80xf32, #tpu.memory_space<vmem>>, vector<16x64xf32>
      %c20 = arith.constant 20 : index
      %c0_93 = arith.constant 0 : index
      %136 = vector.load %arg7[%c20, %c0_93] : memref<25x64xf32, #tpu.memory_space<vmem>>, vector<1x64xf32>
      %137 = vector.broadcast %136 : vector<1x64xf32> to vector<16x64xf32>
      %138 = arith.mulf %135, %137 : vector<16x64xf32>
      %139 = arith.addf %134, %138 : vector<16x64xf32>
      %c4_94 = arith.constant 4 : index
      %c4_95 = arith.constant 4 : index
      %140 = vector.load %arg13[%c4_94, %c4_95] : memref<20x80xf32, #tpu.memory_space<vmem>>, vector<16x64xf32>
      %c21 = arith.constant 21 : index
      %c0_96 = arith.constant 0 : index
      %141 = vector.load %arg7[%c21, %c0_96] : memref<25x64xf32, #tpu.memory_space<vmem>>, vector<1x64xf32>
      %142 = vector.broadcast %141 : vector<1x64xf32> to vector<16x64xf32>
      %143 = arith.mulf %140, %142 : vector<16x64xf32>
      %144 = arith.addf %139, %143 : vector<16x64xf32>
      %c4_97 = arith.constant 4 : index
      %c8_98 = arith.constant 8 : index
      %145 = vector.load %arg13[%c4_97, %c8_98] : memref<20x80xf32, #tpu.memory_space<vmem>>, vector<16x64xf32>
      %c22 = arith.constant 22 : index
      %c0_99 = arith.constant 0 : index
      %146 = vector.load %arg7[%c22, %c0_99] : memref<25x64xf32, #tpu.memory_space<vmem>>, vector<1x64xf32>
      %147 = vector.broadcast %146 : vector<1x64xf32> to vector<16x64xf32>
      %148 = arith.mulf %145, %147 : vector<16x64xf32>
      %149 = arith.addf %144, %148 : vector<16x64xf32>
      %c4_100 = arith.constant 4 : index
      %c12_101 = arith.constant 12 : index
      %150 = vector.load %arg13[%c4_100, %c12_101] : memref<20x80xf32, #tpu.memory_space<vmem>>, vector<16x64xf32>
      %c23 = arith.constant 23 : index
      %c0_102 = arith.constant 0 : index
      %151 = vector.load %arg7[%c23, %c0_102] : memref<25x64xf32, #tpu.memory_space<vmem>>, vector<1x64xf32>
      %152 = vector.broadcast %151 : vector<1x64xf32> to vector<16x64xf32>
      %153 = arith.mulf %150, %152 : vector<16x64xf32>
      %154 = arith.addf %149, %153 : vector<16x64xf32>
      %c4_103 = arith.constant 4 : index
      %c16_104 = arith.constant 16 : index
      %155 = vector.load %arg13[%c4_103, %c16_104] : memref<20x80xf32, #tpu.memory_space<vmem>>, vector<16x64xf32>
      %c24 = arith.constant 24 : index
      %c0_105 = arith.constant 0 : index
      %156 = vector.load %arg7[%c24, %c0_105] : memref<25x64xf32, #tpu.memory_space<vmem>>, vector<1x64xf32>
      %157 = vector.broadcast %156 : vector<1x64xf32> to vector<16x64xf32>
      %158 = arith.mulf %155, %157 : vector<16x64xf32>
      %159 = arith.addf %154, %158 : vector<16x64xf32>
      %cst_106 = arith.constant 0.000000e+00 : f32
      %160 = vector.broadcast %cst_106 : f32 to vector<16x3xf32>
      %c0_107 = arith.constant 0 : index
      %c0_108 = arith.constant 0 : index
      %161 = vector.load %arg14[%c0_107, %c0_108] : memref<16x70xf32, #tpu.memory_space<vmem>>, vector<16x3xf32>
      tpu.vector_store %arg14[%c0_107, %c0_108], %160 {strides = array<i32>} : memref<16x70xf32, #tpu.memory_space<vmem>>, vector<16x3xf32>,
      %cst_109 = arith.constant 0.000000e+00 : f32
      %162 = vector.broadcast %cst_109 : f32 to vector<16x3xf32>
      %c0_110 = arith.constant 0 : index
      %c67 = arith.constant 67 : index
      %163 = vector.load %arg14[%c0_110, %c67] : memref<16x70xf32, #tpu.memory_space<vmem>>, vector<16x3xf32>
      tpu.vector_store %arg14[%c0_110, %c67], %162 {strides = array<i32>} : memref<16x70xf32, #tpu.memory_space<vmem>>, vector<16x3xf32>,
      %c0_111 = arith.constant 0 : index
      %c3_112 = arith.constant 3 : index
      %164 = vector.load %arg14[%c0_111, %c3_112] : memref<16x70xf32, #tpu.memory_space<vmem>>, vector<16x64xf32>
      tpu.vector_store %arg14[%c0_111, %c3_112], %159 {strides = array<i32>} : memref<16x70xf32, #tpu.memory_space<vmem>>, vector<16x64xf32>,
      %c0_113 = arith.constant 0 : index
      %c0_114 = arith.constant 0 : index
      %165 = vector.load %arg14[%c0_113, %c0_114] : memref<16x70xf32, #tpu.memory_space<vmem>>, vector<16x64xf32>
      %c0_115 = arith.constant 0 : index
      %c0_116 = arith.constant 0 : index
      %166 = vector.load %arg8[%c0_115, %c0_116] : memref<7x64xf32, #tpu.memory_space<vmem>>, vector<1x64xf32>
      %167 = vector.broadcast %166 : vector<1x64xf32> to vector<16x64xf32>
      %168 = arith.mulf %165, %167 : vector<16x64xf32>
      %c0_117 = arith.constant 0 : index
      %c1_118 = arith.constant 1 : index
      %169 = vector.load %arg14[%c0_117, %c1_118] : memref<16x70xf32, #tpu.memory_space<vmem>>, vector<16x64xf32>
      %c1_119 = arith.constant 1 : index
      %c0_120 = arith.constant 0 : index
      %170 = vector.load %arg8[%c1_119, %c0_120] : memref<7x64xf32, #tpu.memory_space<vmem>>, vector<1x64xf32>
      %171 = vector.broadcast %170 : vector<1x64xf32> to vector<16x64xf32>
      %172 = arith.mulf %169, %171 : vector<16x64xf32>
      %173 = arith.addf %168, %172 : vector<16x64xf32>
      %c0_121 = arith.constant 0 : index
      %c2_122 = arith.constant 2 : index
      %174 = vector.load %arg14[%c0_121, %c2_122] : memref<16x70xf32, #tpu.memory_space<vmem>>, vector<16x64xf32>
      %c2_123 = arith.constant 2 : index
      %c0_124 = arith.constant 0 : index
      %175 = vector.load %arg8[%c2_123, %c0_124] : memref<7x64xf32, #tpu.memory_space<vmem>>, vector<1x64xf32>
      %176 = vector.broadcast %175 : vector<1x64xf32> to vector<16x64xf32>
      %177 = arith.mulf %174, %176 : vector<16x64xf32>
      %178 = arith.addf %173, %177 : vector<16x64xf32>
      %c0_125 = arith.constant 0 : index
      %c3_126 = arith.constant 3 : index
      %179 = vector.load %arg14[%c0_125, %c3_126] : memref<16x70xf32, #tpu.memory_space<vmem>>, vector<16x64xf32>
      %c3_127 = arith.constant 3 : index
      %c0_128 = arith.constant 0 : index
      %180 = vector.load %arg8[%c3_127, %c0_128] : memref<7x64xf32, #tpu.memory_space<vmem>>, vector<1x64xf32>
      %181 = vector.broadcast %180 : vector<1x64xf32> to vector<16x64xf32>
      %182 = arith.mulf %179, %181 : vector<16x64xf32>
      %183 = arith.addf %178, %182 : vector<16x64xf32>
      %c0_129 = arith.constant 0 : index
      %c4_130 = arith.constant 4 : index
      %184 = vector.load %arg14[%c0_129, %c4_130] : memref<16x70xf32, #tpu.memory_space<vmem>>, vector<16x64xf32>
      %c4_131 = arith.constant 4 : index
      %c0_132 = arith.constant 0 : index
      %185 = vector.load %arg8[%c4_131, %c0_132] : memref<7x64xf32, #tpu.memory_space<vmem>>, vector<1x64xf32>
      %186 = vector.broadcast %185 : vector<1x64xf32> to vector<16x64xf32>
      %187 = arith.mulf %184, %186 : vector<16x64xf32>
      %188 = arith.addf %183, %187 : vector<16x64xf32>
      %c0_133 = arith.constant 0 : index
      %c5_134 = arith.constant 5 : index
      %189 = vector.load %arg14[%c0_133, %c5_134] : memref<16x70xf32, #tpu.memory_space<vmem>>, vector<16x64xf32>
      %c5_135 = arith.constant 5 : index
      %c0_136 = arith.constant 0 : index
      %190 = vector.load %arg8[%c5_135, %c0_136] : memref<7x64xf32, #tpu.memory_space<vmem>>, vector<1x64xf32>
      %191 = vector.broadcast %190 : vector<1x64xf32> to vector<16x64xf32>
      %192 = arith.mulf %189, %191 : vector<16x64xf32>
      %193 = arith.addf %188, %192 : vector<16x64xf32>
      %c0_137 = arith.constant 0 : index
      %c6_138 = arith.constant 6 : index
      %194 = vector.load %arg14[%c0_137, %c6_138] : memref<16x70xf32, #tpu.memory_space<vmem>>, vector<16x64xf32>
      %c6_139 = arith.constant 6 : index
      %c0_140 = arith.constant 0 : index
      %195 = vector.load %arg8[%c6_139, %c0_140] : memref<7x64xf32, #tpu.memory_space<vmem>>, vector<1x64xf32>
      %196 = vector.broadcast %195 : vector<1x64xf32> to vector<16x64xf32>
      %197 = arith.mulf %194, %196 : vector<16x64xf32>
      %198 = arith.addf %193, %197 : vector<16x64xf32>
      %cst_141 = arith.constant dense<0.000000e+00> : vector<64xf32>
      %199 = vector.multi_reduction <add>, %198, %cst_141 [0] : vector<16x64xf32> to vector<64xf32>
      %200 = vector.shape_cast %199 : vector<64xf32> to vector<1x64xf32>
      %201 = vector.shape_cast %200 : vector<1x64xf32> to vector<1x1x64xf32>
      %c0_142 = arith.constant 0 : index
      %c2_143 = arith.constant 2 : index
      %c0_144 = arith.constant 0 : index
      %202 = vector.load %arg11[%c0_142, %c2_143, %c0_144] : memref<1x4x64xf32, #tpu.memory_space<vmem>>, vector<1x1x64xf32>
      tpu.vector_store %arg11[%c0_142, %c2_143, %c0_144], %201 {strides = array<i32>} : memref<1x4x64xf32, #tpu.memory_space<vmem>>, vector<1x1x64xf32>,
      %203 = arith.mulf %198, %198 : vector<16x64xf32>
      %cst_145 = arith.constant dense<0.000000e+00> : vector<64xf32>
      %204 = vector.multi_reduction <add>, %203, %cst_145 [0] : vector<16x64xf32> to vector<64xf32>
      %205 = vector.shape_cast %204 : vector<64xf32> to vector<1x64xf32>
      %206 = vector.shape_cast %205 : vector<1x64xf32> to vector<1x1x64xf32>
      %c0_146 = arith.constant 0 : index
      %c3_147 = arith.constant 3 : index
      %c0_148 = arith.constant 0 : index
      %207 = vector.load %arg11[%c0_146, %c3_147, %c0_148] : memref<1x4x64xf32, #tpu.memory_space<vmem>>, vector<1x1x64xf32>
      tpu.vector_store %arg11[%c0_146, %c3_147, %c0_148], %206 {strides = array<i32>} : memref<1x4x64xf32, #tpu.memory_space<vmem>>, vector<1x1x64xf32>,
      %208 = arith.truncf %198 : vector<16x64xf32> to vector<16x64xbf16>
      %209 = vector.shape_cast %208 : vector<16x64xbf16> to vector<1x16x64xbf16>
      %c0_149 = arith.constant 0 : index
      %c0_150 = arith.constant 0 : index
      %c0_151 = arith.constant 0 : index
      %210 = vector.load %arg10[%c0_149, %c0_150, %c0_151] : memref<1x16x64xbf16, #tpu.memory_space<vmem>>, vector<1x16x64xbf16>
      tpu.vector_store %arg10[%c0_149, %c0_150, %c0_151], %209 {strides = array<i32>} : memref<1x16x64xbf16, #tpu.memory_space<vmem>>, vector<1x16x64xbf16>,
    } else {
    }
    %c5_6 = arith.constant 5 : index
    %12 = memref.load %arg1[%c5_6] : memref<8xi32, #tpu.memory_space<smem>>
    %c0_i32_7 = arith.constant 0 : i32
    %13 = arith.cmpi eq, %12, %c0_i32_7 : i32
    %14 = arith.extui %13 : i1 to i32
    %c0_i32_8 = arith.constant 0 : i32
    %15 = arith.cmpi ne, %14, %c0_i32_8 : i32
    scf.if %15 {
      %cst = arith.constant 0.000000e+00 : f32
      %16 = vector.broadcast %cst : f32 to vector<1x2x64xf32>
      %c0 = arith.constant 0 : index
      %c2 = arith.constant 2 : index
      %c0_9 = arith.constant 0 : index
      %17 = vector.load %arg11[%c0, %c2, %c0_9] : memref<1x4x64xf32, #tpu.memory_space<vmem>>, vector<1x2x64xf32>
      tpu.vector_store %arg11[%c0, %c2, %c0_9], %16 {strides = array<i32>} : memref<1x4x64xf32, #tpu.memory_space<vmem>>, vector<1x2x64xf32>,
      %cst_10 = arith.constant 0.000000e+00 : bf16
      %18 = vector.broadcast %cst_10 : bf16 to vector<1x16x64xbf16>
      %c0_11 = arith.constant 0 : index
      %c0_12 = arith.constant 0 : index
      %c0_13 = arith.constant 0 : index
      %19 = vector.load %arg10[%c0_11, %c0_12, %c0_13] : memref<1x16x64xbf16, #tpu.memory_space<vmem>>, vector<1x16x64xbf16>
      tpu.vector_store %arg10[%c0_11, %c0_12, %c0_13], %18 {strides = array<i32>} : memref<1x16x64xbf16, #tpu.memory_space<vmem>>, vector<1x16x64xbf16>,
    } else {
    }
    return
  }
  func.func @transform_0(%arg0: i32) -> i32 {
    %c0_i32 = arith.constant 0 : i32
    %c0_i32_0 = arith.constant 0 : i32
    return %c0_i32 : i32
  }
  func.func @transform_1(%arg0: i32) -> (i32, i32) {
    %c0_i32 = arith.constant 0 : i32
    %c0_i32_0 = arith.constant 0 : i32
    %c0_i32_1 = arith.constant 0 : i32
    return %c0_i32, %c0_i32_0 : i32, i32
  }
  func.func @transform_2(%arg0: i32) -> (i32, i32, i32) {
    %c0_i32 = arith.constant 0 : i32
    %c0_i32_0 = arith.constant 0 : i32
    %c0_i32_1 = arith.constant 0 : i32
    return %arg0, %c0_i32, %c0_i32_0 : i32, i32, i32
  }
  func.func @transform_3(%arg0: i32) -> (i32, i32, i32) {
    %c0_i32 = arith.constant 0 : i32
    %c0_i32_0 = arith.constant 0 : i32
    %c0_i32_1 = arith.constant 0 : i32
    return %arg0, %c0_i32, %c0_i32_0 : i32, i32, i32
  }
  func.func @transform_4(%arg0: i32) -> (i32, i32) {
    %c0_i32 = arith.constant 0 : i32
    %c0_i32_0 = arith.constant 0 : i32
    %c0_i32_1 = arith.constant 0 : i32
    return %c0_i32, %c0_i32_0 : i32, i32
  }
  func.func @transform_5(%arg0: i32) -> (i32, i32) {
    %c0_i32 = arith.constant 0 : i32
    %c0_i32_0 = arith.constant 0 : i32
    %c0_i32_1 = arith.constant 0 : i32
    return %c0_i32, %c0_i32_0 : i32, i32
  }
  func.func @transform_6(%arg0: i32) -> (i32, i32) {
    %c0_i32 = arith.constant 0 : i32
    %c0_i32_0 = arith.constant 0 : i32
    %c0_i32_1 = arith.constant 0 : i32
    return %c0_i32, %c0_i32_0 : i32, i32
  }
  func.func @transform_7(%arg0: i32) -> (i32, i32) {
    %c0_i32 = arith.constant 0 : i32
    %c0_i32_0 = arith.constant 0 : i32
    %c0_i32_1 = arith.constant 0 : i32
    return %c0_i32, %c0_i32_0 : i32, i32
  }
  func.func @transform_8(%arg0: i32) -> (i32, i32, i32) {
    %c0_i32 = arith.constant 0 : i32
    %c0_i32_0 = arith.constant 0 : i32
    %c0_i32_1 = arith.constant 0 : i32
    return %arg0, %c0_i32, %c0_i32_0 : i32, i32, i32
  }
  func.func @transform_9(%arg0: i32) -> (i32, i32, i32) {
    %c0_i32 = arith.constant 0 : i32
    %c0_i32_0 = arith.constant 0 : i32
    %c0_i32_1 = arith.constant 0 : i32
    return %arg0, %c0_i32, %c0_i32_0 : i32, i32, i32
  }
  func.func @transform_10(%arg0: i32) -> (i32, i32, i32) {
    %c0_i32 = arith.constant 0 : i32
    %c0_i32_0 = arith.constant 0 : i32
    %c0_i32_1 = arith.constant 0 : i32
    return %arg0, %c0_i32, %c0_i32_0 : i32, i32, i32
  }
}

module attributes {stable_mosaic.version = 11 : i64} {
  func.func @_combine_kernel(%arg0: i32, %arg1: memref<7x256xf32, #tpu.memory_space<vmem>>, %arg2: memref<1x256xf32, #tpu.memory_space<vmem>>, %arg3: memref<8x256xf32, #tpu.memory_space<vmem>>, %arg4: memref<8x256xbf16, #tpu.memory_space<vmem>>, %arg5: memref<8x256xbf16, #tpu.memory_space<vmem>>, %arg6: memref<8x256xbf16, #tpu.memory_space<vmem>>, %arg7: memref<8x256xbf16, #tpu.memory_space<vmem>>, %arg8: memref<8x256xbf16, #tpu.memory_space<vmem>>, %arg9: memref<8x256xbf16, #tpu.memory_space<vmem>>, %arg10: memref<8x256xf32, #tpu.memory_space<vmem>>) attributes {dimension_semantics = [#tpu.dimension_semantics<parallel>], iteration_bounds = array<i64: 1>, scalar_prefetch = 0 : i64, scratch_operands = 0 : i64, tpu.core_type = #tpu.core_type<tc>, window_params = [{pipeline_mode = #tpu.pipeline_mode<synchronous>, transform_indices = @transform_0, window_bounds = array<i64: 7, 256>}, {pipeline_mode = #tpu.pipeline_mode<synchronous>, transform_indices = @transform_1, window_bounds = array<i64: 1, 256>}, {transform_indices = @transform_2, window_bounds = array<i64: 8, 256>}, {transform_indices = @transform_3, window_bounds = array<i64: 8, 256>}, {transform_indices = @transform_4, window_bounds = array<i64: 8, 256>}, {transform_indices = @transform_5, window_bounds = array<i64: 8, 256>}, {transform_indices = @transform_6, window_bounds = array<i64: 8, 256>}, {transform_indices = @transform_7, window_bounds = array<i64: 8, 256>}, {transform_indices = @transform_8, window_bounds = array<i64: 8, 256>}, {transform_indices = @transform_9, window_bounds = array<i64: 8, 256>}]} {
    %c0 = arith.constant 0 : index
    %c0_0 = arith.constant 0 : index
    %0 = vector.load %arg1[%c0, %c0_0] : memref<7x256xf32, #tpu.memory_space<vmem>>, vector<7x256xf32>
    %c0_1 = arith.constant 0 : index
    %c0_2 = arith.constant 0 : index
    %1 = vector.load %arg3[%c0_1, %c0_2] : memref<8x256xf32, #tpu.memory_space<vmem>>, vector<8x256xf32>
    %2 = vector.extract_strided_slice %0 {offsets = [0, 0], sizes = [1, 256], strides = [1, 1]} : vector<7x256xf32> to vector<1x256xf32>
    %3 = vector.broadcast %2 : vector<1x256xf32> to vector<8x256xf32>
    %4 = arith.mulf %1, %3 : vector<8x256xf32>
    %c0_3 = arith.constant 0 : index
    %c0_4 = arith.constant 0 : index
    %5 = vector.load %arg4[%c0_3, %c0_4] : memref<8x256xbf16, #tpu.memory_space<vmem>>, vector<8x256xbf16>
    %6 = arith.extf %5 : vector<8x256xbf16> to vector<8x256xf32>
    %7 = vector.extract_strided_slice %0 {offsets = [1, 0], sizes = [1, 256], strides = [1, 1]} : vector<7x256xf32> to vector<1x256xf32>
    %8 = vector.broadcast %7 : vector<1x256xf32> to vector<8x256xf32>
    %9 = arith.mulf %6, %8 : vector<8x256xf32>
    %10 = arith.addf %4, %9 : vector<8x256xf32>
    %c0_5 = arith.constant 0 : index
    %c0_6 = arith.constant 0 : index
    %11 = vector.load %arg5[%c0_5, %c0_6] : memref<8x256xbf16, #tpu.memory_space<vmem>>, vector<8x256xbf16>
    %12 = arith.extf %11 : vector<8x256xbf16> to vector<8x256xf32>
    %13 = vector.extract_strided_slice %0 {offsets = [2, 0], sizes = [1, 256], strides = [1, 1]} : vector<7x256xf32> to vector<1x256xf32>
    %14 = vector.broadcast %13 : vector<1x256xf32> to vector<8x256xf32>
    %15 = arith.mulf %12, %14 : vector<8x256xf32>
    %16 = arith.addf %10, %15 : vector<8x256xf32>
    %c0_7 = arith.constant 0 : index
    %c0_8 = arith.constant 0 : index
    %17 = vector.load %arg6[%c0_7, %c0_8] : memref<8x256xbf16, #tpu.memory_space<vmem>>, vector<8x256xbf16>
    %18 = arith.extf %17 : vector<8x256xbf16> to vector<8x256xf32>
    %19 = vector.extract_strided_slice %0 {offsets = [3, 0], sizes = [1, 256], strides = [1, 1]} : vector<7x256xf32> to vector<1x256xf32>
    %20 = vector.broadcast %19 : vector<1x256xf32> to vector<8x256xf32>
    %21 = arith.mulf %18, %20 : vector<8x256xf32>
    %22 = arith.addf %16, %21 : vector<8x256xf32>
    %c0_9 = arith.constant 0 : index
    %c0_10 = arith.constant 0 : index
    %23 = vector.load %arg7[%c0_9, %c0_10] : memref<8x256xbf16, #tpu.memory_space<vmem>>, vector<8x256xbf16>
    %24 = arith.extf %23 : vector<8x256xbf16> to vector<8x256xf32>
    %25 = vector.extract_strided_slice %0 {offsets = [4, 0], sizes = [1, 256], strides = [1, 1]} : vector<7x256xf32> to vector<1x256xf32>
    %26 = vector.broadcast %25 : vector<1x256xf32> to vector<8x256xf32>
    %27 = arith.mulf %24, %26 : vector<8x256xf32>
    %28 = arith.addf %22, %27 : vector<8x256xf32>
    %c0_11 = arith.constant 0 : index
    %c0_12 = arith.constant 0 : index
    %29 = vector.load %arg8[%c0_11, %c0_12] : memref<8x256xbf16, #tpu.memory_space<vmem>>, vector<8x256xbf16>
    %30 = arith.extf %29 : vector<8x256xbf16> to vector<8x256xf32>
    %31 = vector.extract_strided_slice %0 {offsets = [5, 0], sizes = [1, 256], strides = [1, 1]} : vector<7x256xf32> to vector<1x256xf32>
    %32 = vector.broadcast %31 : vector<1x256xf32> to vector<8x256xf32>
    %33 = arith.mulf %30, %32 : vector<8x256xf32>
    %34 = arith.addf %28, %33 : vector<8x256xf32>
    %c0_13 = arith.constant 0 : index
    %c0_14 = arith.constant 0 : index
    %35 = vector.load %arg9[%c0_13, %c0_14] : memref<8x256xbf16, #tpu.memory_space<vmem>>, vector<8x256xbf16>
    %36 = arith.extf %35 : vector<8x256xbf16> to vector<8x256xf32>
    %37 = vector.extract_strided_slice %0 {offsets = [6, 0], sizes = [1, 256], strides = [1, 1]} : vector<7x256xf32> to vector<1x256xf32>
    %38 = vector.broadcast %37 : vector<1x256xf32> to vector<8x256xf32>
    %39 = arith.mulf %36, %38 : vector<8x256xf32>
    %40 = arith.addf %34, %39 : vector<8x256xf32>
    %c0_15 = arith.constant 0 : index
    %c0_16 = arith.constant 0 : index
    %41 = vector.load %arg2[%c0_15, %c0_16] : memref<1x256xf32, #tpu.memory_space<vmem>>, vector<1x256xf32>
    %42 = vector.broadcast %41 : vector<1x256xf32> to vector<8x256xf32>
    %43 = arith.subf %40, %42 : vector<8x256xf32>
    %c0_17 = arith.constant 0 : index
    %c0_18 = arith.constant 0 : index
    %44 = vector.load %arg10[%c0_17, %c0_18] : memref<8x256xf32, #tpu.memory_space<vmem>>, vector<8x256xf32>
    tpu.vector_store %arg10[%c0_17, %c0_18], %43 {strides = array<i32>} : memref<8x256xf32, #tpu.memory_space<vmem>>, vector<8x256xf32>,
    return
  }
  func.func @transform_0(%arg0: i32) -> (i32, i32) {
    %c0_i32 = arith.constant 0 : i32
    %c0_i32_0 = arith.constant 0 : i32
    %c0_i32_1 = arith.constant 0 : i32
    return %c0_i32, %c0_i32_0 : i32, i32
  }
  func.func @transform_1(%arg0: i32) -> (i32, i32) {
    %c0_i32 = arith.constant 0 : i32
    %c0_i32_0 = arith.constant 0 : i32
    %c0_i32_1 = arith.constant 0 : i32
    return %c0_i32, %c0_i32_0 : i32, i32
  }
  func.func @transform_2(%arg0: i32) -> (i32, i32) {
    %c0_i32 = arith.constant 0 : i32
    %c0_i32_0 = arith.constant 0 : i32
    return %arg0, %c0_i32 : i32, i32
  }
  func.func @transform_3(%arg0: i32) -> (i32, i32) {
    %c0_i32 = arith.constant 0 : i32
    %c0_i32_0 = arith.constant 0 : i32
    return %arg0, %c0_i32 : i32, i32
  }
  func.func @transform_4(%arg0: i32) -> (i32, i32) {
    %c0_i32 = arith.constant 0 : i32
    %c0_i32_0 = arith.constant 0 : i32
    return %arg0, %c0_i32 : i32, i32
  }
  func.func @transform_5(%arg0: i32) -> (i32, i32) {
    %c0_i32 = arith.constant 0 : i32
    %c0_i32_0 = arith.constant 0 : i32
    return %arg0, %c0_i32 : i32, i32
  }
  func.func @transform_6(%arg0: i32) -> (i32, i32) {
    %c0_i32 = arith.constant 0 : i32
    %c0_i32_0 = arith.constant 0 : i32
    return %arg0, %c0_i32 : i32, i32
  }
  func.func @transform_7(%arg0: i32) -> (i32, i32) {
    %c0_i32 = arith.constant 0 : i32
    %c0_i32_0 = arith.constant 0 : i32
    return %arg0, %c0_i32 : i32, i32
  }
  func.func @transform_8(%arg0: i32) -> (i32, i32) {
    %c0_i32 = arith.constant 0 : i32
    %c0_i32_0 = arith.constant 0 : i32
    return %arg0, %c0_i32 : i32, i32
  }
  func.func @transform_9(%arg0: i32) -> (i32, i32) {
    %c0_i32 = arith.constant 0 : i32
    %c0_i32_0 = arith.constant 0 : i32
    return %arg0, %c0_i32 : i32, i32
  }
}

</mosaic_0001>

<llo_original>
// kernel: tile.91
$region0: #{tile.91}
  %s0 = inlined_call_operand.vmem [shape: f32[7,16,4], index: 0, kind: input, shape index: {}]
  %s1 = inlined_call_operand.vmem [shape: f32[7,64], index: 1, kind: output, shape index: {}]
  %s2 = smov 3
  %v3 = vld [vmem:[%s0] ss:$16 sm:%s2]
  %s4 = smov 12
  %v5 = vld [vmem:[%s0] ss:$16 sm:%s4]
  %vm6 = vcmask 1043458
  %v7 = vsel %vm6, %v5, %v3
  %s8 = smov 48
  %v9 = vld [vmem:[%s0] ss:$16 sm:%s8]
  %vm10 = vcmask 1045508
  %v11 = vsel %vm10, %v9, %v7
  %s12 = scalar_lea.vmem %s0, 90
  %v13 = vld [vmem:[%s12] sm:$0x40]
  %vm14 = vcmask 1046534
  %v15 = vsel %vm14, %v13, %v11
  %vm16 = vcmask 31744
  %17 = vst.msk [vmem:[%s1] sm:$0x7f] %vm16, %v15
  %s18 = scalar_lea.vmem %s0, 15
  %s19 = smov 3
  %v20 = vld [vmem:[%s18] ss:$16 sm:%s19]
  %s21 = scalar_lea.vmem %s0, 15
  %s22 = smov 12
  %v23 = vld [vmem:[%s21] ss:$16 sm:%s22]
  %vm24 = vcmask 1043458
  %v25 = vsel %vm24, %v23, %v20
  %s26 = scalar_lea.vmem %s0, 15
  %s27 = smov 48
  %v28 = vld [vmem:[%s26] ss:$16 sm:%s27]
  %vm29 = vcmask 1045508
  %v30 = vsel %vm29, %v28, %v25
  %s31 = scalar_lea.vmem %s0, 105
  %v32 = vld [vmem:[%s31] sm:$0x40]
  %vm33 = vcmask 1046534
  %v34 = vsel %vm33, %v32, %v30
  %35 = vrot.lane.b32.xlu0 %v34, 60
  %v36 = vpop.permute.xlu0 %35
  %vm37 = vcmask 523744
  %38 = vst.msk [vmem:[%s1] sm:$0x7f] %vm37, %v36
  %s39 = scalar_lea.vmem %s0, 14
  %s40 = smov 3
  %v41 = vld [vmem:[%s39] ss:$16 sm:%s40]
  %s42 = scalar_lea.vmem %s0, 14
  %s43 = smov 12
  %v44 = vld [vmem:[%s42] ss:$16 sm:%s43]
  %vm45 = vcmask 1043458
  %v46 = vsel %vm45, %v44, %v41
  %s47 = scalar_lea.vmem %s0, 14
  %s48 = smov 48
  %v49 = vld [vmem:[%s47] ss:$16 sm:%s48]
  %vm50 = vcmask 1045508
  %v51 = vsel %vm50, %v49, %v46
  %s52 = scalar_lea.vmem %s0, 104
  %v53 = vld [vmem:[%s52] sm:$0x40]
  %vm54 = vcmask 1046534
  %v55 = vsel %vm54, %v53, %v51
  %56 = vrot.lane.b32.xlu0 %v55, 56
  %v57 = vpop.permute.xlu0 %56
  %vm58 = vcmask 490944
  %59 = vst.msk [vmem:[%s1] sm:$0x7f] %vm58, %v57
  %s60 = scalar_lea.vmem %s0, 13
  %s61 = smov 3
  %v62 = vld [vmem:[%s60] ss:$16 sm:%s61]
  %s63 = scalar_lea.vmem %s0, 13
  %s64 = smov 12
  %v65 = vld [vmem:[%s63] ss:$16 sm:%s64]
  %vm66 = vcmask 1043458
  %v67 = vsel %vm66, %v65, %v62
  %s68 = scalar_lea.vmem %s0, 13
  %s69 = smov 48
  %v70 = vld [vmem:[%s68] ss:$16 sm:%s69]
  %vm71 = vcmask 1045508
  %v72 = vsel %vm71, %v70, %v67
  %s73 = scalar_lea.vmem %s0, 103
  %v74 = vld [vmem:[%s73] sm:$0x40]
  %vm75 = vcmask 1046534
  %v76 = vsel %vm75, %v74, %v72
  %77 = vrot.lane.b32.xlu0 %v76, 52
  %v78 = vpop.permute.xlu0 %77
  %vm79 = vcmask 458144
  %80 = vst.msk [vmem:[%s1] sm:$0x7f] %vm79, %v78
  %s81 = scalar_lea.vmem %s0, 12
  %s82 = smov 3
  %v83 = vld [vmem:[%s81] ss:$16 sm:%s82]
  %s84 = scalar_lea.vmem %s0, 12
  %s85 = smov 12
  %v86 = vld [vmem:[%s84] ss:$16 sm:%s85]
  %vm87 = vcmask 1043458
  %v88 = vsel %vm87, %v86, %v83
  %s89 = scalar_lea.vmem %s0, 12
  %s90 = smov 48
  %v91 = vld [vmem:[%s89] ss:$16 sm:%s90]
  %vm92 = vcmask 1045508
  %v93 = vsel %vm92, %v91, %v88
  %s94 = scalar_lea.vmem %s0, 102
  %v95 = vld [vmem:[%s94] sm:$0x40]
  %vm96 = vcmask 1046534
  %v97 = vsel %vm96, %v95, %v93
  %98 = vrot.lane.b32.xlu0 %v97, 48
  %v99 = vpop.permute.xlu0 %98
  %vm100 = vcmask 425344
  %101 = vst.msk [vmem:[%s1] sm:$0x7f] %vm100, %v99
  %s102 = scalar_lea.vmem %s0, 11
  %s103 = smov 3
  %v104 = vld [vmem:[%s102] ss:$16 sm:%s103]
  %s105 = scalar_lea.vmem %s0, 11
  %s106 = smov 12
  %v107 = vld [vmem:[%s105] ss:$16 sm:%s106]
  %vm108 = vcmask 1043458
  %v109 = vsel %vm108, %v107, %v104
  %s110 = scalar_lea.vmem %s0, 11
  %s111 = smov 48
  %v112 = vld [vmem:[%s110] ss:$16 sm:%s111]
  %vm113 = vcmask 1045508
  %v114 = vsel %vm113, %v112, %v109
  %s115 = scalar_lea.vmem %s0, 101
  %v116 = vld [vmem:[%s115] sm:$0x40]
  %vm117 = vcmask 1046534
  %v118 = vsel %vm117, %v116, %v114
  %119 = vrot.lane.b32.xlu0 %v118, 44
  %v120 = vpop.permute.xlu0 %119
  %vm121 = vcmask 392544
  %122 = vst.msk [vmem:[%s1] sm:$0x7f] %vm121, %v120
  %s123 = scalar_lea.vmem %s0, 10
  %s124 = smov 3
  %v125 = vld [vmem:[%s123] ss:$16 sm:%s124]
  %s126 = scalar_lea.vmem %s0, 10
  %s127 = smov 12
  %v128 = vld [vmem:[%s126] ss:$16 sm:%s127]
  %vm129 = vcmask 1043458
  %v130 = vsel %vm129, %v128, %v125
  %s131 = scalar_lea.vmem %s0, 10
  %s132 = smov 48
  %v133 = vld [vmem:[%s131] ss:$16 sm:%s132]
  %vm134 = vcmask 1045508
  %v135 = vsel %vm134, %v133, %v130
  %s136 = scalar_lea.vmem %s0, 100
  %v137 = vld [vmem:[%s136] sm:$0x40]
  %vm138 = vcmask 1046534
  %v139 = vsel %vm138, %v137, %v135
  %140 = vrot.lane.b32.xlu0 %v139, 40
  %v141 = vpop.permute.xlu0 %140
  %vm142 = vcmask 359744
  %143 = vst.msk [vmem:[%s1] sm:$0x7f] %vm142, %v141
  %s144 = scalar_lea.vmem %s0, 9
  %s145 = smov 3
  %v146 = vld [vmem:[%s144] ss:$16 sm:%s145]
  %s147 = scalar_lea.vmem %s0, 9
  %s148 = smov 12
  %v149 = vld [vmem:[%s147] ss:$16 sm:%s148]
  %vm150 = vcmask 1043458
  %v151 = vsel %vm150, %v149, %v146
  %s152 = scalar_lea.vmem %s0, 9
  %s153 = smov 48
  %v154 = vld [vmem:[%s152] ss:$16 sm:%s153]
  %vm155 = vcmask 1045508
  %v156 = vsel %vm155, %v154, %v151
  %s157 = scalar_lea.vmem %s0, 99
  %v158 = vld [vmem:[%s157] sm:$0x40]
  %vm159 = vcmask 1046534
  %v160 = vsel %vm159, %v158, %v156
  %161 = vrot.lane.b32.xlu0 %v160, 36
  %v162 = vpop.permute.xlu0 %161
  %vm163 = vcmask 326944
  %164 = vst.msk [vmem:[%s1] sm:$0x7f] %vm163, %v162
  %s165 = scalar_lea.vmem %s0, 8
  %s166 = smov 3
  %v167 = vld [vmem:[%s165] ss:$16 sm:%s166]
  %s168 = scalar_lea.vmem %s0, 8
  %s169 = smov 12
  %v170 = vld [vmem:[%s168] ss:$16 sm:%s169]
  %vm171 = vcmask 1043458
  %v172 = vsel %vm171, %v170, %v167
  %s173 = scalar_lea.vmem %s0, 8
  %s174 = smov 48
  %v175 = vld [vmem:[%s173] ss:$16 sm:%s174]
  %vm176 = vcmask 1045508
  %v177 = vsel %vm176, %v175, %v172
  %s178 = scalar_lea.vmem %s0, 98
  %v179 = vld [vmem:[%s178] sm:$0x40]
  %vm180 = vcmask 1046534
  %v181 = vsel %vm180, %v179, %v177
  %182 = vrot.lane.b32.xlu0 %v181, 32
  %v183 = vpop.permute.xlu0 %182
  %vm184 = vcmask 294144
  %185 = vst.msk [vmem:[%s1] sm:$0x7f] %vm184, %v183
  %s186 = scalar_lea.vmem %s0, 7
  %s187 = smov 3
  %v188 = vld [vmem:[%s186] ss:$16 sm:%s187]
  %s189 = scalar_lea.vmem %s0, 7
  %s190 = smov 12
  %v191 = vld [vmem:[%s189] ss:$16 sm:%s190]
  %vm192 = vcmask 1043458
  %v193 = vsel %vm192, %v191, %v188
  %s194 = scalar_lea.vmem %s0, 7
  %s195 = smov 48
  %v196 = vld [vmem:[%s194] ss:$16 sm:%s195]
  %vm197 = vcmask 1045508
  %v198 = vsel %vm197, %v196, %v193
  %s199 = scalar_lea.vmem %s0, 97
  %v200 = vld [vmem:[%s199] sm:$0x40]
  %vm201 = vcmask 1046534
  %v202 = vsel %vm201, %v200, %v198
  %203 = vrot.lane.b32.xlu0 %v202, 28
  %v204 = vpop.permute.xlu0 %203
  %vm205 = vcmask 261344
  %206 = vst.msk [vmem:[%s1] sm:$0x7f] %vm205, %v204
  %s207 = scalar_lea.vmem %s0, 6
  %s208 = smov 3
  %v209 = vld [vmem:[%s207] ss:$16 sm:%s208]
  %s210 = scalar_lea.vmem %s0, 6
  %s211 = smov 12
  %v212 = vld [vmem:[%s210] ss:$16 sm:%s211]
  %vm213 = vcmask 1043458
  %v214 = vsel %vm213, %v212, %v209
  %s215 = scalar_lea.vmem %s0, 6
  %s216 = smov 48
  %v217 = vld [vmem:[%s215] ss:$16 sm:%s216]
  %vm218 = vcmask 1045508
  %v219 = vsel %vm218, %v217, %v214
  %s220 = scalar_lea.vmem %s0, 96
  %v221 = vld [vmem:[%s220] sm:$0x40]
  %vm222 = vcmask 1046534
  %v223 = vsel %vm222, %v221, %v219
  %224 = vrot.lane.b32.xlu0 %v223, 24
  %v225 = vpop.permute.xlu0 %224
  %vm226 = vcmask 228544
  %227 = vst.msk [vmem:[%s1] sm:$0x7f] %vm226, %v225
  %s228 = scalar_lea.vmem %s0, 5
  %s229 = smov 3
  %v230 = vld [vmem:[%s228] ss:$16 sm:%s229]
  %s231 = scalar_lea.vmem %s0, 5
  %s232 = smov 12
  %v233 = vld [vmem:[%s231] ss:$16 sm:%s232]
  %vm234 = vcmask 1043458
  %v235 = vsel %vm234, %v233, %v230
  %s236 = scalar_lea.vmem %s0, 5
  %s237 = smov 48
  %v238 = vld [vmem:[%s236] ss:$16 sm:%s237]
  %vm239 = vcmask 1045508
  %v240 = vsel %vm239, %v238, %v235
  %s241 = scalar_lea.vmem %s0, 95
  %v242 = vld [vmem:[%s241] sm:$0x40]
  %vm243 = vcmask 1046534
  %v244 = vsel %vm243, %v242, %v240
  %245 = vrot.lane.b32.xlu0 %v244, 20
  %v246 = vpop.permute.xlu0 %245
  %vm247 = vcmask 195744
  %248 = vst.msk [vmem:[%s1] sm:$0x7f] %vm247, %v246
  %s249 = scalar_lea.vmem %s0, 4
  %s250 = smov 3
  %v251 = vld [vmem:[%s249] ss:$16 sm:%s250]
  %s252 = scalar_lea.vmem %s0, 4
  %s253 = smov 12
  %v254 = vld [vmem:[%s252] ss:$16 sm:%s253]
  %vm255 = vcmask 1043458
  %v256 = vsel %vm255, %v254, %v251
  %s257 = scalar_lea.vmem %s0, 4
  %s258 = smov 48
  %v259 = vld [vmem:[%s257] ss:$16 sm:%s258]
  %vm260 = vcmask 1045508
  %v261 = vsel %vm260, %v259, %v256
  %s262 = scalar_lea.vmem %s0, 94
  %v263 = vld [vmem:[%s262] sm:$0x40]
  %vm264 = vcmask 1046534
  %v265 = vsel %vm264, %v263, %v261
  %266 = vrot.lane.b32.xlu0 %v265, 16
  %v267 = vpop.permute.xlu0 %266
  %vm268 = vcmask 162944
  %269 = vst.msk [vmem:[%s1] sm:$0x7f] %vm268, %v267
  %s270 = scalar_lea.vmem %s0, 3
  %s271 = smov 3
  %v272 = vld [vmem:[%s270] ss:$16 sm:%s271]
  %s273 = scalar_lea.vmem %s0, 3
  %s274 = smov 12
  %v275 = vld [vmem:[%s273] ss:$16 sm:%s274]
  %vm276 = vcmask 1043458
  %v277 = vsel %vm276, %v275, %v272
  %s278 = scalar_lea.vmem %s0, 3
  %s279 = smov 48
  %v280 = vld [vmem:[%s278] ss:$16 sm:%s279]
  %vm281 = vcmask 1045508
  %v282 = vsel %vm281, %v280, %v277
  %s283 = scalar_lea.vmem %s0, 93
  %v284 = vld [vmem:[%s283] sm:$0x40]
  %vm285 = vcmask 1046534
  %v286 = vsel %vm285, %v284, %v282
  %287 = vrot.lane.b32.xlu0 %v286, 12
  %v288 = vpop.permute.xlu0 %287
  %vm289 = vcmask 130144
  %290 = vst.msk [vmem:[%s1] sm:$0x7f] %vm289, %v288
  %s291 = scalar_lea.vmem %s0, 2
  %s292 = smov 3
  %v293 = vld [vmem:[%s291] ss:$16 sm:%s292]
  %s294 = scalar_lea.vmem %s0, 2
  %s295 = smov 12
  %v296 = vld [vmem:[%s294] ss:$16 sm:%s295]
  %vm297 = vcmask 1043458
  %v298 = vsel %vm297, %v296, %v293
  %s299 = scalar_lea.vmem %s0, 2
  %s300 = smov 48
  %v301 = vld [vmem:[%s299] ss:$16 sm:%s300]
  %vm302 = vcmask 1045508
  %v303 = vsel %vm302, %v301, %v298
  %s304 = scalar_lea.vmem %s0, 92
  %v305 = vld [vmem:[%s304] sm:$0x40]
  %vm306 = vcmask 1046534
  %v307 = vsel %vm306, %v305, %v303
  %308 = vrot.lane.b32.xlu0 %v307, 8
  %v309 = vpop.permute.xlu0 %308
  %vm310 = vcmask 97344
  %311 = vst.msk [vmem:[%s1] sm:$0x7f] %vm310, %v309
  %s312 = scalar_lea.vmem %s0, 1
  %s313 = smov 3
  %v314 = vld [vmem:[%s312] ss:$16 sm:%s313]
  %s315 = scalar_lea.vmem %s0, 1
  %s316 = smov 12
  %v317 = vld [vmem:[%s315] ss:$16 sm:%s316]
  %vm318 = vcmask 1043458
  %v319 = vsel %vm318, %v317, %v314
  %s320 = scalar_lea.vmem %s0, 1
  %s321 = smov 48
  %v322 = vld [vmem:[%s320] ss:$16 sm:%s321]
  %vm323 = vcmask 1045508
  %v324 = vsel %vm323, %v322, %v319
  %s325 = scalar_lea.vmem %s0, 91
  %v326 = vld [vmem:[%s325] sm:$0x40]
  %vm327 = vcmask 1046534
  %v328 = vsel %vm327, %v326, %v324
  %329 = vrot.lane.b32.xlu0 %v328, 4
  %v330 = vpop.permute.xlu0 %329
  %vm331 = vcmask 64544
  %332 = vst.msk [vmem:[%s1] sm:$0x7f] %vm331, %v330

// kernel: tile.148
$region0: #{tile.148}
  #allocation0 [shape = 's32[1]{0}', space=sflag, size = 0x4, scoped, tag = 'scoped memory for tile.148']
  %s0 = inlined_call_operand.vmem [shape: f32[4], index: 0, kind: input, shape index: {}]
  %s1 = inlined_call_operand.vmem [shape: f32[16,4], index: 1, kind: output, shape index: {}]
  // Predicated region
  $region2: #{tile.148} parent=0 // pred_check
    _
  $region3: #{tile.148} parent=0 // pred_check_branch
    %3 = sbr.rel (0) target = $region5
  $region4: #{tile.148} parent=0 // pred_region
    _
  $region5: #{tile.148} parent=0 // pred_fallthru
    _
  %v4 = vld [vmem:[%s0] ss:$0 sm:$0xff]
  %5 = vst [vmem:[%s1] sm:$0xff] %v4
  %s6 = scalar_lea.vmem %s1, 8
  %7 = vst [vmem:[%s6] sm:$0xff] %v4

// kernel: tile.155
$region0: #{tile.155}
  %s0 = inlined_call_operand.vmem [shape: f32[16,4], index: 0, kind: input, shape index: {}]
  %s1 = inlined_call_operand.vmem [shape: f32[1,64], index: 1, kind: output, shape index: {}]
  $region1: #{tile.155} parent=0
    #allocation0 [shape = 'u8[4096]{0}', space=vmem, size = 0x1000, scoped, tag = 'scoped mem for output reshape']
    %v2 = vld [vmem:[%s0] sm:$0x1]
    %vm3 = vcmask 31744
    %4 = vst.msk [vmem:[#allocation0] sm:$0x1] %vm3, %v2
    %s5 = scalar_lea.vmem %s0, 15
    %v6 = vld [vmem:[%s5] sm:$0x1]
    %7 = vrot.lane.b32.xlu0 %v6, 60
    %v8 = vpop.permute.xlu0 %7
    %vm9 = vcmask 523744
    %10 = vst.msk [vmem:[#allocation0] sm:$0x1] %vm9, %v8
    %s11 = scalar_lea.vmem %s0, 14
    %v12 = vld [vmem:[%s11] sm:$0x1]
    %13 = vrot.lane.b32.xlu0 %v12, 56
    %v14 = vpop.permute.xlu0 %13
    %vm15 = vcmask 490944
    %16 = vst.msk [vmem:[#allocation0] sm:$0x1] %vm15, %v14
    %s17 = scalar_lea.vmem %s0, 13
    %v18 = vld [vmem:[%s17] sm:$0x1]
    %19 = vrot.lane.b32.xlu0 %v18, 52
    %v20 = vpop.permute.xlu0 %19
    %vm21 = vcmask 458144
    %22 = vst.msk [vmem:[#allocation0] sm:$0x1] %vm21, %v20
    %s23 = scalar_lea.vmem %s0, 12
    %v24 = vld [vmem:[%s23] sm:$0x1]
    %25 = vrot.lane.b32.xlu0 %v24, 48
    %v26 = vpop.permute.xlu0 %25
    %vm27 = vcmask 425344
    %28 = vst.msk [vmem:[#allocation0] sm:$0x1] %vm27, %v26
    %s29 = scalar_lea.vmem %s0, 11
    %v30 = vld [vmem:[%s29] sm:$0x1]
    %31 = vrot.lane.b32.xlu0 %v30, 44
    %v32 = vpop.permute.xlu0 %31
    %vm33 = vcmask 392544
    %34 = vst.msk [vmem:[#allocation0] sm:$0x1] %vm33, %v32
    %s35 = scalar_lea.vmem %s0, 10
    %v36 = vld [vmem:[%s35] sm:$0x1]
    %37 = vrot.lane.b32.xlu0 %v36, 40
    %v38 = vpop.permute.xlu0 %37
    %vm39 = vcmask 359744
    %40 = vst.msk [vmem:[#allocation0] sm:$0x1] %vm39, %v38
    %s41 = scalar_lea.vmem %s0, 9
    %v42 = vld [vmem:[%s41] sm:$0x1]
    %43 = vrot.lane.b32.xlu0 %v42, 36
    %v44 = vpop.permute.xlu0 %43
    %vm45 = vcmask 326944
    %46 = vst.msk [vmem:[#allocation0] sm:$0x1] %vm45, %v44
    %s47 = scalar_lea.vmem %s0, 8
    %v48 = vld [vmem:[%s47] sm:$0x1]
    %49 = vrot.lane.b32.xlu0 %v48, 32
    %v50 = vpop.permute.xlu0 %49
    %vm51 = vcmask 294144
    %52 = vst.msk [vmem:[#allocation0] sm:$0x1] %vm51, %v50
    %s53 = scalar_lea.vmem %s0, 7
    %v54 = vld [vmem:[%s53] sm:$0x1]
    %55 = vrot.lane.b32.xlu0 %v54, 28
    %v56 = vpop.permute.xlu0 %55
    %vm57 = vcmask 261344
    %58 = vst.msk [vmem:[#allocation0] sm:$0x1] %vm57, %v56
    %s59 = scalar_lea.vmem %s0, 6
    %v60 = vld [vmem:[%s59] sm:$0x1]
    %61 = vrot.lane.b32.xlu0 %v60, 24
    %v62 = vpop.permute.xlu0 %61
    %vm63 = vcmask 228544
    %64 = vst.msk [vmem:[#allocation0] sm:$0x1] %vm63, %v62
    %s65 = scalar_lea.vmem %s0, 5
    %v66 = vld [vmem:[%s65] sm:$0x1]
    %67 = vrot.lane.b32.xlu0 %v66, 20
    %v68 = vpop.permute.xlu0 %67
    %vm69 = vcmask 195744
    %70 = vst.msk [vmem:[#allocation0] sm:$0x1] %vm69, %v68
    %s71 = scalar_lea.vmem %s0, 4
    %v72 = vld [vmem:[%s71] sm:$0x1]
    %73 = vrot.lane.b32.xlu0 %v72, 16
    %v74 = vpop.permute.xlu0 %73
    %vm75 = vcmask 162944
    %76 = vst.msk [vmem:[#allocation0] sm:$0x1] %vm75, %v74
    %s77 = scalar_lea.vmem %s0, 3
    %v78 = vld [vmem:[%s77] sm:$0x1]
    %79 = vrot.lane.b32.xlu0 %v78, 12
    %v80 = vpop.permute.xlu0 %79
    %vm81 = vcmask 130144
    %82 = vst.msk [vmem:[#allocation0] sm:$0x1] %vm81, %v80
    %s83 = scalar_lea.vmem %s0, 2
    %v84 = vld [vmem:[%s83] sm:$0x1]
    %85 = vrot.lane.b32.xlu0 %v84, 8
    %v86 = vpop.permute.xlu0 %85
    %vm87 = vcmask 97344
    %88 = vst.msk [vmem:[#allocation0] sm:$0x1] %vm87, %v86
    %s89 = scalar_lea.vmem %s0, 1
    %v90 = vld [vmem:[%s89] sm:$0x1]
    %91 = vrot.lane.b32.xlu0 %v90, 4
    %v92 = vpop.permute.xlu0 %91
    %vm93 = vcmask 64544
    %94 = vst.msk [vmem:[#allocation0] sm:$0x1] %vm93, %v92
    %s96 = sshllo.u32 0, 1
    %v98 = vld [vmem:[#allocation0] sm:%s96]
    %s99 = sshllo.u32 0, 1
    %100 = vst [vmem:[%s1] sm:%s99] %v98

// kernel: tile.161
$region0: #{tile.161}
  %s0 = inlined_call_operand.vmem [shape: f32[7,64,4], index: 0, kind: input, shape index: {}]
  %s1 = inlined_call_operand.vmem [shape: f32[7,256], index: 1, kind: output, shape index: {}]
  %v2 = vld [vmem:[%s0] sm:$0x1]
  %s3 = scalar_lea.vmem %s0, 31
  %v4 = vld [vmem:[%s3] sm:$0x2]
  %vm5 = vcmask 1041409
  %v6 = vsel %vm5, %v4, %v2
  %s7 = scalar_lea.vmem %s0, 62
  %v8 = vld [vmem:[%s7] sm:$0x4]
  %vm9 = vcmask 1042434
  %v10 = vsel %vm9, %v8, %v6
  %s11 = scalar_lea.vmem %s0, 93
  %v12 = vld [vmem:[%s11] sm:$0x8]
  %vm13 = vcmask 1043459
  %v14 = vsel %vm13, %v12, %v10
  %s15 = scalar_lea.vmem %s0, 124
  %v16 = vld [vmem:[%s15] sm:$0x10]
  %vm17 = vcmask 1044484
  %v18 = vsel %vm17, %v16, %v14
  %s19 = scalar_lea.vmem %s0, 155
  %v20 = vld [vmem:[%s19] sm:$0x20]
  %vm21 = vcmask 1045509
  %v22 = vsel %vm21, %v20, %v18
  %s23 = scalar_lea.vmem %s0, 186
  %v24 = vld [vmem:[%s23] sm:$0x40]
  %vm25 = vcmask 1046534
  %v26 = vsel %vm25, %v24, %v22
  %s27 = scalar_lea.vmem %s0, 217
  %v28 = vld [vmem:[%s27] sm:$0x80]
  %vm29 = vcmask 1047559
  %v30 = vsel %vm29, %v28, %v26
  %vm31 = vcmask 31744
  %32 = vst.msk [vmem:[%s1] ss:$8 sm:$0x3] %vm31, %v30
  %s33 = scalar_lea.vmem %s1, 4294967281
  %34 = vst.msk [vmem:[%s33] ss:$8 sm:$0xc] %vm31, %v30
  %s35 = scalar_lea.vmem %s1, 4294967266
  %36 = vst.msk [vmem:[%s35] ss:$8 sm:$0x30] %vm31, %v30
  %s37 = scalar_lea.vmem %s1, 4294967251
  %38 = vst.msk [vmem:[%s37] ss:$8 sm:$0xc0] %vm31, %v30
  %s39 = scalar_lea.vmem %s0, 256
  %v40 = vld [vmem:[%s39] sm:$0x1]
  %s41 = scalar_lea.vmem %s0, 287
  %v42 = vld [vmem:[%s41] sm:$0x2]
  %vm43 = vcmask 1041409
  %v44 = vsel %vm43, %v42, %v40
  %s45 = scalar_lea.vmem %s0, 318
  %v46 = vld [vmem:[%s45] sm:$0x4]
  %vm47 = vcmask 1042434
  %v48 = vsel %vm47, %v46, %v44
  %s49 = scalar_lea.vmem %s0, 349
  %v50 = vld [vmem:[%s49] sm:$0x8]
  %vm51 = vcmask 1043459
  %v52 = vsel %vm51, %v50, %v48
  %s53 = scalar_lea.vmem %s0, 380
  %v54 = vld [vmem:[%s53] sm:$0x10]
  %vm55 = vcmask 1044484
  %v56 = vsel %vm55, %v54, %v52
  %s57 = scalar_lea.vmem %s0, 411
  %v58 = vld [vmem:[%s57] sm:$0x20]
  %vm59 = vcmask 1045509
  %v60 = vsel %vm59, %v58, %v56
  %vm61 = vcmask 31744
  %s62 = scalar_lea.vmem %s1, 4
  %63 = vst.msk [vmem:[%s62] ss:$8 sm:$0x3] %vm61, %v60
  %s64 = scalar_lea.vmem %s1, 4294967285
  %65 = vst.msk [vmem:[%s64] ss:$8 sm:$0xc] %vm61, %v60
  %s66 = scalar_lea.vmem %s1, 4294967270
  %67 = vst.msk [vmem:[%s66] ss:$8 sm:$0x30] %vm61, %v60
  %s68 = scalar_lea.vmem %s0, 31
  %v69 = vld [vmem:[%s68] sm:$0x1]
  %s70 = scalar_lea.vmem %s0, 94
  %v71 = vld [vmem:[%s70] sm:$0x2]
  %vm72 = vcmask 1041409
  %v73 = vsel %vm72, %v71, %v69
  %s74 = scalar_lea.vmem %s0, 157
  %v75 = vld [vmem:[%s74] sm:$0x4]
  %vm76 = vcmask 1042434
  %v77 = vsel %vm76, %v75, %v73
  %s78 = scalar_lea.vmem %s0, 220
  %v79 = vld [vmem:[%s78] sm:$0x8]
  %vm80 = vcmask 1043459
  %v81 = vsel %vm80, %v79, %v77
  %s82 = scalar_lea.vmem %s0, 283
  %v83 = vld [vmem:[%s82] sm:$0x10]
  %vm84 = vcmask 1044484
  %v85 = vsel %vm84, %v83, %v81
  %s86 = scalar_lea.vmem %s0, 346
  %v87 = vld [vmem:[%s86] sm:$0x20]
  %vm88 = vcmask 1045509
  %v89 = vsel %vm88, %v87, %v85
  %s90 = scalar_lea.vmem %s0, 409
  %v91 = vld [vmem:[%s90] sm:$0x40]
  %vm92 = vcmask 1046534
  %v93 = vsel %vm92, %v91, %v89
  %s94 = scalar_lea.vmem %s0, 56
  %v95 = vld [vmem:[%s94] sm:$0x80]
  %vm96 = vcmask 1047559
  %v97 = vsel %vm96, %v95, %v93
  %98 = vrot.lane.b32.xlu0 %v97, 124
  %v99 = vpop.permute.xlu0 %98
  %vm100 = vcmask 1048544
  %101 = vst.msk [vmem:[%s1] sm:$0x7f] %vm100, %v99
  %s102 = scalar_lea.vmem %s1, 1
  %103 = vst.msk [vmem:[%s102] sm:$0x80] %vm100, %v99
  %s104 = scalar_lea.vmem %s0, 127
  %v105 = vld [vmem:[%s104] sm:$0x1]
  %s106 = scalar_lea.vmem %s0, 190
  %v107 = vld [vmem:[%s106] sm:$0x2]
  %vm108 = vcmask 1041409
  %v109 = vsel %vm108, %v107, %v105
  %s110 = scalar_lea.vmem %s0, 253
  %v111 = vld [vmem:[%s110] sm:$0x4]
  %vm112 = vcmask 1042434
  %v113 = vsel %vm112, %v111, %v109
  %s114 = scalar_lea.vmem %s0, 316
  %v115 = vld [vmem:[%s114] sm:$0x8]
  %vm116 = vcmask 1043459
  %v117 = vsel %vm116, %v115, %v113
  %s118 = scalar_lea.vmem %s0, 379
  %v119 = vld [vmem:[%s118] sm:$0x10]
  %vm120 = vcmask 1044484
  %v121 = vsel %vm120, %v119, %v117
  %s122 = scalar_lea.vmem %s0, 442
  %v123 = vld [vmem:[%s122] sm:$0x20]
  %vm124 = vcmask 1045509
  %v125 = vsel %vm124, %v123, %v121
  %126 = vrot.lane.b32.xlu0 %v125, 124
  %v127 = vpop.permute.xlu0 %126
  %vm128 = vcmask 1048544
  %s129 = scalar_lea.vmem %s1, 9
  %130 = vst.msk [vmem:[%s129] sm:$0x3f] %vm128, %v127
  %s131 = scalar_lea.vmem %s0, 30
  %v132 = vld [vmem:[%s131] sm:$0x1]
  %s133 = scalar_lea.vmem %s0, 93
  %v134 = vld [vmem:[%s133] sm:$0x2]
  %vm135 = vcmask 1041409
  %v136 = vsel %vm135, %v134, %v132
  %s137 = scalar_lea.vmem %s0, 156
  %v138 = vld [vmem:[%s137] sm:$0x4]
  %vm139 = vcmask 1042434
  %v140 = vsel %vm139, %v138, %v136
  %s141 = scalar_lea.vmem %s0, 219
  %v142 = vld [vmem:[%s141] sm:$0x8]
  %vm143 = vcmask 1043459
  %v144 = vsel %vm143, %v142, %v140
  %s145 = scalar_lea.vmem %s0, 282
  %v146 = vld [vmem:[%s145] sm:$0x10]
  %vm147 = vcmask 1044484
  %v148 = vsel %vm147, %v146, %v144
  %s149 = scalar_lea.vmem %s0, 345
  %v150 = vld [vmem:[%s149] sm:$0x20]
  %vm151 = vcmask 1045509
  %v152 = vsel %vm151, %v150, %v148
  %s153 = scalar_lea.vmem %s0, 408
  %v154 = vld [vmem:[%s153] sm:$0x40]
  %vm155 = vcmask 1046534
  %v156 = vsel %vm155, %v154, %v152
  %s157 = scalar_lea.vmem %s0, 55
  %v158 = vld [vmem:[%s157] sm:$0x80]
  %vm159 = vcmask 1047559
  %v160 = vsel %vm159, %v158, %v156
  %161 = vrot.lane.b32.xlu0 %v160, 120
  %v162 = vpop.permute.xlu0 %161
  %vm163 = vcmask 1015744
  %164 = vst.msk [vmem:[%s1] sm:$0x7f] %vm163, %v162
  %s165 = scalar_lea.vmem %s1, 1
  %166 = vst.msk [vmem:[%s165] sm:$0x80] %vm163, %v162
  %s167 = scalar_lea.vmem %s0, 126
  %v168 = vld [vmem:[%s167] sm:$0x1]
  %s169 = scalar_lea.vmem %s0, 189
  %v170 = vld [vmem:[%s169] sm:$0x2]
  %vm171 = vcmask 1041409
  %v172 = vsel %vm171, %v170, %v168
  %s173 = scalar_lea.vmem %s0, 252
  %v174 = vld [vmem:[%s173] sm:$0x4]
  %vm175 = vcmask 1042434
  %v176 = vsel %vm175, %v174, %v172
  %s177 = scalar_lea.vmem %s0, 315
  %v178 = vld [vmem:[%s177] sm:$0x8]
  %vm179 = vcmask 1043459
  %v180 = vsel %vm179, %v178, %v176
  %s181 = scalar_lea.vmem %s0, 378
  %v182 = vld [vmem:[%s181] sm:$0x10]
  %vm183 = vcmask 1044484
  %v184 = vsel %vm183, %v182, %v180
  %s185 = scalar_lea.vmem %s0, 441
  %v186 = vld [vmem:[%s185] sm:$0x20]
  %vm187 = vcmask 1045509
  %v188 = vsel %vm187, %v186, %v184
  %189 = vrot.lane.b32.xlu0 %v188, 120
  %v190 = vpop.permute.xlu0 %189
  %vm191 = vcmask 1015744
  %s192 = scalar_lea.vmem %s1, 9
  %193 = vst.msk [vmem:[%s192] sm:$0x3f] %vm191, %v190
  %s194 = scalar_lea.vmem %s0, 29
  %v195 = vld [vmem:[%s194] sm:$0x1]
  %s196 = scalar_lea.vmem %s0, 92
  %v197 = vld [vmem:[%s196] sm:$0x2]
  %vm198 = vcmask 1041409
  %v199 = vsel %vm198, %v197, %v195
  %s200 = scalar_lea.vmem %s0, 155
  %v201 = vld [vmem:[%s200] sm:$0x4]
  %vm202 = vcmask 1042434
  %v203 = vsel %vm202, %v201, %v199
  %s204 = scalar_lea.vmem %s0, 218
  %v205 = vld [vmem:[%s204] sm:$0x8]
  %vm206 = vcmask 1043459
  %v207 = vsel %vm206, %v205, %v203
  %s208 = scalar_lea.vmem %s0, 281
  %v209 = vld [vmem:[%s208] sm:$0x10]
  %vm210 = vcmask 1044484
  %v211 = vsel %vm210, %v209, %v207
  %s212 = scalar_lea.vmem %s0, 344
  %v213 = vld [vmem:[%s212] sm:$0x20]
  %vm214 = vcmask 1045509
  %v215 = vsel %vm214, %v213, %v211
  %s216 = scalar_lea.vmem %s0, 407
  %v217 = vld [vmem:[%s216] sm:$0x40]
  %vm218 = vcmask 1046534
  %v219 = vsel %vm218, %v217, %v215
  %s220 = scalar_lea.vmem %s0, 54
  %v221 = vld [vmem:[%s220] sm:$0x80]
  %vm222 = vcmask 1047559
  %v223 = vsel %vm222, %v221, %v219
  %224 = vrot.lane.b32.xlu0 %v223, 116
  %v225 = vpop.permute.xlu0 %224
  %vm226 = vcmask 982944
  %227 = vst.msk [vmem:[%s1] sm:$0x7f] %vm226, %v225
  %s228 = scalar_lea.vmem %s1, 1
  %229 = vst.msk [vmem:[%s228] sm:$0x80] %vm226, %v225
  %s230 = scalar_lea.vmem %s0, 125
  %v231 = vld [vmem:[%s230] sm:$0x1]
  %s232 = scalar_lea.vmem %s0, 188
  %v233 = vld [vmem:[%s232] sm:$0x2]
  %vm234 = vcmask 1041409
  %v235 = vsel %vm234, %v233, %v231
  %s236 = scalar_lea.vmem %s0, 251
  %v237 = vld [vmem:[%s236] sm:$0x4]
  %vm238 = vcmask 1042434
  %v239 = vsel %vm238, %v237, %v235
  %s240 = scalar_lea.vmem %s0, 314
  %v241 = vld [vmem:[%s240] sm:$0x8]
  %vm242 = vcmask 1043459
  %v243 = vsel %vm242, %v241, %v239
  %s244 = scalar_lea.vmem %s0, 377
  %v245 = vld [vmem:[%s244] sm:$0x10]
  %vm246 = vcmask 1044484
  %v247 = vsel %vm246, %v245, %v243
  %s248 = scalar_lea.vmem %s0, 440
  %v249 = vld [vmem:[%s248] sm:$0x20]
  %vm250 = vcmask 1045509
  %v251 = vsel %vm250, %v249, %v247
  %252 = vrot.lane.b32.xlu0 %v251, 116
  %v253 = vpop.permute.xlu0 %252
  %vm254 = vcmask 982944
  %s255 = scalar_lea.vmem %s1, 9
  %256 = vst.msk [vmem:[%s255] sm:$0x3f] %vm254, %v253
  %s257 = scalar_lea.vmem %s0, 28
  %v258 = vld [vmem:[%s257] sm:$0x1]
  %s259 = scalar_lea.vmem %s0, 91
  %v260 = vld [vmem:[%s259] sm:$0x2]
  %vm261 = vcmask 1041409
  %v262 = vsel %vm261, %v260, %v258
  %s263 = scalar_lea.vmem %s0, 154
  %v264 = vld [vmem:[%s263] sm:$0x4]
  %vm265 = vcmask 1042434
  %v266 = vsel %vm265, %v264, %v262
  %s267 = scalar_lea.vmem %s0, 217
  %v268 = vld [vmem:[%s267] sm:$0x8]
  %vm269 = vcmask 1043459
  %v270 = vsel %vm269, %v268, %v266
  %s271 = scalar_lea.vmem %s0, 280
  %v272 = vld [vmem:[%s271] sm:$0x10]
  %vm273 = vcmask 1044484
  %v274 = vsel %vm273, %v272, %v270
  %s275 = scalar_lea.vmem %s0, 343
  %v276 = vld [vmem:[%s275] sm:$0x20]
  %vm277 = vcmask 1045509
  %v278 = vsel %vm277, %v276, %v274
  %s279 = scalar_lea.vmem %s0, 406
  %v280 = vld [vmem:[%s279] sm:$0x40]
  %vm281 = vcmask 1046534
  %v282 = vsel %vm281, %v280, %v278
  %s283 = scalar_lea.vmem %s0, 53
  %v284 = vld [vmem:[%s283] sm:$0x80]
  %vm285 = vcmask 1047559
  %v286 = vsel %vm285, %v284, %v282
  %287 = vrot.lane.b32.xlu0 %v286, 112
  %v288 = vpop.permute.xlu0 %287
  %vm289 = vcmask 950144
  %290 = vst.msk [vmem:[%s1] sm:$0x7f] %vm289, %v288
  %s291 = scalar_lea.vmem %s1, 1
  %292 = vst.msk [vmem:[%s291] sm:$0x80] %vm289, %v288
  %s293 = scalar_lea.vmem %s0, 124
  %v294 = vld [vmem:[%s293] sm:$0x1]
  %s295 = scalar_lea.vmem %s0, 187
  %v296 = vld [vmem:[%s295] sm:$0x2]
  %vm297 = vcmask 1041409
  %v298 = vsel %vm297, %v296, %v294
  %s299 = scalar_lea.vmem %s0, 250
  %v300 = vld [vmem:[%s299] sm:$0x4]
  %vm301 = vcmask 1042434
  %v302 = vsel %vm301, %v300, %v298
  %s303 = scalar_lea.vmem %s0, 313
  %v304 = vld [vmem:[%s303] sm:$0x8]
  %vm305 = vcmask 1043459
  %v306 = vsel %vm305, %v304, %v302
  %s307 = scalar_lea.vmem %s0, 376
  %v308 = vld [vmem:[%s307] sm:$0x10]
  %vm309 = vcmask 1044484
  %v310 = vsel %vm309, %v308, %v306
  %s311 = scalar_lea.vmem %s0, 439
  %v312 = vld [vmem:[%s311] sm:$0x20]
  %vm313 = vcmask 1045509
  %v314 = vsel %vm313, %v312, %v310
  %315 = vrot.lane.b32.xlu0 %v314, 112
  %v316 = vpop.permute.xlu0 %315
  %vm317 = vcmask 950144
  %s318 = scalar_lea.vmem %s1, 9
  %319 = vst.msk [vmem:[%s318] sm:$0x3f] %vm317, %v316
  %s320 = scalar_lea.vmem %s0, 27
  %v321 = vld [vmem:[%s320] sm:$0x1]
  %s322 = scalar_lea.vmem %s0, 90
  %v323 = vld [vmem:[%s322] sm:$0x2]
  %vm324 = vcmask 1041409
  %v325 = vsel %vm324, %v323, %v321
  %s326 = scalar_lea.vmem %s0, 153
  %v327 = vld [vmem:[%s326] sm:$0x4]
  %vm328 = vcmask 1042434
  %v329 = vsel %vm328, %v327, %v325
  %s330 = scalar_lea.vmem %s0, 216
  %v331 = vld [vmem:[%s330] sm:$0x8]
  %vm332 = vcmask 1043459
  %v333 = vsel %vm332, %v331, %v329
  %s334 = scalar_lea.vmem %s0, 279
  %v335 = vld [vmem:[%s334] sm:$0x10]
  %vm336 = vcmask 1044484
  %v337 = vsel %vm336, %v335, %v333
  %s338 = scalar_lea.vmem %s0, 342
  %v339 = vld [vmem:[%s338] sm:$0x20]
  %vm340 = vcmask 1045509
  %v341 = vsel %vm340, %v339, %v337
  %s342 = scalar_lea.vmem %s0, 405
  %v343 = vld [vmem:[%s342] sm:$0x40]
  %vm344 = vcmask 1046534
  %v345 = vsel %vm344, %v343, %v341
  %s346 = scalar_lea.vmem %s0, 52
  %v347 = vld [vmem:[%s346] sm:$0x80]
  %vm348 = vcmask 1047559
  %v349 = vsel %vm348, %v347, %v345
  %350 = vrot.lane.b32.xlu0 %v349, 108
  %v351 = vpop.permute.xlu0 %350
  %vm352 = vcmask 917344
  %353 = vst.msk [vmem:[%s1] sm:$0x7f] %vm352, %v351
  %s354 = scalar_lea.vmem %s1, 1
  %355 = vst.msk [vmem:[%s354] sm:$0x80] %vm352, %v351
  %s356 = scalar_lea.vmem %s0, 123
  %v357 = vld [vmem:[%s356] sm:$0x1]
  %s358 = scalar_lea.vmem %s0, 186
  %v359 = vld [vmem:[%s358] sm:$0x2]
  %vm360 = vcmask 1041409
  %v361 = vsel %vm360, %v359, %v357
  %s362 = scalar_lea.vmem %s0, 249
  %v363 = vld [vmem:[%s362] sm:$0x4]
  %vm364 = vcmask 1042434
  %v365 = vsel %vm364, %v363, %v361
  %s366 = scalar_lea.vmem %s0, 312
  %v367 = vld [vmem:[%s366] sm:$0x8]
  %vm368 = vcmask 1043459
  %v369 = vsel %vm368, %v367, %v365
  %s370 = scalar_lea.vmem %s0, 375
  %v371 = vld [vmem:[%s370] sm:$0x10]
  %vm372 = vcmask 1044484
  %v373 = vsel %vm372, %v371, %v369
  %s374 = scalar_lea.vmem %s0, 438
  %v375 = vld [vmem:[%s374] sm:$0x20]
  %vm376 = vcmask 1045509
  %v377 = vsel %vm376, %v375, %v373
  %378 = vrot.lane.b32.xlu0 %v377, 108
  %v379 = vpop.permute.xlu0 %378
  %vm380 = vcmask 917344
  %s381 = scalar_lea.vmem %s1, 9
  %382 = vst.msk [vmem:[%s381] sm:$0x3f] %vm380, %v379
  %s383 = scalar_lea.vmem %s0, 26
  %v384 = vld [vmem:[%s383] sm:$0x1]
  %s385 = scalar_lea.vmem %s0, 89
  %v386 = vld [vmem:[%s385] sm:$0x2]
  %vm387 = vcmask 1041409
  %v388 = vsel %vm387, %v386, %v384
  %s389 = scalar_lea.vmem %s0, 152
  %v390 = vld [vmem:[%s389] sm:$0x4]
  %vm391 = vcmask 1042434
  %v392 = vsel %vm391, %v390, %v388
  %s393 = scalar_lea.vmem %s0, 215
  %v394 = vld [vmem:[%s393] sm:$0x8]
  %vm395 = vcmask 1043459
  %v396 = vsel %vm395, %v394, %v392
  %s397 = scalar_lea.vmem %s0, 278
  %v398 = vld [vmem:[%s397] sm:$0x10]
  %vm399 = vcmask 1044484
  %v400 = vsel %vm399, %v398, %v396
  %s401 = scalar_lea.vmem %s0, 341
  %v402 = vld [vmem:[%s401] sm:$0x20]
  %vm403 = vcmask 1045509
  %v404 = vsel %vm403, %v402, %v400
  %s405 = scalar_lea.vmem %s0, 404
  %v406 = vld [vmem:[%s405] sm:$0x40]
  %vm407 = vcmask 1046534
  %v408 = vsel %vm407, %v406, %v404
  %s409 = scalar_lea.vmem %s0, 51
  %v410 = vld [vmem:[%s409] sm:$0x80]
  %vm411 = vcmask 1047559
  %v412 = vsel %vm411, %v410, %v408
  %413 = vrot.lane.b32.xlu0 %v412, 104
  %v414 = vpop.permute.xlu0 %413
  %vm415 = vcmask 884544
  %416 = vst.msk [vmem:[%s1] sm:$0x7f] %vm415, %v414
  %s417 = scalar_lea.vmem %s1, 1
  %418 = vst.msk [vmem:[%s417] sm:$0x80] %vm415, %v414
  %s419 = scalar_lea.vmem %s0, 122
  %v420 = vld [vmem:[%s419] sm:$0x1]
  %s421 = scalar_lea.vmem %s0, 185
  %v422 = vld [vmem:[%s421] sm:$0x2]
  %vm423 = vcmask 1041409
  %v424 = vsel %vm423, %v422, %v420
  %s425 = scalar_lea.vmem %s0, 248
  %v426 = vld [vmem:[%s425] sm:$0x4]
  %vm427 = vcmask 1042434
  %v428 = vsel %vm427, %v426, %v424
  %s429 = scalar_lea.vmem %s0, 311
  %v430 = vld [vmem:[%s429] sm:$0x8]
  %vm431 = vcmask 1043459
  %v432 = vsel %vm431, %v430, %v428
  %s433 = scalar_lea.vmem %s0, 374
  %v434 = vld [vmem:[%s433] sm:$0x10]
  %vm435 = vcmask 1044484
  %v436 = vsel %vm435, %v434, %v432
  %s437 = scalar_lea.vmem %s0, 437
  %v438 = vld [vmem:[%s437] sm:$0x20]
  %vm439 = vcmask 1045509
  %v440 = vsel %vm439, %v438, %v436
  %441 = vrot.lane.b32.xlu0 %v440, 104
  %v442 = vpop.permute.xlu0 %441
  %vm443 = vcmask 884544
  %s444 = scalar_lea.vmem %s1, 9
  %445 = vst.msk [vmem:[%s444] sm:$0x3f] %vm443, %v442
  %s446 = scalar_lea.vmem %s0, 25
  %v447 = vld [vmem:[%s446] sm:$0x1]
  %s448 = scalar_lea.vmem %s0, 88
  %v449 = vld [vmem:[%s448] sm:$0x2]
  %vm450 = vcmask 1041409
  %v451 = vsel %vm450, %v449, %v447
  %s452 = scalar_lea.vmem %s0, 151
  %v453 = vld [vmem:[%s452] sm:$0x4]
  %vm454 = vcmask 1042434
  %v455 = vsel %vm454, %v453, %v451
  %s456 = scalar_lea.vmem %s0, 214
  %v457 = vld [vmem:[%s456] sm:$0x8]
  %vm458 = vcmask 1043459
  %v459 = vsel %vm458, %v457, %v455
  %s460 = scalar_lea.vmem %s0, 277
  %v461 = vld [vmem:[%s460] sm:$0x10]
  %vm462 = vcmask 1044484
  %v463 = vsel %vm462, %v461, %v459
  %s464 = scalar_lea.vmem %s0, 340
  %v465 = vld [vmem:[%s464] sm:$0x20]
  %vm466 = vcmask 1045509
  %v467 = vsel %vm466, %v465, %v463
  %s468 = scalar_lea.vmem %s0, 403
  %v469 = vld [vmem:[%s468] sm:$0x40]
  %vm470 = vcmask 1046534
  %v471 = vsel %vm470, %v469, %v467
  %s472 = scalar_lea.vmem %s0, 50
  %v473 = vld [vmem:[%s472] sm:$0x80]
  %vm474 = vcmask 1047559
  %v475 = vsel %vm474, %v473, %v471
  %476 = vrot.lane.b32.xlu0 %v475, 100
  %v477 = vpop.permute.xlu0 %476
  %vm478 = vcmask 851744
  %479 = vst.msk [vmem:[%s1] sm:$0x7f] %vm478, %v477
  %s480 = scalar_lea.vmem %s1, 1
  %481 = vst.msk [vmem:[%s480] sm:$0x80] %vm478, %v477
  %s482 = scalar_lea.vmem %s0, 121
  %v483 = vld [vmem:[%s482] sm:$0x1]
  %s484 = scalar_lea.vmem %s0, 184
  %v485 = vld [vmem:[%s484] sm:$0x2]
  %vm486 = vcmask 1041409
  %v487 = vsel %vm486, %v485, %v483
  %s488 = scalar_lea.vmem %s0, 247
  %v489 = vld [vmem:[%s488] sm:$0x4]
  %vm490 = vcmask 1042434
  %v491 = vsel %vm490, %v489, %v487
  %s492 = scalar_lea.vmem %s0, 310
  %v493 = vld [vmem:[%s492] sm:$0x8]
  %vm494 = vcmask 1043459
  %v495 = vsel %vm494, %v493, %v491
  %s496 = scalar_lea.vmem %s0, 373
  %v497 = vld [vmem:[%s496] sm:$0x10]
  %vm498 = vcmask 1044484
  %v499 = vsel %vm498, %v497, %v495
  %s500 = scalar_lea.vmem %s0, 436
  %v501 = vld [vmem:[%s500] sm:$0x20]
  %vm502 = vcmask 1045509
  %v503 = vsel %vm502, %v501, %v499
  %504 = vrot.lane.b32.xlu0 %v503, 100
  %v505 = vpop.permute.xlu0 %504
  %vm506 = vcmask 851744
  %s507 = scalar_lea.vmem %s1, 9
  %508 = vst.msk [vmem:[%s507] sm:$0x3f] %vm506, %v505
  %s509 = scalar_lea.vmem %s0, 24
  %v510 = vld [vmem:[%s509] sm:$0x1]
  %s511 = scalar_lea.vmem %s0, 87
  %v512 = vld [vmem:[%s511] sm:$0x2]
  %vm513 = vcmask 1041409
  %v514 = vsel %vm513, %v512, %v510
  %s515 = scalar_lea.vmem %s0, 150
  %v516 = vld [vmem:[%s515] sm:$0x4]
  %vm517 = vcmask 1042434
  %v518 = vsel %vm517, %v516, %v514
  %s519 = scalar_lea.vmem %s0, 213
  %v520 = vld [vmem:[%s519] sm:$0x8]
  %vm521 = vcmask 1043459
  %v522 = vsel %vm521, %v520, %v518
  %s523 = scalar_lea.vmem %s0, 276
  %v524 = vld [vmem:[%s523] sm:$0x10]
  %vm525 = vcmask 1044484
  %v526 = vsel %vm525, %v524, %v522
  %s527 = scalar_lea.vmem %s0, 339
  %v528 = vld [vmem:[%s527] sm:$0x20]
  %vm529 = vcmask 1045509
  %v530 = vsel %vm529, %v528, %v526
  %s531 = scalar_lea.vmem %s0, 402
  %v532 = vld [vmem:[%s531] sm:$0x40]
  %vm533 = vcmask 1046534
  %v534 = vsel %vm533, %v532, %v530
  %s535 = scalar_lea.vmem %s0, 49
  %v536 = vld [vmem:[%s535] sm:$0x80]
  %vm537 = vcmask 1047559
  %v538 = vsel %vm537, %v536, %v534
  %539 = vrot.lane.b32.xlu0 %v538, 96
  %v540 = vpop.permute.xlu0 %539
  %vm541 = vcmask 818944
  %542 = vst.msk [vmem:[%s1] sm:$0x7f] %vm541, %v540
  %s543 = scalar_lea.vmem %s1, 1
  %544 = vst.msk [vmem:[%s543] sm:$0x80] %vm541, %v540
  %s545 = scalar_lea.vmem %s0, 120
  %v546 = vld [vmem:[%s545] sm:$0x1]
  %s547 = scalar_lea.vmem %s0, 183
  %v548 = vld [vmem:[%s547] sm:$0x2]
  %vm549 = vcmask 1041409
  %v550 = vsel %vm549, %v548, %v546
  %s551 = scalar_lea.vmem %s0, 246
  %v552 = vld [vmem:[%s551] sm:$0x4]
  %vm553 = vcmask 1042434
  %v554 = vsel %vm553, %v552, %v550
  %s555 = scalar_lea.vmem %s0, 309
  %v556 = vld [vmem:[%s555] sm:$0x8]
  %vm557 = vcmask 1043459
  %v558 = vsel %vm557, %v556, %v554
  %s559 = scalar_lea.vmem %s0, 372
  %v560 = vld [vmem:[%s559] sm:$0x10]
  %vm561 = vcmask 1044484
  %v562 = vsel %vm561, %v560, %v558
  %s563 = scalar_lea.vmem %s0, 435
  %v564 = vld [vmem:[%s563] sm:$0x20]
  %vm565 = vcmask 1045509
  %v566 = vsel %vm565, %v564, %v562
  %567 = vrot.lane.b32.xlu0 %v566, 96
  %v568 = vpop.permute.xlu0 %567
  %vm569 = vcmask 818944
  %s570 = scalar_lea.vmem %s1, 9
  %571 = vst.msk [vmem:[%s570] sm:$0x3f] %vm569, %v568
  %s572 = scalar_lea.vmem %s0, 23
  %v573 = vld [vmem:[%s572] sm:$0x1]
  %s574 = scalar_lea.vmem %s0, 86
  %v575 = vld [vmem:[%s574] sm:$0x2]
  %vm576 = vcmask 1041409
  %v577 = vsel %vm576, %v575, %v573
  %s578 = scalar_lea.vmem %s0, 149
  %v579 = vld [vmem:[%s578] sm:$0x4]
  %vm580 = vcmask 1042434
  %v581 = vsel %vm580, %v579, %v577
  %s582 = scalar_lea.vmem %s0, 212
  %v583 = vld [vmem:[%s582] sm:$0x8]
  %vm584 = vcmask 1043459
  %v585 = vsel %vm584, %v583, %v581
  %s586 = scalar_lea.vmem %s0, 275
  %v587 = vld [vmem:[%s586] sm:$0x10]
  %vm588 = vcmask 1044484
  %v589 = vsel %vm588, %v587, %v585
  %s590 = scalar_lea.vmem %s0, 338
  %v591 = vld [vmem:[%s590] sm:$0x20]
  %vm592 = vcmask 1045509
  %v593 = vsel %vm592, %v591, %v589
  %s594 = scalar_lea.vmem %s0, 401
  %v595 = vld [vmem:[%s594] sm:$0x40]
  %vm596 = vcmask 1046534
  %v597 = vsel %vm596, %v595, %v593
  %s598 = scalar_lea.vmem %s0, 48
  %v599 = vld [vmem:[%s598] sm:$0x80]
  %vm600 = vcmask 1047559
  %v601 = vsel %vm600, %v599, %v597
  %602 = vrot.lane.b32.xlu0 %v601, 92
  %v603 = vpop.permute.xlu0 %602
  %vm604 = vcmask 786144
  %605 = vst.msk [vmem:[%s1] sm:$0x7f] %vm604, %v603
  %s606 = scalar_lea.vmem %s1, 1
  %607 = vst.msk [vmem:[%s606] sm:$0x80] %vm604, %v603
  %s608 = scalar_lea.vmem %s0, 119
  %v609 = vld [vmem:[%s608] sm:$0x1]
  %s610 = scalar_lea.vmem %s0, 182
  %v611 = vld [vmem:[%s610] sm:$0x2]
  %vm612 = vcmask 1041409
  %v613 = vsel %vm612, %v611, %v609
  %s614 = scalar_lea.vmem %s0, 245
  %v615 = vld [vmem:[%s614] sm:$0x4]
  %vm616 = vcmask 1042434
  %v617 = vsel %vm616, %v615, %v613
  %s618 = scalar_lea.vmem %s0, 308
  %v619 = vld [vmem:[%s618] sm:$0x8]
  %vm620 = vcmask 1043459
  %v621 = vsel %vm620, %v619, %v617
  %s622 = scalar_lea.vmem %s0, 371
  %v623 = vld [vmem:[%s622] sm:$0x10]
  %vm624 = vcmask 1044484
  %v625 = vsel %vm624, %v623, %v621
  %s626 = scalar_lea.vmem %s0, 434
  %v627 = vld [vmem:[%s626] sm:$0x20]
  %vm628 = vcmask 1045509
  %v629 = vsel %vm628, %v627, %v625
  %630 = vrot.lane.b32.xlu0 %v629, 92
  %v631 = vpop.permute.xlu0 %630
  %vm632 = vcmask 786144
  %s633 = scalar_lea.vmem %s1, 9
  %634 = vst.msk [vmem:[%s633] sm:$0x3f] %vm632, %v631
  %s635 = scalar_lea.vmem %s0, 22
  %v636 = vld [vmem:[%s635] sm:$0x1]
  %s637 = scalar_lea.vmem %s0, 85
  %v638 = vld [vmem:[%s637] sm:$0x2]
  %vm639 = vcmask 1041409
  %v640 = vsel %vm639, %v638, %v636
  %s641 = scalar_lea.vmem %s0, 148
  %v642 = vld [vmem:[%s641] sm:$0x4]
  %vm643 = vcmask 1042434
  %v644 = vsel %vm643, %v642, %v640
  %s645 = scalar_lea.vmem %s0, 211
  %v646 = vld [vmem:[%s645] sm:$0x8]
  %vm647 = vcmask 1043459
  %v648 = vsel %vm647, %v646, %v644
  %s649 = scalar_lea.vmem %s0, 274
  %v650 = vld [vmem:[%s649] sm:$0x10]
  %vm651 = vcmask 1044484
  %v652 = vsel %vm651, %v650, %v648
  %s653 = scalar_lea.vmem %s0, 337
  %v654 = vld [vmem:[%s653] sm:$0x20]
  %vm655 = vcmask 1045509
  %v656 = vsel %vm655, %v654, %v652
  %s657 = scalar_lea.vmem %s0, 400
  %v658 = vld [vmem:[%s657] sm:$0x40]
  %vm659 = vcmask 1046534
  %v660 = vsel %vm659, %v658, %v656
  %s661 = scalar_lea.vmem %s0, 47
  %v662 = vld [vmem:[%s661] sm:$0x80]
  %vm663 = vcmask 1047559
  %v664 = vsel %vm663, %v662, %v660
  %665 = vrot.lane.b32.xlu0 %v664, 88
  %v666 = vpop.permute.xlu0 %665
  %vm667 = vcmask 753344
  %668 = vst.msk [vmem:[%s1] sm:$0x7f] %vm667, %v666
  %s669 = scalar_lea.vmem %s1, 1
  %670 = vst.msk [vmem:[%s669] sm:$0x80] %vm667, %v666
  %s671 = scalar_lea.vmem %s0, 118
  %v672 = vld [vmem:[%s671] sm:$0x1]
  %s673 = scalar_lea.vmem %s0, 181
  %v674 = vld [vmem:[%s673] sm:$0x2]
  %vm675 = vcmask 1041409
  %v676 = vsel %vm675, %v674, %v672
  %s677 = scalar_lea.vmem %s0, 244
  %v678 = vld [vmem:[%s677] sm:$0x4]
  %vm679 = vcmask 1042434
  %v680 = vsel %vm679, %v678, %v676
  %s681 = scalar_lea.vmem %s0, 307
  %v682 = vld [vmem:[%s681] sm:$0x8]
  %vm683 = vcmask 1043459
  %v684 = vsel %vm683, %v682, %v680
  %s685 = scalar_lea.vmem %s0, 370
  %v686 = vld [vmem:[%s685] sm:$0x10]
  %vm687 = vcmask 1044484
  %v688 = vsel %vm687, %v686, %v684
  %s689 = scalar_lea.vmem %s0, 433
  %v690 = vld [vmem:[%s689] sm:$0x20]
  %vm691 = vcmask 1045509
  %v692 = vsel %vm691, %v690, %v688
  %693 = vrot.lane.b32.xlu0 %v692, 88
  %v694 = vpop.permute.xlu0 %693
  %vm695 = vcmask 753344
  %s696 = scalar_lea.vmem %s1, 9
  %697 = vst.msk [vmem:[%s696] sm:$0x3f] %vm695, %v694
  %s698 = scalar_lea.vmem %s0, 21
  %v699 = vld [vmem:[%s698] sm:$0x1]
  %s700 = scalar_lea.vmem %s0, 84
  %v701 = vld [vmem:[%s700] sm:$0x2]
  %vm702 = vcmask 1041409
  %v703 = vsel %vm702, %v701, %v699
  %s704 = scalar_lea.vmem %s0, 147
  %v705 = vld [vmem:[%s704] sm:$0x4]
  %vm706 = vcmask 1042434
  %v707 = vsel %vm706, %v705, %v703
  %s708 = scalar_lea.vmem %s0, 210
  %v709 = vld [vmem:[%s708] sm:$0x8]
  %vm710 = vcmask 1043459
  %v711 = vsel %vm710, %v709, %v707
  %s712 = scalar_lea.vmem %s0, 273
  %v713 = vld [vmem:[%s712] sm:$0x10]
  %vm714 = vcmask 1044484
  %v715 = vsel %vm714, %v713, %v711
  %s716 = scalar_lea.vmem %s0, 336
  %v717 = vld [vmem:[%s716] sm:$0x20]
  %vm718 = vcmask 1045509
  %v719 = vsel %vm718, %v717, %v715
  %s720 = scalar_lea.vmem %s0, 399
  %v721 = vld [vmem:[%s720] sm:$0x40]
  %vm722 = vcmask 1046534
  %v723 = vsel %vm722, %v721, %v719
  %s724 = scalar_lea.vmem %s0, 46
  %v725 = vld [vmem:[%s724] sm:$0x80]
  %vm726 = vcmask 1047559
  %v727 = vsel %vm726, %v725, %v723
  %728 = vrot.lane.b32.xlu0 %v727, 84
  %v729 = vpop.permute.xlu0 %728
  %vm730 = vcmask 720544
  %731 = vst.msk [vmem:[%s1] sm:$0x7f] %vm730, %v729
  %s732 = scalar_lea.vmem %s1, 1
  %733 = vst.msk [vmem:[%s732] sm:$0x80] %vm730, %v729
  %s734 = scalar_lea.vmem %s0, 117
  %v735 = vld [vmem:[%s734] sm:$0x1]
  %s736 = scalar_lea.vmem %s0, 180
  %v737 = vld [vmem:[%s736] sm:$0x2]
  %vm738 = vcmask 1041409
  %v739 = vsel %vm738, %v737, %v735
  %s740 = scalar_lea.vmem %s0, 243
  %v741 = vld [vmem:[%s740] sm:$0x4]
  %vm742 = vcmask 1042434
  %v743 = vsel %vm742, %v741, %v739
  %s744 = scalar_lea.vmem %s0, 306
  %v745 = vld [vmem:[%s744] sm:$0x8]
  %vm746 = vcmask 1043459
  %v747 = vsel %vm746, %v745, %v743
  %s748 = scalar_lea.vmem %s0, 369
  %v749 = vld [vmem:[%s748] sm:$0x10]
  %vm750 = vcmask 1044484
  %v751 = vsel %vm750, %v749, %v747
  %s752 = scalar_lea.vmem %s0, 432
  %v753 = vld [vmem:[%s752] sm:$0x20]
  %vm754 = vcmask 1045509
  %v755 = vsel %vm754, %v753, %v751
  %756 = vrot.lane.b32.xlu0 %v755, 84
  %v757 = vpop.permute.xlu0 %756
  %vm758 = vcmask 720544
  %s759 = scalar_lea.vmem %s1, 9
  %760 = vst.msk [vmem:[%s759] sm:$0x3f] %vm758, %v757
  %s761 = scalar_lea.vmem %s0, 20
  %v762 = vld [vmem:[%s761] sm:$0x1]
  %s763 = scalar_lea.vmem %s0, 83
  %v764 = vld [vmem:[%s763] sm:$0x2]
  %vm765 = vcmask 1041409
  %v766 = vsel %vm765, %v764, %v762
  %s767 = scalar_lea.vmem %s0, 146
  %v768 = vld [vmem:[%s767] sm:$0x4]
  %vm769 = vcmask 1042434
  %v770 = vsel %vm769, %v768, %v766
  %s771 = scalar_lea.vmem %s0, 209
  %v772 = vld [vmem:[%s771] sm:$0x8]
  %vm773 = vcmask 1043459
  %v774 = vsel %vm773, %v772, %v770
  %s775 = scalar_lea.vmem %s0, 272
  %v776 = vld [vmem:[%s775] sm:$0x10]
  %vm777 = vcmask 1044484
  %v778 = vsel %vm777, %v776, %v774
  %s779 = scalar_lea.vmem %s0, 335
  %v780 = vld [vmem:[%s779] sm:$0x20]
  %vm781 = vcmask 1045509
  %v782 = vsel %vm781, %v780, %v778
  %s783 = scalar_lea.vmem %s0, 398
  %v784 = vld [vmem:[%s783] sm:$0x40]
  %vm785 = vcmask 1046534
  %v786 = vsel %vm785, %v784, %v782
  %s787 = scalar_lea.vmem %s0, 45
  %v788 = vld [vmem:[%s787] sm:$0x80]
  %vm789 = vcmask 1047559
  %v790 = vsel %vm789, %v788, %v786
  %791 = vrot.lane.b32.xlu0 %v790, 80
  %v792 = vpop.permute.xlu0 %791
  %vm793 = vcmask 687744
  %794 = vst.msk [vmem:[%s1] sm:$0x7f] %vm793, %v792
  %s795 = scalar_lea.vmem %s1, 1
  %796 = vst.msk [vmem:[%s795] sm:$0x80] %vm793, %v792
  %s797 = scalar_lea.vmem %s0, 116
  %v798 = vld [vmem:[%s797] sm:$0x1]
  %s799 = scalar_lea.vmem %s0, 179
  %v800 = vld [vmem:[%s799] sm:$0x2]
  %vm801 = vcmask 1041409
  %v802 = vsel %vm801, %v800, %v798
  %s803 = scalar_lea.vmem %s0, 242
  %v804 = vld [vmem:[%s803] sm:$0x4]
  %vm805 = vcmask 1042434
  %v806 = vsel %vm805, %v804, %v802
  %s807 = scalar_lea.vmem %s0, 305
  %v808 = vld [vmem:[%s807] sm:$0x8]
  %vm809 = vcmask 1043459
  %v810 = vsel %vm809, %v808, %v806
  %s811 = scalar_lea.vmem %s0, 368
  %v812 = vld [vmem:[%s811] sm:$0x10]
  %vm813 = vcmask 1044484
  %v814 = vsel %vm813, %v812, %v810
  %s815 = scalar_lea.vmem %s0, 431
  %v816 = vld [vmem:[%s815] sm:$0x20]
  %vm817 = vcmask 1045509
  %v818 = vsel %vm817, %v816, %v814
  %819 = vrot.lane.b32.xlu0 %v818, 80
  %v820 = vpop.permute.xlu0 %819
  %vm821 = vcmask 687744
  %s822 = scalar_lea.vmem %s1, 9
  %823 = vst.msk [vmem:[%s822] sm:$0x3f] %vm821, %v820
  %s824 = scalar_lea.vmem %s0, 19
  %v825 = vld [vmem:[%s824] sm:$0x1]
  %s826 = scalar_lea.vmem %s0, 82
  %v827 = vld [vmem:[%s826] sm:$0x2]
  %vm828 = vcmask 1041409
  %v829 = vsel %vm828, %v827, %v825
  %s830 = scalar_lea.vmem %s0, 145
  %v831 = vld [vmem:[%s830] sm:$0x4]
  %vm832 = vcmask 1042434
  %v833 = vsel %vm832, %v831, %v829
  %s834 = scalar_lea.vmem %s0, 208
  %v835 = vld [vmem:[%s834] sm:$0x8]
  %vm836 = vcmask 1043459
  %v837 = vsel %vm836, %v835, %v833
  %s838 = scalar_lea.vmem %s0, 271
  %v839 = vld [vmem:[%s838] sm:$0x10]
  %vm840 = vcmask 1044484
  %v841 = vsel %vm840, %v839, %v837
  %s842 = scalar_lea.vmem %s0, 334
  %v843 = vld [vmem:[%s842] sm:$0x20]
  %vm844 = vcmask 1045509
  %v845 = vsel %vm844, %v843, %v841
  %s846 = scalar_lea.vmem %s0, 397
  %v847 = vld [vmem:[%s846] sm:$0x40]
  %vm848 = vcmask 1046534
  %v849 = vsel %vm848, %v847, %v845
  %s850 = scalar_lea.vmem %s0, 44
  %v851 = vld [vmem:[%s850] sm:$0x80]
  %vm852 = vcmask 1047559
  %v853 = vsel %vm852, %v851, %v849
  %854 = vrot.lane.b32.xlu0 %v853, 76
  %v855 = vpop.permute.xlu0 %854
  %vm856 = vcmask 654944
  %857 = vst.msk [vmem:[%s1] sm:$0x7f] %vm856, %v855
  %s858 = scalar_lea.vmem %s1, 1
  %859 = vst.msk [vmem:[%s858] sm:$0x80] %vm856, %v855
  %s860 = scalar_lea.vmem %s0, 115
  %v861 = vld [vmem:[%s860] sm:$0x1]
  %s862 = scalar_lea.vmem %s0, 178
  %v863 = vld [vmem:[%s862] sm:$0x2]
  %vm864 = vcmask 1041409
  %v865 = vsel %vm864, %v863, %v861
  %s866 = scalar_lea.vmem %s0, 241
  %v867 = vld [vmem:[%s866] sm:$0x4]
  %vm868 = vcmask 1042434
  %v869 = vsel %vm868, %v867, %v865
  %s870 = scalar_lea.vmem %s0, 304
  %v871 = vld [vmem:[%s870] sm:$0x8]
  %vm872 = vcmask 1043459
  %v873 = vsel %vm872, %v871, %v869
  %s874 = scalar_lea.vmem %s0, 367
  %v875 = vld [vmem:[%s874] sm:$0x10]
  %vm876 = vcmask 1044484
  %v877 = vsel %vm876, %v875, %v873
  %s878 = scalar_lea.vmem %s0, 430
  %v879 = vld [vmem:[%s878] sm:$0x20]
  %vm880 = vcmask 1045509
  %v881 = vsel %vm880, %v879, %v877
  %882 = vrot.lane.b32.xlu0 %v881, 76
  %v883 = vpop.permute.xlu0 %882
  %vm884 = vcmask 654944
  %s885 = scalar_lea.vmem %s1, 9
  %886 = vst.msk [vmem:[%s885] sm:$0x3f] %vm884, %v883
  %s887 = scalar_lea.vmem %s0, 18
  %v888 = vld [vmem:[%s887] sm:$0x1]
  %s889 = scalar_lea.vmem %s0, 81
  %v890 = vld [vmem:[%s889] sm:$0x2]
  %vm891 = vcmask 1041409
  %v892 = vsel %vm891, %v890, %v888
  %s893 = scalar_lea.vmem %s0, 144
  %v894 = vld [vmem:[%s893] sm:$0x4]
  %vm895 = vcmask 1042434
  %v896 = vsel %vm895, %v894, %v892
  %s897 = scalar_lea.vmem %s0, 207
  %v898 = vld [vmem:[%s897] sm:$0x8]
  %vm899 = vcmask 1043459
  %v900 = vsel %vm899, %v898, %v896
  %s901 = scalar_lea.vmem %s0, 270
  %v902 = vld [vmem:[%s901] sm:$0x10]
  %vm903 = vcmask 1044484
  %v904 = vsel %vm903, %v902, %v900
  %s905 = scalar_lea.vmem %s0, 333
  %v906 = vld [vmem:[%s905] sm:$0x20]
  %vm907 = vcmask 1045509
  %v908 = vsel %vm907, %v906, %v904
  %s909 = scalar_lea.vmem %s0, 396
  %v910 = vld [vmem:[%s909] sm:$0x40]
  %vm911 = vcmask 1046534
  %v912 = vsel %vm911, %v910, %v908
  %s913 = scalar_lea.vmem %s0, 43
  %v914 = vld [vmem:[%s913] sm:$0x80]
  %vm915 = vcmask 1047559
  %v916 = vsel %vm915, %v914, %v912
  %917 = vrot.lane.b32.xlu0 %v916, 72
  %v918 = vpop.permute.xlu0 %917
  %vm919 = vcmask 622144
  %920 = vst.msk [vmem:[%s1] sm:$0x7f] %vm919, %v918
  %s921 = scalar_lea.vmem %s1, 1
  %922 = vst.msk [vmem:[%s921] sm:$0x80] %vm919, %v918
  %s923 = scalar_lea.vmem %s0, 114
  %v924 = vld [vmem:[%s923] sm:$0x1]
  %s925 = scalar_lea.vmem %s0, 177
  %v926 = vld [vmem:[%s925] sm:$0x2]
  %vm927 = vcmask 1041409
  %v928 = vsel %vm927, %v926, %v924
  %s929 = scalar_lea.vmem %s0, 240
  %v930 = vld [vmem:[%s929] sm:$0x4]
  %vm931 = vcmask 1042434
  %v932 = vsel %vm931, %v930, %v928
  %s933 = scalar_lea.vmem %s0, 303
  %v934 = vld [vmem:[%s933] sm:$0x8]
  %vm935 = vcmask 1043459
  %v936 = vsel %vm935, %v934, %v932
  %s937 = scalar_lea.vmem %s0, 366
  %v938 = vld [vmem:[%s937] sm:$0x10]
  %vm939 = vcmask 1044484
  %v940 = vsel %vm939, %v938, %v936
  %s941 = scalar_lea.vmem %s0, 429
  %v942 = vld [vmem:[%s941] sm:$0x20]
  %vm943 = vcmask 1045509
  %v944 = vsel %vm943, %v942, %v940
  %945 = vrot.lane.b32.xlu0 %v944, 72
  %v946 = vpop.permute.xlu0 %945
  %vm947 = vcmask 622144
  %s948 = scalar_lea.vmem %s1, 9
  %949 = vst.msk [vmem:[%s948] sm:$0x3f] %vm947, %v946
  %s950 = scalar_lea.vmem %s0, 17
  %v951 = vld [vmem:[%s950] sm:$0x1]
  %s952 = scalar_lea.vmem %s0, 80
  %v953 = vld [vmem:[%s952] sm:$0x2]
  %vm954 = vcmask 1041409
  %v955 = vsel %vm954, %v953, %v951
  %s956 = scalar_lea.vmem %s0, 143
  %v957 = vld [vmem:[%s956] sm:$0x4]
  %vm958 = vcmask 1042434
  %v959 = vsel %vm958, %v957, %v955
  %s960 = scalar_lea.vmem %s0, 206
  %v961 = vld [vmem:[%s960] sm:$0x8]
  %vm962 = vcmask 1043459
  %v963 = vsel %vm962, %v961, %v959
  %s964 = scalar_lea.vmem %s0, 269
  %v965 = vld [vmem:[%s964] sm:$0x10]
  %vm966 = vcmask 1044484
  %v967 = vsel %vm966, %v965, %v963
  %s968 = scalar_lea.vmem %s0, 332
  %v969 = vld [vmem:[%s968] sm:$0x20]
  %vm970 = vcmask 1045509
  %v971 = vsel %vm970, %v969, %v967
  %s972 = scalar_lea.vmem %s0, 395
  %v973 = vld [vmem:[%s972] sm:$0x40]
  %vm974 = vcmask 1046534
  %v975 = vsel %vm974, %v973, %v971
  %s976 = scalar_lea.vmem %s0, 42
  %v977 = vld [vmem:[%s976] sm:$0x80]
  %vm978 = vcmask 1047559
  %v979 = vsel %vm978, %v977, %v975
  %980 = vrot.lane.b32.xlu0 %v979, 68
  %v981 = vpop.permute.xlu0 %980
  %vm982 = vcmask 589344
  %983 = vst.msk [vmem:[%s1] sm:$0x7f] %vm982, %v981
  %s984 = scalar_lea.vmem %s1, 1
  %985 = vst.msk [vmem:[%s984] sm:$0x80] %vm982, %v981
  %s986 = scalar_lea.vmem %s0, 113
  %v987 = vld [vmem:[%s986] sm:$0x1]
  %s988 = scalar_lea.vmem %s0, 176
  %v989 = vld [vmem:[%s988] sm:$0x2]
  %vm990 = vcmask 1041409
  %v991 = vsel %vm990, %v989, %v987
  %s992 = scalar_lea.vmem %s0, 239
  %v993 = vld [vmem:[%s992] sm:$0x4]
  %vm994 = vcmask 1042434
  %v995 = vsel %vm994, %v993, %v991
  %s996 = scalar_lea.vmem %s0, 302
  %v997 = vld [vmem:[%s996] sm:$0x8]
  %vm998 = vcmask 1043459
  %v999 = vsel %vm998, %v997, %v995
  %s1000 = scalar_lea.vmem %s0, 365
  %v1001 = vld [vmem:[%s1000] sm:$0x10]
  %vm1002 = vcmask 1044484
  %v1003 = vsel %vm1002, %v1001, %v999
  %s1004 = scalar_lea.vmem %s0, 428
  %v1005 = vld [vmem:[%s1004] sm:$0x20]
  %vm1006 = vcmask 1045509
  %v1007 = vsel %vm1006, %v1005, %v1003
  %1008 = vrot.lane.b32.xlu0 %v1007, 68
  %v1009 = vpop.permute.xlu0 %1008
  %vm1010 = vcmask 589344
  %s1011 = scalar_lea.vmem %s1, 9
  %1012 = vst.msk [vmem:[%s1011] sm:$0x3f] %vm1010, %v1009
  %s1013 = scalar_lea.vmem %s0, 16
  %v1014 = vld [vmem:[%s1013] sm:$0x1]
  %s1015 = scalar_lea.vmem %s0, 79
  %v1016 = vld [vmem:[%s1015] sm:$0x2]
  %vm1017 = vcmask 1041409
  %v1018 = vsel %vm1017, %v1016, %v1014
  %s1019 = scalar_lea.vmem %s0, 142
  %v1020 = vld [vmem:[%s1019] sm:$0x4]
  %vm1021 = vcmask 1042434
  %v1022 = vsel %vm1021, %v1020, %v1018
  %s1023 = scalar_lea.vmem %s0, 205
  %v1024 = vld [vmem:[%s1023] sm:$0x8]
  %vm1025 = vcmask 1043459
  %v1026 = vsel %vm1025, %v1024, %v1022
  %s1027 = scalar_lea.vmem %s0, 268
  %v1028 = vld [vmem:[%s1027] sm:$0x10]
  %vm1029 = vcmask 1044484
  %v1030 = vsel %vm1029, %v1028, %v1026
  %s1031 = scalar_lea.vmem %s0, 331
  %v1032 = vld [vmem:[%s1031] sm:$0x20]
  %vm1033 = vcmask 1045509
  %v1034 = vsel %vm1033, %v1032, %v1030
  %s1035 = scalar_lea.vmem %s0, 394
  %v1036 = vld [vmem:[%s1035] sm:$0x40]
  %vm1037 = vcmask 1046534
  %v1038 = vsel %vm1037, %v1036, %v1034
  %s1039 = scalar_lea.vmem %s0, 41
  %v1040 = vld [vmem:[%s1039] sm:$0x80]
  %vm1041 = vcmask 1047559
  %v1042 = vsel %vm1041, %v1040, %v1038
  %1043 = vrot.lane.b32.xlu0 %v1042, 64
  %v1044 = vpop.permute.xlu0 %1043
  %vm1045 = vcmask 556544
  %1046 = vst.msk [vmem:[%s1] sm:$0x7f] %vm1045, %v1044
  %s1047 = scalar_lea.vmem %s1, 1
  %1048 = vst.msk [vmem:[%s1047] sm:$0x80] %vm1045, %v1044
  %s1049 = scalar_lea.vmem %s0, 112
  %v1050 = vld [vmem:[%s1049] sm:$0x1]
  %s1051 = scalar_lea.vmem %s0, 175
  %v1052 = vld [vmem:[%s1051] sm:$0x2]
  %vm1053 = vcmask 1041409
  %v1054 = vsel %vm1053, %v1052, %v1050
  %s1055 = scalar_lea.vmem %s0, 238
  %v1056 = vld [vmem:[%s1055] sm:$0x4]
  %vm1057 = vcmask 1042434
  %v1058 = vsel %vm1057, %v1056, %v1054
  %s1059 = scalar_lea.vmem %s0, 301
  %v1060 = vld [vmem:[%s1059] sm:$0x8]
  %vm1061 = vcmask 1043459
  %v1062 = vsel %vm1061, %v1060, %v1058
  %s1063 = scalar_lea.vmem %s0, 364
  %v1064 = vld [vmem:[%s1063] sm:$0x10]
  %vm1065 = vcmask 1044484
  %v1066 = vsel %vm1065, %v1064, %v1062
  %s1067 = scalar_lea.vmem %s0, 427
  %v1068 = vld [vmem:[%s1067] sm:$0x20]
  %vm1069 = vcmask 1045509
  %v1070 = vsel %vm1069, %v1068, %v1066
  %1071 = vrot.lane.b32.xlu0 %v1070, 64
  %v1072 = vpop.permute.xlu0 %1071
  %vm1073 = vcmask 556544
  %s1074 = scalar_lea.vmem %s1, 9
  %1075 = vst.msk [vmem:[%s1074] sm:$0x3f] %vm1073, %v1072
  %s1076 = scalar_lea.vmem %s0, 15
  %v1077 = vld [vmem:[%s1076] sm:$0x1]
  %s1078 = scalar_lea.vmem %s0, 78
  %v1079 = vld [vmem:[%s1078] sm:$0x2]
  %vm1080 = vcmask 1041409
  %v1081 = vsel %vm1080, %v1079, %v1077
  %s1082 = scalar_lea.vmem %s0, 141
  %v1083 = vld [vmem:[%s1082] sm:$0x4]
  %vm1084 = vcmask 1042434
  %v1085 = vsel %vm1084, %v1083, %v1081
  %s1086 = scalar_lea.vmem %s0, 204
  %v1087 = vld [vmem:[%s1086] sm:$0x8]
  %vm1088 = vcmask 1043459
  %v1089 = vsel %vm1088, %v1087, %v1085
  %s1090 = scalar_lea.vmem %s0, 267
  %v1091 = vld [vmem:[%s1090] sm:$0x10]
  %vm1092 = vcmask 1044484
  %v1093 = vsel %vm1092, %v1091, %v1089
  %s1094 = scalar_lea.vmem %s0, 330
  %v1095 = vld [vmem:[%s1094] sm:$0x20]
  %vm1096 = vcmask 1045509
  %v1097 = vsel %vm1096, %v1095, %v1093
  %s1098 = scalar_lea.vmem %s0, 393
  %v1099 = vld [vmem:[%s1098] sm:$0x40]
  %vm1100 = vcmask 1046534
  %v1101 = vsel %vm1100, %v1099, %v1097
  %s1102 = scalar_lea.vmem %s0, 40
  %v1103 = vld [vmem:[%s1102] sm:$0x80]
  %vm1104 = vcmask 1047559
  %v1105 = vsel %vm1104, %v1103, %v1101
  %1106 = vrot.lane.b32.xlu0 %v1105, 60
  %v1107 = vpop.permute.xlu0 %1106
  %vm1108 = vcmask 523744
  %1109 = vst.msk [vmem:[%s1] sm:$0x7f] %vm1108, %v1107
  %s1110 = scalar_lea.vmem %s1, 1
  %1111 = vst.msk [vmem:[%s1110] sm:$0x80] %vm1108, %v1107
  %s1112 = scalar_lea.vmem %s0, 111
  %v1113 = vld [vmem:[%s1112] sm:$0x1]
  %s1114 = scalar_lea.vmem %s0, 174
  %v1115 = vld [vmem:[%s1114] sm:$0x2]
  %vm1116 = vcmask 1041409
  %v1117 = vsel %vm1116, %v1115, %v1113
  %s1118 = scalar_lea.vmem %s0, 237
  %v1119 = vld [vmem:[%s1118] sm:$0x4]
  %vm1120 = vcmask 1042434
  %v1121 = vsel %vm1120, %v1119, %v1117
  %s1122 = scalar_lea.vmem %s0, 300
  %v1123 = vld [vmem:[%s1122] sm:$0x8]
  %vm1124 = vcmask 1043459
  %v1125 = vsel %vm1124, %v1123, %v1121
  %s1126 = scalar_lea.vmem %s0, 363
  %v1127 = vld [vmem:[%s1126] sm:$0x10]
  %vm1128 = vcmask 1044484
  %v1129 = vsel %vm1128, %v1127, %v1125
  %s1130 = scalar_lea.vmem %s0, 426
  %v1131 = vld [vmem:[%s1130] sm:$0x20]
  %vm1132 = vcmask 1045509
  %v1133 = vsel %vm1132, %v1131, %v1129
  %1134 = vrot.lane.b32.xlu0 %v1133, 60
  %v1135 = vpop.permute.xlu0 %1134
  %vm1136 = vcmask 523744
  %s1137 = scalar_lea.vmem %s1, 9
  %1138 = vst.msk [vmem:[%s1137] sm:$0x3f] %vm1136, %v1135
  %s1139 = scalar_lea.vmem %s0, 14
  %v1140 = vld [vmem:[%s1139] sm:$0x1]
  %s1141 = scalar_lea.vmem %s0, 77
  %v1142 = vld [vmem:[%s1141] sm:$0x2]
  %vm1143 = vcmask 1041409
  %v1144 = vsel %vm1143, %v1142, %v1140
  %s1145 = scalar_lea.vmem %s0, 140
  %v1146 = vld [vmem:[%s1145] sm:$0x4]
  %vm1147 = vcmask 1042434
  %v1148 = vsel %vm1147, %v1146, %v1144
  %s1149 = scalar_lea.vmem %s0, 203
  %v1150 = vld [vmem:[%s1149] sm:$0x8]
  %vm1151 = vcmask 1043459
  %v1152 = vsel %vm1151, %v1150, %v1148
  %s1153 = scalar_lea.vmem %s0, 266
  %v1154 = vld [vmem:[%s1153] sm:$0x10]
  %vm1155 = vcmask 1044484
  %v1156 = vsel %vm1155, %v1154, %v1152
  %s1157 = scalar_lea.vmem %s0, 329
  %v1158 = vld [vmem:[%s1157] sm:$0x20]
  %vm1159 = vcmask 1045509
  %v1160 = vsel %vm1159, %v1158, %v1156
  %s1161 = scalar_lea.vmem %s0, 392
  %v1162 = vld [vmem:[%s1161] sm:$0x40]
  %vm1163 = vcmask 1046534
  %v1164 = vsel %vm1163, %v1162, %v1160
  %s1165 = scalar_lea.vmem %s0, 39
  %v1166 = vld [vmem:[%s1165] sm:$0x80]
  %vm1167 = vcmask 1047559
  %v1168 = vsel %vm1167, %v1166, %v1164
  %1169 = vrot.lane.b32.xlu0 %v1168, 56
  %v1170 = vpop.permute.xlu0 %1169
  %vm1171 = vcmask 490944
  %1172 = vst.msk [vmem:[%s1] sm:$0x7f] %vm1171, %v1170
  %s1173 = scalar_lea.vmem %s1, 1
  %1174 = vst.msk [vmem:[%s1173] sm:$0x80] %vm1171, %v1170
  %s1175 = scalar_lea.vmem %s0, 110
  %v1176 = vld [vmem:[%s1175] sm:$0x1]
  %s1177 = scalar_lea.vmem %s0, 173
  %v1178 = vld [vmem:[%s1177] sm:$0x2]
  %vm1179 = vcmask 1041409
  %v1180 = vsel %vm1179, %v1178, %v1176
  %s1181 = scalar_lea.vmem %s0, 236
  %v1182 = vld [vmem:[%s1181] sm:$0x4]
  %vm1183 = vcmask 1042434
  %v1184 = vsel %vm1183, %v1182, %v1180
  %s1185 = scalar_lea.vmem %s0, 299
  %v1186 = vld [vmem:[%s1185] sm:$0x8]
  %vm1187 = vcmask 1043459
  %v1188 = vsel %vm1187, %v1186, %v1184
  %s1189 = scalar_lea.vmem %s0, 362
  %v1190 = vld [vmem:[%s1189] sm:$0x10]
  %vm1191 = vcmask 1044484
  %v1192 = vsel %vm1191, %v1190, %v1188
  %s1193 = scalar_lea.vmem %s0, 425
  %v1194 = vld [vmem:[%s1193] sm:$0x20]
  %vm1195 = vcmask 1045509
  %v1196 = vsel %vm1195, %v1194, %v1192
  %1197 = vrot.lane.b32.xlu0 %v1196, 56
  %v1198 = vpop.permute.xlu0 %1197
  %vm1199 = vcmask 490944
  %s1200 = scalar_lea.vmem %s1, 9
  %1201 = vst.msk [vmem:[%s1200] sm:$0x3f] %vm1199, %v1198
  %s1202 = scalar_lea.vmem %s0, 13
  %v1203 = vld [vmem:[%s1202] sm:$0x1]
  %s1204 = scalar_lea.vmem %s0, 76
  %v1205 = vld [vmem:[%s1204] sm:$0x2]
  %vm1206 = vcmask 1041409
  %v1207 = vsel %vm1206, %v1205, %v1203
  %s1208 = scalar_lea.vmem %s0, 139
  %v1209 = vld [vmem:[%s1208] sm:$0x4]
  %vm1210 = vcmask 1042434
  %v1211 = vsel %vm1210, %v1209, %v1207
  %s1212 = scalar_lea.vmem %s0, 202
  %v1213 = vld [vmem:[%s1212] sm:$0x8]
  %vm1214 = vcmask 1043459
  %v1215 = vsel %vm1214, %v1213, %v1211
  %s1216 = scalar_lea.vmem %s0, 265
  %v1217 = vld [vmem:[%s1216] sm:$0x10]
  %vm1218 = vcmask 1044484
  %v1219 = vsel %vm1218, %v1217, %v1215
  %s1220 = scalar_lea.vmem %s0, 328
  %v1221 = vld [vmem:[%s1220] sm:$0x20]
  %vm1222 = vcmask 1045509
  %v1223 = vsel %vm1222, %v1221, %v1219
  %s1224 = scalar_lea.vmem %s0, 391
  %v1225 = vld [vmem:[%s1224] sm:$0x40]
  %vm1226 = vcmask 1046534
  %v1227 = vsel %vm1226, %v1225, %v1223
  %s1228 = scalar_lea.vmem %s0, 38
  %v1229 = vld [vmem:[%s1228] sm:$0x80]
  %vm1230 = vcmask 1047559
  %v1231 = vsel %vm1230, %v1229, %v1227
  %1232 = vrot.lane.b32.xlu0 %v1231, 52
  %v1233 = vpop.permute.xlu0 %1232
  %vm1234 = vcmask 458144
  %1235 = vst.msk [vmem:[%s1] sm:$0x7f] %vm1234, %v1233
  %s1236 = scalar_lea.vmem %s1, 1
  %1237 = vst.msk [vmem:[%s1236] sm:$0x80] %vm1234, %v1233
  %s1238 = scalar_lea.vmem %s0, 109
  %v1239 = vld [vmem:[%s1238] sm:$0x1]
  %s1240 = scalar_lea.vmem %s0, 172
  %v1241 = vld [vmem:[%s1240] sm:$0x2]
  %vm1242 = vcmask 1041409
  %v1243 = vsel %vm1242, %v1241, %v1239
  %s1244 = scalar_lea.vmem %s0, 235
  %v1245 = vld [vmem:[%s1244] sm:$0x4]
  %vm1246 = vcmask 1042434
  %v1247 = vsel %vm1246, %v1245, %v1243
  %s1248 = scalar_lea.vmem %s0, 298
  %v1249 = vld [vmem:[%s1248] sm:$0x8]
  %vm1250 = vcmask 1043459
  %v1251 = vsel %vm1250, %v1249, %v1247
  %s1252 = scalar_lea.vmem %s0, 361
  %v1253 = vld [vmem:[%s1252] sm:$0x10]
  %vm1254 = vcmask 1044484
  %v1255 = vsel %vm1254, %v1253, %v1251
  %s1256 = scalar_lea.vmem %s0, 424
  %v1257 = vld [vmem:[%s1256] sm:$0x20]
  %vm1258 = vcmask 1045509
  %v1259 = vsel %vm1258, %v1257, %v1255
  %1260 = vrot.lane.b32.xlu0 %v1259, 52
  %v1261 = vpop.permute.xlu0 %1260
  %vm1262 = vcmask 458144
  %s1263 = scalar_lea.vmem %s1, 9
  %1264 = vst.msk [vmem:[%s1263] sm:$0x3f] %vm1262, %v1261
  %s1265 = scalar_lea.vmem %s0, 12
  %v1266 = vld [vmem:[%s1265] sm:$0x1]
  %s1267 = scalar_lea.vmem %s0, 75
  %v1268 = vld [vmem:[%s1267] sm:$0x2]
  %vm1269 = vcmask 1041409
  %v1270 = vsel %vm1269, %v1268, %v1266
  %s1271 = scalar_lea.vmem %s0, 138
  %v1272 = vld [vmem:[%s1271] sm:$0x4]
  %vm1273 = vcmask 1042434
  %v1274 = vsel %vm1273, %v1272, %v1270
  %s1275 = scalar_lea.vmem %s0, 201
  %v1276 = vld [vmem:[%s1275] sm:$0x8]
  %vm1277 = vcmask 1043459
  %v1278 = vsel %vm1277, %v1276, %v1274
  %s1279 = scalar_lea.vmem %s0, 264
  %v1280 = vld [vmem:[%s1279] sm:$0x10]
  %vm1281 = vcmask 1044484
  %v1282 = vsel %vm1281, %v1280, %v1278
  %s1283 = scalar_lea.vmem %s0, 327
  %v1284 = vld [vmem:[%s1283] sm:$0x20]
  %vm1285 = vcmask 1045509
  %v1286 = vsel %vm1285, %v1284, %v1282
  %s1287 = scalar_lea.vmem %s0, 390
  %v1288 = vld [vmem:[%s1287] sm:$0x40]
  %vm1289 = vcmask 1046534
  %v1290 = vsel %vm1289, %v1288, %v1286
  %s1291 = scalar_lea.vmem %s0, 37
  %v1292 = vld [vmem:[%s1291] sm:$0x80]
  %vm1293 = vcmask 1047559
  %v1294 = vsel %vm1293, %v1292, %v1290
  %1295 = vrot.lane.b32.xlu0 %v1294, 48
  %v1296 = vpop.permute.xlu0 %1295
  %vm1297 = vcmask 425344
  %1298 = vst.msk [vmem:[%s1] sm:$0x7f] %vm1297, %v1296
  %s1299 = scalar_lea.vmem %s1, 1
  %1300 = vst.msk [vmem:[%s1299] sm:$0x80] %vm1297, %v1296
  %s1301 = scalar_lea.vmem %s0, 108
  %v1302 = vld [vmem:[%s1301] sm:$0x1]
  %s1303 = scalar_lea.vmem %s0, 171
  %v1304 = vld [vmem:[%s1303] sm:$0x2]
  %vm1305 = vcmask 1041409
  %v1306 = vsel %vm1305, %v1304, %v1302
  %s1307 = scalar_lea.vmem %s0, 234
  %v1308 = vld [vmem:[%s1307] sm:$0x4]
  %vm1309 = vcmask 1042434
  %v1310 = vsel %vm1309, %v1308, %v1306
  %s1311 = scalar_lea.vmem %s0, 297
  %v1312 = vld [vmem:[%s1311] sm:$0x8]
  %vm1313 = vcmask 1043459
  %v1314 = vsel %vm1313, %v1312, %v1310
  %s1315 = scalar_lea.vmem %s0, 360
  %v1316 = vld [vmem:[%s1315] sm:$0x10]
  %vm1317 = vcmask 1044484
  %v1318 = vsel %vm1317, %v1316, %v1314
  %s1319 = scalar_lea.vmem %s0, 423
  %v1320 = vld [vmem:[%s1319] sm:$0x20]
  %vm1321 = vcmask 1045509
  %v1322 = vsel %vm1321, %v1320, %v1318
  %1323 = vrot.lane.b32.xlu0 %v1322, 48
  %v1324 = vpop.permute.xlu0 %1323
  %vm1325 = vcmask 425344
  %s1326 = scalar_lea.vmem %s1, 9
  %1327 = vst.msk [vmem:[%s1326] sm:$0x3f] %vm1325, %v1324
  %s1328 = scalar_lea.vmem %s0, 11
  %v1329 = vld [vmem:[%s1328] sm:$0x1]
  %s1330 = scalar_lea.vmem %s0, 74
  %v1331 = vld [vmem:[%s1330] sm:$0x2]
  %vm1332 = vcmask 1041409
  %v1333 = vsel %vm1332, %v1331, %v1329
  %s1334 = scalar_lea.vmem %s0, 137
  %v1335 = vld [vmem:[%s1334] sm:$0x4]
  %vm1336 = vcmask 1042434
  %v1337 = vsel %vm1336, %v1335, %v1333
  %s1338 = scalar_lea.vmem %s0, 200
  %v1339 = vld [vmem:[%s1338] sm:$0x8]
  %vm1340 = vcmask 1043459
  %v1341 = vsel %vm1340, %v1339, %v1337
  %s1342 = scalar_lea.vmem %s0, 263
  %v1343 = vld [vmem:[%s1342] sm:$0x10]
  %vm1344 = vcmask 1044484
  %v1345 = vsel %vm1344, %v1343, %v1341
  %s1346 = scalar_lea.vmem %s0, 326
  %v1347 = vld [vmem:[%s1346] sm:$0x20]
  %vm1348 = vcmask 1045509
  %v1349 = vsel %vm1348, %v1347, %v1345
  %s1350 = scalar_lea.vmem %s0, 389
  %v1351 = vld [vmem:[%s1350] sm:$0x40]
  %vm1352 = vcmask 1046534
  %v1353 = vsel %vm1352, %v1351, %v1349
  %s1354 = scalar_lea.vmem %s0, 36
  %v1355 = vld [vmem:[%s1354] sm:$0x80]
  %vm1356 = vcmask 1047559
  %v1357 = vsel %vm1356, %v1355, %v1353
  %1358 = vrot.lane.b32.xlu0 %v1357, 44
  %v1359 = vpop.permute.xlu0 %1358
  %vm1360 = vcmask 392544
  %1361 = vst.msk [vmem:[%s1] sm:$0x7f] %vm1360, %v1359
  %s1362 = scalar_lea.vmem %s1, 1
  %1363 = vst.msk [vmem:[%s1362] sm:$0x80] %vm1360, %v1359
  %s1364 = scalar_lea.vmem %s0, 107
  %v1365 = vld [vmem:[%s1364] sm:$0x1]
  %s1366 = scalar_lea.vmem %s0, 170
  %v1367 = vld [vmem:[%s1366] sm:$0x2]
  %vm1368 = vcmask 1041409
  %v1369 = vsel %vm1368, %v1367, %v1365
  %s1370 = scalar_lea.vmem %s0, 233
  %v1371 = vld [vmem:[%s1370] sm:$0x4]
  %vm1372 = vcmask 1042434
  %v1373 = vsel %vm1372, %v1371, %v1369
  %s1374 = scalar_lea.vmem %s0, 296
  %v1375 = vld [vmem:[%s1374] sm:$0x8]
  %vm1376 = vcmask 1043459
  %v1377 = vsel %vm1376, %v1375, %v1373
  %s1378 = scalar_lea.vmem %s0, 359
  %v1379 = vld [vmem:[%s1378] sm:$0x10]
  %vm1380 = vcmask 1044484
  %v1381 = vsel %vm1380, %v1379, %v1377
  %s1382 = scalar_lea.vmem %s0, 422
  %v1383 = vld [vmem:[%s1382] sm:$0x20]
  %vm1384 = vcmask 1045509
  %v1385 = vsel %vm1384, %v1383, %v1381
  %1386 = vrot.lane.b32.xlu0 %v1385, 44
  %v1387 = vpop.permute.xlu0 %1386
  %vm1388 = vcmask 392544
  %s1389 = scalar_lea.vmem %s1, 9
  %1390 = vst.msk [vmem:[%s1389] sm:$0x3f] %vm1388, %v1387
  %s1391 = scalar_lea.vmem %s0, 10
  %v1392 = vld [vmem:[%s1391] sm:$0x1]
  %s1393 = scalar_lea.vmem %s0, 73
  %v1394 = vld [vmem:[%s1393] sm:$0x2]
  %vm1395 = vcmask 1041409
  %v1396 = vsel %vm1395, %v1394, %v1392
  %s1397 = scalar_lea.vmem %s0, 136
  %v1398 = vld [vmem:[%s1397] sm:$0x4]
  %vm1399 = vcmask 1042434
  %v1400 = vsel %vm1399, %v1398, %v1396
  %s1401 = scalar_lea.vmem %s0, 199
  %v1402 = vld [vmem:[%s1401] sm:$0x8]
  %vm1403 = vcmask 1043459
  %v1404 = vsel %vm1403, %v1402, %v1400
  %s1405 = scalar_lea.vmem %s0, 262
  %v1406 = vld [vmem:[%s1405] sm:$0x10]
  %vm1407 = vcmask 1044484
  %v1408 = vsel %vm1407, %v1406, %v1404
  %s1409 = scalar_lea.vmem %s0, 325
  %v1410 = vld [vmem:[%s1409] sm:$0x20]
  %vm1411 = vcmask 1045509
  %v1412 = vsel %vm1411, %v1410, %v1408
  %s1413 = scalar_lea.vmem %s0, 388
  %v1414 = vld [vmem:[%s1413] sm:$0x40]
  %vm1415 = vcmask 1046534
  %v1416 = vsel %vm1415, %v1414, %v1412
  %s1417 = scalar_lea.vmem %s0, 35
  %v1418 = vld [vmem:[%s1417] sm:$0x80]
  %vm1419 = vcmask 1047559
  %v1420 = vsel %vm1419, %v1418, %v1416
  %1421 = vrot.lane.b32.xlu0 %v1420, 40
  %v1422 = vpop.permute.xlu0 %1421
  %vm1423 = vcmask 359744
  %1424 = vst.msk [vmem:[%s1] sm:$0x7f] %vm1423, %v1422
  %s1425 = scalar_lea.vmem %s1, 1
  %1426 = vst.msk [vmem:[%s1425] sm:$0x80] %vm1423, %v1422
  %s1427 = scalar_lea.vmem %s0, 106
  %v1428 = vld [vmem:[%s1427] sm:$0x1]
  %s1429 = scalar_lea.vmem %s0, 169
  %v1430 = vld [vmem:[%s1429] sm:$0x2]
  %vm1431 = vcmask 1041409
  %v1432 = vsel %vm1431, %v1430, %v1428
  %s1433 = scalar_lea.vmem %s0, 232
  %v1434 = vld [vmem:[%s1433] sm:$0x4]
  %vm1435 = vcmask 1042434
  %v1436 = vsel %vm1435, %v1434, %v1432
  %s1437 = scalar_lea.vmem %s0, 295
  %v1438 = vld [vmem:[%s1437] sm:$0x8]
  %vm1439 = vcmask 1043459
  %v1440 = vsel %vm1439, %v1438, %v1436
  %s1441 = scalar_lea.vmem %s0, 358
  %v1442 = vld [vmem:[%s1441] sm:$0x10]
  %vm1443 = vcmask 1044484
  %v1444 = vsel %vm1443, %v1442, %v1440
  %s1445 = scalar_lea.vmem %s0, 421
  %v1446 = vld [vmem:[%s1445] sm:$0x20]
  %vm1447 = vcmask 1045509
  %v1448 = vsel %vm1447, %v1446, %v1444
  %1449 = vrot.lane.b32.xlu0 %v1448, 40
  %v1450 = vpop.permute.xlu0 %1449
  %vm1451 = vcmask 359744
  %s1452 = scalar_lea.vmem %s1, 9
  %1453 = vst.msk [vmem:[%s1452] sm:$0x3f] %vm1451, %v1450
  %s1454 = scalar_lea.vmem %s0, 9
  %v1455 = vld [vmem:[%s1454] sm:$0x1]
  %s1456 = scalar_lea.vmem %s0, 72
  %v1457 = vld [vmem:[%s1456] sm:$0x2]
  %vm1458 = vcmask 1041409
  %v1459 = vsel %vm1458, %v1457, %v1455
  %s1460 = scalar_lea.vmem %s0, 135
  %v1461 = vld [vmem:[%s1460] sm:$0x4]
  %vm1462 = vcmask 1042434
  %v1463 = vsel %vm1462, %v1461, %v1459
  %s1464 = scalar_lea.vmem %s0, 198
  %v1465 = vld [vmem:[%s1464] sm:$0x8]
  %vm1466 = vcmask 1043459
  %v1467 = vsel %vm1466, %v1465, %v1463
  %s1468 = scalar_lea.vmem %s0, 261
  %v1469 = vld [vmem:[%s1468] sm:$0x10]
  %vm1470 = vcmask 1044484
  %v1471 = vsel %vm1470, %v1469, %v1467
  %s1472 = scalar_lea.vmem %s0, 324
  %v1473 = vld [vmem:[%s1472] sm:$0x20]
  %vm1474 = vcmask 1045509
  %v1475 = vsel %vm1474, %v1473, %v1471
  %s1476 = scalar_lea.vmem %s0, 387
  %v1477 = vld [vmem:[%s1476] sm:$0x40]
  %vm1478 = vcmask 1046534
  %v1479 = vsel %vm1478, %v1477, %v1475
  %s1480 = scalar_lea.vmem %s0, 34
  %v1481 = vld [vmem:[%s1480] sm:$0x80]
  %vm1482 = vcmask 1047559
  %v1483 = vsel %vm1482, %v1481, %v1479
  %1484 = vrot.lane.b32.xlu0 %v1483, 36
  %v1485 = vpop.permute.xlu0 %1484
  %vm1486 = vcmask 326944
  %1487 = vst.msk [vmem:[%s1] sm:$0x7f] %vm1486, %v1485
  %s1488 = scalar_lea.vmem %s1, 1
  %1489 = vst.msk [vmem:[%s1488] sm:$0x80] %vm1486, %v1485
  %s1490 = scalar_lea.vmem %s0, 105
  %v1491 = vld [vmem:[%s1490] sm:$0x1]
  %s1492 = scalar_lea.vmem %s0, 168
  %v1493 = vld [vmem:[%s1492] sm:$0x2]
  %vm1494 = vcmask 1041409
  %v1495 = vsel %vm1494, %v1493, %v1491
  %s1496 = scalar_lea.vmem %s0, 231
  %v1497 = vld [vmem:[%s1496] sm:$0x4]
  %vm1498 = vcmask 1042434
  %v1499 = vsel %vm1498, %v1497, %v1495
  %s1500 = scalar_lea.vmem %s0, 294
  %v1501 = vld [vmem:[%s1500] sm:$0x8]
  %vm1502 = vcmask 1043459
  %v1503 = vsel %vm1502, %v1501, %v1499
  %s1504 = scalar_lea.vmem %s0, 357
  %v1505 = vld [vmem:[%s1504] sm:$0x10]
  %vm1506 = vcmask 1044484
  %v1507 = vsel %vm1506, %v1505, %v1503
  %s1508 = scalar_lea.vmem %s0, 420
  %v1509 = vld [vmem:[%s1508] sm:$0x20]
  %vm1510 = vcmask 1045509
  %v1511 = vsel %vm1510, %v1509, %v1507
  %1512 = vrot.lane.b32.xlu0 %v1511, 36
  %v1513 = vpop.permute.xlu0 %1512
  %vm1514 = vcmask 326944
  %s1515 = scalar_lea.vmem %s1, 9
  %1516 = vst.msk [vmem:[%s1515] sm:$0x3f] %vm1514, %v1513
  %s1517 = scalar_lea.vmem %s0, 8
  %v1518 = vld [vmem:[%s1517] sm:$0x1]
  %s1519 = scalar_lea.vmem %s0, 71
  %v1520 = vld [vmem:[%s1519] sm:$0x2]
  %vm1521 = vcmask 1041409
  %v1522 = vsel %vm1521, %v1520, %v1518
  %s1523 = scalar_lea.vmem %s0, 134
  %v1524 = vld [vmem:[%s1523] sm:$0x4]
  %vm1525 = vcmask 1042434
  %v1526 = vsel %vm1525, %v1524, %v1522
  %s1527 = scalar_lea.vmem %s0, 197
  %v1528 = vld [vmem:[%s1527] sm:$0x8]
  %vm1529 = vcmask 1043459
  %v1530 = vsel %vm1529, %v1528, %v1526
  %s1531 = scalar_lea.vmem %s0, 260
  %v1532 = vld [vmem:[%s1531] sm:$0x10]
  %vm1533 = vcmask 1044484
  %v1534 = vsel %vm1533, %v1532, %v1530
  %s1535 = scalar_lea.vmem %s0, 323
  %v1536 = vld [vmem:[%s1535] sm:$0x20]
  %vm1537 = vcmask 1045509
  %v1538 = vsel %vm1537, %v1536, %v1534
  %s1539 = scalar_lea.vmem %s0, 386
  %v1540 = vld [vmem:[%s1539] sm:$0x40]
  %vm1541 = vcmask 1046534
  %v1542 = vsel %vm1541, %v1540, %v1538
  %s1543 = scalar_lea.vmem %s0, 33
  %v1544 = vld [vmem:[%s1543] sm:$0x80]
  %vm1545 = vcmask 1047559
  %v1546 = vsel %vm1545, %v1544, %v1542
  %1547 = vrot.lane.b32.xlu0 %v1546, 32
  %v1548 = vpop.permute.xlu0 %1547
  %vm1549 = vcmask 294144
  %1550 = vst.msk [vmem:[%s1] sm:$0x7f] %vm1549, %v1548
  %s1551 = scalar_lea.vmem %s1, 1
  %1552 = vst.msk [vmem:[%s1551] sm:$0x80] %vm1549, %v1548
  %s1553 = scalar_lea.vmem %s0, 104
  %v1554 = vld [vmem:[%s1553] sm:$0x1]
  %s1555 = scalar_lea.vmem %s0, 167
  %v1556 = vld [vmem:[%s1555] sm:$0x2]
  %vm1557 = vcmask 1041409
  %v1558 = vsel %vm1557, %v1556, %v1554
  %s1559 = scalar_lea.vmem %s0, 230
  %v1560 = vld [vmem:[%s1559] sm:$0x4]
  %vm1561 = vcmask 1042434
  %v1562 = vsel %vm1561, %v1560, %v1558
  %s1563 = scalar_lea.vmem %s0, 293
  %v1564 = vld [vmem:[%s1563] sm:$0x8]
  %vm1565 = vcmask 1043459
  %v1566 = vsel %vm1565, %v1564, %v1562
  %s1567 = scalar_lea.vmem %s0, 356
  %v1568 = vld [vmem:[%s1567] sm:$0x10]
  %vm1569 = vcmask 1044484
  %v1570 = vsel %vm1569, %v1568, %v1566
  %s1571 = scalar_lea.vmem %s0, 419
  %v1572 = vld [vmem:[%s1571] sm:$0x20]
  %vm1573 = vcmask 1045509
  %v1574 = vsel %vm1573, %v1572, %v1570
  %1575 = vrot.lane.b32.xlu0 %v1574, 32
  %v1576 = vpop.permute.xlu0 %1575
  %vm1577 = vcmask 294144
  %s1578 = scalar_lea.vmem %s1, 9
  %1579 = vst.msk [vmem:[%s1578] sm:$0x3f] %vm1577, %v1576
  %s1580 = scalar_lea.vmem %s0, 7
  %v1581 = vld [vmem:[%s1580] sm:$0x1]
  %s1582 = scalar_lea.vmem %s0, 70
  %v1583 = vld [vmem:[%s1582] sm:$0x2]
  %vm1584 = vcmask 1041409
  %v1585 = vsel %vm1584, %v1583, %v1581
  %s1586 = scalar_lea.vmem %s0, 133
  %v1587 = vld [vmem:[%s1586] sm:$0x4]
  %vm1588 = vcmask 1042434
  %v1589 = vsel %vm1588, %v1587, %v1585
  %s1590 = scalar_lea.vmem %s0, 196
  %v1591 = vld [vmem:[%s1590] sm:$0x8]
  %vm1592 = vcmask 1043459
  %v1593 = vsel %vm1592, %v1591, %v1589
  %s1594 = scalar_lea.vmem %s0, 259
  %v1595 = vld [vmem:[%s1594] sm:$0x10]
  %vm1596 = vcmask 1044484
  %v1597 = vsel %vm1596, %v1595, %v1593
  %s1598 = scalar_lea.vmem %s0, 322
  %v1599 = vld [vmem:[%s1598] sm:$0x20]
  %vm1600 = vcmask 1045509
  %v1601 = vsel %vm1600, %v1599, %v1597
  %s1602 = scalar_lea.vmem %s0, 385
  %v1603 = vld [vmem:[%s1602] sm:$0x40]
  %vm1604 = vcmask 1046534
  %v1605 = vsel %vm1604, %v1603, %v1601
  %s1606 = scalar_lea.vmem %s0, 32
  %v1607 = vld [vmem:[%s1606] sm:$0x80]
  %vm1608 = vcmask 1047559
  %v1609 = vsel %vm1608, %v1607, %v1605
  %1610 = vrot.lane.b32.xlu0 %v1609, 28
  %v1611 = vpop.permute.xlu0 %1610
  %vm1612 = vcmask 261344
  %1613 = vst.msk [vmem:[%s1] sm:$0x7f] %vm1612, %v1611
  %s1614 = scalar_lea.vmem %s1, 1
  %1615 = vst.msk [vmem:[%s1614] sm:$0x80] %vm1612, %v1611
  %s1616 = scalar_lea.vmem %s0, 103
  %v1617 = vld [vmem:[%s1616] sm:$0x1]
  %s1618 = scalar_lea.vmem %s0, 166
  %v1619 = vld [vmem:[%s1618] sm:$0x2]
  %vm1620 = vcmask 1041409
  %v1621 = vsel %vm1620, %v1619, %v1617
  %s1622 = scalar_lea.vmem %s0, 229
  %v1623 = vld [vmem:[%s1622] sm:$0x4]
  %vm1624 = vcmask 1042434
  %v1625 = vsel %vm1624, %v1623, %v1621
  %s1626 = scalar_lea.vmem %s0, 292
  %v1627 = vld [vmem:[%s1626] sm:$0x8]
  %vm1628 = vcmask 1043459
  %v1629 = vsel %vm1628, %v1627, %v1625
  %s1630 = scalar_lea.vmem %s0, 355
  %v1631 = vld [vmem:[%s1630] sm:$0x10]
  %vm1632 = vcmask 1044484
  %v1633 = vsel %vm1632, %v1631, %v1629
  %s1634 = scalar_lea.vmem %s0, 418
  %v1635 = vld [vmem:[%s1634] sm:$0x20]
  %vm1636 = vcmask 1045509
  %v1637 = vsel %vm1636, %v1635, %v1633
  %1638 = vrot.lane.b32.xlu0 %v1637, 28
  %v1639 = vpop.permute.xlu0 %1638
  %vm1640 = vcmask 261344
  %s1641 = scalar_lea.vmem %s1, 9
  %1642 = vst.msk [vmem:[%s1641] sm:$0x3f] %vm1640, %v1639
  %s1643 = scalar_lea.vmem %s0, 6
  %v1644 = vld [vmem:[%s1643] sm:$0x1]
  %s1645 = scalar_lea.vmem %s0, 69
  %v1646 = vld [vmem:[%s1645] sm:$0x2]
  %vm1647 = vcmask 1041409
  %v1648 = vsel %vm1647, %v1646, %v1644
  %s1649 = scalar_lea.vmem %s0, 132
  %v1650 = vld [vmem:[%s1649] sm:$0x4]
  %vm1651 = vcmask 1042434
  %v1652 = vsel %vm1651, %v1650, %v1648
  %s1653 = scalar_lea.vmem %s0, 195
  %v1654 = vld [vmem:[%s1653] sm:$0x8]
  %vm1655 = vcmask 1043459
  %v1656 = vsel %vm1655, %v1654, %v1652
  %s1657 = scalar_lea.vmem %s0, 258
  %v1658 = vld [vmem:[%s1657] sm:$0x10]
  %vm1659 = vcmask 1044484
  %v1660 = vsel %vm1659, %v1658, %v1656
  %s1661 = scalar_lea.vmem %s0, 321
  %v1662 = vld [vmem:[%s1661] sm:$0x20]
  %vm1663 = vcmask 1045509
  %v1664 = vsel %vm1663, %v1662, %v1660
  %s1665 = scalar_lea.vmem %s0, 384
  %v1666 = vld [vmem:[%s1665] sm:$0x40]
  %vm1667 = vcmask 1046534
  %v1668 = vsel %vm1667, %v1666, %v1664
  %s1669 = scalar_lea.vmem %s0, 31
  %v1670 = vld [vmem:[%s1669] sm:$0x80]
  %vm1671 = vcmask 1047559
  %v1672 = vsel %vm1671, %v1670, %v1668
  %1673 = vrot.lane.b32.xlu0 %v1672, 24
  %v1674 = vpop.permute.xlu0 %1673
  %vm1675 = vcmask 228544
  %1676 = vst.msk [vmem:[%s1] sm:$0x7f] %vm1675, %v1674
  %s1677 = scalar_lea.vmem %s1, 1
  %1678 = vst.msk [vmem:[%s1677] sm:$0x80] %vm1675, %v1674
  %s1679 = scalar_lea.vmem %s0, 102
  %v1680 = vld [vmem:[%s1679] sm:$0x1]
  %s1681 = scalar_lea.vmem %s0, 165
  %v1682 = vld [vmem:[%s1681] sm:$0x2]
  %vm1683 = vcmask 1041409
  %v1684 = vsel %vm1683, %v1682, %v1680
  %s1685 = scalar_lea.vmem %s0, 228
  %v1686 = vld [vmem:[%s1685] sm:$0x4]
  %vm1687 = vcmask 1042434
  %v1688 = vsel %vm1687, %v1686, %v1684
  %s1689 = scalar_lea.vmem %s0, 291
  %v1690 = vld [vmem:[%s1689] sm:$0x8]
  %vm1691 = vcmask 1043459
  %v1692 = vsel %vm1691, %v1690, %v1688
  %s1693 = scalar_lea.vmem %s0, 354
  %v1694 = vld [vmem:[%s1693] sm:$0x10]
  %vm1695 = vcmask 1044484
  %v1696 = vsel %vm1695, %v1694, %v1692
  %s1697 = scalar_lea.vmem %s0, 417
  %v1698 = vld [vmem:[%s1697] sm:$0x20]
  %vm1699 = vcmask 1045509
  %v1700 = vsel %vm1699, %v1698, %v1696
  %1701 = vrot.lane.b32.xlu0 %v1700, 24
  %v1702 = vpop.permute.xlu0 %1701
  %vm1703 = vcmask 228544
  %s1704 = scalar_lea.vmem %s1, 9
  %1705 = vst.msk [vmem:[%s1704] sm:$0x3f] %vm1703, %v1702
  %s1706 = scalar_lea.vmem %s0, 5
  %v1707 = vld [vmem:[%s1706] sm:$0x1]
  %s1708 = scalar_lea.vmem %s0, 68
  %v1709 = vld [vmem:[%s1708] sm:$0x2]
  %vm1710 = vcmask 1041409
  %v1711 = vsel %vm1710, %v1709, %v1707
  %s1712 = scalar_lea.vmem %s0, 131
  %v1713 = vld [vmem:[%s1712] sm:$0x4]
  %vm1714 = vcmask 1042434
  %v1715 = vsel %vm1714, %v1713, %v1711
  %s1716 = scalar_lea.vmem %s0, 194
  %v1717 = vld [vmem:[%s1716] sm:$0x8]
  %vm1718 = vcmask 1043459
  %v1719 = vsel %vm1718, %v1717, %v1715
  %s1720 = scalar_lea.vmem %s0, 257
  %v1721 = vld [vmem:[%s1720] sm:$0x10]
  %vm1722 = vcmask 1044484
  %v1723 = vsel %vm1722, %v1721, %v1719
  %s1724 = scalar_lea.vmem %s0, 320
  %v1725 = vld [vmem:[%s1724] sm:$0x20]
  %vm1726 = vcmask 1045509
  %v1727 = vsel %vm1726, %v1725, %v1723
  %s1728 = scalar_lea.vmem %s0, 383
  %v1729 = vld [vmem:[%s1728] sm:$0x40]
  %vm1730 = vcmask 1046534
  %v1731 = vsel %vm1730, %v1729, %v1727
  %s1732 = scalar_lea.vmem %s0, 30
  %v1733 = vld [vmem:[%s1732] sm:$0x80]
  %vm1734 = vcmask 1047559
  %v1735 = vsel %vm1734, %v1733, %v1731
  %1736 = vrot.lane.b32.xlu0 %v1735, 20
  %v1737 = vpop.permute.xlu0 %1736
  %vm1738 = vcmask 195744
  %1739 = vst.msk [vmem:[%s1] sm:$0x7f] %vm1738, %v1737
  %s1740 = scalar_lea.vmem %s1, 1
  %1741 = vst.msk [vmem:[%s1740] sm:$0x80] %vm1738, %v1737
  %s1742 = scalar_lea.vmem %s0, 101
  %v1743 = vld [vmem:[%s1742] sm:$0x1]
  %s1744 = scalar_lea.vmem %s0, 164
  %v1745 = vld [vmem:[%s1744] sm:$0x2]
  %vm1746 = vcmask 1041409
  %v1747 = vsel %vm1746, %v1745, %v1743
  %s1748 = scalar_lea.vmem %s0, 227
  %v1749 = vld [vmem:[%s1748] sm:$0x4]
  %vm1750 = vcmask 1042434
  %v1751 = vsel %vm1750, %v1749, %v1747
  %s1752 = scalar_lea.vmem %s0, 290
  %v1753 = vld [vmem:[%s1752] sm:$0x8]
  %vm1754 = vcmask 1043459
  %v1755 = vsel %vm1754, %v1753, %v1751
  %s1756 = scalar_lea.vmem %s0, 353
  %v1757 = vld [vmem:[%s1756] sm:$0x10]
  %vm1758 = vcmask 1044484
  %v1759 = vsel %vm1758, %v1757, %v1755
  %s1760 = scalar_lea.vmem %s0, 416
  %v1761 = vld [vmem:[%s1760] sm:$0x20]
  %vm1762 = vcmask 1045509
  %v1763 = vsel %vm1762, %v1761, %v1759
  %1764 = vrot.lane.b32.xlu0 %v1763, 20
  %v1765 = vpop.permute.xlu0 %1764
  %vm1766 = vcmask 195744
  %s1767 = scalar_lea.vmem %s1, 9
  %1768 = vst.msk [vmem:[%s1767] sm:$0x3f] %vm1766, %v1765
  %s1769 = scalar_lea.vmem %s0, 4
  %v1770 = vld [vmem:[%s1769] sm:$0x1]
  %s1771 = scalar_lea.vmem %s0, 67
  %v1772 = vld [vmem:[%s1771] sm:$0x2]
  %vm1773 = vcmask 1041409
  %v1774 = vsel %vm1773, %v1772, %v1770
  %s1775 = scalar_lea.vmem %s0, 130
  %v1776 = vld [vmem:[%s1775] sm:$0x4]
  %vm1777 = vcmask 1042434
  %v1778 = vsel %vm1777, %v1776, %v1774
  %s1779 = scalar_lea.vmem %s0, 193
  %v1780 = vld [vmem:[%s1779] sm:$0x8]
  %vm1781 = vcmask 1043459
  %v1782 = vsel %vm1781, %v1780, %v1778
  %s1783 = scalar_lea.vmem %s0, 256
  %v1784 = vld [vmem:[%s1783] sm:$0x10]
  %vm1785 = vcmask 1044484
  %v1786 = vsel %vm1785, %v1784, %v1782
  %s1787 = scalar_lea.vmem %s0, 319
  %v1788 = vld [vmem:[%s1787] sm:$0x20]
  %vm1789 = vcmask 1045509
  %v1790 = vsel %vm1789, %v1788, %v1786
  %s1791 = scalar_lea.vmem %s0, 382
  %v1792 = vld [vmem:[%s1791] sm:$0x40]
  %vm1793 = vcmask 1046534
  %v1794 = vsel %vm1793, %v1792, %v1790
  %s1795 = scalar_lea.vmem %s0, 29
  %v1796 = vld [vmem:[%s1795] sm:$0x80]
  %vm1797 = vcmask 1047559
  %v1798 = vsel %vm1797, %v1796, %v1794
  %1799 = vrot.lane.b32.xlu0 %v1798, 16
  %v1800 = vpop.permute.xlu0 %1799
  %vm1801 = vcmask 162944
  %1802 = vst.msk [vmem:[%s1] sm:$0x7f] %vm1801, %v1800
  %s1803 = scalar_lea.vmem %s1, 1
  %1804 = vst.msk [vmem:[%s1803] sm:$0x80] %vm1801, %v1800
  %s1805 = scalar_lea.vmem %s0, 100
  %v1806 = vld [vmem:[%s1805] sm:$0x1]
  %s1807 = scalar_lea.vmem %s0, 163
  %v1808 = vld [vmem:[%s1807] sm:$0x2]
  %vm1809 = vcmask 1041409
  %v1810 = vsel %vm1809, %v1808, %v1806
  %s1811 = scalar_lea.vmem %s0, 226
  %v1812 = vld [vmem:[%s1811] sm:$0x4]
  %vm1813 = vcmask 1042434
  %v1814 = vsel %vm1813, %v1812, %v1810
  %s1815 = scalar_lea.vmem %s0, 289
  %v1816 = vld [vmem:[%s1815] sm:$0x8]
  %vm1817 = vcmask 1043459
  %v1818 = vsel %vm1817, %v1816, %v1814
  %s1819 = scalar_lea.vmem %s0, 352
  %v1820 = vld [vmem:[%s1819] sm:$0x10]
  %vm1821 = vcmask 1044484
  %v1822 = vsel %vm1821, %v1820, %v1818
  %s1823 = scalar_lea.vmem %s0, 415
  %v1824 = vld [vmem:[%s1823] sm:$0x20]
  %vm1825 = vcmask 1045509
  %v1826 = vsel %vm1825, %v1824, %v1822
  %1827 = vrot.lane.b32.xlu0 %v1826, 16
  %v1828 = vpop.permute.xlu0 %1827
  %vm1829 = vcmask 162944
  %s1830 = scalar_lea.vmem %s1, 9
  %1831 = vst.msk [vmem:[%s1830] sm:$0x3f] %vm1829, %v1828
  %s1832 = scalar_lea.vmem %s0, 3
  %v1833 = vld [vmem:[%s1832] sm:$0x1]
  %s1834 = scalar_lea.vmem %s0, 66
  %v1835 = vld [vmem:[%s1834] sm:$0x2]
  %vm1836 = vcmask 1041409
  %v1837 = vsel %vm1836, %v1835, %v1833
  %s1838 = scalar_lea.vmem %s0, 129
  %v1839 = vld [vmem:[%s1838] sm:$0x4]
  %vm1840 = vcmask 1042434
  %v1841 = vsel %vm1840, %v1839, %v1837
  %s1842 = scalar_lea.vmem %s0, 192
  %v1843 = vld [vmem:[%s1842] sm:$0x8]
  %vm1844 = vcmask 1043459
  %v1845 = vsel %vm1844, %v1843, %v1841
  %s1846 = scalar_lea.vmem %s0, 255
  %v1847 = vld [vmem:[%s1846] sm:$0x10]
  %vm1848 = vcmask 1044484
  %v1849 = vsel %vm1848, %v1847, %v1845
  %s1850 = scalar_lea.vmem %s0, 318
  %v1851 = vld [vmem:[%s1850] sm:$0x20]
  %vm1852 = vcmask 1045509
  %v1853 = vsel %vm1852, %v1851, %v1849
  %s1854 = scalar_lea.vmem %s0, 381
  %v1855 = vld [vmem:[%s1854] sm:$0x40]
  %vm1856 = vcmask 1046534
  %v1857 = vsel %vm1856, %v1855, %v1853
  %s1858 = scalar_lea.vmem %s0, 28
  %v1859 = vld [vmem:[%s1858] sm:$0x80]
  %vm1860 = vcmask 1047559
  %v1861 = vsel %vm1860, %v1859, %v1857
  %1862 = vrot.lane.b32.xlu0 %v1861, 12
  %v1863 = vpop.permute.xlu0 %1862
  %vm1864 = vcmask 130144
  %1865 = vst.msk [vmem:[%s1] sm:$0x7f] %vm1864, %v1863
  %s1866 = scalar_lea.vmem %s1, 1
  %1867 = vst.msk [vmem:[%s1866] sm:$0x80] %vm1864, %v1863
  %s1868 = scalar_lea.vmem %s0, 99
  %v1869 = vld [vmem:[%s1868] sm:$0x1]
  %s1870 = scalar_lea.vmem %s0, 162
  %v1871 = vld [vmem:[%s1870] sm:$0x2]
  %vm1872 = vcmask 1041409
  %v1873 = vsel %vm1872, %v1871, %v1869
  %s1874 = scalar_lea.vmem %s0, 225
  %v1875 = vld [vmem:[%s1874] sm:$0x4]
  %vm1876 = vcmask 1042434
  %v1877 = vsel %vm1876, %v1875, %v1873
  %s1878 = scalar_lea.vmem %s0, 288
  %v1879 = vld [vmem:[%s1878] sm:$0x8]
  %vm1880 = vcmask 1043459
  %v1881 = vsel %vm1880, %v1879, %v1877
  %s1882 = scalar_lea.vmem %s0, 351
  %v1883 = vld [vmem:[%s1882] sm:$0x10]
  %vm1884 = vcmask 1044484
  %v1885 = vsel %vm1884, %v1883, %v1881
  %s1886 = scalar_lea.vmem %s0, 414
  %v1887 = vld [vmem:[%s1886] sm:$0x20]
  %vm1888 = vcmask 1045509
  %v1889 = vsel %vm1888, %v1887, %v1885
  %1890 = vrot.lane.b32.xlu0 %v1889, 12
  %v1891 = vpop.permute.xlu0 %1890
  %vm1892 = vcmask 130144
  %s1893 = scalar_lea.vmem %s1, 9
  %1894 = vst.msk [vmem:[%s1893] sm:$0x3f] %vm1892, %v1891
  %s1895 = scalar_lea.vmem %s0, 2
  %v1896 = vld [vmem:[%s1895] sm:$0x1]
  %s1897 = scalar_lea.vmem %s0, 65
  %v1898 = vld [vmem:[%s1897] sm:$0x2]
  %vm1899 = vcmask 1041409
  %v1900 = vsel %vm1899, %v1898, %v1896
  %s1901 = scalar_lea.vmem %s0, 128
  %v1902 = vld [vmem:[%s1901] sm:$0x4]
  %vm1903 = vcmask 1042434
  %v1904 = vsel %vm1903, %v1902, %v1900
  %s1905 = scalar_lea.vmem %s0, 191
  %v1906 = vld [vmem:[%s1905] sm:$0x8]
  %vm1907 = vcmask 1043459
  %v1908 = vsel %vm1907, %v1906, %v1904
  %s1909 = scalar_lea.vmem %s0, 254
  %v1910 = vld [vmem:[%s1909] sm:$0x10]
  %vm1911 = vcmask 1044484
  %v1912 = vsel %vm1911, %v1910, %v1908
  %s1913 = scalar_lea.vmem %s0, 317
  %v1914 = vld [vmem:[%s1913] sm:$0x20]
  %vm1915 = vcmask 1045509
  %v1916 = vsel %vm1915, %v1914, %v1912
  %s1917 = scalar_lea.vmem %s0, 380
  %v1918 = vld [vmem:[%s1917] sm:$0x40]
  %vm1919 = vcmask 1046534
  %v1920 = vsel %vm1919, %v1918, %v1916
  %s1921 = scalar_lea.vmem %s0, 27
  %v1922 = vld [vmem:[%s1921] sm:$0x80]
  %vm1923 = vcmask 1047559
  %v1924 = vsel %vm1923, %v1922, %v1920
  %1925 = vrot.lane.b32.xlu0 %v1924, 8
  %v1926 = vpop.permute.xlu0 %1925
  %vm1927 = vcmask 97344
  %1928 = vst.msk [vmem:[%s1] sm:$0x7f] %vm1927, %v1926
  %s1929 = scalar_lea.vmem %s1, 1
  %1930 = vst.msk [vmem:[%s1929] sm:$0x80] %vm1927, %v1926
  %s1931 = scalar_lea.vmem %s0, 98
  %v1932 = vld [vmem:[%s1931] sm:$0x1]
  %s1933 = scalar_lea.vmem %s0, 161
  %v1934 = vld [vmem:[%s1933] sm:$0x2]
  %vm1935 = vcmask 1041409
  %v1936 = vsel %vm1935, %v1934, %v1932
  %s1937 = scalar_lea.vmem %s0, 224
  %v1938 = vld [vmem:[%s1937] sm:$0x4]
  %vm1939 = vcmask 1042434
  %v1940 = vsel %vm1939, %v1938, %v1936
  %s1941 = scalar_lea.vmem %s0, 287
  %v1942 = vld [vmem:[%s1941] sm:$0x8]
  %vm1943 = vcmask 1043459
  %v1944 = vsel %vm1943, %v1942, %v1940
  %s1945 = scalar_lea.vmem %s0, 350
  %v1946 = vld [vmem:[%s1945] sm:$0x10]
  %vm1947 = vcmask 1044484
  %v1948 = vsel %vm1947, %v1946, %v1944
  %s1949 = scalar_lea.vmem %s0, 413
  %v1950 = vld [vmem:[%s1949] sm:$0x20]
  %vm1951 = vcmask 1045509
  %v1952 = vsel %vm1951, %v1950, %v1948
  %1953 = vrot.lane.b32.xlu0 %v1952, 8
  %v1954 = vpop.permute.xlu0 %1953
  %vm1955 = vcmask 97344
  %s1956 = scalar_lea.vmem %s1, 9
  %1957 = vst.msk [vmem:[%s1956] sm:$0x3f] %vm1955, %v1954
  %s1958 = scalar_lea.vmem %s0, 1
  %v1959 = vld [vmem:[%s1958] sm:$0x1]
  %s1960 = scalar_lea.vmem %s0, 64
  %v1961 = vld [vmem:[%s1960] sm:$0x2]
  %vm1962 = vcmask 1041409
  %v1963 = vsel %vm1962, %v1961, %v1959
  %s1964 = scalar_lea.vmem %s0, 127
  %v1965 = vld [vmem:[%s1964] sm:$0x4]
  %vm1966 = vcmask 1042434
  %v1967 = vsel %vm1966, %v1965, %v1963
  %s1968 = scalar_lea.vmem %s0, 190
  %v1969 = vld [vmem:[%s1968] sm:$0x8]
  %vm1970 = vcmask 1043459
  %v1971 = vsel %vm1970, %v1969, %v1967
  %s1972 = scalar_lea.vmem %s0, 253
  %v1973 = vld [vmem:[%s1972] sm:$0x10]
  %vm1974 = vcmask 1044484
  %v1975 = vsel %vm1974, %v1973, %v1971
  %s1976 = scalar_lea.vmem %s0, 316
  %v1977 = vld [vmem:[%s1976] sm:$0x20]
  %vm1978 = vcmask 1045509
  %v1979 = vsel %vm1978, %v1977, %v1975
  %s1980 = scalar_lea.vmem %s0, 379
  %v1981 = vld [vmem:[%s1980] sm:$0x40]
  %vm1982 = vcmask 1046534
  %v1983 = vsel %vm1982, %v1981, %v1979
  %s1984 = scalar_lea.vmem %s0, 26
  %v1985 = vld [vmem:[%s1984] sm:$0x80]
  %vm1986 = vcmask 1047559
  %v1987 = vsel %vm1986, %v1985, %v1983
  %1988 = vrot.lane.b32.xlu0 %v1987, 4
  %v1989 = vpop.permute.xlu0 %1988
  %vm1990 = vcmask 64544
  %1991 = vst.msk [vmem:[%s1] sm:$0x7f] %vm1990, %v1989
  %s1992 = scalar_lea.vmem %s1, 1
  %1993 = vst.msk [vmem:[%s1992] sm:$0x80] %vm1990, %v1989
  %s1994 = scalar_lea.vmem %s0, 97
  %v1995 = vld [vmem:[%s1994] sm:$0x1]
  %s1996 = scalar_lea.vmem %s0, 160
  %v1997 = vld [vmem:[%s1996] sm:$0x2]
  %vm1998 = vcmask 1041409
  %v1999 = vsel %vm1998, %v1997, %v1995
  %s2000 = scalar_lea.vmem %s0, 223
  %v2001 = vld [vmem:[%s2000] sm:$0x4]
  %vm2002 = vcmask 1042434
  %v2003 = vsel %vm2002, %v2001, %v1999
  %s2004 = scalar_lea.vmem %s0, 286
  %v2005 = vld [vmem:[%s2004] sm:$0x8]
  %vm2006 = vcmask 1043459
  %v2007 = vsel %vm2006, %v2005, %v2003
  %s2008 = scalar_lea.vmem %s0, 349
  %v2009 = vld [vmem:[%s2008] sm:$0x10]
  %vm2010 = vcmask 1044484
  %v2011 = vsel %vm2010, %v2009, %v2007
  %s2012 = scalar_lea.vmem %s0, 412
  %v2013 = vld [vmem:[%s2012] sm:$0x20]
  %vm2014 = vcmask 1045509
  %v2015 = vsel %vm2014, %v2013, %v2011
  %2016 = vrot.lane.b32.xlu0 %v2015, 4
  %v2017 = vpop.permute.xlu0 %2016
  %vm2018 = vcmask 64544
  %s2019 = scalar_lea.vmem %s1, 9
  %2020 = vst.msk [vmem:[%s2019] sm:$0x3f] %vm2018, %v2017

// kernel: mixed_op_forward.5
$region0: #{mixed_op_forward.5}
  #allocation0 [shape = 'u32[]', space=smem, size = 0x4, offset = 0x4, fixed_abs, tag = 'smem constant byte address 0x4 - core index']
  #allocation1 [shape = 'u32[144,128]{1,0:T(1,128)}', space=vmem, size = 0x12000, scoped, tag = 'internal scratch']
  %s0 = inlined_call_operand.vmem [shape: f32[7,256], index: 0, kind: input, shape index: {}]
  %s1 = inlined_call_operand.vmem [shape: f32[1,256], index: 1, kind: input, shape index: {}]
  %s2 = inlined_call_operand.vmem [shape: f32[8,256], index: 2, kind: input, shape index: {}]
  %s3 = inlined_call_operand.vmem [shape: bf16[8,256], index: 3, kind: input, shape index: {}]
  %s4 = inlined_call_operand.vmem [shape: bf16[8,256], index: 4, kind: input, shape index: {}]
  %s5 = inlined_call_operand.vmem [shape: bf16[8,256], index: 5, kind: input, shape index: {}]
  %s6 = inlined_call_operand.vmem [shape: bf16[8,256], index: 6, kind: input, shape index: {}]
  %s7 = inlined_call_operand.vmem [shape: bf16[8,256], index: 7, kind: input, shape index: {}]
  %s8 = inlined_call_operand.vmem [shape: bf16[8,256], index: 8, kind: input, shape index: {}]
  %s9 = inlined_call_operand.vmem [shape: f32[8,256], index: 9, kind: output, shape index: {}]
  %s10 = sld [smem:[#allocation0]]
  $region46: #{mixed_op_forward.5} parent=0
    _
  %s12 = ssub.s32 1, %s10
  %s13 = scalar_select 0, %s12, %s10
  // Predicated region
  $region2: #{mixed_op_forward.5} parent=0 // pred_check
    _
  $region3: #{mixed_op_forward.5} parent=0 // pred_check_branch
    %15 = sbr.rel (0) target = $region5
  $region4: #{mixed_op_forward.5} parent=0 // pred_region
    _
  $region5: #{mixed_op_forward.5} parent=0 // pred_fallthru
    _
  // Predicated region
  $region6: #{mixed_op_forward.5} parent=0 // pred_check
    _
  $region7: #{mixed_op_forward.5} parent=0 // pred_check_branch
    %17 = sbr.rel (0) target = $region9
  $region8: #{mixed_op_forward.5} parent=0 // pred_region
    _
  $region9: #{mixed_op_forward.5} parent=0 // pred_fallthru
    _
  // Predicated region
  $region10: #{mixed_op_forward.5} parent=0 // pred_check
    _
  $region11: #{mixed_op_forward.5} parent=0 // pred_check_branch
    %19 = sbr.rel (0) target = $region13
  $region12: #{mixed_op_forward.5} parent=0 // pred_region
    _
  $region13: #{mixed_op_forward.5} parent=0 // pred_fallthru
    _
  // Predicated region
  $region14: #{mixed_op_forward.5} parent=0 // pred_check
    _
  $region15: #{mixed_op_forward.5} parent=0 // pred_check_branch
    %21 = sbr.rel (0) target = $region17
  $region16: #{mixed_op_forward.5} parent=0 // pred_region
    _
  $region17: #{mixed_op_forward.5} parent=0 // pred_fallthru
    _
  // Predicated region
  $region18: #{mixed_op_forward.5} parent=0 // pred_check
    _
  $region19: #{mixed_op_forward.5} parent=0 // pred_check_branch
    %23 = sbr.rel (0) target = $region21
  $region20: #{mixed_op_forward.5} parent=0 // pred_region
    _
  $region21: #{mixed_op_forward.5} parent=0 // pred_fallthru
    _
  // Predicated region
  $region22: #{mixed_op_forward.5} parent=0 // pred_check
    _
  $region23: #{mixed_op_forward.5} parent=0 // pred_check_branch
    %25 = sbr.rel (0) target = $region25
  $region24: #{mixed_op_forward.5} parent=0 // pred_region
    _
  $region25: #{mixed_op_forward.5} parent=0 // pred_fallthru
    _
  // Predicated region
  $region26: #{mixed_op_forward.5} parent=0 // pred_check
    _
  $region27: #{mixed_op_forward.5} parent=0 // pred_check_branch
    %27 = sbr.rel (0) target = $region29
  $region28: #{mixed_op_forward.5} parent=0 // pred_region
    _
  $region29: #{mixed_op_forward.5} parent=0 // pred_fallthru
    _
  // Predicated region
  $region30: #{mixed_op_forward.5} parent=0 // pred_check
    _
  $region31: #{mixed_op_forward.5} parent=0 // pred_check_branch
    %29 = sbr.rel (0) target = $region33
  $region32: #{mixed_op_forward.5} parent=0 // pred_region
    _
  $region33: #{mixed_op_forward.5} parent=0 // pred_fallthru
    _
  // Predicated region
  $region34: #{mixed_op_forward.5} parent=0 // pred_check
    _
  $region35: #{mixed_op_forward.5} parent=0 // pred_check_branch
    %31 = sbr.rel (0) target = $region37
  $region36: #{mixed_op_forward.5} parent=0 // pred_region
    _
  $region37: #{mixed_op_forward.5} parent=0 // pred_fallthru
    _
  %v32 = vld [vmem:[%s0] sm:$0x7f]
  %v33 = vld [vmem:[%s0 + $0x8] sm:$0x7f]
  %v34 = vld [vmem:[%s2] sm:$0xff]
  %v35 = vld [vmem:[%s2 + $0x8] sm:$0xff]
  %v36 = vlaneseq
  %v37 = vshrl.u32 %v36, 7
  %v38 = vsub.s32 0, %v37
  %v39 = vrot.slane %v32, %v38
  %v40 = vlaneseq
  %v41 = vshrl.u32 %v40, 7
  %v42 = vsub.s32 0, %v41
  %v43 = vrot.slane %v33, %v42
  %v44 = vmul.f32 %v34, %v39
  %v45 = vmul.f32 %v35, %v43
  %v46 = vld [vmem:[%s3] sm:$0xff]
  %v47 = vunpack.c.l.bf16 %v46
  %v48 = vunpack.c.h.bf16 %v46
  %v49 = vlaneseq
  %v50 = vshrl.u32 %v49, 7
  %v51 = vsub.s32 1, %v50
  %v52 = vrot.slane %v32, %v51
  %v53 = vlaneseq
  %v54 = vshrl.u32 %v53, 7
  %v55 = vsub.s32 1, %v54
  %v56 = vrot.slane %v33, %v55
  %v57 = vmul.f32 %v47, %v52
  %v58 = vmul.f32 %v48, %v56
  %v59 = vadd.f32 %v44, %v57
  %v60 = vadd.f32 %v45, %v58
  %v61 = vld [vmem:[%s4] sm:$0xff]
  %v62 = vunpack.c.l.bf16 %v61
  %v63 = vunpack.c.h.bf16 %v61
  %v64 = vlaneseq
  %v65 = vshrl.u32 %v64, 7
  %v66 = vsub.s32 2, %v65
  %v67 = vrot.slane %v32, %v66
  %v68 = vlaneseq
  %v69 = vshrl.u32 %v68, 7
  %v70 = vsub.s32 2, %v69
  %v71 = vrot.slane %v33, %v70
  %v72 = vmul.f32 %v62, %v67
  %v73 = vmul.f32 %v63, %v71
  %v74 = vadd.f32 %v59, %v72
  %v75 = vadd.f32 %v60, %v73
  %v76 = vld [vmem:[%s5] sm:$0xff]
  %v77 = vunpack.c.l.bf16 %v76
  %v78 = vunpack.c.h.bf16 %v76
  %v79 = vlaneseq
  %v80 = vshrl.u32 %v79, 7
  %v81 = vsub.s32 3, %v80
  %v82 = vrot.slane %v32, %v81
  %v83 = vlaneseq
  %v84 = vshrl.u32 %v83, 7
  %v85 = vsub.s32 3, %v84
  %v86 = vrot.slane %v33, %v85
  %v87 = vmul.f32 %v77, %v82
  %v88 = vmul.f32 %v78, %v86
  %v89 = vadd.f32 %v74, %v87
  %v90 = vadd.f32 %v75, %v88
  %v91 = vld [vmem:[%s6] sm:$0xff]
  %v92 = vunpack.c.l.bf16 %v91
  %v93 = vunpack.c.h.bf16 %v91
  %v94 = vlaneseq
  %v95 = vshrl.u32 %v94, 7
  %v96 = vsub.s32 4, %v95
  %v97 = vrot.slane %v32, %v96
  %v98 = vlaneseq
  %v99 = vshrl.u32 %v98, 7
  %v100 = vsub.s32 4, %v99
  %v101 = vrot.slane %v33, %v100
  %v102 = vmul.f32 %v92, %v97
  %v103 = vmul.f32 %v93, %v101
  %v104 = vadd.f32 %v89, %v102
  %v105 = vadd.f32 %v90, %v103
  %v106 = vld [vmem:[%s7] sm:$0xff]
  %v107 = vunpack.c.l.bf16 %v106
  %v108 = vunpack.c.h.bf16 %v106
  %v109 = vlaneseq
  %v110 = vshrl.u32 %v109, 7
  %v111 = vsub.s32 5, %v110
  %v112 = vrot.slane %v32, %v111
  %v113 = vlaneseq
  %v114 = vshrl.u32 %v113, 7
  %v115 = vsub.s32 5, %v114
  %v116 = vrot.slane %v33, %v115
  %v117 = vmul.f32 %v107, %v112
  %v118 = vmul.f32 %v108, %v116
  %v119 = vadd.f32 %v104, %v117
  %v120 = vadd.f32 %v105, %v118
  %v121 = vld [vmem:[%s8] sm:$0xff]
  %v122 = vunpack.c.l.bf16 %v121
  %v123 = vunpack.c.h.bf16 %v121
  %v124 = vlaneseq
  %v125 = vshrl.u32 %v124, 7
  %v126 = vsub.s32 6, %v125
  %v127 = vrot.slane %v32, %v126
  %v128 = vlaneseq
  %v129 = vshrl.u32 %v128, 7
  %v130 = vsub.s32 6, %v129
  %v131 = vrot.slane %v33, %v130
  %v132 = vmul.f32 %v122, %v127
  %v133 = vmul.f32 %v123, %v131
  %v134 = vadd.f32 %v119, %v132
  %v135 = vadd.f32 %v120, %v133
  %v136 = vld [vmem:[%s1] sm:$0x3]
  %v138 = vlaneseq
  %v139 = vshrl.u32 %v138, 7
  %v140 = vsub.s32 0, %v139
  %v141 = vrot.slane %v136, %v140
  %v142 = vlaneseq
  %v143 = vshrl.u32 %v142, 7
  %v144 = vsub.s32 1, %v143
  %v145 = vrot.slane %v136, %v144
  %v148 = vsub.f32 %v134, %v141
  %v149 = vsub.f32 %v135, %v145
  %150 = vst [vmem:[%s9] sm:$0xff] %v148
  %151 = vst [vmem:[%s9 + $0x8] sm:$0xff] %v149
  // Predicated region
  $region38: #{mixed_op_forward.5} parent=0 // pred_check
    _
  $region39: #{mixed_op_forward.5} parent=0 // pred_check_branch
    %153 = sbr.rel (0) target = $region41
  $region40: #{mixed_op_forward.5} parent=0 // pred_region
    _
  $region41: #{mixed_op_forward.5} parent=0 // pred_fallthru
    _
  // Predicated region
  $region42: #{mixed_op_forward.5} parent=0 // pred_check
    _
  $region43: #{mixed_op_forward.5} parent=0 // pred_check_branch
    %155 = sbr.rel (0) target = $region45
  $region44: #{mixed_op_forward.5} parent=0 // pred_region
    _
  $region45: #{mixed_op_forward.5} parent=0 // pred_fallthru
    _

// kernel: mixed_op_forward.4
$region0: #{mixed_op_forward.4}
  #allocation0 [shape = 'u32[]', space=smem, size = 0x4, offset = 0x4, fixed_abs, tag = 'smem constant byte address 0x4 - core index']
  #allocation1 [shape = 'u32[144,128]{1,0:T(1,128)}', space=vmem, size = 0x12000, scoped, tag = 'internal scratch']
  #allocation2 [shape = 'f32[18,72]{1,0:T(8,128)}', space=vmem, size = 0x3000, scoped, tag = 'scratch operand']
  #allocation3 [shape = 'f32[20,80]{1,0:T(8,128)}', space=vmem, size = 0x3000, scoped, tag = 'scratch operand']
  #allocation4 [shape = 'f32[16,70]{1,0:T(8,128)}', space=vmem, size = 0x2000, scoped, tag = 'scratch operand']
  %s0 = inlined_call_operand.vmem [shape: s32[8], index: 0, kind: input, shape index: {}]
  %s1 = inlined_call_operand.vmem [shape: f32[4,64], index: 1, kind: input, shape index: {}]
  %s2 = inlined_call_operand.vmem [shape: bf16[2,16,64], index: 2, kind: input, shape index: {}]
  %s3 = inlined_call_operand.vmem [shape: bf16[2,16,64], index: 3, kind: input, shape index: {}]
  %s4 = inlined_call_operand.vmem [shape: f32[9,64], index: 4, kind: input, shape index: {}]
  %s5 = inlined_call_operand.vmem [shape: f32[7,64], index: 5, kind: input, shape index: {}]
  %s6 = inlined_call_operand.vmem [shape: f32[25,64], index: 6, kind: input, shape index: {}]
  %s7 = inlined_call_operand.vmem [shape: f32[7,64], index: 7, kind: input, shape index: {}]
  %s8 = inlined_call_operand.vmem [shape: bf16[2,16,64], index: 8, kind: output, shape index: {0}]
  %s9 = inlined_call_operand.vmem [shape: bf16[2,16,64], index: 9, kind: output, shape index: {1}]
  %s10 = inlined_call_operand.vmem [shape: f32[2,4,64], index: 10, kind: output, shape index: {2}]
  %11 = xla_tuple %s8, %s9, %s10
  %s12 = sld [smem:[#allocation0]]
  $region101: #{mixed_op_forward.4} parent=0
    _
  %s14 = ssub.s32 1, %s12
  %s15 = scalar_select 0, %s14, %s12
  $region1: #{mixed_op_forward.4} parent=0
    #allocation5 [shape = 'u8[512]{0}', space=smem, size = 0x200, scoped, tag = 'input window, operand 0, single buffered']
    #allocation6 [shape = 's32[2]{0}', space=sflag, size = 0x8, scoped, tag = 'scoped memory for mixed_op_forward.4']
    %16 = vsyncpa [#allocation6], 0
    loop: start=0, step=1, limit=4
    $region2: #{mixed_op_forward.4} parent=1 // loop_pre_header
      _
    $region3: #{mixed_op_forward.4} parent=1 // loop_header
      %s18 = sphi 0, %s22
      %p19 = scmp.ge.s32.totalorder %s18, 4
      %s26 = sphi 0, %s26
      %s28 = sphi 0, %s26
      %s29 = sphi 0, %s28
      %s43 = sphi 0, %s29
      %s47 = sphi 0, %s47
      %s49 = sphi 0, %s47
      %s50 = sphi 0, %s49
      %s64 = sphi 0, %s50
      %s70 = sphi 0, %s72
      %s73 = sphi 0, %s70
      %s74 = sphi 0, %s73
      %s90 = sphi 0, %s74
      %s96 = sphi 0, %s98
      %s99 = sphi 0, %s96
      %s100 = sphi 0, %s99
      %s116 = sphi 0, %s100
      %s120 = sphi 0, %s120
      %s122 = sphi 0, %s120
      %s123 = sphi 0, %s122
      %s137 = sphi 0, %s123
      %s141 = sphi 0, %s141
      %s143 = sphi 0, %s141
      %s144 = sphi 0, %s143
      %s158 = sphi 0, %s144
      %s162 = sphi 0, %s162
      %s164 = sphi 0, %s162
      %s165 = sphi 0, %s164
      %s179 = sphi 0, %s165
      %s183 = sphi 0, %s183
      %s185 = sphi 0, %s183
      %s186 = sphi 0, %s185
      %s200 = sphi 0, %s186
      %s206 = sphi 0, %s208
      %s209 = sphi 0, %s206
      %s210 = sphi 0, %s209
      %s226 = sphi 0, %s210
      %s232 = sphi 0, %s234
      %s235 = sphi 0, %s232
      %s236 = sphi 0, %s235
      %s252 = sphi 0, %s236
      %s258 = sphi 0, %s260
      %s261 = sphi 0, %s258
      %s262 = sphi 0, %s261
      %s278 = sphi 0, %s262
    $region4: #{mixed_op_forward.4} parent=1 // loop_header_branch
      %21 = sbr.rel (%p19) target = $region8
    $region5: #{mixed_op_forward.4} parent=1 // loop_body
      %s23 = ssub.s32 %s18, 1
      %s24 = ssub.s32 %s18, 2
      %s25 = sadd.s32 %s18, 1
      %s27 = sadd.s32 %s26, 1
      %p30 = scmp.eq.s32.totalorder %s18, 1
      %p31 = scmp.ne.s32.totalorder %s26, %s28
      %p32 = scmp.eq.s32.totalorder %s18, 0
      %p33 = por %p31, %p32
      %p34 = scmp.ne.s32.totalorder %s26, %s28
      %p35 = scmp.eq.s32.totalorder %s23, 1
      %p36 = por %p34, %p35
      %p37 = scmp.ne.s32.totalorder %s28, %s29
      %p38 = scmp.eq.s32.totalorder %s23, 0
      %p39 = por %p37, %p38
      %p40 = scmp.ne.s32.totalorder %s28, %s29
      %p41 = scmp.eq.s32.totalorder %s24, 1
      %p42 = por %p40, %p41
      %p44 = scmp.ne.s32.totalorder %s29, %s43
      %p45 = scmp.eq.s32.totalorder %s24, 0
      %p46 = por %p44, %p45
      %s48 = sadd.s32 %s47, 1
      %p51 = scmp.eq.s32.totalorder %s18, 1
      %p52 = scmp.ne.s32.totalorder %s47, %s49
      %p53 = scmp.eq.s32.totalorder %s18, 0
      %p54 = por %p52, %p53
      %p55 = scmp.ne.s32.totalorder %s47, %s49
      %p56 = scmp.eq.s32.totalorder %s23, 1
      %p57 = por %p55, %p56
      %p58 = scmp.ne.s32.totalorder %s49, %s50
      %p59 = scmp.eq.s32.totalorder %s23, 0
      %p60 = por %p58, %p59
      %p61 = scmp.ne.s32.totalorder %s49, %s50
      %p62 = scmp.eq.s32.totalorder %s24, 1
      %p63 = por %p61, %p62
      %p65 = scmp.ne.s32.totalorder %s50, %s64
      %p66 = scmp.eq.s32.totalorder %s24, 0
      %p67 = por %p65, %p66
      %s68 = ssub.s32 %s18, %s25
      %p69 = scmp.eq.s32.totalorder %s68, 0
      %s71 = sadd.s32 %s70, 1
      %s72 = scalar_select %p69, %s70, %s71
      %p75 = pneg %p69
      %p76 = scmp.eq.s32.totalorder %s18, 1
      %p77 = por %p75, %p76
      %p78 = scmp.ne.s32.totalorder %s70, %s73
      %p79 = scmp.eq.s32.totalorder %s18, 0
      %p80 = por %p78, %p79
      %p81 = scmp.ne.s32.totalorder %s70, %s73
      %p82 = scmp.eq.s32.totalorder %s23, 1
      %p83 = por %p81, %p82
      %p84 = scmp.ne.s32.totalorder %s73, %s74
      %p85 = scmp.eq.s32.totalorder %s23, 0
      %p86 = por %p84, %p85
      %p87 = scmp.ne.s32.totalorder %s73, %s74
      %p88 = scmp.eq.s32.totalorder %s24, 1
      %p89 = por %p87, %p88
      %p91 = scmp.ne.s32.totalorder %s74, %s90
      %p92 = scmp.eq.s32.totalorder %s24, 0
      %p93 = por %p91, %p92
      %s94 = ssub.s32 %s18, %s25
      %p95 = scmp.eq.s32.totalorder %s94, 0
      %s97 = sadd.s32 %s96, 1
      %s98 = scalar_select %p95, %s96, %s97
      %p101 = pneg %p95
      %p102 = scmp.eq.s32.totalorder %s18, 1
      %p103 = por %p101, %p102
      %p104 = scmp.ne.s32.totalorder %s96, %s99
      %p105 = scmp.eq.s32.totalorder %s18, 0
      %p106 = por %p104, %p105
      %p107 = scmp.ne.s32.totalorder %s96, %s99
      %p108 = scmp.eq.s32.totalorder %s23, 1
      %p109 = por %p107, %p108
      %p110 = scmp.ne.s32.totalorder %s99, %s100
      %p111 = scmp.eq.s32.totalorder %s23, 0
      %p112 = por %p110, %p111
      %p113 = scmp.ne.s32.totalorder %s99, %s100
      %p114 = scmp.eq.s32.totalorder %s24, 1
      %p115 = por %p113, %p114
      %p117 = scmp.ne.s32.totalorder %s100, %s116
      %p118 = scmp.eq.s32.totalorder %s24, 0
      %p119 = por %p117, %p118
      %s121 = sadd.s32 %s120, 1
      %p124 = scmp.eq.s32.totalorder %s18, 1
      %p125 = scmp.ne.s32.totalorder %s120, %s122
      %p126 = scmp.eq.s32.totalorder %s18, 0
      %p127 = por %p125, %p126
      %p128 = scmp.ne.s32.totalorder %s120, %s122
      %p129 = scmp.eq.s32.totalorder %s23, 1
      %p130 = por %p128, %p129
      %p131 = scmp.ne.s32.totalorder %s122, %s123
      %p132 = scmp.eq.s32.totalorder %s23, 0
      %p133 = por %p131, %p132
      %p134 = scmp.ne.s32.totalorder %s122, %s123
      %p135 = scmp.eq.s32.totalorder %s24, 1
      %p136 = por %p134, %p135
      %p138 = scmp.ne.s32.totalorder %s123, %s137
      %p139 = scmp.eq.s32.totalorder %s24, 0
      %p140 = por %p138, %p139
      %s142 = sadd.s32 %s141, 1
      %p145 = scmp.eq.s32.totalorder %s18, 1
      %p146 = scmp.ne.s32.totalorder %s141, %s143
      %p147 = scmp.eq.s32.totalorder %s18, 0
      %p148 = por %p146, %p147
      %p149 = scmp.ne.s32.totalorder %s141, %s143
      %p150 = scmp.eq.s32.totalorder %s23, 1
      %p151 = por %p149, %p150
      %p152 = scmp.ne.s32.totalorder %s143, %s144
      %p153 = scmp.eq.s32.totalorder %s23, 0
      %p154 = por %p152, %p153
      %p155 = scmp.ne.s32.totalorder %s143, %s144
      %p156 = scmp.eq.s32.totalorder %s24, 1
      %p157 = por %p155, %p156
      %p159 = scmp.ne.s32.totalorder %s144, %s158
      %p160 = scmp.eq.s32.totalorder %s24, 0
      %p161 = por %p159, %p160
      %s163 = sadd.s32 %s162, 1
      %p166 = scmp.eq.s32.totalorder %s18, 1
      %p167 = scmp.ne.s32.totalorder %s162, %s164
      %p168 = scmp.eq.s32.totalorder %s18, 0
      %p169 = por %p167, %p168
      %p170 = scmp.ne.s32.totalorder %s162, %s164
      %p171 = scmp.eq.s32.totalorder %s23, 1
      %p172 = por %p170, %p171
      %p173 = scmp.ne.s32.totalorder %s164, %s165
      %p174 = scmp.eq.s32.totalorder %s23, 0
      %p175 = por %p173, %p174
      %p176 = scmp.ne.s32.totalorder %s164, %s165
      %p177 = scmp.eq.s32.totalorder %s24, 1
      %p178 = por %p176, %p177
      %p180 = scmp.ne.s32.totalorder %s165, %s179
      %p181 = scmp.eq.s32.totalorder %s24, 0
      %p182 = por %p180, %p181
      %s184 = sadd.s32 %s183, 1
      %p187 = scmp.eq.s32.totalorder %s18, 1
      %p188 = scmp.ne.s32.totalorder %s183, %s185
      %p189 = scmp.eq.s32.totalorder %s18, 0
      %p190 = por %p188, %p189
      %p191 = scmp.ne.s32.totalorder %s183, %s185
      %p192 = scmp.eq.s32.totalorder %s23, 1
      %p193 = por %p191, %p192
      %p194 = scmp.ne.s32.totalorder %s185, %s186
      %p195 = scmp.eq.s32.totalorder %s23, 0
      %p196 = por %p194, %p195
      %p197 = scmp.ne.s32.totalorder %s185, %s186
      %p198 = scmp.eq.s32.totalorder %s24, 1
      %p199 = por %p197, %p198
      %p201 = scmp.ne.s32.totalorder %s186, %s200
      %p202 = scmp.eq.s32.totalorder %s24, 0
      %p203 = por %p201, %p202
      %s204 = ssub.s32 %s18, %s25
      %p205 = scmp.eq.s32.totalorder %s204, 0
      %s207 = sadd.s32 %s206, 1
      %s208 = scalar_select %p205, %s206, %s207
      %p211 = pneg %p205
      %p212 = scmp.eq.s32.totalorder %s18, 1
      %p213 = por %p211, %p212
      %p214 = scmp.ne.s32.totalorder %s206, %s209
      %p215 = scmp.eq.s32.totalorder %s18, 0
      %p216 = por %p214, %p215
      %p217 = scmp.ne.s32.totalorder %s206, %s209
      %p218 = scmp.eq.s32.totalorder %s23, 1
      %p219 = por %p217, %p218
      %p220 = scmp.ne.s32.totalorder %s209, %s210
      %p221 = scmp.eq.s32.totalorder %s23, 0
      %p222 = por %p220, %p221
      %p223 = scmp.ne.s32.totalorder %s209, %s210
      %p224 = scmp.eq.s32.totalorder %s24, 1
      %p225 = por %p223, %p224
      %p227 = scmp.ne.s32.totalorder %s210, %s226
      %p228 = scmp.eq.s32.totalorder %s24, 0
      %p229 = por %p227, %p228
      %s230 = ssub.s32 %s18, %s25
      %p231 = scmp.eq.s32.totalorder %s230, 0
      %s233 = sadd.s32 %s232, 1
      %s234 = scalar_select %p231, %s232, %s233
      %p237 = pneg %p231
      %p238 = scmp.eq.s32.totalorder %s18, 1
      %p239 = por %p237, %p238
      %p240 = scmp.ne.s32.totalorder %s232, %s235
      %p241 = scmp.eq.s32.totalorder %s18, 0
      %p242 = por %p240, %p241
      %p243 = scmp.ne.s32.totalorder %s232, %s235
      %p244 = scmp.eq.s32.totalorder %s23, 1
      %p245 = por %p243, %p244
      %p246 = scmp.ne.s32.totalorder %s235, %s236
      %p247 = scmp.eq.s32.totalorder %s23, 0
      %p248 = por %p246, %p247
      %p249 = scmp.ne.s32.totalorder %s235, %s236
      %p250 = scmp.eq.s32.totalorder %s24, 1
      %p251 = por %p249, %p250
      %p253 = scmp.ne.s32.totalorder %s236, %s252
      %p254 = scmp.eq.s32.totalorder %s24, 0
      %p255 = por %p253, %p254
      %s256 = ssub.s32 %s18, %s25
      %p257 = scmp.eq.s32.totalorder %s256, 0
      %s259 = sadd.s32 %s258, 1
      %s260 = scalar_select %p257, %s258, %s259
      %p263 = pneg %p257
      %p264 = scmp.eq.s32.totalorder %s18, 1
      %p265 = por %p263, %p264
      %p266 = scmp.ne.s32.totalorder %s258, %s261
      %p267 = scmp.eq.s32.totalorder %s18, 0
      %p268 = por %p266, %p267
      %p269 = scmp.ne.s32.totalorder %s258, %s261
      %p270 = scmp.eq.s32.totalorder %s23, 1
      %p271 = por %p269, %p270
      %p272 = scmp.ne.s32.totalorder %s261, %s262
      %p273 = scmp.eq.s32.totalorder %s23, 0
      %p274 = por %p272, %p273
      %p275 = scmp.ne.s32.totalorder %s261, %s262
      %p276 = scmp.eq.s32.totalorder %s24, 1
      %p277 = por %p275, %p276
      %p279 = scmp.ne.s32.totalorder %s262, %s278
      %p280 = scmp.eq.s32.totalorder %s24, 0
      %p281 = por %p279, %p280
      %p282 = scmp.le.s32.totalorder 1, %s18
      %p283 = scmp.lt.s32.totalorder %s18, 3
      %p284 = pnand %p282, %p283
      %p285 = pneg %p284
      // Predicated region
      $region9: #{mixed_op_forward.4} parent=5 // pred_check
        _
      $region10: #{mixed_op_forward.4} parent=5 // pred_check_branch
        %287 = sbr.rel (%p284) target = $region12
      $region11: #{mixed_op_forward.4} parent=5 // pred_region
        %s288 = ssub.s32 %s18, 1
        // Predicated region
        $region13: #{mixed_op_forward.4} parent=11 // pred_check
          %p289 = pneg %p39
        $region14: #{mixed_op_forward.4} parent=11 // pred_check_branch
          %291 = sbr.rel (%p289) target = $region16
        $region15: #{mixed_op_forward.4} parent=11 // pred_region
          %s293 = ssub.s32 16, 16
          %294 = vsyncadd [#allocation6], %s293
          %s296 = sshll.u32 %s0, 4
          %s297 = int_to_ptr.vmem [resolvable:$true] %s296
          %299 = dma.vmem_to_smem %s297, 16, [#allocation5], [#allocation6]
        $region16: #{mixed_op_forward.4} parent=11 // pred_fallthru
          _
        // Predicated region
        $region17: #{mixed_op_forward.4} parent=11 // pred_check
          %p300 = pneg %p60
        $region18: #{mixed_op_forward.4} parent=11 // pred_check_branch
          %302 = sbr.rel (%p300) target = $region20
        $region19: #{mixed_op_forward.4} parent=11 // pred_region
          _
        $region20: #{mixed_op_forward.4} parent=11 // pred_fallthru
          _
        // Predicated region
        $region21: #{mixed_op_forward.4} parent=11 // pred_check
          %p303 = pneg %p133
        $region22: #{mixed_op_forward.4} parent=11 // pred_check_branch
          %305 = sbr.rel (%p303) target = $region24
        $region23: #{mixed_op_forward.4} parent=11 // pred_region
          _
        $region24: #{mixed_op_forward.4} parent=11 // pred_fallthru
          _
        // Predicated region
        $region25: #{mixed_op_forward.4} parent=11 // pred_check
          %p306 = pneg %p154
        $region26: #{mixed_op_forward.4} parent=11 // pred_check_branch
          %308 = sbr.rel (%p306) target = $region28
        $region27: #{mixed_op_forward.4} parent=11 // pred_region
          _
        $region28: #{mixed_op_forward.4} parent=11 // pred_fallthru
          _
        // Predicated region
        $region29: #{mixed_op_forward.4} parent=11 // pred_check
          %p309 = pneg %p175
        $region30: #{mixed_op_forward.4} parent=11 // pred_check_branch
          %311 = sbr.rel (%p309) target = $region32
        $region31: #{mixed_op_forward.4} parent=11 // pred_region
          _
        $region32: #{mixed_op_forward.4} parent=11 // pred_fallthru
          _
        // Predicated region
        $region33: #{mixed_op_forward.4} parent=11 // pred_check
          %p312 = pneg %p196
        $region34: #{mixed_op_forward.4} parent=11 // pred_check_branch
          %314 = sbr.rel (%p312) target = $region36
        $region35: #{mixed_op_forward.4} parent=11 // pred_region
          _
        $region36: #{mixed_op_forward.4} parent=11 // pred_fallthru
          _
      $region12: #{mixed_op_forward.4} parent=5 // pred_fallthru
        _
      %p315 = scmp.lt.s32.totalorder %s18, 2
      // Predicated region
      $region37: #{mixed_op_forward.4} parent=5 // pred_check
        %p316 = pneg %p315
      $region38: #{mixed_op_forward.4} parent=5 // pred_check_branch
        %318 = sbr.rel (%p316) target = $region40
      $region39: #{mixed_op_forward.4} parent=5 // pred_region
        // Predicated region
        $region41: #{mixed_op_forward.4} parent=39 // pred_check
          %p319 = pneg %p80
        $region42: #{mixed_op_forward.4} parent=39 // pred_check_branch
          %321 = sbr.rel (%p319) target = $region44
        $region43: #{mixed_op_forward.4} parent=39 // pred_region
          %p322 = scmp.lt.s32.totalorder %s18, 1
          %s323 = scalar_select %p322, %s18, 1
          %s324 = smul.addr %s323, 2
          %s325 = smul.addr %s324, 4
          %s326 = scalar_lea.vmem %s2, %s325
        $region44: #{mixed_op_forward.4} parent=39 // pred_fallthru
          _
        // Predicated region
        $region45: #{mixed_op_forward.4} parent=39 // pred_check
          %p327 = pneg %p106
        $region46: #{mixed_op_forward.4} parent=39 // pred_check_branch
          %329 = sbr.rel (%p327) target = $region48
        $region47: #{mixed_op_forward.4} parent=39 // pred_region
          %p330 = scmp.lt.s32.totalorder %s18, 1
          %s331 = scalar_select %p330, %s18, 1
          %s332 = smul.addr %s331, 2
          %s333 = smul.addr %s332, 4
          %s334 = scalar_lea.vmem %s3, %s333
        $region48: #{mixed_op_forward.4} parent=39 // pred_fallthru
          _
      $region40: #{mixed_op_forward.4} parent=5 // pred_fallthru
        _
      %p335 = scmp.le.s32.totalorder 1, %s18
      %p336 = scmp.lt.s32.totalorder %s18, 3
      %p337 = pnand %p335, %p336
      %p338 = pneg %p337
      // Predicated region
      $region49: #{mixed_op_forward.4} parent=5 // pred_check
        _
      $region50: #{mixed_op_forward.4} parent=5 // pred_check_branch
        %340 = sbr.rel (%p337) target = $region52
      $region51: #{mixed_op_forward.4} parent=5 // pred_region
        %s341 = ssub.s32 %s18, 1
        // Predicated region
        $region53: #{mixed_op_forward.4} parent=51 // pred_check
          %p342 = pneg %p39
        $region54: #{mixed_op_forward.4} parent=51 // pred_check_branch
          %344 = sbr.rel (%p342) target = $region56
        $region55: #{mixed_op_forward.4} parent=51 // pred_region
          %345 = dma.done [#allocation6], 16
        $region56: #{mixed_op_forward.4} parent=51 // pred_fallthru
          _
        %346 = sfence
        %p347 = pneg %p39
        %p348 = pneg %p36
        %p349 = pneg %p60
        %p350 = pneg %p57
        %p351 = scmp.lt.s32.totalorder %s23, 1
        %s352 = scalar_select %p351, %s23, 1
        %s353 = smul.addr %s352, 2
        %s354 = smul.addr %s353, 4
        %s355 = scalar_lea.vmem %s2, %s354
        %p356 = pneg %p86
        %p357 = pneg %p83
        %p358 = scmp.lt.s32.totalorder %s23, 1
        %s359 = scalar_select %p358, %s23, 1
        %s360 = smul.addr %s359, 2
        %s361 = smul.addr %s360, 4
        %s362 = scalar_lea.vmem %s3, %s361
        %p363 = pneg %p112
        %p364 = pneg %p109
        %p365 = pneg %p133
        %p366 = pneg %p130
        %p367 = pneg %p154
        %p368 = pneg %p151
        %p369 = pneg %p175
        %p370 = pneg %p172
        %p371 = pneg %p196
        %p372 = pneg %p193
        %p373 = pneg %p222
        %p374 = pneg %p219
        %p375 = scmp.lt.s32.totalorder %s23, 1
        %s376 = scalar_select %p375, %s23, 1
        %s377 = smul.addr %s376, 2
        %s378 = smul.addr %s377, 4
        %s379 = scalar_lea.vmem %s8, %s378
        %p380 = pneg %p248
        %p381 = pneg %p245
        %p382 = scmp.lt.s32.totalorder %s23, 1
        %s383 = scalar_select %p382, %s23, 1
        %s384 = smul.addr %s383, 2
        %s385 = smul.addr %s384, 4
        %s386 = scalar_lea.vmem %s9, %s385
        %p387 = pneg %p274
        %p388 = pneg %p271
        %p389 = scmp.lt.s32.totalorder %s23, 1
        %s390 = scalar_select %p389, %s23, 1
        %s391 = smul.addr %s390, 4
        %s392 = scalar_lea.vmem %s10, %s391
        %p393 = scmp.lt.s32.totalorder %s23, 1
        %s394 = scalar_select %p393, %s23, 1
        %s395 = smul.addr %s394, 2
        %s396 = smul.addr %s395, 4
        %s397 = scalar_lea.vmem %s2, %s396
        %p398 = scmp.lt.s32.totalorder %s23, 1
        %s399 = scalar_select %p398, %s23, 1
        %s400 = smul.addr %s399, 2
        %s401 = smul.addr %s400, 4
        %s402 = scalar_lea.vmem %s3, %s401
        %p403 = scmp.lt.s32.totalorder %s23, 1
        %s404 = scalar_select %p403, %s23, 1
        %s405 = smul.addr %s404, 2
        %s406 = smul.addr %s405, 4
        %s407 = scalar_lea.vmem %s8, %s406
        %p408 = scmp.lt.s32.totalorder %s23, 1
        %s409 = scalar_select %p408, %s23, 1
        %s410 = smul.addr %s409, 2
        %s411 = smul.addr %s410, 4
        %s412 = scalar_lea.vmem %s9, %s411
        %p413 = scmp.lt.s32.totalorder %s23, 1
        %s414 = scalar_select %p413, %s23, 1
        %s415 = smul.addr %s414, 4
        %s416 = scalar_lea.vmem %s10, %s415
        %s418 = sld [smem:[#allocation5 + $0x4]]
        %p419 = scmp.ne.s32.totalorder %s418, 0
        // Predicated region
        $region57: #{mixed_op_forward.4} parent=51 // pred_check
          %p420 = pneg %p419
        $region58: #{mixed_op_forward.4} parent=51 // pred_check_branch
          %422 = sbr.rel (%p420) target = $region60
        $region59: #{mixed_op_forward.4} parent=51 // pred_region
          %v423 = vld [vmem:[%s1] sm:$0x1]
          %v424 = vld [vmem:[%s1 + $0x1] sm:$0x1]
          %v425 = vld [vmem:[%s397] sm:$0xf]
          %v426 = vld [vmem:[%s397 + $0x4] sm:$0xf]
          %v427 = vunpack.c.l.bf16 %v425
          %v428 = vunpack.c.l.bf16 %v426
          %v429 = vlaneseq
          %v430 = vshrl.u32 %v429, 7
          %v431 = vsub.s32 0, %v430
          %v432 = vrot.slane %v423, %v431
          %v433 = vsub.f32 %v427, %v432
          %v434 = vsub.f32 %v428, %v432
          %v435 = vlaneseq
          %v436 = vshrl.u32 %v435, 7
          %v437 = vsub.s32 0, %v436
          %v438 = vrot.slane %v424, %v437
          %v439 = vmul.f32 %v433, %v438
          %v440 = vmul.f32 %v434, %v438
          %vm441 = vcmask 581632
          %442 = vst.msk [vmem:[#allocation2] sm:$0x1] %vm441, 0.0
          %443 = vst.msk [vmem:[#allocation2 + $0x11] sm:$0x1] %vm441, 0.0
          %vm444 = vcmask 31744
          %445 = vst.msk [vmem:[#allocation2 + $0x1] sm:$0xff] %vm444, 0.0
          %446 = vst.msk [vmem:[#allocation2 + $0x9] sm:$0xff] %vm444, 0.0
          %vm447 = vcmask 589344
          %448 = vst.msk [vmem:[#allocation2 + $0x1] sm:$0xff] %vm447, 0.0
          %449 = vst.msk [vmem:[#allocation2 + $0x9] sm:$0xff] %vm447, 0.0
          %v450 = vmax.f32 %v439, 0.0
          %v451 = vmax.f32 %v440, 0.0
          %454 = vrot.lane.b32.xlu0 %v450, 4
          %v455 = vpop.permute.xlu0 %454
          %456 = vrot.lane.b32.xlu0 %v451, 4
          %v457 = vpop.permute.xlu0 %456
          %vm460 = vcmask 556064
          %461 = vst.msk [vmem:[#allocation2 + $0x1] sm:$0xff] %vm460, %v455
          %462 = vst.msk [vmem:[#allocation2 + $0x9] sm:$0xff] %vm460, %v457
          %v463 = vld [vmem:[#allocation2] sm:$0xff]
          %v464 = vld [vmem:[#allocation2 + $0x8] sm:$0xff]
          %v465 = vld [vmem:[%s4] sm:$0x1]
          %v466 = vlaneseq
          %v467 = vshrl.u32 %v466, 7
          %v468 = vsub.s32 0, %v467
          %v469 = vrot.slane %v465, %v468
          %v470 = vmul.f32 %v463, %v469
          %v471 = vmul.f32 %v464, %v469
          %v472 = vld [vmem:[%s4 + $0x1] sm:$0x1]
          %v473 = vlaneseq
          %v474 = vshrl.u32 %v473, 7
          %v475 = vsub.s32 0, %v474
          %v476 = vrot.slane %v472, %v475
          %478 = vrot.lane.b32.xlu0 %v476, 4
          %v479 = vpop.permute.xlu0 %478
          %v481 = vmul.f32 %v463, %v479
          %v482 = vmul.f32 %v464, %v479
          %485 = vrot.lane.b32.xlu0 %v481, 124
          %v486 = vpop.permute.xlu0 %485
          %487 = vrot.lane.b32.xlu0 %v482, 124
          %v488 = vpop.permute.xlu0 %487
          %v491 = vadd.f32 %v470, %v486
          %v492 = vadd.f32 %v471, %v488
          %v493 = vld [vmem:[%s4 + $0x2] sm:$0x1]
          %v494 = vlaneseq
          %v495 = vshrl.u32 %v494, 7
          %v496 = vsub.s32 0, %v495
          %v497 = vrot.slane %v493, %v496
          %499 = vrot.lane.b32.xlu0 %v497, 8
          %v500 = vpop.permute.xlu0 %499
          %v502 = vmul.f32 %v463, %v500
          %v503 = vmul.f32 %v464, %v500
          %506 = vrot.lane.b32.xlu0 %v502, 120
          %v507 = vpop.permute.xlu0 %506
          %508 = vrot.lane.b32.xlu0 %v503, 120
          %v509 = vpop.permute.xlu0 %508
          %v512 = vadd.f32 %v491, %v507
          %v513 = vadd.f32 %v492, %v509
          %v514 = vld [vmem:[#allocation2 + $0x1] sm:$0xff]
          %v515 = vld [vmem:[#allocation2 + $0x9] sm:$0xff]
          %v516 = vld [vmem:[%s4 + $0x3] sm:$0x1]
          %v517 = vlaneseq
          %v518 = vshrl.u32 %v517, 7
          %v519 = vsub.s32 0, %v518
          %v520 = vrot.slane %v516, %v519
          %v521 = vmul.f32 %v514, %v520
          %v522 = vmul.f32 %v515, %v520
          %v523 = vadd.f32 %v512, %v521
          %v524 = vadd.f32 %v513, %v522
          %v525 = vld [vmem:[%s4 + $0x4] sm:$0x1]
          %v526 = vlaneseq
          %v527 = vshrl.u32 %v526, 7
          %v528 = vsub.s32 0, %v527
          %v529 = vrot.slane %v525, %v528
          %531 = vrot.lane.b32.xlu0 %v529, 4
          %v532 = vpop.permute.xlu0 %531
          %v534 = vmul.f32 %v514, %v532
          %v535 = vmul.f32 %v515, %v532
          %538 = vrot.lane.b32.xlu0 %v534, 124
          %v539 = vpop.permute.xlu0 %538
          %540 = vrot.lane.b32.xlu0 %v535, 124
          %v541 = vpop.permute.xlu0 %540
          %v544 = vadd.f32 %v523, %v539
          %v545 = vadd.f32 %v524, %v541
          %v546 = vld [vmem:[%s4 + $0x5] sm:$0x1]
          %v547 = vlaneseq
          %v548 = vshrl.u32 %v547, 7
          %v549 = vsub.s32 0, %v548
          %v550 = vrot.slane %v546, %v549
          %552 = vrot.lane.b32.xlu0 %v550, 8
          %v553 = vpop.permute.xlu0 %552
          %v555 = vmul.f32 %v514, %v553
          %v556 = vmul.f32 %v515, %v553
          %559 = vrot.lane.b32.xlu0 %v555, 120
          %v560 = vpop.permute.xlu0 %559
          %561 = vrot.lane.b32.xlu0 %v556, 120
          %v562 = vpop.permute.xlu0 %561
          %v565 = vadd.f32 %v544, %v560
          %v566 = vadd.f32 %v545, %v562
          %v567 = vld [vmem:[#allocation2 + $0x2] sm:$0xff]
          %v568 = vld [vmem:[#allocation2 + $0xa] sm:$0xff]
          %v569 = vld [vmem:[%s4 + $0x6] sm:$0x1]
          %v570 = vlaneseq
          %v571 = vshrl.u32 %v570, 7
          %v572 = vsub.s32 0, %v571
          %v573 = vrot.slane %v569, %v572
          %v574 = vmul.f32 %v567, %v573
          %v575 = vmul.f32 %v568, %v573
          %v576 = vadd.f32 %v565, %v574
          %v577 = vadd.f32 %v566, %v575
          %v578 = vld [vmem:[%s4 + $0x7] sm:$0x1]
          %v579 = vlaneseq
          %v580 = vshrl.u32 %v579, 7
          %v581 = vsub.s32 0, %v580
          %v582 = vrot.slane %v578, %v581
          %584 = vrot.lane.b32.xlu0 %v582, 4
          %v585 = vpop.permute.xlu0 %584
          %v587 = vmul.f32 %v567, %v585
          %v588 = vmul.f32 %v568, %v585
          %591 = vrot.lane.b32.xlu0 %v587, 124
          %v592 = vpop.permute.xlu0 %591
          %593 = vrot.lane.b32.xlu0 %v588, 124
          %v594 = vpop.permute.xlu0 %593
          %v597 = vadd.f32 %v576, %v592
          %v598 = vadd.f32 %v577, %v594
          %v599 = vld [vmem:[%s4 + $0x8] sm:$0x1]
          %v600 = vlaneseq
          %v601 = vshrl.u32 %v600, 7
          %v602 = vsub.s32 0, %v601
          %v603 = vrot.slane %v599, %v602
          %605 = vrot.lane.b32.xlu0 %v603, 8
          %v606 = vpop.permute.xlu0 %605
          %v608 = vmul.f32 %v567, %v606
          %v609 = vmul.f32 %v568, %v606
          %612 = vrot.lane.b32.xlu0 %v608, 120
          %v613 = vpop.permute.xlu0 %612
          %614 = vrot.lane.b32.xlu0 %v609, 120
          %v615 = vpop.permute.xlu0 %614
          %v618 = vadd.f32 %v597, %v613
          %v619 = vadd.f32 %v598, %v615
          %vm620 = vcmask 23552
          %621 = vst.msk [vmem:[#allocation4] sm:$0xff] %vm620, 0.0
          %622 = vst.msk [vmem:[#allocation4 + $0x8] sm:$0xff] %vm620, 0.0
          %vm623 = vcmask 572952
          %624 = vst.msk [vmem:[#allocation4] sm:$0xff] %vm623, 0.0
          %625 = vst.msk [vmem:[#allocation4 + $0x8] sm:$0xff] %vm623, 0.0
          %628 = vrot.lane.b32.xlu0 %v618, 3
          %v629 = vpop.permute.xlu0 %628
          %630 = vrot.lane.b32.xlu0 %v619, 3
          %v631 = vpop.permute.xlu0 %630
          %vm634 = vcmask 547864
          %635 = vst.msk [vmem:[#allocation4] sm:$0xff] %vm634, %v629
          %636 = vst.msk [vmem:[#allocation4 + $0x8] sm:$0xff] %vm634, %v631
          %v637 = vld [vmem:[#allocation4] sm:$0xff]
          %v638 = vld [vmem:[#allocation4 + $0x8] sm:$0xff]
          %v639 = vld [vmem:[%s5] sm:$0x1]
          %v640 = vlaneseq
          %v641 = vshrl.u32 %v640, 7
          %v642 = vsub.s32 0, %v641
          %v643 = vrot.slane %v639, %v642
          %v644 = vmul.f32 %v637, %v643
          %v645 = vmul.f32 %v638, %v643
          %v646 = vld [vmem:[%s5 + $0x1] sm:$0x1]
          %v647 = vlaneseq
          %v648 = vshrl.u32 %v647, 7
          %v649 = vsub.s32 0, %v648
          %v650 = vrot.slane %v646, %v649
          %652 = vrot.lane.b32.xlu0 %v650, 1
          %v653 = vpop.permute.xlu0 %652
          %v655 = vmul.f32 %v637, %v653
          %v656 = vmul.f32 %v638, %v653
          %659 = vrot.lane.b32.xlu0 %v655, 127
          %v660 = vpop.permute.xlu0 %659
          %661 = vrot.lane.b32.xlu0 %v656, 127
          %v662 = vpop.permute.xlu0 %661
          %v665 = vadd.f32 %v644, %v660
          %v666 = vadd.f32 %v645, %v662
          %v667 = vld [vmem:[%s5 + $0x2] sm:$0x1]
          %v668 = vlaneseq
          %v669 = vshrl.u32 %v668, 7
          %v670 = vsub.s32 0, %v669
          %v671 = vrot.slane %v667, %v670
          %673 = vrot.lane.b32.xlu0 %v671, 2
          %v674 = vpop.permute.xlu0 %673
          %v676 = vmul.f32 %v637, %v674
          %v677 = vmul.f32 %v638, %v674
          %680 = vrot.lane.b32.xlu0 %v676, 126
          %v681 = vpop.permute.xlu0 %680
          %682 = vrot.lane.b32.xlu0 %v677, 126
          %v683 = vpop.permute.xlu0 %682
          %v686 = vadd.f32 %v665, %v681
          %v687 = vadd.f32 %v666, %v683
          %v688 = vld [vmem:[%s5 + $0x3] sm:$0x1]
          %v689 = vlaneseq
          %v690 = vshrl.u32 %v689, 7
          %v691 = vsub.s32 0, %v690
          %v692 = vrot.slane %v688, %v691
          %694 = vrot.lane.b32.xlu0 %v692, 3
          %v695 = vpop.permute.xlu0 %694
          %v697 = vmul.f32 %v637, %v695
          %v698 = vmul.f32 %v638, %v695
          %701 = vrot.lane.b32.xlu0 %v697, 125
          %v702 = vpop.permute.xlu0 %701
          %703 = vrot.lane.b32.xlu0 %v698, 125
          %v704 = vpop.permute.xlu0 %703
          %v707 = vadd.f32 %v686, %v702
          %v708 = vadd.f32 %v687, %v704
          %v709 = vld [vmem:[%s5 + $0x4] sm:$0x1]
          %v710 = vlaneseq
          %v711 = vshrl.u32 %v710, 7
          %v712 = vsub.s32 0, %v711
          %v713 = vrot.slane %v709, %v712
          %715 = vrot.lane.b32.xlu0 %v713, 4
          %v716 = vpop.permute.xlu0 %715
          %v718 = vmul.f32 %v637, %v716
          %v719 = vmul.f32 %v638, %v716
          %722 = vrot.lane.b32.xlu0 %v718, 124
          %v723 = vpop.permute.xlu0 %722
          %724 = vrot.lane.b32.xlu0 %v719, 124
          %v725 = vpop.permute.xlu0 %724
          %v728 = vadd.f32 %v707, %v723
          %v729 = vadd.f32 %v708, %v725
          %v730 = vld [vmem:[%s5 + $0x5] sm:$0x1]
          %v731 = vlaneseq
          %v732 = vshrl.u32 %v731, 7
          %v733 = vsub.s32 0, %v732
          %v734 = vrot.slane %v730, %v733
          %736 = vrot.lane.b32.xlu0 %v734, 5
          %v737 = vpop.permute.xlu0 %736
          %v739 = vmul.f32 %v637, %v737
          %v740 = vmul.f32 %v638, %v737
          %743 = vrot.lane.b32.xlu0 %v739, 123
          %v744 = vpop.permute.xlu0 %743
          %745 = vrot.lane.b32.xlu0 %v740, 123
          %v746 = vpop.permute.xlu0 %745
          %v749 = vadd.f32 %v728, %v744
          %v750 = vadd.f32 %v729, %v746
          %v751 = vld [vmem:[%s5 + $0x6] sm:$0x1]
          %v752 = vlaneseq
          %v753 = vshrl.u32 %v752, 7
          %v754 = vsub.s32 0, %v753
          %v755 = vrot.slane %v751, %v754
          %757 = vrot.lane.b32.xlu0 %v755, 6
          %v758 = vpop.permute.xlu0 %757
          %v760 = vmul.f32 %v637, %v758
          %v761 = vmul.f32 %v638, %v758
          %764 = vrot.lane.b32.xlu0 %v760, 122
          %v765 = vpop.permute.xlu0 %764
          %766 = vrot.lane.b32.xlu0 %v761, 122
          %v767 = vpop.permute.xlu0 %766
          %v770 = vadd.f32 %v749, %v765
          %v771 = vadd.f32 %v750, %v767
          %vm772 = vcmask 523264
          %v773 = vsel %vm772, %v770, 0.0
          %v774 = vsel %vm772, %v771, 0.0
          %v775 = vadd.f32 %v773, %v774
          %v776 = vrot.slane %v775, 4
          %v777 = vadd.f32 %v775, %v776
          %v778 = vrot.slane %v777, 2
          %v779 = vadd.f32 %v777, %v778
          %v780 = vrot.slane %v779, 1
          %v781 = vadd.f32 %v779, %v780
          %vm782 = vcmask 516096
          %783 = vst.msk [vmem:[%s416] sm:$0x1] %vm782, %v781
          %v784 = vmul.f32 %v770, %v770
          %v785 = vmul.f32 %v771, %v771
          %v786 = vsel %vm772, %v784, 0.0
          %v787 = vsel %vm772, %v785, 0.0
          %v788 = vadd.f32 %v786, %v787
          %v789 = vrot.slane %v788, 4
          %v790 = vadd.f32 %v788, %v789
          %v791 = vrot.slane %v790, 2
          %v792 = vadd.f32 %v790, %v791
          %v793 = vrot.slane %v792, 1
          %v794 = vadd.f32 %v792, %v793
          %795 = vst.msk [vmem:[%s416 + $0x1] sm:$0x1] %vm782, %v794
          %v796 = vpack.c.bf16 %v771, %v770
          %v798 = vunpack.c.l.b16 %v796
          %v799 = vunpack.c.h.b16 %v796
          %v800 = vpack.c.b16 %v798, %v798
          %v801 = vpack.c.b16 %v799, %v799
          %vm804 = vcmask 519168
          %805 = vst.msk [vmem:[%s407] sm:$0xf] %vm804, %v800
          %806 = vst.msk [vmem:[%s407 + $0x4] sm:$0xf] %vm804, %v801
        $region60: #{mixed_op_forward.4} parent=51 // pred_fallthru
          _
        %s807 = sld [smem:[#allocation5 + $0x4]]
        %p808 = scmp.eq.s32.totalorder %s807, 0
        // Predicated region
        $region61: #{mixed_op_forward.4} parent=51 // pred_check
          %p809 = pneg %p808
        $region62: #{mixed_op_forward.4} parent=51 // pred_check_branch
          %811 = sbr.rel (%p809) target = $region64
        $region63: #{mixed_op_forward.4} parent=51 // pred_region
          %vm812 = vcmask 517120
          %813 = vst.msk [vmem:[%s416] sm:$0x3] %vm812, 0.0
          %vm814 = vcmask 519168
          %815 = vst.msk [vmem:[%s407] sm:$0xf] %vm814, 0
          %816 = vst.msk [vmem:[%s407 + $0x4] sm:$0xf] %vm814, 0
        $region64: #{mixed_op_forward.4} parent=51 // pred_fallthru
          _
        %s817 = sld [smem:[#allocation5 + $0x5]]
        %p818 = scmp.ne.s32.totalorder %s817, 0
        // Predicated region
        $region65: #{mixed_op_forward.4} parent=51 // pred_check
          %p819 = pneg %p818
        $region66: #{mixed_op_forward.4} parent=51 // pred_check_branch
          %821 = sbr.rel (%p819) target = $region68
        $region67: #{mixed_op_forward.4} parent=51 // pred_region
          %v822 = vld [vmem:[%s1 + $0x2] sm:$0x1]
          %v823 = vld [vmem:[%s1 + $0x3] sm:$0x1]
          %v824 = vld [vmem:[%s402] sm:$0xf]
          %v825 = vld [vmem:[%s402 + $0x4] sm:$0xf]
          %v826 = vunpack.c.l.bf16 %v824
          %v827 = vunpack.c.l.bf16 %v825
          %v828 = vlaneseq
          %v829 = vshrl.u32 %v828, 7
          %v830 = vsub.s32 0, %v829
          %v831 = vrot.slane %v822, %v830
          %v832 = vsub.f32 %v826, %v831
          %v833 = vsub.f32 %v827, %v831
          %v834 = vlaneseq
          %v835 = vshrl.u32 %v834, 7
          %v836 = vsub.s32 0, %v835
          %v837 = vrot.slane %v823, %v836
          %v838 = vmul.f32 %v832, %v837
          %v839 = vmul.f32 %v833, %v837
          %vm840 = vcmask 648192
          %841 = vst.msk [vmem:[#allocation3] sm:$0x3] %vm840, 0.0
          %842 = vst.msk [vmem:[#allocation3 + $0x12] sm:$0x3] %vm840, 0.0
          %vm843 = vcmask 64512
          %844 = vst.msk [vmem:[#allocation3 + $0x2] sm:$0xff] %vm843, 0.0
          %845 = vst.msk [vmem:[#allocation3 + $0xa] sm:$0xff] %vm843, 0.0
          %vm846 = vcmask 654912
          %847 = vst.msk [vmem:[#allocation3 + $0x2] sm:$0xff] %vm846, 0.0
          %848 = vst.msk [vmem:[#allocation3 + $0xa] sm:$0xff] %vm846, 0.0
          %v849 = vmax.f32 %v838, 0.0
          %v850 = vmax.f32 %v839, 0.0
          %853 = vrot.lane.b32.xlu0 %v849, 8
          %v854 = vpop.permute.xlu0 %853
          %855 = vrot.lane.b32.xlu0 %v850, 8
          %v856 = vpop.permute.xlu0 %855
          %vm859 = vcmask 588864
          %860 = vst.msk [vmem:[#allocation3 + $0x2] sm:$0xff] %vm859, %v854
          %861 = vst.msk [vmem:[#allocation3 + $0xa] sm:$0xff] %vm859, %v856
          %v862 = vld [vmem:[#allocation3] sm:$0xff]
          %v863 = vld [vmem:[#allocation3 + $0x8] sm:$0xff]
          %v864 = vld [vmem:[%s6] sm:$0x1]
          %v865 = vlaneseq
          %v866 = vshrl.u32 %v865, 7
          %v867 = vsub.s32 0, %v866
          %v868 = vrot.slane %v864, %v867
          %v869 = vmul.f32 %v862, %v868
          %v870 = vmul.f32 %v863, %v868
          %v871 = vld [vmem:[%s6 + $0x1] sm:$0x1]
          %v872 = vlaneseq
          %v873 = vshrl.u32 %v872, 7
          %v874 = vsub.s32 0, %v873
          %v875 = vrot.slane %v871, %v874
          %877 = vrot.lane.b32.xlu0 %v875, 4
          %v878 = vpop.permute.xlu0 %877
          %v880 = vmul.f32 %v862, %v878
          %v881 = vmul.f32 %v863, %v878
          %884 = vrot.lane.b32.xlu0 %v880, 124
          %v885 = vpop.permute.xlu0 %884
          %886 = vrot.lane.b32.xlu0 %v881, 124
          %v887 = vpop.permute.xlu0 %886
          %v890 = vadd.f32 %v869, %v885
          %v891 = vadd.f32 %v870, %v887
          %v892 = vld [vmem:[%s6 + $0x2] sm:$0x1]
          %v893 = vlaneseq
          %v894 = vshrl.u32 %v893, 7
          %v895 = vsub.s32 0, %v894
          %v896 = vrot.slane %v892, %v895
          %898 = vrot.lane.b32.xlu0 %v896, 8
          %v899 = vpop.permute.xlu0 %898
          %v901 = vmul.f32 %v862, %v899
          %v902 = vmul.f32 %v863, %v899
          %905 = vrot.lane.b32.xlu0 %v901, 120
          %v906 = vpop.permute.xlu0 %905
          %907 = vrot.lane.b32.xlu0 %v902, 120
          %v908 = vpop.permute.xlu0 %907
          %v911 = vadd.f32 %v890, %v906
          %v912 = vadd.f32 %v891, %v908
          %v913 = vld [vmem:[%s6 + $0x3] sm:$0x1]
          %v914 = vlaneseq
          %v915 = vshrl.u32 %v914, 7
          %v916 = vsub.s32 0, %v915
          %v917 = vrot.slane %v913, %v916
          %919 = vrot.lane.b32.xlu0 %v917, 12
          %v920 = vpop.permute.xlu0 %919
          %v922 = vmul.f32 %v862, %v920
          %v923 = vmul.f32 %v863, %v920
          %926 = vrot.lane.b32.xlu0 %v922, 116
          %v927 = vpop.permute.xlu0 %926
          %928 = vrot.lane.b32.xlu0 %v923, 116
          %v929 = vpop.permute.xlu0 %928
          %v932 = vadd.f32 %v911, %v927
          %v933 = vadd.f32 %v912, %v929
          %v934 = vld [vmem:[%s6 + $0x4] sm:$0x1]
          %v935 = vlaneseq
          %v936 = vshrl.u32 %v935, 7
          %v937 = vsub.s32 0, %v936
          %v938 = vrot.slane %v934, %v937
          %940 = vrot.lane.b32.xlu0 %v938, 16
          %v941 = vpop.permute.xlu0 %940
          %v943 = vmul.f32 %v862, %v941
          %v944 = vmul.f32 %v863, %v941
          %947 = vrot.lane.b32.xlu0 %v943, 112
          %v948 = vpop.permute.xlu0 %947
          %949 = vrot.lane.b32.xlu0 %v944, 112
          %v950 = vpop.permute.xlu0 %949
          %v953 = vadd.f32 %v932, %v948
          %v954 = vadd.f32 %v933, %v950
          %v955 = vld [vmem:[#allocation3 + $0x1] sm:$0xff]
          %v956 = vld [vmem:[#allocation3 + $0x9] sm:$0xff]
          %v957 = vld [vmem:[%s6 + $0x5] sm:$0x1]
          %v958 = vlaneseq
          %v959 = vshrl.u32 %v958, 7
          %v960 = vsub.s32 0, %v959
          %v961 = vrot.slane %v957, %v960
          %v962 = vmul.f32 %v955, %v961
          %v963 = vmul.f32 %v956, %v961
          %v964 = vadd.f32 %v953, %v962
          %v965 = vadd.f32 %v954, %v963
          %v966 = vld [vmem:[%s6 + $0x6] sm:$0x1]
          %v967 = vlaneseq
          %v968 = vshrl.u32 %v967, 7
          %v969 = vsub.s32 0, %v968
          %v970 = vrot.slane %v966, %v969
          %972 = vrot.lane.b32.xlu0 %v970, 4
          %v973 = vpop.permute.xlu0 %972
          %v975 = vmul.f32 %v955, %v973
          %v976 = vmul.f32 %v956, %v973
          %979 = vrot.lane.b32.xlu0 %v975, 124
          %v980 = vpop.permute.xlu0 %979
          %981 = vrot.lane.b32.xlu0 %v976, 124
          %v982 = vpop.permute.xlu0 %981
          %v985 = vadd.f32 %v964, %v980
          %v986 = vadd.f32 %v965, %v982
          %v987 = vld [vmem:[%s6 + $0x7] sm:$0x1]
          %v988 = vlaneseq
          %v989 = vshrl.u32 %v988, 7
          %v990 = vsub.s32 0, %v989
          %v991 = vrot.slane %v987, %v990
          %993 = vrot.lane.b32.xlu0 %v991, 8
          %v994 = vpop.permute.xlu0 %993
          %v996 = vmul.f32 %v955, %v994
          %v997 = vmul.f32 %v956, %v994
          %1000 = vrot.lane.b32.xlu0 %v996, 120
          %v1001 = vpop.permute.xlu0 %1000
          %1002 = vrot.lane.b32.xlu0 %v997, 120
          %v1003 = vpop.permute.xlu0 %1002
          %v1006 = vadd.f32 %v985, %v1001
          %v1007 = vadd.f32 %v986, %v1003
          %v1008 = vld [vmem:[%s6 + $0x8] sm:$0x1]
          %v1009 = vlaneseq
          %v1010 = vshrl.u32 %v1009, 7
          %v1011 = vsub.s32 0, %v1010
          %v1012 = vrot.slane %v1008, %v1011
          %1014 = vrot.lane.b32.xlu0 %v1012, 12
          %v1015 = vpop.permute.xlu0 %1014
          %v1017 = vmul.f32 %v955, %v1015
          %v1018 = vmul.f32 %v956, %v1015
          %1021 = vrot.lane.b32.xlu0 %v1017, 116
          %v1022 = vpop.permute.xlu0 %1021
          %1023 = vrot.lane.b32.xlu0 %v1018, 116
          %v1024 = vpop.permute.xlu0 %1023
          %v1027 = vadd.f32 %v1006, %v1022
          %v1028 = vadd.f32 %v1007, %v1024
          %v1029 = vld [vmem:[%s6 + $0x9] sm:$0x1]
          %v1030 = vlaneseq
          %v1031 = vshrl.u32 %v1030, 7
          %v1032 = vsub.s32 0, %v1031
          %v1033 = vrot.slane %v1029, %v1032
          %1035 = vrot.lane.b32.xlu0 %v1033, 16
          %v1036 = vpop.permute.xlu0 %1035
          %v1038 = vmul.f32 %v955, %v1036
          %v1039 = vmul.f32 %v956, %v1036
          %1042 = vrot.lane.b32.xlu0 %v1038, 112
          %v1043 = vpop.permute.xlu0 %1042
          %1044 = vrot.lane.b32.xlu0 %v1039, 112
          %v1045 = vpop.permute.xlu0 %1044
          %v1048 = vadd.f32 %v1027, %v1043
          %v1049 = vadd.f32 %v1028, %v1045
          %v1050 = vld [vmem:[#allocation3 + $0x2] sm:$0xff]
          %v1051 = vld [vmem:[#allocation3 + $0xa] sm:$0xff]
          %v1052 = vld [vmem:[%s6 + $0xa] sm:$0x1]
          %v1053 = vlaneseq
          %v1054 = vshrl.u32 %v1053, 7
          %v1055 = vsub.s32 0, %v1054
          %v1056 = vrot.slane %v1052, %v1055
          %v1057 = vmul.f32 %v1050, %v1056
          %v1058 = vmul.f32 %v1051, %v1056
          %v1059 = vadd.f32 %v1048, %v1057
          %v1060 = vadd.f32 %v1049, %v1058
          %v1061 = vld [vmem:[%s6 + $0xb] sm:$0x1]
          %v1062 = vlaneseq
          %v1063 = vshrl.u32 %v1062, 7
          %v1064 = vsub.s32 0, %v1063
          %v1065 = vrot.slane %v1061, %v1064
          %1067 = vrot.lane.b32.xlu0 %v1065, 4
          %v1068 = vpop.permute.xlu0 %1067
          %v1070 = vmul.f32 %v1050, %v1068
          %v1071 = vmul.f32 %v1051, %v1068
          %1074 = vrot.lane.b32.xlu0 %v1070, 124
          %v1075 = vpop.permute.xlu0 %1074
          %1076 = vrot.lane.b32.xlu0 %v1071, 124
          %v1077 = vpop.permute.xlu0 %1076
          %v1080 = vadd.f32 %v1059, %v1075
          %v1081 = vadd.f32 %v1060, %v1077
          %v1082 = vld [vmem:[%s6 + $0xc] sm:$0x1]
          %v1083 = vlaneseq
          %v1084 = vshrl.u32 %v1083, 7
          %v1085 = vsub.s32 0, %v1084
          %v1086 = vrot.slane %v1082, %v1085
          %1088 = vrot.lane.b32.xlu0 %v1086, 8
          %v1089 = vpop.permute.xlu0 %1088
          %v1091 = vmul.f32 %v1050, %v1089
          %v1092 = vmul.f32 %v1051, %v1089
          %1095 = vrot.lane.b32.xlu0 %v1091, 120
          %v1096 = vpop.permute.xlu0 %1095
          %1097 = vrot.lane.b32.xlu0 %v1092, 120
          %v1098 = vpop.permute.xlu0 %1097
          %v1101 = vadd.f32 %v1080, %v1096
          %v1102 = vadd.f32 %v1081, %v1098
          %v1103 = vld [vmem:[%s6 + $0xd] sm:$0x1]
          %v1104 = vlaneseq
          %v1105 = vshrl.u32 %v1104, 7
          %v1106 = vsub.s32 0, %v1105
          %v1107 = vrot.slane %v1103, %v1106
          %1109 = vrot.lane.b32.xlu0 %v1107, 12
          %v1110 = vpop.permute.xlu0 %1109
          %v1112 = vmul.f32 %v1050, %v1110
          %v1113 = vmul.f32 %v1051, %v1110
          %1116 = vrot.lane.b32.xlu0 %v1112, 116
          %v1117 = vpop.permute.xlu0 %1116
          %1118 = vrot.lane.b32.xlu0 %v1113, 116
          %v1119 = vpop.permute.xlu0 %1118
          %v1122 = vadd.f32 %v1101, %v1117
          %v1123 = vadd.f32 %v1102, %v1119
          %v1124 = vld [vmem:[%s6 + $0xe] sm:$0x1]
          %v1125 = vlaneseq
          %v1126 = vshrl.u32 %v1125, 7
          %v1127 = vsub.s32 0, %v1126
          %v1128 = vrot.slane %v1124, %v1127
          %1130 = vrot.lane.b32.xlu0 %v1128, 16
          %v1131 = vpop.permute.xlu0 %1130
          %v1133 = vmul.f32 %v1050, %v1131
          %v1134 = vmul.f32 %v1051, %v1131
          %1137 = vrot.lane.b32.xlu0 %v1133, 112
          %v1138 = vpop.permute.xlu0 %1137
          %1139 = vrot.lane.b32.xlu0 %v1134, 112
          %v1140 = vpop.permute.xlu0 %1139
          %v1143 = vadd.f32 %v1122, %v1138
          %v1144 = vadd.f32 %v1123, %v1140
          %v1145 = vld [vmem:[#allocation3 + $0x3] sm:$0xff]
          %v1146 = vld [vmem:[#allocation3 + $0xb] sm:$0xff]
          %v1147 = vld [vmem:[%s6 + $0xf] sm:$0x1]
          %v1148 = vlaneseq
          %v1149 = vshrl.u32 %v1148, 7
          %v1150 = vsub.s32 0, %v1149
          %v1151 = vrot.slane %v1147, %v1150
          %v1152 = vmul.f32 %v1145, %v1151
          %v1153 = vmul.f32 %v1146, %v1151
          %v1154 = vadd.f32 %v1143, %v1152
          %v1155 = vadd.f32 %v1144, %v1153
          %v1156 = vld [vmem:[%s6 + $0x10] sm:$0x1]
          %v1157 = vlaneseq
          %v1158 = vshrl.u32 %v1157, 7
          %v1159 = vsub.s32 0, %v1158
          %v1160 = vrot.slane %v1156, %v1159
          %1162 = vrot.lane.b32.xlu0 %v1160, 4
          %v1163 = vpop.permute.xlu0 %1162
          %v1165 = vmul.f32 %v1145, %v1163
          %v1166 = vmul.f32 %v1146, %v1163
          %1169 = vrot.lane.b32.xlu0 %v1165, 124
          %v1170 = vpop.permute.xlu0 %1169
          %1171 = vrot.lane.b32.xlu0 %v1166, 124
          %v1172 = vpop.permute.xlu0 %1171
          %v1175 = vadd.f32 %v1154, %v1170
          %v1176 = vadd.f32 %v1155, %v1172
          %v1177 = vld [vmem:[%s6 + $0x11] sm:$0x1]
          %v1178 = vlaneseq
          %v1179 = vshrl.u32 %v1178, 7
          %v1180 = vsub.s32 0, %v1179
          %v1181 = vrot.slane %v1177, %v1180
          %1183 = vrot.lane.b32.xlu0 %v1181, 8
          %v1184 = vpop.permute.xlu0 %1183
          %v1186 = vmul.f32 %v1145, %v1184
          %v1187 = vmul.f32 %v1146, %v1184
          %1190 = vrot.lane.b32.xlu0 %v1186, 120
          %v1191 = vpop.permute.xlu0 %1190
          %1192 = vrot.lane.b32.xlu0 %v1187, 120
          %v1193 = vpop.permute.xlu0 %1192
          %v1196 = vadd.f32 %v1175, %v1191
          %v1197 = vadd.f32 %v1176, %v1193
          %v1198 = vld [vmem:[%s6 + $0x12] sm:$0x1]
          %v1199 = vlaneseq
          %v1200 = vshrl.u32 %v1199, 7
          %v1201 = vsub.s32 0, %v1200
          %v1202 = vrot.slane %v1198, %v1201
          %1204 = vrot.lane.b32.xlu0 %v1202, 12
          %v1205 = vpop.permute.xlu0 %1204
          %v1207 = vmul.f32 %v1145, %v1205
          %v1208 = vmul.f32 %v1146, %v1205
          %1211 = vrot.lane.b32.xlu0 %v1207, 116
          %v1212 = vpop.permute.xlu0 %1211
          %1213 = vrot.lane.b32.xlu0 %v1208, 116
          %v1214 = vpop.permute.xlu0 %1213
          %v1217 = vadd.f32 %v1196, %v1212
          %v1218 = vadd.f32 %v1197, %v1214
          %v1219 = vld [vmem:[%s6 + $0x13] sm:$0x1]
          %v1220 = vlaneseq
          %v1221 = vshrl.u32 %v1220, 7
          %v1222 = vsub.s32 0, %v1221
          %v1223 = vrot.slane %v1219, %v1222
          %1225 = vrot.lane.b32.xlu0 %v1223, 16
          %v1226 = vpop.permute.xlu0 %1225
          %v1228 = vmul.f32 %v1145, %v1226
          %v1229 = vmul.f32 %v1146, %v1226
          %1232 = vrot.lane.b32.xlu0 %v1228, 112
          %v1233 = vpop.permute.xlu0 %1232
          %1234 = vrot.lane.b32.xlu0 %v1229, 112
          %v1235 = vpop.permute.xlu0 %1234
          %v1238 = vadd.f32 %v1217, %v1233
          %v1239 = vadd.f32 %v1218, %v1235
          %v1240 = vld [vmem:[#allocation3 + $0x4] sm:$0xff]
          %v1241 = vld [vmem:[#allocation3 + $0xc] sm:$0xff]
          %v1242 = vld [vmem:[%s6 + $0x14] sm:$0x1]
          %v1243 = vlaneseq
          %v1244 = vshrl.u32 %v1243, 7
          %v1245 = vsub.s32 0, %v1244
          %v1246 = vrot.slane %v1242, %v1245
          %v1247 = vmul.f32 %v1240, %v1246
          %v1248 = vmul.f32 %v1241, %v1246
          %v1249 = vadd.f32 %v1238, %v1247
          %v1250 = vadd.f32 %v1239, %v1248
          %v1251 = vld [vmem:[%s6 + $0x15] sm:$0x1]
          %v1252 = vlaneseq
          %v1253 = vshrl.u32 %v1252, 7
          %v1254 = vsub.s32 0, %v1253
          %v1255 = vrot.slane %v1251, %v1254
          %1257 = vrot.lane.b32.xlu0 %v1255, 4
          %v1258 = vpop.permute.xlu0 %1257
          %v1260 = vmul.f32 %v1240, %v1258
          %v1261 = vmul.f32 %v1241, %v1258
          %1264 = vrot.lane.b32.xlu0 %v1260, 124
          %v1265 = vpop.permute.xlu0 %1264
          %1266 = vrot.lane.b32.xlu0 %v1261, 124
          %v1267 = vpop.permute.xlu0 %1266
          %v1270 = vadd.f32 %v1249, %v1265
          %v1271 = vadd.f32 %v1250, %v1267
          %v1272 = vld [vmem:[%s6 + $0x16] sm:$0x1]
          %v1273 = vlaneseq
          %v1274 = vshrl.u32 %v1273, 7
          %v1275 = vsub.s32 0, %v1274
          %v1276 = vrot.slane %v1272, %v1275
          %1278 = vrot.lane.b32.xlu0 %v1276, 8
          %v1279 = vpop.permute.xlu0 %1278
          %v1281 = vmul.f32 %v1240, %v1279
          %v1282 = vmul.f32 %v1241, %v1279
          %1285 = vrot.lane.b32.xlu0 %v1281, 120
          %v1286 = vpop.permute.xlu0 %1285
          %1287 = vrot.lane.b32.xlu0 %v1282, 120
          %v1288 = vpop.permute.xlu0 %1287
          %v1291 = vadd.f32 %v1270, %v1286
          %v1292 = vadd.f32 %v1271, %v1288
          %v1293 = vld [vmem:[%s6 + $0x17] sm:$0x1]
          %v1294 = vlaneseq
          %v1295 = vshrl.u32 %v1294, 7
          %v1296 = vsub.s32 0, %v1295
          %v1297 = vrot.slane %v1293, %v1296
          %1299 = vrot.lane.b32.xlu0 %v1297, 12
          %v1300 = vpop.permute.xlu0 %1299
          %v1302 = vmul.f32 %v1240, %v1300
          %v1303 = vmul.f32 %v1241, %v1300
          %1306 = vrot.lane.b32.xlu0 %v1302, 116
          %v1307 = vpop.permute.xlu0 %1306
          %1308 = vrot.lane.b32.xlu0 %v1303, 116
          %v1309 = vpop.permute.xlu0 %1308
          %v1312 = vadd.f32 %v1291, %v1307
          %v1313 = vadd.f32 %v1292, %v1309
          %v1314 = vld [vmem:[%s6 + $0x18] sm:$0x1]
          %v1315 = vlaneseq
          %v1316 = vshrl.u32 %v1315, 7
          %v1317 = vsub.s32 0, %v1316
          %v1318 = vrot.slane %v1314, %v1317
          %1320 = vrot.lane.b32.xlu0 %v1318, 16
          %v1321 = vpop.permute.xlu0 %1320
          %v1323 = vmul.f32 %v1240, %v1321
          %v1324 = vmul.f32 %v1241, %v1321
          %1327 = vrot.lane.b32.xlu0 %v1323, 112
          %v1328 = vpop.permute.xlu0 %1327
          %1329 = vrot.lane.b32.xlu0 %v1324, 112
          %v1330 = vpop.permute.xlu0 %1329
          %v1333 = vadd.f32 %v1312, %v1328
          %v1334 = vadd.f32 %v1313, %v1330
          %vm1335 = vcmask 23552
          %1336 = vst.msk [vmem:[#allocation4] sm:$0xff] %vm1335, 0.0
          %1337 = vst.msk [vmem:[#allocation4 + $0x8] sm:$0xff] %vm1335, 0.0
          %vm1338 = vcmask 572952
          %1339 = vst.msk [vmem:[#allocation4] sm:$0xff] %vm1338, 0.0
          %1340 = vst.msk [vmem:[#allocation4 + $0x8] sm:$0xff] %vm1338, 0.0
          %1343 = vrot.lane.b32.xlu0 %v1333, 3
          %v1344 = vpop.permute.xlu0 %1343
          %1345 = vrot.lane.b32.xlu0 %v1334, 3
          %v1346 = vpop.permute.xlu0 %1345
          %vm1349 = vcmask 547864
          %1350 = vst.msk [vmem:[#allocation4] sm:$0xff] %vm1349, %v1344
          %1351 = vst.msk [vmem:[#allocation4 + $0x8] sm:$0xff] %vm1349, %v1346
          %v1352 = vld [vmem:[#allocation4] sm:$0xff]
          %v1353 = vld [vmem:[#allocation4 + $0x8] sm:$0xff]
          %v1354 = vld [vmem:[%s7] sm:$0x1]
          %v1355 = vlaneseq
          %v1356 = vshrl.u32 %v1355, 7
          %v1357 = vsub.s32 0, %v1356
          %v1358 = vrot.slane %v1354, %v1357
          %v1359 = vmul.f32 %v1352, %v1358
          %v1360 = vmul.f32 %v1353, %v1358
          %v1361 = vld [vmem:[%s7 + $0x1] sm:$0x1]
          %v1362 = vlaneseq
          %v1363 = vshrl.u32 %v1362, 7
          %v1364 = vsub.s32 0, %v1363
          %v1365 = vrot.slane %v1361, %v1364
          %1367 = vrot.lane.b32.xlu0 %v1365, 1
          %v1368 = vpop.permute.xlu0 %1367
          %v1370 = vmul.f32 %v1352, %v1368
          %v1371 = vmul.f32 %v1353, %v1368
          %1374 = vrot.lane.b32.xlu0 %v1370, 127
          %v1375 = vpop.permute.xlu0 %1374
          %1376 = vrot.lane.b32.xlu0 %v1371, 127
          %v1377 = vpop.permute.xlu0 %1376
          %v1380 = vadd.f32 %v1359, %v1375
          %v1381 = vadd.f32 %v1360, %v1377
          %v1382 = vld [vmem:[%s7 + $0x2] sm:$0x1]
          %v1383 = vlaneseq
          %v1384 = vshrl.u32 %v1383, 7
          %v1385 = vsub.s32 0, %v1384
          %v1386 = vrot.slane %v1382, %v1385
          %1388 = vrot.lane.b32.xlu0 %v1386, 2
          %v1389 = vpop.permute.xlu0 %1388
          %v1391 = vmul.f32 %v1352, %v1389
          %v1392 = vmul.f32 %v1353, %v1389
          %1395 = vrot.lane.b32.xlu0 %v1391, 126
          %v1396 = vpop.permute.xlu0 %1395
          %1397 = vrot.lane.b32.xlu0 %v1392, 126
          %v1398 = vpop.permute.xlu0 %1397
          %v1401 = vadd.f32 %v1380, %v1396
          %v1402 = vadd.f32 %v1381, %v1398
          %v1403 = vld [vmem:[%s7 + $0x3] sm:$0x1]
          %v1404 = vlaneseq
          %v1405 = vshrl.u32 %v1404, 7
          %v1406 = vsub.s32 0, %v1405
          %v1407 = vrot.slane %v1403, %v1406
          %1409 = vrot.lane.b32.xlu0 %v1407, 3
          %v1410 = vpop.permute.xlu0 %1409
          %v1412 = vmul.f32 %v1352, %v1410
          %v1413 = vmul.f32 %v1353, %v1410
          %1416 = vrot.lane.b32.xlu0 %v1412, 125
          %v1417 = vpop.permute.xlu0 %1416
          %1418 = vrot.lane.b32.xlu0 %v1413, 125
          %v1419 = vpop.permute.xlu0 %1418
          %v1422 = vadd.f32 %v1401, %v1417
          %v1423 = vadd.f32 %v1402, %v1419
          %v1424 = vld [vmem:[%s7 + $0x4] sm:$0x1]
          %v1425 = vlaneseq
          %v1426 = vshrl.u32 %v1425, 7
          %v1427 = vsub.s32 0, %v1426
          %v1428 = vrot.slane %v1424, %v1427
          %1430 = vrot.lane.b32.xlu0 %v1428, 4
          %v1431 = vpop.permute.xlu0 %1430
          %v1433 = vmul.f32 %v1352, %v1431
          %v1434 = vmul.f32 %v1353, %v1431
          %1437 = vrot.lane.b32.xlu0 %v1433, 124
          %v1438 = vpop.permute.xlu0 %1437
          %1439 = vrot.lane.b32.xlu0 %v1434, 124
          %v1440 = vpop.permute.xlu0 %1439
          %v1443 = vadd.f32 %v1422, %v1438
          %v1444 = vadd.f32 %v1423, %v1440
          %v1445 = vld [vmem:[%s7 + $0x5] sm:$0x1]
          %v1446 = vlaneseq
          %v1447 = vshrl.u32 %v1446, 7
          %v1448 = vsub.s32 0, %v1447
          %v1449 = vrot.slane %v1445, %v1448
          %1451 = vrot.lane.b32.xlu0 %v1449, 5
          %v1452 = vpop.permute.xlu0 %1451
          %v1454 = vmul.f32 %v1352, %v1452
          %v1455 = vmul.f32 %v1353, %v1452
          %1458 = vrot.lane.b32.xlu0 %v1454, 123
          %v1459 = vpop.permute.xlu0 %1458
          %1460 = vrot.lane.b32.xlu0 %v1455, 123
          %v1461 = vpop.permute.xlu0 %1460
          %v1464 = vadd.f32 %v1443, %v1459
          %v1465 = vadd.f32 %v1444, %v1461
          %v1466 = vld [vmem:[%s7 + $0x6] sm:$0x1]
          %v1467 = vlaneseq
          %v1468 = vshrl.u32 %v1467, 7
          %v1469 = vsub.s32 0, %v1468
          %v1470 = vrot.slane %v1466, %v1469
          %1472 = vrot.lane.b32.xlu0 %v1470, 6
          %v1473 = vpop.permute.xlu0 %1472
          %v1475 = vmul.f32 %v1352, %v1473
          %v1476 = vmul.f32 %v1353, %v1473
          %1479 = vrot.lane.b32.xlu0 %v1475, 122
          %v1480 = vpop.permute.xlu0 %1479
          %1481 = vrot.lane.b32.xlu0 %v1476, 122
          %v1482 = vpop.permute.xlu0 %1481
          %v1485 = vadd.f32 %v1464, %v1480
          %v1486 = vadd.f32 %v1465, %v1482
          %vm1487 = vcmask 523264
          %v1488 = vsel %vm1487, %v1485, 0.0
          %v1489 = vsel %vm1487, %v1486, 0.0
          %v1490 = vadd.f32 %v1488, %v1489
          %v1491 = vrot.slane %v1490, 4
          %v1492 = vadd.f32 %v1490, %v1491
          %v1493 = vrot.slane %v1492, 2
          %v1494 = vadd.f32 %v1492, %v1493
          %v1495 = vrot.slane %v1494, 1
          %v1496 = vadd.f32 %v1494, %v1495
          %vm1497 = vcmask 516096
          %1498 = vst.msk [vmem:[%s416 + $0x2] sm:$0x1] %vm1497, %v1496
          %v1499 = vmul.f32 %v1485, %v1485
          %v1500 = vmul.f32 %v1486, %v1486
          %v1501 = vsel %vm1487, %v1499, 0.0
          %v1502 = vsel %vm1487, %v1500, 0.0
          %v1503 = vadd.f32 %v1501, %v1502
          %v1504 = vrot.slane %v1503, 4
          %v1505 = vadd.f32 %v1503, %v1504
          %v1506 = vrot.slane %v1505, 2
          %v1507 = vadd.f32 %v1505, %v1506
          %v1508 = vrot.slane %v1507, 1
          %v1509 = vadd.f32 %v1507, %v1508
          %1510 = vst.msk [vmem:[%s416 + $0x3] sm:$0x1] %vm1497, %v1509
          %v1511 = vpack.c.bf16 %v1486, %v1485
          %v1513 = vunpack.c.l.b16 %v1511
          %v1514 = vunpack.c.h.b16 %v1511
          %v1515 = vpack.c.b16 %v1513, %v1513
          %v1516 = vpack.c.b16 %v1514, %v1514
          %vm1519 = vcmask 519168
          %1520 = vst.msk [vmem:[%s412] sm:$0xf] %vm1519, %v1515
          %1521 = vst.msk [vmem:[%s412 + $0x4] sm:$0xf] %vm1519, %v1516
        $region68: #{mixed_op_forward.4} parent=51 // pred_fallthru
          _
        %s1522 = sld [smem:[#allocation5 + $0x5]]
        %p1523 = scmp.eq.s32.totalorder %s1522, 0
        // Predicated region
        $region69: #{mixed_op_forward.4} parent=51 // pred_check
          %p1524 = pneg %p1523
        $region70: #{mixed_op_forward.4} parent=51 // pred_check_branch
          %1526 = sbr.rel (%p1524) target = $region72
        $region71: #{mixed_op_forward.4} parent=51 // pred_region
          %vm1527 = vcmask 517120
          %1528 = vst.msk [vmem:[%s416 + $0x2] sm:$0x3] %vm1527, 0.0
          %vm1529 = vcmask 519168
          %1530 = vst.msk [vmem:[%s412] sm:$0xf] %vm1529, 0
          %1531 = vst.msk [vmem:[%s412 + $0x4] sm:$0xf] %vm1529, 0
        $region72: #{mixed_op_forward.4} parent=51 // pred_fallthru
          _
        %p1532 = scmp.lt.s32.totalorder %s23, 1
        %s1533 = scalar_select %p1532, %s23, 1
        %s1534 = smul.addr %s1533, 2
        %s1535 = smul.addr %s1534, 4
        %s1536 = scalar_lea.vmem %s8, %s1535
        %p1537 = scmp.lt.s32.totalorder %s23, 1
        %s1538 = scalar_select %p1537, %s23, 1
        %s1539 = smul.addr %s1538, 2
        %s1540 = smul.addr %s1539, 4
        %s1541 = scalar_lea.vmem %s9, %s1540
        %p1542 = scmp.lt.s32.totalorder %s23, 1
        %s1543 = scalar_select %p1542, %s23, 1
        %s1544 = smul.addr %s1543, 4
        %s1545 = scalar_lea.vmem %s10, %s1544
        // Predicated region
        $region73: #{mixed_op_forward.4} parent=51 // pred_check
          %p1546 = pneg %p219
        $region74: #{mixed_op_forward.4} parent=51 // pred_check_branch
          %1548 = sbr.rel (%p1546) target = $region76
        $region75: #{mixed_op_forward.4} parent=51 // pred_region
          _
        $region76: #{mixed_op_forward.4} parent=51 // pred_fallthru
          _
        // Predicated region
        $region77: #{mixed_op_forward.4} parent=51 // pred_check
          %p1549 = pneg %p245
        $region78: #{mixed_op_forward.4} parent=51 // pred_check_branch
          %1551 = sbr.rel (%p1549) target = $region80
        $region79: #{mixed_op_forward.4} parent=51 // pred_region
          _
        $region80: #{mixed_op_forward.4} parent=51 // pred_fallthru
          _
        // Predicated region
        $region81: #{mixed_op_forward.4} parent=51 // pred_check
          %p1552 = pneg %p271
        $region82: #{mixed_op_forward.4} parent=51 // pred_check_branch
          %1554 = sbr.rel (%p1552) target = $region84
        $region83: #{mixed_op_forward.4} parent=51 // pred_region
          _
        $region84: #{mixed_op_forward.4} parent=51 // pred_fallthru
          _
      $region52: #{mixed_op_forward.4} parent=5 // pred_fallthru
        _
      %p1555 = scmp.le.s32.totalorder 2, %s18
      // Predicated region
      $region85: #{mixed_op_forward.4} parent=5 // pred_check
        %p1556 = pneg %p1555
      $region86: #{mixed_op_forward.4} parent=5 // pred_check_branch
        %1558 = sbr.rel (%p1556) target = $region88
      $region87: #{mixed_op_forward.4} parent=5 // pred_region
        %s1559 = ssub.s32 %s18, 2
        // Predicated region
        $region89: #{mixed_op_forward.4} parent=87 // pred_check
          %p1560 = pneg %p225
        $region90: #{mixed_op_forward.4} parent=87 // pred_check_branch
          %1562 = sbr.rel (%p1560) target = $region92
        $region91: #{mixed_op_forward.4} parent=87 // pred_region
          %p1563 = scmp.lt.s32.totalorder %s24, 1
          %s1564 = scalar_select %p1563, %s24, 1
          %s1565 = smul.addr %s1564, 2
          %s1566 = smul.addr %s1565, 4
          %s1567 = scalar_lea.vmem %s8, %s1566
        $region92: #{mixed_op_forward.4} parent=87 // pred_fallthru
          _
        // Predicated region
        $region93: #{mixed_op_forward.4} parent=87 // pred_check
          %p1568 = pneg %p251
        $region94: #{mixed_op_forward.4} parent=87 // pred_check_branch
          %1570 = sbr.rel (%p1568) target = $region96
        $region95: #{mixed_op_forward.4} parent=87 // pred_region
          %p1571 = scmp.lt.s32.totalorder %s24, 1
          %s1572 = scalar_select %p1571, %s24, 1
          %s1573 = smul.addr %s1572, 2
          %s1574 = smul.addr %s1573, 4
          %s1575 = scalar_lea.vmem %s9, %s1574
        $region96: #{mixed_op_forward.4} parent=87 // pred_fallthru
          _
        // Predicated region
        $region97: #{mixed_op_forward.4} parent=87 // pred_check
          %p1576 = pneg %p277
        $region98: #{mixed_op_forward.4} parent=87 // pred_check_branch
          %1578 = sbr.rel (%p1576) target = $region100
        $region99: #{mixed_op_forward.4} parent=87 // pred_region
          %p1579 = scmp.lt.s32.totalorder %s24, 1
          %s1580 = scalar_select %p1579, %s24, 1
          %s1581 = smul.addr %s1580, 4
          %s1582 = scalar_lea.vmem %s10, %s1581
        $region100: #{mixed_op_forward.4} parent=87 // pred_fallthru
          _
      $region88: #{mixed_op_forward.4} parent=5 // pred_fallthru
        _
    $region6: #{mixed_op_forward.4} parent=1 // loop_footer
      %s22 = sadd.s32 1, %s18
    $region7: #{mixed_op_forward.4} parent=1 // loop_footer_branch
      %17 = sbr.rel target = $region3
    $region8: #{mixed_op_forward.4} parent=1 // loop_exit
      _
    %1583 = vsyncpa [#allocation6], 1
    %s1584 = scalar_lea.sflag [#allocation6], 1
    %1585 = vsyncpa %s1584, 1

// kernel: mixed_op_forward.3
$region0: #{mixed_op_forward.3}
  #allocation0 [shape = 'u32[]', space=smem, size = 0x4, offset = 0x4, fixed_abs, tag = 'smem constant byte address 0x4 - core index']
  #allocation1 [shape = 'u32[144,128]{1,0:T(1,128)}', space=vmem, size = 0x12000, scoped, tag = 'internal scratch']
  #allocation2 [shape = 'f32[24,96]{1,0:T(8,128)}', space=vmem, size = 0x3000, scoped, tag = 'scratch operand']
  #allocation3 [shape = 'f32[18,72]{1,0:T(8,128)}', space=vmem, size = 0x3000, scoped, tag = 'scratch operand']
  #allocation4 [shape = 'f32[18,72]{1,0:T(8,128)}', space=vmem, size = 0x3000, scoped, tag = 'scratch operand']
  #allocation5 [shape = 'f32[16,70]{1,0:T(8,128)}', space=vmem, size = 0x2000, scoped, tag = 'scratch operand']
  %s0 = inlined_call_operand.vmem [shape: s32[8], index: 0, kind: input, shape index: {}]
  %s1 = inlined_call_operand.vmem [shape: f32[2,16,64], index: 1, kind: input, shape index: {}]
  %s2 = inlined_call_operand.vmem [shape: f32[16,64], index: 2, kind: input, shape index: {}]
  %s3 = inlined_call_operand.vmem [shape: f32[9,64], index: 3, kind: input, shape index: {}]
  %s4 = inlined_call_operand.vmem [shape: f32[7,64], index: 4, kind: input, shape index: {}]
  %s5 = inlined_call_operand.vmem [shape: f32[25,64], index: 5, kind: input, shape index: {}]
  %s6 = inlined_call_operand.vmem [shape: f32[7,64], index: 6, kind: input, shape index: {}]
  %s7 = inlined_call_operand.vmem [shape: f32[9,64], index: 7, kind: input, shape index: {}]
  %s8 = inlined_call_operand.vmem [shape: f32[7,64], index: 8, kind: input, shape index: {}]
  %s9 = inlined_call_operand.vmem [shape: f32[25,64], index: 9, kind: input, shape index: {}]
  %s10 = inlined_call_operand.vmem [shape: f32[7,64], index: 10, kind: input, shape index: {}]
  %s11 = inlined_call_operand.vmem [shape: bf16[2,16,64], index: 11, kind: output, shape index: {0}]
  %s12 = inlined_call_operand.vmem [shape: bf16[2,16,64], index: 12, kind: output, shape index: {1}]
  %s13 = inlined_call_operand.vmem [shape: bf16[2,16,64], index: 13, kind: output, shape index: {2}]
  %s14 = inlined_call_operand.vmem [shape: bf16[2,16,64], index: 14, kind: output, shape index: {3}]
  %s15 = inlined_call_operand.vmem [shape: bf16[2,16,64], index: 15, kind: output, shape index: {4}]
  %s16 = inlined_call_operand.vmem [shape: bf16[2,16,64], index: 16, kind: output, shape index: {5}]
  %s17 = inlined_call_operand.vmem [shape: f32[2,12,64], index: 17, kind: output, shape index: {6}]
  %18 = xla_tuple %s11, %s12, %s13, %s14, %s15, %s16, %s17
  %s19 = sld [smem:[#allocation0]]
  $region181: #{mixed_op_forward.3} parent=0
    _
  %s21 = ssub.s32 1, %s19
  %s22 = scalar_select 0, %s21, %s19
  $region1: #{mixed_op_forward.3} parent=0
    #allocation6 [shape = 'u8[512]{0}', space=smem, size = 0x200, scoped, tag = 'input window, operand 0, single buffered']
    #allocation7 [shape = 's32[2]{0}', space=sflag, size = 0x8, scoped, tag = 'scoped memory for mixed_op_forward.3']
    %23 = vsyncpa [#allocation7], 0
    loop: start=0, step=1, limit=4
    $region2: #{mixed_op_forward.3} parent=1 // loop_pre_header
      _
    $region3: #{mixed_op_forward.3} parent=1 // loop_header
      %s25 = sphi 0, %s29
      %p26 = scmp.ge.s32.totalorder %s25, 4
      %s33 = sphi 0, %s33
      %s35 = sphi 0, %s33
      %s36 = sphi 0, %s35
      %s50 = sphi 0, %s36
      %s56 = sphi 0, %s58
      %s59 = sphi 0, %s56
      %s60 = sphi 0, %s59
      %s76 = sphi 0, %s60
      %s80 = sphi 0, %s80
      %s82 = sphi 0, %s80
      %s83 = sphi 0, %s82
      %s97 = sphi 0, %s83
      %s101 = sphi 0, %s101
      %s103 = sphi 0, %s101
      %s104 = sphi 0, %s103
      %s118 = sphi 0, %s104
      %s122 = sphi 0, %s122
      %s124 = sphi 0, %s122
      %s125 = sphi 0, %s124
      %s139 = sphi 0, %s125
      %s143 = sphi 0, %s143
      %s145 = sphi 0, %s143
      %s146 = sphi 0, %s145
      %s160 = sphi 0, %s146
      %s164 = sphi 0, %s164
      %s166 = sphi 0, %s164
      %s167 = sphi 0, %s166
      %s181 = sphi 0, %s167
      %s185 = sphi 0, %s185
      %s187 = sphi 0, %s185
      %s188 = sphi 0, %s187
      %s202 = sphi 0, %s188
      %s206 = sphi 0, %s206
      %s208 = sphi 0, %s206
      %s209 = sphi 0, %s208
      %s223 = sphi 0, %s209
      %s227 = sphi 0, %s227
      %s229 = sphi 0, %s227
      %s230 = sphi 0, %s229
      %s244 = sphi 0, %s230
      %s248 = sphi 0, %s248
      %s250 = sphi 0, %s248
      %s251 = sphi 0, %s250
      %s265 = sphi 0, %s251
      %s271 = sphi 0, %s273
      %s274 = sphi 0, %s271
      %s275 = sphi 0, %s274
      %s291 = sphi 0, %s275
      %s297 = sphi 0, %s299
      %s300 = sphi 0, %s297
      %s301 = sphi 0, %s300
      %s317 = sphi 0, %s301
      %s323 = sphi 0, %s325
      %s326 = sphi 0, %s323
      %s327 = sphi 0, %s326
      %s343 = sphi 0, %s327
      %s349 = sphi 0, %s351
      %s352 = sphi 0, %s349
      %s353 = sphi 0, %s352
      %s369 = sphi 0, %s353
      %s375 = sphi 0, %s377
      %s378 = sphi 0, %s375
      %s379 = sphi 0, %s378
      %s395 = sphi 0, %s379
      %s401 = sphi 0, %s403
      %s404 = sphi 0, %s401
      %s405 = sphi 0, %s404
      %s421 = sphi 0, %s405
      %s427 = sphi 0, %s429
      %s430 = sphi 0, %s427
      %s431 = sphi 0, %s430
      %s447 = sphi 0, %s431
    $region4: #{mixed_op_forward.3} parent=1 // loop_header_branch
      %28 = sbr.rel (%p26) target = $region8
    $region5: #{mixed_op_forward.3} parent=1 // loop_body
      %s30 = ssub.s32 %s25, 1
      %s31 = ssub.s32 %s25, 2
      %s32 = sadd.s32 %s25, 1
      %s34 = sadd.s32 %s33, 1
      %p37 = scmp.eq.s32.totalorder %s25, 1
      %p38 = scmp.ne.s32.totalorder %s33, %s35
      %p39 = scmp.eq.s32.totalorder %s25, 0
      %p40 = por %p38, %p39
      %p41 = scmp.ne.s32.totalorder %s33, %s35
      %p42 = scmp.eq.s32.totalorder %s30, 1
      %p43 = por %p41, %p42
      %p44 = scmp.ne.s32.totalorder %s35, %s36
      %p45 = scmp.eq.s32.totalorder %s30, 0
      %p46 = por %p44, %p45
      %p47 = scmp.ne.s32.totalorder %s35, %s36
      %p48 = scmp.eq.s32.totalorder %s31, 1
      %p49 = por %p47, %p48
      %p51 = scmp.ne.s32.totalorder %s36, %s50
      %p52 = scmp.eq.s32.totalorder %s31, 0
      %p53 = por %p51, %p52
      %s54 = ssub.s32 %s25, %s32
      %p55 = scmp.eq.s32.totalorder %s54, 0
      %s57 = sadd.s32 %s56, 1
      %s58 = scalar_select %p55, %s56, %s57
      %p61 = pneg %p55
      %p62 = scmp.eq.s32.totalorder %s25, 1
      %p63 = por %p61, %p62
      %p64 = scmp.ne.s32.totalorder %s56, %s59
      %p65 = scmp.eq.s32.totalorder %s25, 0
      %p66 = por %p64, %p65
      %p67 = scmp.ne.s32.totalorder %s56, %s59
      %p68 = scmp.eq.s32.totalorder %s30, 1
      %p69 = por %p67, %p68
      %p70 = scmp.ne.s32.totalorder %s59, %s60
      %p71 = scmp.eq.s32.totalorder %s30, 0
      %p72 = por %p70, %p71
      %p73 = scmp.ne.s32.totalorder %s59, %s60
      %p74 = scmp.eq.s32.totalorder %s31, 1
      %p75 = por %p73, %p74
      %p77 = scmp.ne.s32.totalorder %s60, %s76
      %p78 = scmp.eq.s32.totalorder %s31, 0
      %p79 = por %p77, %p78
      %s81 = sadd.s32 %s80, 1
      %p84 = scmp.eq.s32.totalorder %s25, 1
      %p85 = scmp.ne.s32.totalorder %s80, %s82
      %p86 = scmp.eq.s32.totalorder %s25, 0
      %p87 = por %p85, %p86
      %p88 = scmp.ne.s32.totalorder %s80, %s82
      %p89 = scmp.eq.s32.totalorder %s30, 1
      %p90 = por %p88, %p89
      %p91 = scmp.ne.s32.totalorder %s82, %s83
      %p92 = scmp.eq.s32.totalorder %s30, 0
      %p93 = por %p91, %p92
      %p94 = scmp.ne.s32.totalorder %s82, %s83
      %p95 = scmp.eq.s32.totalorder %s31, 1
      %p96 = por %p94, %p95
      %p98 = scmp.ne.s32.totalorder %s83, %s97
      %p99 = scmp.eq.s32.totalorder %s31, 0
      %p100 = por %p98, %p99
      %s102 = sadd.s32 %s101, 1
      %p105 = scmp.eq.s32.totalorder %s25, 1
      %p106 = scmp.ne.s32.totalorder %s101, %s103
      %p107 = scmp.eq.s32.totalorder %s25, 0
      %p108 = por %p106, %p107
      %p109 = scmp.ne.s32.totalorder %s101, %s103
      %p110 = scmp.eq.s32.totalorder %s30, 1
      %p111 = por %p109, %p110
      %p112 = scmp.ne.s32.totalorder %s103, %s104
      %p113 = scmp.eq.s32.totalorder %s30, 0
      %p114 = por %p112, %p113
      %p115 = scmp.ne.s32.totalorder %s103, %s104
      %p116 = scmp.eq.s32.totalorder %s31, 1
      %p117 = por %p115, %p116
      %p119 = scmp.ne.s32.totalorder %s104, %s118
      %p120 = scmp.eq.s32.totalorder %s31, 0
      %p121 = por %p119, %p120
      %s123 = sadd.s32 %s122, 1
      %p126 = scmp.eq.s32.totalorder %s25, 1
      %p127 = scmp.ne.s32.totalorder %s122, %s124
      %p128 = scmp.eq.s32.totalorder %s25, 0
      %p129 = por %p127, %p128
      %p130 = scmp.ne.s32.totalorder %s122, %s124
      %p131 = scmp.eq.s32.totalorder %s30, 1
      %p132 = por %p130, %p131
      %p133 = scmp.ne.s32.totalorder %s124, %s125
      %p134 = scmp.eq.s32.totalorder %s30, 0
      %p135 = por %p133, %p134
      %p136 = scmp.ne.s32.totalorder %s124, %s125
      %p137 = scmp.eq.s32.totalorder %s31, 1
      %p138 = por %p136, %p137
      %p140 = scmp.ne.s32.totalorder %s125, %s139
      %p141 = scmp.eq.s32.totalorder %s31, 0
      %p142 = por %p140, %p141
      %s144 = sadd.s32 %s143, 1
      %p147 = scmp.eq.s32.totalorder %s25, 1
      %p148 = scmp.ne.s32.totalorder %s143, %s145
      %p149 = scmp.eq.s32.totalorder %s25, 0
      %p150 = por %p148, %p149
      %p151 = scmp.ne.s32.totalorder %s143, %s145
      %p152 = scmp.eq.s32.totalorder %s30, 1
      %p153 = por %p151, %p152
      %p154 = scmp.ne.s32.totalorder %s145, %s146
      %p155 = scmp.eq.s32.totalorder %s30, 0
      %p156 = por %p154, %p155
      %p157 = scmp.ne.s32.totalorder %s145, %s146
      %p158 = scmp.eq.s32.totalorder %s31, 1
      %p159 = por %p157, %p158
      %p161 = scmp.ne.s32.totalorder %s146, %s160
      %p162 = scmp.eq.s32.totalorder %s31, 0
      %p163 = por %p161, %p162
      %s165 = sadd.s32 %s164, 1
      %p168 = scmp.eq.s32.totalorder %s25, 1
      %p169 = scmp.ne.s32.totalorder %s164, %s166
      %p170 = scmp.eq.s32.totalorder %s25, 0
      %p171 = por %p169, %p170
      %p172 = scmp.ne.s32.totalorder %s164, %s166
      %p173 = scmp.eq.s32.totalorder %s30, 1
      %p174 = por %p172, %p173
      %p175 = scmp.ne.s32.totalorder %s166, %s167
      %p176 = scmp.eq.s32.totalorder %s30, 0
      %p177 = por %p175, %p176
      %p178 = scmp.ne.s32.totalorder %s166, %s167
      %p179 = scmp.eq.s32.totalorder %s31, 1
      %p180 = por %p178, %p179
      %p182 = scmp.ne.s32.totalorder %s167, %s181
      %p183 = scmp.eq.s32.totalorder %s31, 0
      %p184 = por %p182, %p183
      %s186 = sadd.s32 %s185, 1
      %p189 = scmp.eq.s32.totalorder %s25, 1
      %p190 = scmp.ne.s32.totalorder %s185, %s187
      %p191 = scmp.eq.s32.totalorder %s25, 0
      %p192 = por %p190, %p191
      %p193 = scmp.ne.s32.totalorder %s185, %s187
      %p194 = scmp.eq.s32.totalorder %s30, 1
      %p195 = por %p193, %p194
      %p196 = scmp.ne.s32.totalorder %s187, %s188
      %p197 = scmp.eq.s32.totalorder %s30, 0
      %p198 = por %p196, %p197
      %p199 = scmp.ne.s32.totalorder %s187, %s188
      %p200 = scmp.eq.s32.totalorder %s31, 1
      %p201 = por %p199, %p200
      %p203 = scmp.ne.s32.totalorder %s188, %s202
      %p204 = scmp.eq.s32.totalorder %s31, 0
      %p205 = por %p203, %p204
      %s207 = sadd.s32 %s206, 1
      %p210 = scmp.eq.s32.totalorder %s25, 1
      %p211 = scmp.ne.s32.totalorder %s206, %s208
      %p212 = scmp.eq.s32.totalorder %s25, 0
      %p213 = por %p211, %p212
      %p214 = scmp.ne.s32.totalorder %s206, %s208
      %p215 = scmp.eq.s32.totalorder %s30, 1
      %p216 = por %p214, %p215
      %p217 = scmp.ne.s32.totalorder %s208, %s209
      %p218 = scmp.eq.s32.totalorder %s30, 0
      %p219 = por %p217, %p218
      %p220 = scmp.ne.s32.totalorder %s208, %s209
      %p221 = scmp.eq.s32.totalorder %s31, 1
      %p222 = por %p220, %p221
      %p224 = scmp.ne.s32.totalorder %s209, %s223
      %p225 = scmp.eq.s32.totalorder %s31, 0
      %p226 = por %p224, %p225
      %s228 = sadd.s32 %s227, 1
      %p231 = scmp.eq.s32.totalorder %s25, 1
      %p232 = scmp.ne.s32.totalorder %s227, %s229
      %p233 = scmp.eq.s32.totalorder %s25, 0
      %p234 = por %p232, %p233
      %p235 = scmp.ne.s32.totalorder %s227, %s229
      %p236 = scmp.eq.s32.totalorder %s30, 1
      %p237 = por %p235, %p236
      %p238 = scmp.ne.s32.totalorder %s229, %s230
      %p239 = scmp.eq.s32.totalorder %s30, 0
      %p240 = por %p238, %p239
      %p241 = scmp.ne.s32.totalorder %s229, %s230
      %p242 = scmp.eq.s32.totalorder %s31, 1
      %p243 = por %p241, %p242
      %p245 = scmp.ne.s32.totalorder %s230, %s244
      %p246 = scmp.eq.s32.totalorder %s31, 0
      %p247 = por %p245, %p246
      %s249 = sadd.s32 %s248, 1
      %p252 = scmp.eq.s32.totalorder %s25, 1
      %p253 = scmp.ne.s32.totalorder %s248, %s250
      %p254 = scmp.eq.s32.totalorder %s25, 0
      %p255 = por %p253, %p254
      %p256 = scmp.ne.s32.totalorder %s248, %s250
      %p257 = scmp.eq.s32.totalorder %s30, 1
      %p258 = por %p256, %p257
      %p259 = scmp.ne.s32.totalorder %s250, %s251
      %p260 = scmp.eq.s32.totalorder %s30, 0
      %p261 = por %p259, %p260
      %p262 = scmp.ne.s32.totalorder %s250, %s251
      %p263 = scmp.eq.s32.totalorder %s31, 1
      %p264 = por %p262, %p263
      %p266 = scmp.ne.s32.totalorder %s251, %s265
      %p267 = scmp.eq.s32.totalorder %s31, 0
      %p268 = por %p266, %p267
      %s269 = ssub.s32 %s25, %s32
      %p270 = scmp.eq.s32.totalorder %s269, 0
      %s272 = sadd.s32 %s271, 1
      %s273 = scalar_select %p270, %s271, %s272
      %p276 = pneg %p270
      %p277 = scmp.eq.s32.totalorder %s25, 1
      %p278 = por %p276, %p277
      %p279 = scmp.ne.s32.totalorder %s271, %s274
      %p280 = scmp.eq.s32.totalorder %s25, 0
      %p281 = por %p279, %p280
      %p282 = scmp.ne.s32.totalorder %s271, %s274
      %p283 = scmp.eq.s32.totalorder %s30, 1
      %p284 = por %p282, %p283
      %p285 = scmp.ne.s32.totalorder %s274, %s275
      %p286 = scmp.eq.s32.totalorder %s30, 0
      %p287 = por %p285, %p286
      %p288 = scmp.ne.s32.totalorder %s274, %s275
      %p289 = scmp.eq.s32.totalorder %s31, 1
      %p290 = por %p288, %p289
      %p292 = scmp.ne.s32.totalorder %s275, %s291
      %p293 = scmp.eq.s32.totalorder %s31, 0
      %p294 = por %p292, %p293
      %s295 = ssub.s32 %s25, %s32
      %p296 = scmp.eq.s32.totalorder %s295, 0
      %s298 = sadd.s32 %s297, 1
      %s299 = scalar_select %p296, %s297, %s298
      %p302 = pneg %p296
      %p303 = scmp.eq.s32.totalorder %s25, 1
      %p304 = por %p302, %p303
      %p305 = scmp.ne.s32.totalorder %s297, %s300
      %p306 = scmp.eq.s32.totalorder %s25, 0
      %p307 = por %p305, %p306
      %p308 = scmp.ne.s32.totalorder %s297, %s300
      %p309 = scmp.eq.s32.totalorder %s30, 1
      %p310 = por %p308, %p309
      %p311 = scmp.ne.s32.totalorder %s300, %s301
      %p312 = scmp.eq.s32.totalorder %s30, 0
      %p313 = por %p311, %p312
      %p314 = scmp.ne.s32.totalorder %s300, %s301
      %p315 = scmp.eq.s32.totalorder %s31, 1
      %p316 = por %p314, %p315
      %p318 = scmp.ne.s32.totalorder %s301, %s317
      %p319 = scmp.eq.s32.totalorder %s31, 0
      %p320 = por %p318, %p319
      %s321 = ssub.s32 %s25, %s32
      %p322 = scmp.eq.s32.totalorder %s321, 0
      %s324 = sadd.s32 %s323, 1
      %s325 = scalar_select %p322, %s323, %s324
      %p328 = pneg %p322
      %p329 = scmp.eq.s32.totalorder %s25, 1
      %p330 = por %p328, %p329
      %p331 = scmp.ne.s32.totalorder %s323, %s326
      %p332 = scmp.eq.s32.totalorder %s25, 0
      %p333 = por %p331, %p332
      %p334 = scmp.ne.s32.totalorder %s323, %s326
      %p335 = scmp.eq.s32.totalorder %s30, 1
      %p336 = por %p334, %p335
      %p337 = scmp.ne.s32.totalorder %s326, %s327
      %p338 = scmp.eq.s32.totalorder %s30, 0
      %p339 = por %p337, %p338
      %p340 = scmp.ne.s32.totalorder %s326, %s327
      %p341 = scmp.eq.s32.totalorder %s31, 1
      %p342 = por %p340, %p341
      %p344 = scmp.ne.s32.totalorder %s327, %s343
      %p345 = scmp.eq.s32.totalorder %s31, 0
      %p346 = por %p344, %p345
      %s347 = ssub.s32 %s25, %s32
      %p348 = scmp.eq.s32.totalorder %s347, 0
      %s350 = sadd.s32 %s349, 1
      %s351 = scalar_select %p348, %s349, %s350
      %p354 = pneg %p348
      %p355 = scmp.eq.s32.totalorder %s25, 1
      %p356 = por %p354, %p355
      %p357 = scmp.ne.s32.totalorder %s349, %s352
      %p358 = scmp.eq.s32.totalorder %s25, 0
      %p359 = por %p357, %p358
      %p360 = scmp.ne.s32.totalorder %s349, %s352
      %p361 = scmp.eq.s32.totalorder %s30, 1
      %p362 = por %p360, %p361
      %p363 = scmp.ne.s32.totalorder %s352, %s353
      %p364 = scmp.eq.s32.totalorder %s30, 0
      %p365 = por %p363, %p364
      %p366 = scmp.ne.s32.totalorder %s352, %s353
      %p367 = scmp.eq.s32.totalorder %s31, 1
      %p368 = por %p366, %p367
      %p370 = scmp.ne.s32.totalorder %s353, %s369
      %p371 = scmp.eq.s32.totalorder %s31, 0
      %p372 = por %p370, %p371
      %s373 = ssub.s32 %s25, %s32
      %p374 = scmp.eq.s32.totalorder %s373, 0
      %s376 = sadd.s32 %s375, 1
      %s377 = scalar_select %p374, %s375, %s376
      %p380 = pneg %p374
      %p381 = scmp.eq.s32.totalorder %s25, 1
      %p382 = por %p380, %p381
      %p383 = scmp.ne.s32.totalorder %s375, %s378
      %p384 = scmp.eq.s32.totalorder %s25, 0
      %p385 = por %p383, %p384
      %p386 = scmp.ne.s32.totalorder %s375, %s378
      %p387 = scmp.eq.s32.totalorder %s30, 1
      %p388 = por %p386, %p387
      %p389 = scmp.ne.s32.totalorder %s378, %s379
      %p390 = scmp.eq.s32.totalorder %s30, 0
      %p391 = por %p389, %p390
      %p392 = scmp.ne.s32.totalorder %s378, %s379
      %p393 = scmp.eq.s32.totalorder %s31, 1
      %p394 = por %p392, %p393
      %p396 = scmp.ne.s32.totalorder %s379, %s395
      %p397 = scmp.eq.s32.totalorder %s31, 0
      %p398 = por %p396, %p397
      %s399 = ssub.s32 %s25, %s32
      %p400 = scmp.eq.s32.totalorder %s399, 0
      %s402 = sadd.s32 %s401, 1
      %s403 = scalar_select %p400, %s401, %s402
      %p406 = pneg %p400
      %p407 = scmp.eq.s32.totalorder %s25, 1
      %p408 = por %p406, %p407
      %p409 = scmp.ne.s32.totalorder %s401, %s404
      %p410 = scmp.eq.s32.totalorder %s25, 0
      %p411 = por %p409, %p410
      %p412 = scmp.ne.s32.totalorder %s401, %s404
      %p413 = scmp.eq.s32.totalorder %s30, 1
      %p414 = por %p412, %p413
      %p415 = scmp.ne.s32.totalorder %s404, %s405
      %p416 = scmp.eq.s32.totalorder %s30, 0
      %p417 = por %p415, %p416
      %p418 = scmp.ne.s32.totalorder %s404, %s405
      %p419 = scmp.eq.s32.totalorder %s31, 1
      %p420 = por %p418, %p419
      %p422 = scmp.ne.s32.totalorder %s405, %s421
      %p423 = scmp.eq.s32.totalorder %s31, 0
      %p424 = por %p422, %p423
      %s425 = ssub.s32 %s25, %s32
      %p426 = scmp.eq.s32.totalorder %s425, 0
      %s428 = sadd.s32 %s427, 1
      %s429 = scalar_select %p426, %s427, %s428
      %p432 = pneg %p426
      %p433 = scmp.eq.s32.totalorder %s25, 1
      %p434 = por %p432, %p433
      %p435 = scmp.ne.s32.totalorder %s427, %s430
      %p436 = scmp.eq.s32.totalorder %s25, 0
      %p437 = por %p435, %p436
      %p438 = scmp.ne.s32.totalorder %s427, %s430
      %p439 = scmp.eq.s32.totalorder %s30, 1
      %p440 = por %p438, %p439
      %p441 = scmp.ne.s32.totalorder %s430, %s431
      %p442 = scmp.eq.s32.totalorder %s30, 0
      %p443 = por %p441, %p442
      %p444 = scmp.ne.s32.totalorder %s430, %s431
      %p445 = scmp.eq.s32.totalorder %s31, 1
      %p446 = por %p444, %p445
      %p448 = scmp.ne.s32.totalorder %s431, %s447
      %p449 = scmp.eq.s32.totalorder %s31, 0
      %p450 = por %p448, %p449
      %p451 = scmp.le.s32.totalorder 1, %s25
      %p452 = scmp.lt.s32.totalorder %s25, 3
      %p453 = pnand %p451, %p452
      %p454 = pneg %p453
      // Predicated region
      $region9: #{mixed_op_forward.3} parent=5 // pred_check
        _
      $region10: #{mixed_op_forward.3} parent=5 // pred_check_branch
        %456 = sbr.rel (%p453) target = $region12
      $region11: #{mixed_op_forward.3} parent=5 // pred_region
        %s457 = ssub.s32 %s25, 1
        // Predicated region
        $region13: #{mixed_op_forward.3} parent=11 // pred_check
          %p458 = pneg %p46
        $region14: #{mixed_op_forward.3} parent=11 // pred_check_branch
          %460 = sbr.rel (%p458) target = $region16
        $region15: #{mixed_op_forward.3} parent=11 // pred_region
          %s462 = ssub.s32 16, 16
          %463 = vsyncadd [#allocation7], %s462
          %s465 = sshll.u32 %s0, 4
          %s466 = int_to_ptr.vmem [resolvable:$true] %s465
          %468 = dma.vmem_to_smem %s466, 16, [#allocation6], [#allocation7]
        $region16: #{mixed_op_forward.3} parent=11 // pred_fallthru
          _
        // Predicated region
        $region17: #{mixed_op_forward.3} parent=11 // pred_check
          %p469 = pneg %p93
        $region18: #{mixed_op_forward.3} parent=11 // pred_check_branch
          %471 = sbr.rel (%p469) target = $region20
        $region19: #{mixed_op_forward.3} parent=11 // pred_region
          _
        $region20: #{mixed_op_forward.3} parent=11 // pred_fallthru
          _
        // Predicated region
        $region21: #{mixed_op_forward.3} parent=11 // pred_check
          %p472 = pneg %p114
        $region22: #{mixed_op_forward.3} parent=11 // pred_check_branch
          %474 = sbr.rel (%p472) target = $region24
        $region23: #{mixed_op_forward.3} parent=11 // pred_region
          _
        $region24: #{mixed_op_forward.3} parent=11 // pred_fallthru
          _
        // Predicated region
        $region25: #{mixed_op_forward.3} parent=11 // pred_check
          %p475 = pneg %p135
        $region26: #{mixed_op_forward.3} parent=11 // pred_check_branch
          %477 = sbr.rel (%p475) target = $region28
        $region27: #{mixed_op_forward.3} parent=11 // pred_region
          _
        $region28: #{mixed_op_forward.3} parent=11 // pred_fallthru
          _
        // Predicated region
        $region29: #{mixed_op_forward.3} parent=11 // pred_check
          %p478 = pneg %p156
        $region30: #{mixed_op_forward.3} parent=11 // pred_check_branch
          %480 = sbr.rel (%p478) target = $region32
        $region31: #{mixed_op_forward.3} parent=11 // pred_region
          _
        $region32: #{mixed_op_forward.3} parent=11 // pred_fallthru
          _
        // Predicated region
        $region33: #{mixed_op_forward.3} parent=11 // pred_check
          %p481 = pneg %p177
        $region34: #{mixed_op_forward.3} parent=11 // pred_check_branch
          %483 = sbr.rel (%p481) target = $region36
        $region35: #{mixed_op_forward.3} parent=11 // pred_region
          _
        $region36: #{mixed_op_forward.3} parent=11 // pred_fallthru
          _
        // Predicated region
        $region37: #{mixed_op_forward.3} parent=11 // pred_check
          %p484 = pneg %p198
        $region38: #{mixed_op_forward.3} parent=11 // pred_check_branch
          %486 = sbr.rel (%p484) target = $region40
        $region39: #{mixed_op_forward.3} parent=11 // pred_region
          _
        $region40: #{mixed_op_forward.3} parent=11 // pred_fallthru
          _
        // Predicated region
        $region41: #{mixed_op_forward.3} parent=11 // pred_check
          %p487 = pneg %p219
        $region42: #{mixed_op_forward.3} parent=11 // pred_check_branch
          %489 = sbr.rel (%p487) target = $region44
        $region43: #{mixed_op_forward.3} parent=11 // pred_region
          _
        $region44: #{mixed_op_forward.3} parent=11 // pred_fallthru
          _
        // Predicated region
        $region45: #{mixed_op_forward.3} parent=11 // pred_check
          %p490 = pneg %p240
        $region46: #{mixed_op_forward.3} parent=11 // pred_check_branch
          %492 = sbr.rel (%p490) target = $region48
        $region47: #{mixed_op_forward.3} parent=11 // pred_region
          _
        $region48: #{mixed_op_forward.3} parent=11 // pred_fallthru
          _
        // Predicated region
        $region49: #{mixed_op_forward.3} parent=11 // pred_check
          %p493 = pneg %p261
        $region50: #{mixed_op_forward.3} parent=11 // pred_check_branch
          %495 = sbr.rel (%p493) target = $region52
        $region51: #{mixed_op_forward.3} parent=11 // pred_region
          _
        $region52: #{mixed_op_forward.3} parent=11 // pred_fallthru
          _
      $region12: #{mixed_op_forward.3} parent=5 // pred_fallthru
        _
      %p496 = scmp.lt.s32.totalorder %s25, 2
      // Predicated region
      $region53: #{mixed_op_forward.3} parent=5 // pred_check
        %p497 = pneg %p496
      $region54: #{mixed_op_forward.3} parent=5 // pred_check_branch
        %499 = sbr.rel (%p497) target = $region56
      $region55: #{mixed_op_forward.3} parent=5 // pred_region
        // Predicated region
        $region57: #{mixed_op_forward.3} parent=55 // pred_check
          %p500 = pneg %p66
        $region58: #{mixed_op_forward.3} parent=55 // pred_check_branch
          %502 = sbr.rel (%p500) target = $region60
        $region59: #{mixed_op_forward.3} parent=55 // pred_region
          %p503 = scmp.lt.s32.totalorder %s25, 1
          %s504 = scalar_select %p503, %s25, 1
          %s505 = smul.addr %s504, 2
          %s506 = smul.addr %s505, 8
          %s507 = scalar_lea.vmem %s1, %s506
        $region60: #{mixed_op_forward.3} parent=55 // pred_fallthru
          _
      $region56: #{mixed_op_forward.3} parent=5 // pred_fallthru
        _
      %p508 = scmp.le.s32.totalorder 1, %s25
      %p509 = scmp.lt.s32.totalorder %s25, 3
      %p510 = pnand %p508, %p509
      %p511 = pneg %p510
      // Predicated region
      $region61: #{mixed_op_forward.3} parent=5 // pred_check
        _
      $region62: #{mixed_op_forward.3} parent=5 // pred_check_branch
        %513 = sbr.rel (%p510) target = $region64
      $region63: #{mixed_op_forward.3} parent=5 // pred_region
        %s514 = ssub.s32 %s25, 1
        // Predicated region
        $region65: #{mixed_op_forward.3} parent=63 // pred_check
          %p515 = pneg %p46
        $region66: #{mixed_op_forward.3} parent=63 // pred_check_branch
          %517 = sbr.rel (%p515) target = $region68
        $region67: #{mixed_op_forward.3} parent=63 // pred_region
          %518 = dma.done [#allocation7], 16
        $region68: #{mixed_op_forward.3} parent=63 // pred_fallthru
          _
        %519 = sfence
        %p520 = pneg %p46
        %p521 = pneg %p43
        %p522 = scmp.lt.s32.totalorder %s30, 1
        %s523 = scalar_select %p522, %s30, 1
        %s524 = smul.addr %s523, 2
        %s525 = smul.addr %s524, 8
        %s526 = scalar_lea.vmem %s1, %s525
        %p527 = pneg %p72
        %p528 = pneg %p69
        %p529 = pneg %p93
        %p530 = pneg %p90
        %p531 = pneg %p114
        %p532 = pneg %p111
        %p533 = pneg %p135
        %p534 = pneg %p132
        %p535 = pneg %p156
        %p536 = pneg %p153
        %p537 = pneg %p177
        %p538 = pneg %p174
        %p539 = pneg %p198
        %p540 = pneg %p195
        %p541 = pneg %p219
        %p542 = pneg %p216
        %p543 = pneg %p240
        %p544 = pneg %p237
        %p545 = pneg %p261
        %p546 = pneg %p258
        %p547 = pneg %p287
        %p548 = pneg %p284
        %p549 = scmp.lt.s32.totalorder %s30, 1
        %s550 = scalar_select %p549, %s30, 1
        %s551 = smul.addr %s550, 2
        %s552 = smul.addr %s551, 4
        %s553 = scalar_lea.vmem %s11, %s552
        %p554 = pneg %p313
        %p555 = pneg %p310
        %p556 = scmp.lt.s32.totalorder %s30, 1
        %s557 = scalar_select %p556, %s30, 1
        %s558 = smul.addr %s557, 2
        %s559 = smul.addr %s558, 4
        %s560 = scalar_lea.vmem %s12, %s559
        %p561 = pneg %p339
        %p562 = pneg %p336
        %p563 = scmp.lt.s32.totalorder %s30, 1
        %s564 = scalar_select %p563, %s30, 1
        %s565 = smul.addr %s564, 2
        %s566 = smul.addr %s565, 4
        %s567 = scalar_lea.vmem %s13, %s566
        %p568 = pneg %p365
        %p569 = pneg %p362
        %p570 = scmp.lt.s32.totalorder %s30, 1
        %s571 = scalar_select %p570, %s30, 1
        %s572 = smul.addr %s571, 2
        %s573 = smul.addr %s572, 4
        %s574 = scalar_lea.vmem %s14, %s573
        %p575 = pneg %p391
        %p576 = pneg %p388
        %p577 = scmp.lt.s32.totalorder %s30, 1
        %s578 = scalar_select %p577, %s30, 1
        %s579 = smul.addr %s578, 2
        %s580 = smul.addr %s579, 4
        %s581 = scalar_lea.vmem %s15, %s580
        %p582 = pneg %p417
        %p583 = pneg %p414
        %p584 = scmp.lt.s32.totalorder %s30, 1
        %s585 = scalar_select %p584, %s30, 1
        %s586 = smul.addr %s585, 2
        %s587 = smul.addr %s586, 4
        %s588 = scalar_lea.vmem %s16, %s587
        %p589 = pneg %p443
        %p590 = pneg %p440
        %p591 = scmp.lt.s32.totalorder %s30, 1
        %s592 = scalar_select %p591, %s30, 1
        %s593 = smul.addr %s592, 2
        %s594 = smul.addr %s593, 8
        %s595 = scalar_lea.vmem %s17, %s594
        %p596 = scmp.lt.s32.totalorder %s30, 1
        %s597 = scalar_select %p596, %s30, 1
        %s598 = smul.addr %s597, 2
        %s599 = smul.addr %s598, 8
        %s600 = scalar_lea.vmem %s1, %s599
        %p601 = scmp.lt.s32.totalorder %s30, 1
        %s602 = scalar_select %p601, %s30, 1
        %s603 = smul.addr %s602, 2
        %s604 = smul.addr %s603, 4
        %s605 = scalar_lea.vmem %s11, %s604
        %p606 = scmp.lt.s32.totalorder %s30, 1
        %s607 = scalar_select %p606, %s30, 1
        %s608 = smul.addr %s607, 2
        %s609 = smul.addr %s608, 4
        %s610 = scalar_lea.vmem %s12, %s609
        %p611 = scmp.lt.s32.totalorder %s30, 1
        %s612 = scalar_select %p611, %s30, 1
        %s613 = smul.addr %s612, 2
        %s614 = smul.addr %s613, 4
        %s615 = scalar_lea.vmem %s13, %s614
        %p616 = scmp.lt.s32.totalorder %s30, 1
        %s617 = scalar_select %p616, %s30, 1
        %s618 = smul.addr %s617, 2
        %s619 = smul.addr %s618, 4
        %s620 = scalar_lea.vmem %s14, %s619
        %p621 = scmp.lt.s32.totalorder %s30, 1
        %s622 = scalar_select %p621, %s30, 1
        %s623 = smul.addr %s622, 2
        %s624 = smul.addr %s623, 4
        %s625 = scalar_lea.vmem %s15, %s624
        %p626 = scmp.lt.s32.totalorder %s30, 1
        %s627 = scalar_select %p626, %s30, 1
        %s628 = smul.addr %s627, 2
        %s629 = smul.addr %s628, 4
        %s630 = scalar_lea.vmem %s16, %s629
        %p631 = scmp.lt.s32.totalorder %s30, 1
        %s632 = scalar_select %p631, %s30, 1
        %s633 = smul.addr %s632, 2
        %s634 = smul.addr %s633, 8
        %s635 = scalar_lea.vmem %s17, %s634
        %v637 = vld [vmem:[%s600] sm:$0xff]
        %v638 = vld [vmem:[%s600 + $0x8] sm:$0xff]
        %s639 = sld [smem:[#allocation6 + $0x1]]
        %p640 = scmp.ne.s32.totalorder %s639, 0
        // Predicated region
        $region69: #{mixed_op_forward.3} parent=63 // pred_check
          %p641 = pneg %p640
        $region70: #{mixed_op_forward.3} parent=63 // pred_check_branch
          %643 = sbr.rel (%p641) target = $region72
        $region71: #{mixed_op_forward.3} parent=63 // pred_region
          %vm644 = vcmask 581632
          %645 = vst.msk [vmem:[#allocation3] sm:$0x1] %vm644, -inf
          %646 = vst.msk [vmem:[#allocation3 + $0x11] sm:$0x1] %vm644, -inf
          %vm647 = vcmask 31744
          %648 = vst.msk [vmem:[#allocation3 + $0x1] sm:$0xff] %vm647, -inf
          %649 = vst.msk [vmem:[#allocation3 + $0x9] sm:$0xff] %vm647, -inf
          %vm650 = vcmask 589344
          %651 = vst.msk [vmem:[#allocation3 + $0x1] sm:$0xff] %vm650, -inf
          %652 = vst.msk [vmem:[#allocation3 + $0x9] sm:$0xff] %vm650, -inf
          %655 = vrot.lane.b32.xlu0 %v637, 4
          %v656 = vpop.permute.xlu0 %655
          %657 = vrot.lane.b32.xlu0 %v638, 4
          %v658 = vpop.permute.xlu0 %657
          %vm661 = vcmask 556064
          %662 = vst.msk [vmem:[#allocation3 + $0x1] sm:$0xff] %vm661, %v656
          %663 = vst.msk [vmem:[#allocation3 + $0x9] sm:$0xff] %vm661, %v658
          %v664 = vld [vmem:[#allocation3] sm:$0xff]
          %v665 = vld [vmem:[#allocation3 + $0x8] sm:$0xff]
          %668 = vrot.lane.b32.xlu0 %v664, 124
          %v669 = vpop.permute.xlu0 %668
          %670 = vrot.lane.b32.xlu0 %v665, 124
          %v671 = vpop.permute.xlu0 %670
          %v674 = vmax.f32 %v664, %v669
          %v675 = vmax.f32 %v665, %v671
          %676 = vrot.lane.b32.xlu0 %v664, 120
          %v677 = vpop.permute.xlu0 %676
          %678 = vrot.lane.b32.xlu0 %v665, 120
          %v679 = vpop.permute.xlu0 %678
          %v682 = vmax.f32 %v674, %v677
          %v683 = vmax.f32 %v675, %v679
          %v684 = vld [vmem:[#allocation3 + $0x1] sm:$0xff]
          %v685 = vld [vmem:[#allocation3 + $0x9] sm:$0xff]
          %v686 = vmax.f32 %v682, %v684
          %v687 = vmax.f32 %v683, %v685
          %690 = vrot.lane.b32.xlu0 %v684, 124
          %v691 = vpop.permute.xlu0 %690
          %692 = vrot.lane.b32.xlu0 %v685, 124
          %v693 = vpop.permute.xlu0 %692
          %v696 = vmax.f32 %v686, %v691
          %v697 = vmax.f32 %v687, %v693
          %698 = vrot.lane.b32.xlu0 %v684, 120
          %v699 = vpop.permute.xlu0 %698
          %700 = vrot.lane.b32.xlu0 %v685, 120
          %v701 = vpop.permute.xlu0 %700
          %v704 = vmax.f32 %v696, %v699
          %v705 = vmax.f32 %v697, %v701
          %v706 = vld [vmem:[#allocation3 + $0x2] sm:$0xff]
          %v707 = vld [vmem:[#allocation3 + $0xa] sm:$0xff]
          %v708 = vmax.f32 %v704, %v706
          %v709 = vmax.f32 %v705, %v707
          %712 = vrot.lane.b32.xlu0 %v706, 124
          %v713 = vpop.permute.xlu0 %712
          %714 = vrot.lane.b32.xlu0 %v707, 124
          %v715 = vpop.permute.xlu0 %714
          %v718 = vmax.f32 %v708, %v713
          %v719 = vmax.f32 %v709, %v715
          %720 = vrot.lane.b32.xlu0 %v706, 120
          %v721 = vpop.permute.xlu0 %720
          %722 = vrot.lane.b32.xlu0 %v707, 120
          %v723 = vpop.permute.xlu0 %722
          %v726 = vmax.f32 %v718, %v721
          %v727 = vmax.f32 %v719, %v723
          %vm728 = vcmask 523264
          %v729 = vsel %vm728, %v726, 0.0
          %v730 = vsel %vm728, %v727, 0.0
          %v731 = vadd.f32 %v729, %v730
          %v732 = vrot.slane %v731, 4
          %v733 = vadd.f32 %v731, %v732
          %v734 = vrot.slane %v733, 2
          %v735 = vadd.f32 %v733, %v734
          %v736 = vrot.slane %v735, 1
          %v737 = vadd.f32 %v735, %v736
          %vm738 = vcmask 516096
          %739 = vst.msk [vmem:[%s635] sm:$0x1] %vm738, %v737
          %v740 = vmul.f32 %v726, %v726
          %v741 = vmul.f32 %v727, %v727
          %v742 = vsel %vm728, %v740, 0.0
          %v743 = vsel %vm728, %v741, 0.0
          %v744 = vadd.f32 %v742, %v743
          %v745 = vrot.slane %v744, 4
          %v746 = vadd.f32 %v744, %v745
          %v747 = vrot.slane %v746, 2
          %v748 = vadd.f32 %v746, %v747
          %v749 = vrot.slane %v748, 1
          %v750 = vadd.f32 %v748, %v749
          %751 = vst.msk [vmem:[%s635 + $0x1] sm:$0x1] %vm738, %v750
          %v752 = vpack.c.bf16 %v727, %v726
          %v754 = vunpack.c.l.b16 %v752
          %v755 = vunpack.c.h.b16 %v752
          %v756 = vpack.c.b16 %v754, %v754
          %v757 = vpack.c.b16 %v755, %v755
          %vm760 = vcmask 519168
          %761 = vst.msk [vmem:[%s605] sm:$0xf] %vm760, %v756
          %762 = vst.msk [vmem:[%s605 + $0x4] sm:$0xf] %vm760, %v757
        $region72: #{mixed_op_forward.3} parent=63 // pred_fallthru
          _
        %s763 = sld [smem:[#allocation6 + $0x1]]
        %p764 = scmp.eq.s32.totalorder %s763, 0
        // Predicated region
        $region73: #{mixed_op_forward.3} parent=63 // pred_check
          %p765 = pneg %p764
        $region74: #{mixed_op_forward.3} parent=63 // pred_check_branch
          %767 = sbr.rel (%p765) target = $region76
        $region75: #{mixed_op_forward.3} parent=63 // pred_region
          %vm768 = vcmask 517120
          %769 = vst.msk [vmem:[%s635] sm:$0x3] %vm768, 0.0
          %vm770 = vcmask 519168
          %771 = vst.msk [vmem:[%s605] sm:$0xf] %vm770, 0
          %772 = vst.msk [vmem:[%s605 + $0x4] sm:$0xf] %vm770, 0
        $region76: #{mixed_op_forward.3} parent=63 // pred_fallthru
          _
        %s773 = sld [smem:[#allocation6 + $0x2]]
        %p774 = scmp.ne.s32.totalorder %s773, 0
        // Predicated region
        $region77: #{mixed_op_forward.3} parent=63 // pred_check
          %p775 = pneg %p774
        $region78: #{mixed_op_forward.3} parent=63 // pred_check_branch
          %777 = sbr.rel (%p775) target = $region80
        $region79: #{mixed_op_forward.3} parent=63 // pred_region
          %vm778 = vcmask 581632
          %779 = vst.msk [vmem:[#allocation4] sm:$0x1] %vm778, 0.0
          %780 = vst.msk [vmem:[#allocation4 + $0x11] sm:$0x1] %vm778, 0.0
          %vm781 = vcmask 31744
          %782 = vst.msk [vmem:[#allocation4 + $0x1] sm:$0xff] %vm781, 0.0
          %783 = vst.msk [vmem:[#allocation4 + $0x9] sm:$0xff] %vm781, 0.0
          %vm784 = vcmask 589344
          %785 = vst.msk [vmem:[#allocation4 + $0x1] sm:$0xff] %vm784, 0.0
          %786 = vst.msk [vmem:[#allocation4 + $0x9] sm:$0xff] %vm784, 0.0
          %789 = vrot.lane.b32.xlu0 %v637, 4
          %v790 = vpop.permute.xlu0 %789
          %791 = vrot.lane.b32.xlu0 %v638, 4
          %v792 = vpop.permute.xlu0 %791
          %vm795 = vcmask 556064
          %796 = vst.msk [vmem:[#allocation4 + $0x1] sm:$0xff] %vm795, %v790
          %797 = vst.msk [vmem:[#allocation4 + $0x9] sm:$0xff] %vm795, %v792
          %v798 = vld [vmem:[#allocation4] sm:$0xff]
          %v799 = vld [vmem:[#allocation4 + $0x8] sm:$0xff]
          %802 = vrot.lane.b32.xlu0 %v798, 124
          %v803 = vpop.permute.xlu0 %802
          %804 = vrot.lane.b32.xlu0 %v799, 124
          %v805 = vpop.permute.xlu0 %804
          %v808 = vadd.f32 %v798, %v803
          %v809 = vadd.f32 %v799, %v805
          %810 = vrot.lane.b32.xlu0 %v798, 120
          %v811 = vpop.permute.xlu0 %810
          %812 = vrot.lane.b32.xlu0 %v799, 120
          %v813 = vpop.permute.xlu0 %812
          %v816 = vadd.f32 %v808, %v811
          %v817 = vadd.f32 %v809, %v813
          %v818 = vld [vmem:[#allocation4 + $0x1] sm:$0xff]
          %v819 = vld [vmem:[#allocation4 + $0x9] sm:$0xff]
          %v820 = vadd.f32 %v816, %v818
          %v821 = vadd.f32 %v817, %v819
          %824 = vrot.lane.b32.xlu0 %v818, 124
          %v825 = vpop.permute.xlu0 %824
          %826 = vrot.lane.b32.xlu0 %v819, 124
          %v827 = vpop.permute.xlu0 %826
          %v830 = vadd.f32 %v820, %v825
          %v831 = vadd.f32 %v821, %v827
          %832 = vrot.lane.b32.xlu0 %v818, 120
          %v833 = vpop.permute.xlu0 %832
          %834 = vrot.lane.b32.xlu0 %v819, 120
          %v835 = vpop.permute.xlu0 %834
          %v838 = vadd.f32 %v830, %v833
          %v839 = vadd.f32 %v831, %v835
          %v840 = vld [vmem:[#allocation4 + $0x2] sm:$0xff]
          %v841 = vld [vmem:[#allocation4 + $0xa] sm:$0xff]
          %v842 = vadd.f32 %v838, %v840
          %v843 = vadd.f32 %v839, %v841
          %846 = vrot.lane.b32.xlu0 %v840, 124
          %v847 = vpop.permute.xlu0 %846
          %848 = vrot.lane.b32.xlu0 %v841, 124
          %v849 = vpop.permute.xlu0 %848
          %v852 = vadd.f32 %v842, %v847
          %v853 = vadd.f32 %v843, %v849
          %854 = vrot.lane.b32.xlu0 %v840, 120
          %v855 = vpop.permute.xlu0 %854
          %856 = vrot.lane.b32.xlu0 %v841, 120
          %v857 = vpop.permute.xlu0 %856
          %v860 = vadd.f32 %v852, %v855
          %v861 = vadd.f32 %v853, %v857
          %v862 = vld [vmem:[%s2] sm:$0xff]
          %v863 = vld [vmem:[%s2 + $0x8] sm:$0xff]
          %v864 = vmul.f32 %v860, %v862
          %v865 = vmul.f32 %v861, %v863
          %vm866 = vcmask 523264
          %v867 = vsel %vm866, %v864, 0.0
          %v868 = vsel %vm866, %v865, 0.0
          %v869 = vadd.f32 %v867, %v868
          %v870 = vrot.slane %v869, 4
          %v871 = vadd.f32 %v869, %v870
          %v872 = vrot.slane %v871, 2
          %v873 = vadd.f32 %v871, %v872
          %v874 = vrot.slane %v873, 1
          %v875 = vadd.f32 %v873, %v874
          %vm876 = vcmask 516096
          %877 = vst.msk [vmem:[%s635 + $0x2] sm:$0x1] %vm876, %v875
          %v878 = vmul.f32 %v864, %v864
          %v879 = vmul.f32 %v865, %v865
          %v880 = vsel %vm866, %v878, 0.0
          %v881 = vsel %vm866, %v879, 0.0
          %v882 = vadd.f32 %v880, %v881
          %v883 = vrot.slane %v882, 4
          %v884 = vadd.f32 %v882, %v883
          %v885 = vrot.slane %v884, 2
          %v886 = vadd.f32 %v884, %v885
          %v887 = vrot.slane %v886, 1
          %v888 = vadd.f32 %v886, %v887
          %889 = vst.msk [vmem:[%s635 + $0x3] sm:$0x1] %vm876, %v888
          %v890 = vpack.c.bf16 %v865, %v864
          %v892 = vunpack.c.l.b16 %v890
          %v893 = vunpack.c.h.b16 %v890
          %v894 = vpack.c.b16 %v892, %v892
          %v895 = vpack.c.b16 %v893, %v893
          %vm898 = vcmask 519168
          %899 = vst.msk [vmem:[%s610] sm:$0xf] %vm898, %v894
          %900 = vst.msk [vmem:[%s610 + $0x4] sm:$0xf] %vm898, %v895
        $region80: #{mixed_op_forward.3} parent=63 // pred_fallthru
          _
        %s901 = sld [smem:[#allocation6 + $0x2]]
        %p902 = scmp.eq.s32.totalorder %s901, 0
        // Predicated region
        $region81: #{mixed_op_forward.3} parent=63 // pred_check
          %p903 = pneg %p902
        $region82: #{mixed_op_forward.3} parent=63 // pred_check_branch
          %905 = sbr.rel (%p903) target = $region84
        $region83: #{mixed_op_forward.3} parent=63 // pred_region
          %vm906 = vcmask 517120
          %907 = vst.msk [vmem:[%s635 + $0x2] sm:$0x3] %vm906, 0.0
          %vm908 = vcmask 519168
          %909 = vst.msk [vmem:[%s610] sm:$0xf] %vm908, 0
          %910 = vst.msk [vmem:[%s610 + $0x4] sm:$0xf] %vm908, 0
        $region84: #{mixed_op_forward.3} parent=63 // pred_fallthru
          _
        %s911 = sld [smem:[#allocation6 + $0x4]]
        %s912 = sld [smem:[#allocation6 + $0x5]]
        %s913 = sadd.s32 %s911, %s912
        %s914 = sld [smem:[#allocation6 + $0x6]]
        %s915 = sadd.s32 %s913, %s914
        %s916 = sld [smem:[#allocation6 + $0x7]]
        %s917 = sadd.s32 %s915, %s916
        %p918 = scmp.gt.s32.totalorder %s917, 0
        // Predicated region
        $region85: #{mixed_op_forward.3} parent=63 // pred_check
          %p919 = pneg %p918
        $region86: #{mixed_op_forward.3} parent=63 // pred_check_branch
          %921 = sbr.rel (%p919) target = $region88
        $region87: #{mixed_op_forward.3} parent=63 // pred_region
          %vm922 = vcmask 781312
          %923 = vst.msk [vmem:[#allocation2] sm:$0xf] %vm922, 0.0
          %924 = vst.msk [vmem:[#allocation2 + $0x14] sm:$0xf] %vm922, 0.0
          %vm925 = vcmask 130048
          %926 = vst.msk [vmem:[#allocation2 + $0x4] sm:$0xff] %vm925, 0.0
          %927 = vst.msk [vmem:[#allocation2 + $0xc] sm:$0xff] %vm925, 0.0
          %vm928 = vcmask 786048
          %929 = vst.msk [vmem:[#allocation2 + $0x4] sm:$0xff] %vm928, 0.0
          %930 = vst.msk [vmem:[#allocation2 + $0xc] sm:$0xff] %vm928, 0.0
          %v931 = vmax.f32 %v637, 0.0
          %v932 = vmax.f32 %v638, 0.0
          %935 = vrot.lane.b32.xlu0 %v931, 16
          %v936 = vpop.permute.xlu0 %935
          %937 = vrot.lane.b32.xlu0 %v932, 16
          %v938 = vpop.permute.xlu0 %937
          %vm941 = vcmask 654464
          %942 = vst.msk [vmem:[#allocation2 + $0x4] sm:$0xff] %vm941, %v936
          %943 = vst.msk [vmem:[#allocation2 + $0xc] sm:$0xff] %vm941, %v938
        $region88: #{mixed_op_forward.3} parent=63 // pred_fallthru
          _
        %s944 = sld [smem:[#allocation6 + $0x4]]
        %p945 = scmp.ne.s32.totalorder %s944, 0
        // Predicated region
        $region89: #{mixed_op_forward.3} parent=63 // pred_check
          %p946 = pneg %p945
        $region90: #{mixed_op_forward.3} parent=63 // pred_check_branch
          %948 = sbr.rel (%p946) target = $region92
        $region91: #{mixed_op_forward.3} parent=63 // pred_region
          %v949 = vld [vmem:[#allocation2 + $0x3] sm:$0xff]
          %v950 = vld [vmem:[#allocation2 + $0xb] sm:$0xff]
          %v951 = vld [vmem:[%s3] sm:$0x1]
          %v952 = vlaneseq
          %v953 = vshrl.u32 %v952, 7
          %v954 = vsub.s32 0, %v953
          %v955 = vrot.slane %v951, %v954
          %957 = vrot.lane.b32.xlu0 %v955, 12
          %v958 = vpop.permute.xlu0 %957
          %v960 = vmul.f32 %v949, %v958
          %v961 = vmul.f32 %v950, %v958
          %v962 = vld [vmem:[%s3 + $0x1] sm:$0x1]
          %v963 = vlaneseq
          %v964 = vshrl.u32 %v963, 7
          %v965 = vsub.s32 0, %v964
          %v966 = vrot.slane %v962, %v965
          %968 = vrot.lane.b32.xlu0 %v966, 16
          %v969 = vpop.permute.xlu0 %968
          %v971 = vmul.f32 %v949, %v969
          %v972 = vmul.f32 %v950, %v969
          %975 = vrot.lane.b32.xlu0 %v971, 124
          %v976 = vpop.permute.xlu0 %975
          %977 = vrot.lane.b32.xlu0 %v972, 124
          %v978 = vpop.permute.xlu0 %977
          %v981 = vadd.f32 %v960, %v976
          %v982 = vadd.f32 %v961, %v978
          %v983 = vld [vmem:[%s3 + $0x2] sm:$0x1]
          %v984 = vlaneseq
          %v985 = vshrl.u32 %v984, 7
          %v986 = vsub.s32 0, %v985
          %v987 = vrot.slane %v983, %v986
          %989 = vrot.lane.b32.xlu0 %v987, 20
          %v990 = vpop.permute.xlu0 %989
          %v992 = vmul.f32 %v949, %v990
          %v993 = vmul.f32 %v950, %v990
          %996 = vrot.lane.b32.xlu0 %v992, 120
          %v997 = vpop.permute.xlu0 %996
          %998 = vrot.lane.b32.xlu0 %v993, 120
          %v999 = vpop.permute.xlu0 %998
          %v1002 = vadd.f32 %v981, %v997
          %v1003 = vadd.f32 %v982, %v999
          %v1004 = vld [vmem:[#allocation2 + $0x4] sm:$0xff]
          %v1005 = vld [vmem:[#allocation2 + $0xc] sm:$0xff]
          %v1006 = vld [vmem:[%s3 + $0x3] sm:$0x1]
          %v1007 = vlaneseq
          %v1008 = vshrl.u32 %v1007, 7
          %v1009 = vsub.s32 0, %v1008
          %v1010 = vrot.slane %v1006, %v1009
          %1012 = vrot.lane.b32.xlu0 %v1010, 12
          %v1013 = vpop.permute.xlu0 %1012
          %v1015 = vmul.f32 %v1004, %v1013
          %v1016 = vmul.f32 %v1005, %v1013
          %v1017 = vadd.f32 %v1002, %v1015
          %v1018 = vadd.f32 %v1003, %v1016
          %v1019 = vld [vmem:[%s3 + $0x4] sm:$0x1]
          %v1020 = vlaneseq
          %v1021 = vshrl.u32 %v1020, 7
          %v1022 = vsub.s32 0, %v1021
          %v1023 = vrot.slane %v1019, %v1022
          %1025 = vrot.lane.b32.xlu0 %v1023, 16
          %v1026 = vpop.permute.xlu0 %1025
          %v1028 = vmul.f32 %v1004, %v1026
          %v1029 = vmul.f32 %v1005, %v1026
          %1032 = vrot.lane.b32.xlu0 %v1028, 124
          %v1033 = vpop.permute.xlu0 %1032
          %1034 = vrot.lane.b32.xlu0 %v1029, 124
          %v1035 = vpop.permute.xlu0 %1034
          %v1038 = vadd.f32 %v1017, %v1033
          %v1039 = vadd.f32 %v1018, %v1035
          %v1040 = vld [vmem:[%s3 + $0x5] sm:$0x1]
          %v1041 = vlaneseq
          %v1042 = vshrl.u32 %v1041, 7
          %v1043 = vsub.s32 0, %v1042
          %v1044 = vrot.slane %v1040, %v1043
          %1046 = vrot.lane.b32.xlu0 %v1044, 20
          %v1047 = vpop.permute.xlu0 %1046
          %v1049 = vmul.f32 %v1004, %v1047
          %v1050 = vmul.f32 %v1005, %v1047
          %1053 = vrot.lane.b32.xlu0 %v1049, 120
          %v1054 = vpop.permute.xlu0 %1053
          %1055 = vrot.lane.b32.xlu0 %v1050, 120
          %v1056 = vpop.permute.xlu0 %1055
          %v1059 = vadd.f32 %v1038, %v1054
          %v1060 = vadd.f32 %v1039, %v1056
          %v1061 = vld [vmem:[#allocation2 + $0x5] sm:$0xff]
          %v1062 = vld [vmem:[#allocation2 + $0xd] sm:$0xff]
          %v1063 = vld [vmem:[%s3 + $0x6] sm:$0x1]
          %v1064 = vlaneseq
          %v1065 = vshrl.u32 %v1064, 7
          %v1066 = vsub.s32 0, %v1065
          %v1067 = vrot.slane %v1063, %v1066
          %1069 = vrot.lane.b32.xlu0 %v1067, 12
          %v1070 = vpop.permute.xlu0 %1069
          %v1072 = vmul.f32 %v1061, %v1070
          %v1073 = vmul.f32 %v1062, %v1070
          %v1074 = vadd.f32 %v1059, %v1072
          %v1075 = vadd.f32 %v1060, %v1073
          %v1076 = vld [vmem:[%s3 + $0x7] sm:$0x1]
          %v1077 = vlaneseq
          %v1078 = vshrl.u32 %v1077, 7
          %v1079 = vsub.s32 0, %v1078
          %v1080 = vrot.slane %v1076, %v1079
          %1082 = vrot.lane.b32.xlu0 %v1080, 16
          %v1083 = vpop.permute.xlu0 %1082
          %v1085 = vmul.f32 %v1061, %v1083
          %v1086 = vmul.f32 %v1062, %v1083
          %1089 = vrot.lane.b32.xlu0 %v1085, 124
          %v1090 = vpop.permute.xlu0 %1089
          %1091 = vrot.lane.b32.xlu0 %v1086, 124
          %v1092 = vpop.permute.xlu0 %1091
          %v1095 = vadd.f32 %v1074, %v1090
          %v1096 = vadd.f32 %v1075, %v1092
          %v1097 = vld [vmem:[%s3 + $0x8] sm:$0x1]
          %v1098 = vlaneseq
          %v1099 = vshrl.u32 %v1098, 7
          %v1100 = vsub.s32 0, %v1099
          %v1101 = vrot.slane %v1097, %v1100
          %1103 = vrot.lane.b32.xlu0 %v1101, 20
          %v1104 = vpop.permute.xlu0 %1103
          %v1106 = vmul.f32 %v1061, %v1104
          %v1107 = vmul.f32 %v1062, %v1104
          %1110 = vrot.lane.b32.xlu0 %v1106, 120
          %v1111 = vpop.permute.xlu0 %1110
          %1112 = vrot.lane.b32.xlu0 %v1107, 120
          %v1113 = vpop.permute.xlu0 %1112
          %v1116 = vadd.f32 %v1095, %v1111
          %v1117 = vadd.f32 %v1096, %v1113
          %vm1118 = vcmask 23552
          %1119 = vst.msk [vmem:[#allocation5] sm:$0xff] %vm1118, 0.0
          %1120 = vst.msk [vmem:[#allocation5 + $0x8] sm:$0xff] %vm1118, 0.0
          %vm1121 = vcmask 572952
          %1122 = vst.msk [vmem:[#allocation5] sm:$0xff] %vm1121, 0.0
          %1123 = vst.msk [vmem:[#allocation5 + $0x8] sm:$0xff] %vm1121, 0.0
          %1126 = vrot.lane.b32.xlu0 %v1116, 119
          %v1127 = vpop.permute.xlu0 %1126
          %1128 = vrot.lane.b32.xlu0 %v1117, 119
          %v1129 = vpop.permute.xlu0 %1128
          %vm1132 = vcmask 547864
          %1133 = vst.msk [vmem:[#allocation5] sm:$0xff] %vm1132, %v1127
          %1134 = vst.msk [vmem:[#allocation5 + $0x8] sm:$0xff] %vm1132, %v1129
          %v1135 = vld [vmem:[#allocation5] sm:$0xff]
          %v1136 = vld [vmem:[#allocation5 + $0x8] sm:$0xff]
          %v1137 = vld [vmem:[%s4] sm:$0x1]
          %v1138 = vlaneseq
          %v1139 = vshrl.u32 %v1138, 7
          %v1140 = vsub.s32 0, %v1139
          %v1141 = vrot.slane %v1137, %v1140
          %v1142 = vmul.f32 %v1135, %v1141
          %v1143 = vmul.f32 %v1136, %v1141
          %v1144 = vld [vmem:[%s4 + $0x1] sm:$0x1]
          %v1145 = vlaneseq
          %v1146 = vshrl.u32 %v1145, 7
          %v1147 = vsub.s32 0, %v1146
          %v1148 = vrot.slane %v1144, %v1147
          %1150 = vrot.lane.b32.xlu0 %v1148, 1
          %v1151 = vpop.permute.xlu0 %1150
          %v1153 = vmul.f32 %v1135, %v1151
          %v1154 = vmul.f32 %v1136, %v1151
          %1157 = vrot.lane.b32.xlu0 %v1153, 127
          %v1158 = vpop.permute.xlu0 %1157
          %1159 = vrot.lane.b32.xlu0 %v1154, 127
          %v1160 = vpop.permute.xlu0 %1159
          %v1163 = vadd.f32 %v1142, %v1158
          %v1164 = vadd.f32 %v1143, %v1160
          %v1165 = vld [vmem:[%s4 + $0x2] sm:$0x1]
          %v1166 = vlaneseq
          %v1167 = vshrl.u32 %v1166, 7
          %v1168 = vsub.s32 0, %v1167
          %v1169 = vrot.slane %v1165, %v1168
          %1171 = vrot.lane.b32.xlu0 %v1169, 2
          %v1172 = vpop.permute.xlu0 %1171
          %v1174 = vmul.f32 %v1135, %v1172
          %v1175 = vmul.f32 %v1136, %v1172
          %1178 = vrot.lane.b32.xlu0 %v1174, 126
          %v1179 = vpop.permute.xlu0 %1178
          %1180 = vrot.lane.b32.xlu0 %v1175, 126
          %v1181 = vpop.permute.xlu0 %1180
          %v1184 = vadd.f32 %v1163, %v1179
          %v1185 = vadd.f32 %v1164, %v1181
          %v1186 = vld [vmem:[%s4 + $0x3] sm:$0x1]
          %v1187 = vlaneseq
          %v1188 = vshrl.u32 %v1187, 7
          %v1189 = vsub.s32 0, %v1188
          %v1190 = vrot.slane %v1186, %v1189
          %1192 = vrot.lane.b32.xlu0 %v1190, 3
          %v1193 = vpop.permute.xlu0 %1192
          %v1195 = vmul.f32 %v1135, %v1193
          %v1196 = vmul.f32 %v1136, %v1193
          %1199 = vrot.lane.b32.xlu0 %v1195, 125
          %v1200 = vpop.permute.xlu0 %1199
          %1201 = vrot.lane.b32.xlu0 %v1196, 125
          %v1202 = vpop.permute.xlu0 %1201
          %v1205 = vadd.f32 %v1184, %v1200
          %v1206 = vadd.f32 %v1185, %v1202
          %v1207 = vld [vmem:[%s4 + $0x4] sm:$0x1]
          %v1208 = vlaneseq
          %v1209 = vshrl.u32 %v1208, 7
          %v1210 = vsub.s32 0, %v1209
          %v1211 = vrot.slane %v1207, %v1210
          %1213 = vrot.lane.b32.xlu0 %v1211, 4
          %v1214 = vpop.permute.xlu0 %1213
          %v1216 = vmul.f32 %v1135, %v1214
          %v1217 = vmul.f32 %v1136, %v1214
          %1220 = vrot.lane.b32.xlu0 %v1216, 124
          %v1221 = vpop.permute.xlu0 %1220
          %1222 = vrot.lane.b32.xlu0 %v1217, 124
          %v1223 = vpop.permute.xlu0 %1222
          %v1226 = vadd.f32 %v1205, %v1221
          %v1227 = vadd.f32 %v1206, %v1223
          %v1228 = vld [vmem:[%s4 + $0x5] sm:$0x1]
          %v1229 = vlaneseq
          %v1230 = vshrl.u32 %v1229, 7
          %v1231 = vsub.s32 0, %v1230
          %v1232 = vrot.slane %v1228, %v1231
          %1234 = vrot.lane.b32.xlu0 %v1232, 5
          %v1235 = vpop.permute.xlu0 %1234
          %v1237 = vmul.f32 %v1135, %v1235
          %v1238 = vmul.f32 %v1136, %v1235
          %1241 = vrot.lane.b32.xlu0 %v1237, 123
          %v1242 = vpop.permute.xlu0 %1241
          %1243 = vrot.lane.b32.xlu0 %v1238, 123
          %v1244 = vpop.permute.xlu0 %1243
          %v1247 = vadd.f32 %v1226, %v1242
          %v1248 = vadd.f32 %v1227, %v1244
          %v1249 = vld [vmem:[%s4 + $0x6] sm:$0x1]
          %v1250 = vlaneseq
          %v1251 = vshrl.u32 %v1250, 7
          %v1252 = vsub.s32 0, %v1251
          %v1253 = vrot.slane %v1249, %v1252
          %1255 = vrot.lane.b32.xlu0 %v1253, 6
          %v1256 = vpop.permute.xlu0 %1255
          %v1258 = vmul.f32 %v1135, %v1256
          %v1259 = vmul.f32 %v1136, %v1256
          %1262 = vrot.lane.b32.xlu0 %v1258, 122
          %v1263 = vpop.permute.xlu0 %1262
          %1264 = vrot.lane.b32.xlu0 %v1259, 122
          %v1265 = vpop.permute.xlu0 %1264
          %v1268 = vadd.f32 %v1247, %v1263
          %v1269 = vadd.f32 %v1248, %v1265
          %vm1270 = vcmask 523264
          %v1271 = vsel %vm1270, %v1268, 0.0
          %v1272 = vsel %vm1270, %v1269, 0.0
          %v1273 = vadd.f32 %v1271, %v1272
          %v1274 = vrot.slane %v1273, 4
          %v1275 = vadd.f32 %v1273, %v1274
          %v1276 = vrot.slane %v1275, 2
          %v1277 = vadd.f32 %v1275, %v1276
          %v1278 = vrot.slane %v1277, 1
          %v1279 = vadd.f32 %v1277, %v1278
          %vm1280 = vcmask 516096
          %1281 = vst.msk [vmem:[%s635 + $0x4] sm:$0x1] %vm1280, %v1279
          %v1282 = vmul.f32 %v1268, %v1268
          %v1283 = vmul.f32 %v1269, %v1269
          %v1284 = vsel %vm1270, %v1282, 0.0
          %v1285 = vsel %vm1270, %v1283, 0.0
          %v1286 = vadd.f32 %v1284, %v1285
          %v1287 = vrot.slane %v1286, 4
          %v1288 = vadd.f32 %v1286, %v1287
          %v1289 = vrot.slane %v1288, 2
          %v1290 = vadd.f32 %v1288, %v1289
          %v1291 = vrot.slane %v1290, 1
          %v1292 = vadd.f32 %v1290, %v1291
          %1293 = vst.msk [vmem:[%s635 + $0x5] sm:$0x1] %vm1280, %v1292
          %v1294 = vpack.c.bf16 %v1269, %v1268
          %v1296 = vunpack.c.l.b16 %v1294
          %v1297 = vunpack.c.h.b16 %v1294
          %v1298 = vpack.c.b16 %v1296, %v1296
          %v1299 = vpack.c.b16 %v1297, %v1297
          %vm1302 = vcmask 519168
          %1303 = vst.msk [vmem:[%s615] sm:$0xf] %vm1302, %v1298
          %1304 = vst.msk [vmem:[%s615 + $0x4] sm:$0xf] %vm1302, %v1299
        $region92: #{mixed_op_forward.3} parent=63 // pred_fallthru
          _
        %s1305 = sld [smem:[#allocation6 + $0x4]]
        %p1306 = scmp.eq.s32.totalorder %s1305, 0
        // Predicated region
        $region93: #{mixed_op_forward.3} parent=63 // pred_check
          %p1307 = pneg %p1306
        $region94: #{mixed_op_forward.3} parent=63 // pred_check_branch
          %1309 = sbr.rel (%p1307) target = $region96
        $region95: #{mixed_op_forward.3} parent=63 // pred_region
          %vm1310 = vcmask 517120
          %1311 = vst.msk [vmem:[%s635 + $0x4] sm:$0x3] %vm1310, 0.0
          %vm1312 = vcmask 519168
          %1313 = vst.msk [vmem:[%s615] sm:$0xf] %vm1312, 0
          %1314 = vst.msk [vmem:[%s615 + $0x4] sm:$0xf] %vm1312, 0
        $region96: #{mixed_op_forward.3} parent=63 // pred_fallthru
          _
        %s1315 = sld [smem:[#allocation6 + $0x5]]
        %p1316 = scmp.ne.s32.totalorder %s1315, 0
        // Predicated region
        $region97: #{mixed_op_forward.3} parent=63 // pred_check
          %p1317 = pneg %p1316
        $region98: #{mixed_op_forward.3} parent=63 // pred_check_branch
          %1319 = sbr.rel (%p1317) target = $region100
        $region99: #{mixed_op_forward.3} parent=63 // pred_region
          %v1320 = vld [vmem:[#allocation2 + $0x2] sm:$0xff]
          %v1321 = vld [vmem:[#allocation2 + $0xa] sm:$0xff]
          %v1322 = vld [vmem:[%s5] sm:$0x1]
          %v1323 = vlaneseq
          %v1324 = vshrl.u32 %v1323, 7
          %v1325 = vsub.s32 0, %v1324
          %v1326 = vrot.slane %v1322, %v1325
          %1328 = vrot.lane.b32.xlu0 %v1326, 8
          %v1329 = vpop.permute.xlu0 %1328
          %v1331 = vmul.f32 %v1320, %v1329
          %v1332 = vmul.f32 %v1321, %v1329
          %v1333 = vld [vmem:[%s5 + $0x1] sm:$0x1]
          %v1334 = vlaneseq
          %v1335 = vshrl.u32 %v1334, 7
          %v1336 = vsub.s32 0, %v1335
          %v1337 = vrot.slane %v1333, %v1336
          %1339 = vrot.lane.b32.xlu0 %v1337, 12
          %v1340 = vpop.permute.xlu0 %1339
          %v1342 = vmul.f32 %v1320, %v1340
          %v1343 = vmul.f32 %v1321, %v1340
          %1346 = vrot.lane.b32.xlu0 %v1342, 124
          %v1347 = vpop.permute.xlu0 %1346
          %1348 = vrot.lane.b32.xlu0 %v1343, 124
          %v1349 = vpop.permute.xlu0 %1348
          %v1352 = vadd.f32 %v1331, %v1347
          %v1353 = vadd.f32 %v1332, %v1349
          %v1354 = vld [vmem:[%s5 + $0x2] sm:$0x1]
          %v1355 = vlaneseq
          %v1356 = vshrl.u32 %v1355, 7
          %v1357 = vsub.s32 0, %v1356
          %v1358 = vrot.slane %v1354, %v1357
          %1360 = vrot.lane.b32.xlu0 %v1358, 16
          %v1361 = vpop.permute.xlu0 %1360
          %v1363 = vmul.f32 %v1320, %v1361
          %v1364 = vmul.f32 %v1321, %v1361
          %1367 = vrot.lane.b32.xlu0 %v1363, 120
          %v1368 = vpop.permute.xlu0 %1367
          %1369 = vrot.lane.b32.xlu0 %v1364, 120
          %v1370 = vpop.permute.xlu0 %1369
          %v1373 = vadd.f32 %v1352, %v1368
          %v1374 = vadd.f32 %v1353, %v1370
          %v1375 = vld [vmem:[%s5 + $0x3] sm:$0x1]
          %v1376 = vlaneseq
          %v1377 = vshrl.u32 %v1376, 7
          %v1378 = vsub.s32 0, %v1377
          %v1379 = vrot.slane %v1375, %v1378
          %1381 = vrot.lane.b32.xlu0 %v1379, 20
          %v1382 = vpop.permute.xlu0 %1381
          %v1384 = vmul.f32 %v1320, %v1382
          %v1385 = vmul.f32 %v1321, %v1382
          %1388 = vrot.lane.b32.xlu0 %v1384, 116
          %v1389 = vpop.permute.xlu0 %1388
          %1390 = vrot.lane.b32.xlu0 %v1385, 116
          %v1391 = vpop.permute.xlu0 %1390
          %v1394 = vadd.f32 %v1373, %v1389
          %v1395 = vadd.f32 %v1374, %v1391
          %v1396 = vld [vmem:[%s5 + $0x4] sm:$0x1]
          %v1397 = vlaneseq
          %v1398 = vshrl.u32 %v1397, 7
          %v1399 = vsub.s32 0, %v1398
          %v1400 = vrot.slane %v1396, %v1399
          %1402 = vrot.lane.b32.xlu0 %v1400, 24
          %v1403 = vpop.permute.xlu0 %1402
          %v1405 = vmul.f32 %v1320, %v1403
          %v1406 = vmul.f32 %v1321, %v1403
          %1409 = vrot.lane.b32.xlu0 %v1405, 112
          %v1410 = vpop.permute.xlu0 %1409
          %1411 = vrot.lane.b32.xlu0 %v1406, 112
          %v1412 = vpop.permute.xlu0 %1411
          %v1415 = vadd.f32 %v1394, %v1410
          %v1416 = vadd.f32 %v1395, %v1412
          %v1417 = vld [vmem:[#allocation2 + $0x3] sm:$0xff]
          %v1418 = vld [vmem:[#allocation2 + $0xb] sm:$0xff]
          %v1419 = vld [vmem:[%s5 + $0x5] sm:$0x1]
          %v1420 = vlaneseq
          %v1421 = vshrl.u32 %v1420, 7
          %v1422 = vsub.s32 0, %v1421
          %v1423 = vrot.slane %v1419, %v1422
          %1425 = vrot.lane.b32.xlu0 %v1423, 8
          %v1426 = vpop.permute.xlu0 %1425
          %v1428 = vmul.f32 %v1417, %v1426
          %v1429 = vmul.f32 %v1418, %v1426
          %v1430 = vadd.f32 %v1415, %v1428
          %v1431 = vadd.f32 %v1416, %v1429
          %v1432 = vld [vmem:[%s5 + $0x6] sm:$0x1]
          %v1433 = vlaneseq
          %v1434 = vshrl.u32 %v1433, 7
          %v1435 = vsub.s32 0, %v1434
          %v1436 = vrot.slane %v1432, %v1435
          %1438 = vrot.lane.b32.xlu0 %v1436, 12
          %v1439 = vpop.permute.xlu0 %1438
          %v1441 = vmul.f32 %v1417, %v1439
          %v1442 = vmul.f32 %v1418, %v1439
          %1445 = vrot.lane.b32.xlu0 %v1441, 124
          %v1446 = vpop.permute.xlu0 %1445
          %1447 = vrot.lane.b32.xlu0 %v1442, 124
          %v1448 = vpop.permute.xlu0 %1447
          %v1451 = vadd.f32 %v1430, %v1446
          %v1452 = vadd.f32 %v1431, %v1448
          %v1453 = vld [vmem:[%s5 + $0x7] sm:$0x1]
          %v1454 = vlaneseq
          %v1455 = vshrl.u32 %v1454, 7
          %v1456 = vsub.s32 0, %v1455
          %v1457 = vrot.slane %v1453, %v1456
          %1459 = vrot.lane.b32.xlu0 %v1457, 16
          %v1460 = vpop.permute.xlu0 %1459
          %v1462 = vmul.f32 %v1417, %v1460
          %v1463 = vmul.f32 %v1418, %v1460
          %1466 = vrot.lane.b32.xlu0 %v1462, 120
          %v1467 = vpop.permute.xlu0 %1466
          %1468 = vrot.lane.b32.xlu0 %v1463, 120
          %v1469 = vpop.permute.xlu0 %1468
          %v1472 = vadd.f32 %v1451, %v1467
          %v1473 = vadd.f32 %v1452, %v1469
          %v1474 = vld [vmem:[%s5 + $0x8] sm:$0x1]
          %v1475 = vlaneseq
          %v1476 = vshrl.u32 %v1475, 7
          %v1477 = vsub.s32 0, %v1476
          %v1478 = vrot.slane %v1474, %v1477
          %1480 = vrot.lane.b32.xlu0 %v1478, 20
          %v1481 = vpop.permute.xlu0 %1480
          %v1483 = vmul.f32 %v1417, %v1481
          %v1484 = vmul.f32 %v1418, %v1481
          %1487 = vrot.lane.b32.xlu0 %v1483, 116
          %v1488 = vpop.permute.xlu0 %1487
          %1489 = vrot.lane.b32.xlu0 %v1484, 116
          %v1490 = vpop.permute.xlu0 %1489
          %v1493 = vadd.f32 %v1472, %v1488
          %v1494 = vadd.f32 %v1473, %v1490
          %v1495 = vld [vmem:[%s5 + $0x9] sm:$0x1]
          %v1496 = vlaneseq
          %v1497 = vshrl.u32 %v1496, 7
          %v1498 = vsub.s32 0, %v1497
          %v1499 = vrot.slane %v1495, %v1498
          %1501 = vrot.lane.b32.xlu0 %v1499, 24
          %v1502 = vpop.permute.xlu0 %1501
          %v1504 = vmul.f32 %v1417, %v1502
          %v1505 = vmul.f32 %v1418, %v1502
          %1508 = vrot.lane.b32.xlu0 %v1504, 112
          %v1509 = vpop.permute.xlu0 %1508
          %1510 = vrot.lane.b32.xlu0 %v1505, 112
          %v1511 = vpop.permute.xlu0 %1510
          %v1514 = vadd.f32 %v1493, %v1509
          %v1515 = vadd.f32 %v1494, %v1511
          %v1516 = vld [vmem:[#allocation2 + $0x4] sm:$0xff]
          %v1517 = vld [vmem:[#allocation2 + $0xc] sm:$0xff]
          %v1518 = vld [vmem:[%s5 + $0xa] sm:$0x1]
          %v1519 = vlaneseq
          %v1520 = vshrl.u32 %v1519, 7
          %v1521 = vsub.s32 0, %v1520
          %v1522 = vrot.slane %v1518, %v1521
          %1524 = vrot.lane.b32.xlu0 %v1522, 8
          %v1525 = vpop.permute.xlu0 %1524
          %v1527 = vmul.f32 %v1516, %v1525
          %v1528 = vmul.f32 %v1517, %v1525
          %v1529 = vadd.f32 %v1514, %v1527
          %v1530 = vadd.f32 %v1515, %v1528
          %v1531 = vld [vmem:[%s5 + $0xb] sm:$0x1]
          %v1532 = vlaneseq
          %v1533 = vshrl.u32 %v1532, 7
          %v1534 = vsub.s32 0, %v1533
          %v1535 = vrot.slane %v1531, %v1534
          %1537 = vrot.lane.b32.xlu0 %v1535, 12
          %v1538 = vpop.permute.xlu0 %1537
          %v1540 = vmul.f32 %v1516, %v1538
          %v1541 = vmul.f32 %v1517, %v1538
          %1544 = vrot.lane.b32.xlu0 %v1540, 124
          %v1545 = vpop.permute.xlu0 %1544
          %1546 = vrot.lane.b32.xlu0 %v1541, 124
          %v1547 = vpop.permute.xlu0 %1546
          %v1550 = vadd.f32 %v1529, %v1545
          %v1551 = vadd.f32 %v1530, %v1547
          %v1552 = vld [vmem:[%s5 + $0xc] sm:$0x1]
          %v1553 = vlaneseq
          %v1554 = vshrl.u32 %v1553, 7
          %v1555 = vsub.s32 0, %v1554
          %v1556 = vrot.slane %v1552, %v1555
          %1558 = vrot.lane.b32.xlu0 %v1556, 16
          %v1559 = vpop.permute.xlu0 %1558
          %v1561 = vmul.f32 %v1516, %v1559
          %v1562 = vmul.f32 %v1517, %v1559
          %1565 = vrot.lane.b32.xlu0 %v1561, 120
          %v1566 = vpop.permute.xlu0 %1565
          %1567 = vrot.lane.b32.xlu0 %v1562, 120
          %v1568 = vpop.permute.xlu0 %1567
          %v1571 = vadd.f32 %v1550, %v1566
          %v1572 = vadd.f32 %v1551, %v1568
          %v1573 = vld [vmem:[%s5 + $0xd] sm:$0x1]
          %v1574 = vlaneseq
          %v1575 = vshrl.u32 %v1574, 7
          %v1576 = vsub.s32 0, %v1575
          %v1577 = vrot.slane %v1573, %v1576
          %1579 = vrot.lane.b32.xlu0 %v1577, 20
          %v1580 = vpop.permute.xlu0 %1579
          %v1582 = vmul.f32 %v1516, %v1580
          %v1583 = vmul.f32 %v1517, %v1580
          %1586 = vrot.lane.b32.xlu0 %v1582, 116
          %v1587 = vpop.permute.xlu0 %1586
          %1588 = vrot.lane.b32.xlu0 %v1583, 116
          %v1589 = vpop.permute.xlu0 %1588
          %v1592 = vadd.f32 %v1571, %v1587
          %v1593 = vadd.f32 %v1572, %v1589
          %v1594 = vld [vmem:[%s5 + $0xe] sm:$0x1]
          %v1595 = vlaneseq
          %v1596 = vshrl.u32 %v1595, 7
          %v1597 = vsub.s32 0, %v1596
          %v1598 = vrot.slane %v1594, %v1597
          %1600 = vrot.lane.b32.xlu0 %v1598, 24
          %v1601 = vpop.permute.xlu0 %1600
          %v1603 = vmul.f32 %v1516, %v1601
          %v1604 = vmul.f32 %v1517, %v1601
          %1607 = vrot.lane.b32.xlu0 %v1603, 112
          %v1608 = vpop.permute.xlu0 %1607
          %1609 = vrot.lane.b32.xlu0 %v1604, 112
          %v1610 = vpop.permute.xlu0 %1609
          %v1613 = vadd.f32 %v1592, %v1608
          %v1614 = vadd.f32 %v1593, %v1610
          %v1615 = vld [vmem:[#allocation2 + $0x5] sm:$0xff]
          %v1616 = vld [vmem:[#allocation2 + $0xd] sm:$0xff]
          %v1617 = vld [vmem:[%s5 + $0xf] sm:$0x1]
          %v1618 = vlaneseq
          %v1619 = vshrl.u32 %v1618, 7
          %v1620 = vsub.s32 0, %v1619
          %v1621 = vrot.slane %v1617, %v1620
          %1623 = vrot.lane.b32.xlu0 %v1621, 8
          %v1624 = vpop.permute.xlu0 %1623
          %v1626 = vmul.f32 %v1615, %v1624
          %v1627 = vmul.f32 %v1616, %v1624
          %v1628 = vadd.f32 %v1613, %v1626
          %v1629 = vadd.f32 %v1614, %v1627
          %v1630 = vld [vmem:[%s5 + $0x10] sm:$0x1]
          %v1631 = vlaneseq
          %v1632 = vshrl.u32 %v1631, 7
          %v1633 = vsub.s32 0, %v1632
          %v1634 = vrot.slane %v1630, %v1633
          %1636 = vrot.lane.b32.xlu0 %v1634, 12
          %v1637 = vpop.permute.xlu0 %1636
          %v1639 = vmul.f32 %v1615, %v1637
          %v1640 = vmul.f32 %v1616, %v1637
          %1643 = vrot.lane.b32.xlu0 %v1639, 124
          %v1644 = vpop.permute.xlu0 %1643
          %1645 = vrot.lane.b32.xlu0 %v1640, 124
          %v1646 = vpop.permute.xlu0 %1645
          %v1649 = vadd.f32 %v1628, %v1644
          %v1650 = vadd.f32 %v1629, %v1646
          %v1651 = vld [vmem:[%s5 + $0x11] sm:$0x1]
          %v1652 = vlaneseq
          %v1653 = vshrl.u32 %v1652, 7
          %v1654 = vsub.s32 0, %v1653
          %v1655 = vrot.slane %v1651, %v1654
          %1657 = vrot.lane.b32.xlu0 %v1655, 16
          %v1658 = vpop.permute.xlu0 %1657
          %v1660 = vmul.f32 %v1615, %v1658
          %v1661 = vmul.f32 %v1616, %v1658
          %1664 = vrot.lane.b32.xlu0 %v1660, 120
          %v1665 = vpop.permute.xlu0 %1664
          %1666 = vrot.lane.b32.xlu0 %v1661, 120
          %v1667 = vpop.permute.xlu0 %1666
          %v1670 = vadd.f32 %v1649, %v1665
          %v1671 = vadd.f32 %v1650, %v1667
          %v1672 = vld [vmem:[%s5 + $0x12] sm:$0x1]
          %v1673 = vlaneseq
          %v1674 = vshrl.u32 %v1673, 7
          %v1675 = vsub.s32 0, %v1674
          %v1676 = vrot.slane %v1672, %v1675
          %1678 = vrot.lane.b32.xlu0 %v1676, 20
          %v1679 = vpop.permute.xlu0 %1678
          %v1681 = vmul.f32 %v1615, %v1679
          %v1682 = vmul.f32 %v1616, %v1679
          %1685 = vrot.lane.b32.xlu0 %v1681, 116
          %v1686 = vpop.permute.xlu0 %1685
          %1687 = vrot.lane.b32.xlu0 %v1682, 116
          %v1688 = vpop.permute.xlu0 %1687
          %v1691 = vadd.f32 %v1670, %v1686
          %v1692 = vadd.f32 %v1671, %v1688
          %v1693 = vld [vmem:[%s5 + $0x13] sm:$0x1]
          %v1694 = vlaneseq
          %v1695 = vshrl.u32 %v1694, 7
          %v1696 = vsub.s32 0, %v1695
          %v1697 = vrot.slane %v1693, %v1696
          %1699 = vrot.lane.b32.xlu0 %v1697, 24
          %v1700 = vpop.permute.xlu0 %1699
          %v1702 = vmul.f32 %v1615, %v1700
          %v1703 = vmul.f32 %v1616, %v1700
          %1706 = vrot.lane.b32.xlu0 %v1702, 112
          %v1707 = vpop.permute.xlu0 %1706
          %1708 = vrot.lane.b32.xlu0 %v1703, 112
          %v1709 = vpop.permute.xlu0 %1708
          %v1712 = vadd.f32 %v1691, %v1707
          %v1713 = vadd.f32 %v1692, %v1709
          %v1714 = vld [vmem:[#allocation2 + $0x6] sm:$0xff]
          %v1715 = vld [vmem:[#allocation2 + $0xe] sm:$0xff]
          %v1716 = vld [vmem:[%s5 + $0x14] sm:$0x1]
          %v1717 = vlaneseq
          %v1718 = vshrl.u32 %v1717, 7
          %v1719 = vsub.s32 0, %v1718
          %v1720 = vrot.slane %v1716, %v1719
          %1722 = vrot.lane.b32.xlu0 %v1720, 8
          %v1723 = vpop.permute.xlu0 %1722
          %v1725 = vmul.f32 %v1714, %v1723
          %v1726 = vmul.f32 %v1715, %v1723
          %v1727 = vadd.f32 %v1712, %v1725
          %v1728 = vadd.f32 %v1713, %v1726
          %v1729 = vld [vmem:[%s5 + $0x15] sm:$0x1]
          %v1730 = vlaneseq
          %v1731 = vshrl.u32 %v1730, 7
          %v1732 = vsub.s32 0, %v1731
          %v1733 = vrot.slane %v1729, %v1732
          %1735 = vrot.lane.b32.xlu0 %v1733, 12
          %v1736 = vpop.permute.xlu0 %1735
          %v1738 = vmul.f32 %v1714, %v1736
          %v1739 = vmul.f32 %v1715, %v1736
          %1742 = vrot.lane.b32.xlu0 %v1738, 124
          %v1743 = vpop.permute.xlu0 %1742
          %1744 = vrot.lane.b32.xlu0 %v1739, 124
          %v1745 = vpop.permute.xlu0 %1744
          %v1748 = vadd.f32 %v1727, %v1743
          %v1749 = vadd.f32 %v1728, %v1745
          %v1750 = vld [vmem:[%s5 + $0x16] sm:$0x1]
          %v1751 = vlaneseq
          %v1752 = vshrl.u32 %v1751, 7
          %v1753 = vsub.s32 0, %v1752
          %v1754 = vrot.slane %v1750, %v1753
          %1756 = vrot.lane.b32.xlu0 %v1754, 16
          %v1757 = vpop.permute.xlu0 %1756
          %v1759 = vmul.f32 %v1714, %v1757
          %v1760 = vmul.f32 %v1715, %v1757
          %1763 = vrot.lane.b32.xlu0 %v1759, 120
          %v1764 = vpop.permute.xlu0 %1763
          %1765 = vrot.lane.b32.xlu0 %v1760, 120
          %v1766 = vpop.permute.xlu0 %1765
          %v1769 = vadd.f32 %v1748, %v1764
          %v1770 = vadd.f32 %v1749, %v1766
          %v1771 = vld [vmem:[%s5 + $0x17] sm:$0x1]
          %v1772 = vlaneseq
          %v1773 = vshrl.u32 %v1772, 7
          %v1774 = vsub.s32 0, %v1773
          %v1775 = vrot.slane %v1771, %v1774
          %1777 = vrot.lane.b32.xlu0 %v1775, 20
          %v1778 = vpop.permute.xlu0 %1777
          %v1780 = vmul.f32 %v1714, %v1778
          %v1781 = vmul.f32 %v1715, %v1778
          %1784 = vrot.lane.b32.xlu0 %v1780, 116
          %v1785 = vpop.permute.xlu0 %1784
          %1786 = vrot.lane.b32.xlu0 %v1781, 116
          %v1787 = vpop.permute.xlu0 %1786
          %v1790 = vadd.f32 %v1769, %v1785
          %v1791 = vadd.f32 %v1770, %v1787
          %v1792 = vld [vmem:[%s5 + $0x18] sm:$0x1]
          %v1793 = vlaneseq
          %v1794 = vshrl.u32 %v1793, 7
          %v1795 = vsub.s32 0, %v1794
          %v1796 = vrot.slane %v1792, %v1795
          %1798 = vrot.lane.b32.xlu0 %v1796, 24
          %v1799 = vpop.permute.xlu0 %1798
          %v1801 = vmul.f32 %v1714, %v1799
          %v1802 = vmul.f32 %v1715, %v1799
          %1805 = vrot.lane.b32.xlu0 %v1801, 112
          %v1806 = vpop.permute.xlu0 %1805
          %1807 = vrot.lane.b32.xlu0 %v1802, 112
          %v1808 = vpop.permute.xlu0 %1807
          %v1811 = vadd.f32 %v1790, %v1806
          %v1812 = vadd.f32 %v1791, %v1808
          %vm1813 = vcmask 23552
          %1814 = vst.msk [vmem:[#allocation5] sm:$0xff] %vm1813, 0.0
          %1815 = vst.msk [vmem:[#allocation5 + $0x8] sm:$0xff] %vm1813, 0.0
          %vm1816 = vcmask 572952
          %1817 = vst.msk [vmem:[#allocation5] sm:$0xff] %vm1816, 0.0
          %1818 = vst.msk [vmem:[#allocation5 + $0x8] sm:$0xff] %vm1816, 0.0
          %1821 = vrot.lane.b32.xlu0 %v1811, 123
          %v1822 = vpop.permute.xlu0 %1821
          %1823 = vrot.lane.b32.xlu0 %v1812, 123
          %v1824 = vpop.permute.xlu0 %1823
          %vm1827 = vcmask 547864
          %1828 = vst.msk [vmem:[#allocation5] sm:$0xff] %vm1827, %v1822
          %1829 = vst.msk [vmem:[#allocation5 + $0x8] sm:$0xff] %vm1827, %v1824
          %v1830 = vld [vmem:[#allocation5] sm:$0xff]
          %v1831 = vld [vmem:[#allocation5 + $0x8] sm:$0xff]
          %v1832 = vld [vmem:[%s6] sm:$0x1]
          %v1833 = vlaneseq
          %v1834 = vshrl.u32 %v1833, 7
          %v1835 = vsub.s32 0, %v1834
          %v1836 = vrot.slane %v1832, %v1835
          %v1837 = vmul.f32 %v1830, %v1836
          %v1838 = vmul.f32 %v1831, %v1836
          %v1839 = vld [vmem:[%s6 + $0x1] sm:$0x1]
          %v1840 = vlaneseq
          %v1841 = vshrl.u32 %v1840, 7
          %v1842 = vsub.s32 0, %v1841
          %v1843 = vrot.slane %v1839, %v1842
          %1845 = vrot.lane.b32.xlu0 %v1843, 1
          %v1846 = vpop.permute.xlu0 %1845
          %v1848 = vmul.f32 %v1830, %v1846
          %v1849 = vmul.f32 %v1831, %v1846
          %1852 = vrot.lane.b32.xlu0 %v1848, 127
          %v1853 = vpop.permute.xlu0 %1852
          %1854 = vrot.lane.b32.xlu0 %v1849, 127
          %v1855 = vpop.permute.xlu0 %1854
          %v1858 = vadd.f32 %v1837, %v1853
          %v1859 = vadd.f32 %v1838, %v1855
          %v1860 = vld [vmem:[%s6 + $0x2] sm:$0x1]
          %v1861 = vlaneseq
          %v1862 = vshrl.u32 %v1861, 7
          %v1863 = vsub.s32 0, %v1862
          %v1864 = vrot.slane %v1860, %v1863
          %1866 = vrot.lane.b32.xlu0 %v1864, 2
          %v1867 = vpop.permute.xlu0 %1866
          %v1869 = vmul.f32 %v1830, %v1867
          %v1870 = vmul.f32 %v1831, %v1867
          %1873 = vrot.lane.b32.xlu0 %v1869, 126
          %v1874 = vpop.permute.xlu0 %1873
          %1875 = vrot.lane.b32.xlu0 %v1870, 126
          %v1876 = vpop.permute.xlu0 %1875
          %v1879 = vadd.f32 %v1858, %v1874
          %v1880 = vadd.f32 %v1859, %v1876
          %v1881 = vld [vmem:[%s6 + $0x3] sm:$0x1]
          %v1882 = vlaneseq
          %v1883 = vshrl.u32 %v1882, 7
          %v1884 = vsub.s32 0, %v1883
          %v1885 = vrot.slane %v1881, %v1884
          %1887 = vrot.lane.b32.xlu0 %v1885, 3
          %v1888 = vpop.permute.xlu0 %1887
          %v1890 = vmul.f32 %v1830, %v1888
          %v1891 = vmul.f32 %v1831, %v1888
          %1894 = vrot.lane.b32.xlu0 %v1890, 125
          %v1895 = vpop.permute.xlu0 %1894
          %1896 = vrot.lane.b32.xlu0 %v1891, 125
          %v1897 = vpop.permute.xlu0 %1896
          %v1900 = vadd.f32 %v1879, %v1895
          %v1901 = vadd.f32 %v1880, %v1897
          %v1902 = vld [vmem:[%s6 + $0x4] sm:$0x1]
          %v1903 = vlaneseq
          %v1904 = vshrl.u32 %v1903, 7
          %v1905 = vsub.s32 0, %v1904
          %v1906 = vrot.slane %v1902, %v1905
          %1908 = vrot.lane.b32.xlu0 %v1906, 4
          %v1909 = vpop.permute.xlu0 %1908
          %v1911 = vmul.f32 %v1830, %v1909
          %v1912 = vmul.f32 %v1831, %v1909
          %1915 = vrot.lane.b32.xlu0 %v1911, 124
          %v1916 = vpop.permute.xlu0 %1915
          %1917 = vrot.lane.b32.xlu0 %v1912, 124
          %v1918 = vpop.permute.xlu0 %1917
          %v1921 = vadd.f32 %v1900, %v1916
          %v1922 = vadd.f32 %v1901, %v1918
          %v1923 = vld [vmem:[%s6 + $0x5] sm:$0x1]
          %v1924 = vlaneseq
          %v1925 = vshrl.u32 %v1924, 7
          %v1926 = vsub.s32 0, %v1925
          %v1927 = vrot.slane %v1923, %v1926
          %1929 = vrot.lane.b32.xlu0 %v1927, 5
          %v1930 = vpop.permute.xlu0 %1929
          %v1932 = vmul.f32 %v1830, %v1930
          %v1933 = vmul.f32 %v1831, %v1930
          %1936 = vrot.lane.b32.xlu0 %v1932, 123
          %v1937 = vpop.permute.xlu0 %1936
          %1938 = vrot.lane.b32.xlu0 %v1933, 123
          %v1939 = vpop.permute.xlu0 %1938
          %v1942 = vadd.f32 %v1921, %v1937
          %v1943 = vadd.f32 %v1922, %v1939
          %v1944 = vld [vmem:[%s6 + $0x6] sm:$0x1]
          %v1945 = vlaneseq
          %v1946 = vshrl.u32 %v1945, 7
          %v1947 = vsub.s32 0, %v1946
          %v1948 = vrot.slane %v1944, %v1947
          %1950 = vrot.lane.b32.xlu0 %v1948, 6
          %v1951 = vpop.permute.xlu0 %1950
          %v1953 = vmul.f32 %v1830, %v1951
          %v1954 = vmul.f32 %v1831, %v1951
          %1957 = vrot.lane.b32.xlu0 %v1953, 122
          %v1958 = vpop.permute.xlu0 %1957
          %1959 = vrot.lane.b32.xlu0 %v1954, 122
          %v1960 = vpop.permute.xlu0 %1959
          %v1963 = vadd.f32 %v1942, %v1958
          %v1964 = vadd.f32 %v1943, %v1960
          %vm1965 = vcmask 523264
          %v1966 = vsel %vm1965, %v1963, 0.0
          %v1967 = vsel %vm1965, %v1964, 0.0
          %v1968 = vadd.f32 %v1966, %v1967
          %v1969 = vrot.slane %v1968, 4
          %v1970 = vadd.f32 %v1968, %v1969
          %v1971 = vrot.slane %v1970, 2
          %v1972 = vadd.f32 %v1970, %v1971
          %v1973 = vrot.slane %v1972, 1
          %v1974 = vadd.f32 %v1972, %v1973
          %vm1975 = vcmask 516096
          %1976 = vst.msk [vmem:[%s635 + $0x6] sm:$0x1] %vm1975, %v1974
          %v1977 = vmul.f32 %v1963, %v1963
          %v1978 = vmul.f32 %v1964, %v1964
          %v1979 = vsel %vm1965, %v1977, 0.0
          %v1980 = vsel %vm1965, %v1978, 0.0
          %v1981 = vadd.f32 %v1979, %v1980
          %v1982 = vrot.slane %v1981, 4
          %v1983 = vadd.f32 %v1981, %v1982
          %v1984 = vrot.slane %v1983, 2
          %v1985 = vadd.f32 %v1983, %v1984
          %v1986 = vrot.slane %v1985, 1
          %v1987 = vadd.f32 %v1985, %v1986
          %1988 = vst.msk [vmem:[%s635 + $0x7] sm:$0x1] %vm1975, %v1987
          %v1989 = vpack.c.bf16 %v1964, %v1963
          %v1991 = vunpack.c.l.b16 %v1989
          %v1992 = vunpack.c.h.b16 %v1989
          %v1993 = vpack.c.b16 %v1991, %v1991
          %v1994 = vpack.c.b16 %v1992, %v1992
          %vm1997 = vcmask 519168
          %1998 = vst.msk [vmem:[%s620] sm:$0xf] %vm1997, %v1993
          %1999 = vst.msk [vmem:[%s620 + $0x4] sm:$0xf] %vm1997, %v1994
        $region100: #{mixed_op_forward.3} parent=63 // pred_fallthru
          _
        %s2000 = sld [smem:[#allocation6 + $0x5]]
        %p2001 = scmp.eq.s32.totalorder %s2000, 0
        // Predicated region
        $region101: #{mixed_op_forward.3} parent=63 // pred_check
          %p2002 = pneg %p2001
        $region102: #{mixed_op_forward.3} parent=63 // pred_check_branch
          %2004 = sbr.rel (%p2002) target = $region104
        $region103: #{mixed_op_forward.3} parent=63 // pred_region
          %vm2005 = vcmask 517120
          %2006 = vst.msk [vmem:[%s635 + $0x6] sm:$0x3] %vm2005, 0.0
          %vm2007 = vcmask 519168
          %2008 = vst.msk [vmem:[%s620] sm:$0xf] %vm2007, 0
          %2009 = vst.msk [vmem:[%s620 + $0x4] sm:$0xf] %vm2007, 0
        $region104: #{mixed_op_forward.3} parent=63 // pred_fallthru
          _
        %s2010 = sld [smem:[#allocation6 + $0x6]]
        %p2011 = scmp.ne.s32.totalorder %s2010, 0
        // Predicated region
        $region105: #{mixed_op_forward.3} parent=63 // pred_check
          %p2012 = pneg %p2011
        $region106: #{mixed_op_forward.3} parent=63 // pred_check_branch
          %2014 = sbr.rel (%p2012) target = $region108
        $region107: #{mixed_op_forward.3} parent=63 // pred_region
          %v2015 = vld [vmem:[#allocation2 + $0x2] sm:$0xff]
          %v2016 = vld [vmem:[#allocation2 + $0xa] sm:$0xff]
          %v2017 = vld [vmem:[%s7] sm:$0x1]
          %v2018 = vlaneseq
          %v2019 = vshrl.u32 %v2018, 7
          %v2020 = vsub.s32 0, %v2019
          %v2021 = vrot.slane %v2017, %v2020
          %2023 = vrot.lane.b32.xlu0 %v2021, 8
          %v2024 = vpop.permute.xlu0 %2023
          %v2026 = vmul.f32 %v2015, %v2024
          %v2027 = vmul.f32 %v2016, %v2024
          %v2028 = vld [vmem:[%s7 + $0x1] sm:$0x1]
          %v2029 = vlaneseq
          %v2030 = vshrl.u32 %v2029, 7
          %v2031 = vsub.s32 0, %v2030
          %v2032 = vrot.slane %v2028, %v2031
          %2034 = vrot.lane.b32.xlu0 %v2032, 16
          %v2035 = vpop.permute.xlu0 %2034
          %v2037 = vmul.f32 %v2015, %v2035
          %v2038 = vmul.f32 %v2016, %v2035
          %2041 = vrot.lane.b32.xlu0 %v2037, 120
          %v2042 = vpop.permute.xlu0 %2041
          %2043 = vrot.lane.b32.xlu0 %v2038, 120
          %v2044 = vpop.permute.xlu0 %2043
          %v2047 = vadd.f32 %v2026, %v2042
          %v2048 = vadd.f32 %v2027, %v2044
          %v2049 = vld [vmem:[%s7 + $0x2] sm:$0x1]
          %v2050 = vlaneseq
          %v2051 = vshrl.u32 %v2050, 7
          %v2052 = vsub.s32 0, %v2051
          %v2053 = vrot.slane %v2049, %v2052
          %2055 = vrot.lane.b32.xlu0 %v2053, 24
          %v2056 = vpop.permute.xlu0 %2055
          %v2058 = vmul.f32 %v2015, %v2056
          %v2059 = vmul.f32 %v2016, %v2056
          %2062 = vrot.lane.b32.xlu0 %v2058, 112
          %v2063 = vpop.permute.xlu0 %2062
          %2064 = vrot.lane.b32.xlu0 %v2059, 112
          %v2065 = vpop.permute.xlu0 %2064
          %v2068 = vadd.f32 %v2047, %v2063
          %v2069 = vadd.f32 %v2048, %v2065
          %v2070 = vld [vmem:[#allocation2 + $0x4] sm:$0xff]
          %v2071 = vld [vmem:[#allocation2 + $0xc] sm:$0xff]
          %v2072 = vld [vmem:[%s7 + $0x3] sm:$0x1]
          %v2073 = vlaneseq
          %v2074 = vshrl.u32 %v2073, 7
          %v2075 = vsub.s32 0, %v2074
          %v2076 = vrot.slane %v2072, %v2075
          %2078 = vrot.lane.b32.xlu0 %v2076, 8
          %v2079 = vpop.permute.xlu0 %2078
          %v2081 = vmul.f32 %v2070, %v2079
          %v2082 = vmul.f32 %v2071, %v2079
          %v2083 = vadd.f32 %v2068, %v2081
          %v2084 = vadd.f32 %v2069, %v2082
          %v2085 = vld [vmem:[%s7 + $0x4] sm:$0x1]
          %v2086 = vlaneseq
          %v2087 = vshrl.u32 %v2086, 7
          %v2088 = vsub.s32 0, %v2087
          %v2089 = vrot.slane %v2085, %v2088
          %2091 = vrot.lane.b32.xlu0 %v2089, 16
          %v2092 = vpop.permute.xlu0 %2091
          %v2094 = vmul.f32 %v2070, %v2092
          %v2095 = vmul.f32 %v2071, %v2092
          %2098 = vrot.lane.b32.xlu0 %v2094, 120
          %v2099 = vpop.permute.xlu0 %2098
          %2100 = vrot.lane.b32.xlu0 %v2095, 120
          %v2101 = vpop.permute.xlu0 %2100
          %v2104 = vadd.f32 %v2083, %v2099
          %v2105 = vadd.f32 %v2084, %v2101
          %v2106 = vld [vmem:[%s7 + $0x5] sm:$0x1]
          %v2107 = vlaneseq
          %v2108 = vshrl.u32 %v2107, 7
          %v2109 = vsub.s32 0, %v2108
          %v2110 = vrot.slane %v2106, %v2109
          %2112 = vrot.lane.b32.xlu0 %v2110, 24
          %v2113 = vpop.permute.xlu0 %2112
          %v2115 = vmul.f32 %v2070, %v2113
          %v2116 = vmul.f32 %v2071, %v2113
          %2119 = vrot.lane.b32.xlu0 %v2115, 112
          %v2120 = vpop.permute.xlu0 %2119
          %2121 = vrot.lane.b32.xlu0 %v2116, 112
          %v2122 = vpop.permute.xlu0 %2121
          %v2125 = vadd.f32 %v2104, %v2120
          %v2126 = vadd.f32 %v2105, %v2122
          %v2127 = vld [vmem:[#allocation2 + $0x6] sm:$0xff]
          %v2128 = vld [vmem:[#allocation2 + $0xe] sm:$0xff]
          %v2129 = vld [vmem:[%s7 + $0x6] sm:$0x1]
          %v2130 = vlaneseq
          %v2131 = vshrl.u32 %v2130, 7
          %v2132 = vsub.s32 0, %v2131
          %v2133 = vrot.slane %v2129, %v2132
          %2135 = vrot.lane.b32.xlu0 %v2133, 8
          %v2136 = vpop.permute.xlu0 %2135
          %v2138 = vmul.f32 %v2127, %v2136
          %v2139 = vmul.f32 %v2128, %v2136
          %v2140 = vadd.f32 %v2125, %v2138
          %v2141 = vadd.f32 %v2126, %v2139
          %v2142 = vld [vmem:[%s7 + $0x7] sm:$0x1]
          %v2143 = vlaneseq
          %v2144 = vshrl.u32 %v2143, 7
          %v2145 = vsub.s32 0, %v2144
          %v2146 = vrot.slane %v2142, %v2145
          %2148 = vrot.lane.b32.xlu0 %v2146, 16
          %v2149 = vpop.permute.xlu0 %2148
          %v2151 = vmul.f32 %v2127, %v2149
          %v2152 = vmul.f32 %v2128, %v2149
          %2155 = vrot.lane.b32.xlu0 %v2151, 120
          %v2156 = vpop.permute.xlu0 %2155
          %2157 = vrot.lane.b32.xlu0 %v2152, 120
          %v2158 = vpop.permute.xlu0 %2157
          %v2161 = vadd.f32 %v2140, %v2156
          %v2162 = vadd.f32 %v2141, %v2158
          %v2163 = vld [vmem:[%s7 + $0x8] sm:$0x1]
          %v2164 = vlaneseq
          %v2165 = vshrl.u32 %v2164, 7
          %v2166 = vsub.s32 0, %v2165
          %v2167 = vrot.slane %v2163, %v2166
          %2169 = vrot.lane.b32.xlu0 %v2167, 24
          %v2170 = vpop.permute.xlu0 %2169
          %v2172 = vmul.f32 %v2127, %v2170
          %v2173 = vmul.f32 %v2128, %v2170
          %2176 = vrot.lane.b32.xlu0 %v2172, 112
          %v2177 = vpop.permute.xlu0 %2176
          %2178 = vrot.lane.b32.xlu0 %v2173, 112
          %v2179 = vpop.permute.xlu0 %2178
          %v2182 = vadd.f32 %v2161, %v2177
          %v2183 = vadd.f32 %v2162, %v2179
          %vm2184 = vcmask 23552
          %2185 = vst.msk [vmem:[#allocation5] sm:$0xff] %vm2184, 0.0
          %2186 = vst.msk [vmem:[#allocation5 + $0x8] sm:$0xff] %vm2184, 0.0
          %vm2187 = vcmask 572952
          %2188 = vst.msk [vmem:[#allocation5] sm:$0xff] %vm2187, 0.0
          %2189 = vst.msk [vmem:[#allocation5 + $0x8] sm:$0xff] %vm2187, 0.0
          %2192 = vrot.lane.b32.xlu0 %v2182, 123
          %v2193 = vpop.permute.xlu0 %2192
          %2194 = vrot.lane.b32.xlu0 %v2183, 123
          %v2195 = vpop.permute.xlu0 %2194
          %vm2198 = vcmask 547864
          %2199 = vst.msk [vmem:[#allocation5] sm:$0xff] %vm2198, %v2193
          %2200 = vst.msk [vmem:[#allocation5 + $0x8] sm:$0xff] %vm2198, %v2195
          %v2201 = vld [vmem:[#allocation5] sm:$0xff]
          %v2202 = vld [vmem:[#allocation5 + $0x8] sm:$0xff]
          %v2203 = vld [vmem:[%s8] sm:$0x1]
          %v2204 = vlaneseq
          %v2205 = vshrl.u32 %v2204, 7
          %v2206 = vsub.s32 0, %v2205
          %v2207 = vrot.slane %v2203, %v2206
          %v2208 = vmul.f32 %v2201, %v2207
          %v2209 = vmul.f32 %v2202, %v2207
          %v2210 = vld [vmem:[%s8 + $0x1] sm:$0x1]
          %v2211 = vlaneseq
          %v2212 = vshrl.u32 %v2211, 7
          %v2213 = vsub.s32 0, %v2212
          %v2214 = vrot.slane %v2210, %v2213
          %2216 = vrot.lane.b32.xlu0 %v2214, 1
          %v2217 = vpop.permute.xlu0 %2216
          %v2219 = vmul.f32 %v2201, %v2217
          %v2220 = vmul.f32 %v2202, %v2217
          %2223 = vrot.lane.b32.xlu0 %v2219, 127
          %v2224 = vpop.permute.xlu0 %2223
          %2225 = vrot.lane.b32.xlu0 %v2220, 127
          %v2226 = vpop.permute.xlu0 %2225
          %v2229 = vadd.f32 %v2208, %v2224
          %v2230 = vadd.f32 %v2209, %v2226
          %v2231 = vld [vmem:[%s8 + $0x2] sm:$0x1]
          %v2232 = vlaneseq
          %v2233 = vshrl.u32 %v2232, 7
          %v2234 = vsub.s32 0, %v2233
          %v2235 = vrot.slane %v2231, %v2234
          %2237 = vrot.lane.b32.xlu0 %v2235, 2
          %v2238 = vpop.permute.xlu0 %2237
          %v2240 = vmul.f32 %v2201, %v2238
          %v2241 = vmul.f32 %v2202, %v2238
          %2244 = vrot.lane.b32.xlu0 %v2240, 126
          %v2245 = vpop.permute.xlu0 %2244
          %2246 = vrot.lane.b32.xlu0 %v2241, 126
          %v2247 = vpop.permute.xlu0 %2246
          %v2250 = vadd.f32 %v2229, %v2245
          %v2251 = vadd.f32 %v2230, %v2247
          %v2252 = vld [vmem:[%s8 + $0x3] sm:$0x1]
          %v2253 = vlaneseq
          %v2254 = vshrl.u32 %v2253, 7
          %v2255 = vsub.s32 0, %v2254
          %v2256 = vrot.slane %v2252, %v2255
          %2258 = vrot.lane.b32.xlu0 %v2256, 3
          %v2259 = vpop.permute.xlu0 %2258
          %v2261 = vmul.f32 %v2201, %v2259
          %v2262 = vmul.f32 %v2202, %v2259
          %2265 = vrot.lane.b32.xlu0 %v2261, 125
          %v2266 = vpop.permute.xlu0 %2265
          %2267 = vrot.lane.b32.xlu0 %v2262, 125
          %v2268 = vpop.permute.xlu0 %2267
          %v2271 = vadd.f32 %v2250, %v2266
          %v2272 = vadd.f32 %v2251, %v2268
          %v2273 = vld [vmem:[%s8 + $0x4] sm:$0x1]
          %v2274 = vlaneseq
          %v2275 = vshrl.u32 %v2274, 7
          %v2276 = vsub.s32 0, %v2275
          %v2277 = vrot.slane %v2273, %v2276
          %2279 = vrot.lane.b32.xlu0 %v2277, 4
          %v2280 = vpop.permute.xlu0 %2279
          %v2282 = vmul.f32 %v2201, %v2280
          %v2283 = vmul.f32 %v2202, %v2280
          %2286 = vrot.lane.b32.xlu0 %v2282, 124
          %v2287 = vpop.permute.xlu0 %2286
          %2288 = vrot.lane.b32.xlu0 %v2283, 124
          %v2289 = vpop.permute.xlu0 %2288
          %v2292 = vadd.f32 %v2271, %v2287
          %v2293 = vadd.f32 %v2272, %v2289
          %v2294 = vld [vmem:[%s8 + $0x5] sm:$0x1]
          %v2295 = vlaneseq
          %v2296 = vshrl.u32 %v2295, 7
          %v2297 = vsub.s32 0, %v2296
          %v2298 = vrot.slane %v2294, %v2297
          %2300 = vrot.lane.b32.xlu0 %v2298, 5
          %v2301 = vpop.permute.xlu0 %2300
          %v2303 = vmul.f32 %v2201, %v2301
          %v2304 = vmul.f32 %v2202, %v2301
          %2307 = vrot.lane.b32.xlu0 %v2303, 123
          %v2308 = vpop.permute.xlu0 %2307
          %2309 = vrot.lane.b32.xlu0 %v2304, 123
          %v2310 = vpop.permute.xlu0 %2309
          %v2313 = vadd.f32 %v2292, %v2308
          %v2314 = vadd.f32 %v2293, %v2310
          %v2315 = vld [vmem:[%s8 + $0x6] sm:$0x1]
          %v2316 = vlaneseq
          %v2317 = vshrl.u32 %v2316, 7
          %v2318 = vsub.s32 0, %v2317
          %v2319 = vrot.slane %v2315, %v2318
          %2321 = vrot.lane.b32.xlu0 %v2319, 6
          %v2322 = vpop.permute.xlu0 %2321
          %v2324 = vmul.f32 %v2201, %v2322
          %v2325 = vmul.f32 %v2202, %v2322
          %2328 = vrot.lane.b32.xlu0 %v2324, 122
          %v2329 = vpop.permute.xlu0 %2328
          %2330 = vrot.lane.b32.xlu0 %v2325, 122
          %v2331 = vpop.permute.xlu0 %2330
          %v2334 = vadd.f32 %v2313, %v2329
          %v2335 = vadd.f32 %v2314, %v2331
          %vm2336 = vcmask 523264
          %v2337 = vsel %vm2336, %v2334, 0.0
          %v2338 = vsel %vm2336, %v2335, 0.0
          %v2339 = vadd.f32 %v2337, %v2338
          %v2340 = vrot.slane %v2339, 4
          %v2341 = vadd.f32 %v2339, %v2340
          %v2342 = vrot.slane %v2341, 2
          %v2343 = vadd.f32 %v2341, %v2342
          %v2344 = vrot.slane %v2343, 1
          %v2345 = vadd.f32 %v2343, %v2344
          %vm2346 = vcmask 516096
          %2347 = vst.msk [vmem:[%s635 + $0x8] sm:$0x1] %vm2346, %v2345
          %v2348 = vmul.f32 %v2334, %v2334
          %v2349 = vmul.f32 %v2335, %v2335
          %v2350 = vsel %vm2336, %v2348, 0.0
          %v2351 = vsel %vm2336, %v2349, 0.0
          %v2352 = vadd.f32 %v2350, %v2351
          %v2353 = vrot.slane %v2352, 4
          %v2354 = vadd.f32 %v2352, %v2353
          %v2355 = vrot.slane %v2354, 2
          %v2356 = vadd.f32 %v2354, %v2355
          %v2357 = vrot.slane %v2356, 1
          %v2358 = vadd.f32 %v2356, %v2357
          %2359 = vst.msk [vmem:[%s635 + $0x9] sm:$0x1] %vm2346, %v2358
          %v2360 = vpack.c.bf16 %v2335, %v2334
          %v2362 = vunpack.c.l.b16 %v2360
          %v2363 = vunpack.c.h.b16 %v2360
          %v2364 = vpack.c.b16 %v2362, %v2362
          %v2365 = vpack.c.b16 %v2363, %v2363
          %vm2368 = vcmask 519168
          %2369 = vst.msk [vmem:[%s625] sm:$0xf] %vm2368, %v2364
          %2370 = vst.msk [vmem:[%s625 + $0x4] sm:$0xf] %vm2368, %v2365
        $region108: #{mixed_op_forward.3} parent=63 // pred_fallthru
          _
        %s2371 = sld [smem:[#allocation6 + $0x6]]
        %p2372 = scmp.eq.s32.totalorder %s2371, 0
        // Predicated region
        $region109: #{mixed_op_forward.3} parent=63 // pred_check
          %p2373 = pneg %p2372
        $region110: #{mixed_op_forward.3} parent=63 // pred_check_branch
          %2375 = sbr.rel (%p2373) target = $region112
        $region111: #{mixed_op_forward.3} parent=63 // pred_region
          %vm2376 = vcmask 517120
          %2377 = vst.msk [vmem:[%s635 + $0x8] sm:$0x3] %vm2376, 0.0
          %vm2378 = vcmask 519168
          %2379 = vst.msk [vmem:[%s625] sm:$0xf] %vm2378, 0
          %2380 = vst.msk [vmem:[%s625 + $0x4] sm:$0xf] %vm2378, 0
        $region112: #{mixed_op_forward.3} parent=63 // pred_fallthru
          _
        %s2381 = sld [smem:[#allocation6 + $0x7]]
        %p2382 = scmp.ne.s32.totalorder %s2381, 0
        // Predicated region
        $region113: #{mixed_op_forward.3} parent=63 // pred_check
          %p2383 = pneg %p2382
        $region114: #{mixed_op_forward.3} parent=63 // pred_check_branch
          %2385 = sbr.rel (%p2383) target = $region116
        $region115: #{mixed_op_forward.3} parent=63 // pred_region
          %v2386 = vld [vmem:[#allocation2] sm:$0xff]
          %v2387 = vld [vmem:[#allocation2 + $0x8] sm:$0xff]
          %v2388 = vld [vmem:[%s9] sm:$0x1]
          %v2389 = vlaneseq
          %v2390 = vshrl.u32 %v2389, 7
          %v2391 = vsub.s32 0, %v2390
          %v2392 = vrot.slane %v2388, %v2391
          %v2393 = vmul.f32 %v2386, %v2392
          %v2394 = vmul.f32 %v2387, %v2392
          %v2395 = vld [vmem:[%s9 + $0x1] sm:$0x1]
          %v2396 = vlaneseq
          %v2397 = vshrl.u32 %v2396, 7
          %v2398 = vsub.s32 0, %v2397
          %v2399 = vrot.slane %v2395, %v2398
          %2401 = vrot.lane.b32.xlu0 %v2399, 8
          %v2402 = vpop.permute.xlu0 %2401
          %v2404 = vmul.f32 %v2386, %v2402
          %v2405 = vmul.f32 %v2387, %v2402
          %2408 = vrot.lane.b32.xlu0 %v2404, 120
          %v2409 = vpop.permute.xlu0 %2408
          %2410 = vrot.lane.b32.xlu0 %v2405, 120
          %v2411 = vpop.permute.xlu0 %2410
          %v2414 = vadd.f32 %v2393, %v2409
          %v2415 = vadd.f32 %v2394, %v2411
          %v2416 = vld [vmem:[%s9 + $0x2] sm:$0x1]
          %v2417 = vlaneseq
          %v2418 = vshrl.u32 %v2417, 7
          %v2419 = vsub.s32 0, %v2418
          %v2420 = vrot.slane %v2416, %v2419
          %2422 = vrot.lane.b32.xlu0 %v2420, 16
          %v2423 = vpop.permute.xlu0 %2422
          %v2425 = vmul.f32 %v2386, %v2423
          %v2426 = vmul.f32 %v2387, %v2423
          %2429 = vrot.lane.b32.xlu0 %v2425, 112
          %v2430 = vpop.permute.xlu0 %2429
          %2431 = vrot.lane.b32.xlu0 %v2426, 112
          %v2432 = vpop.permute.xlu0 %2431
          %v2435 = vadd.f32 %v2414, %v2430
          %v2436 = vadd.f32 %v2415, %v2432
          %v2437 = vld [vmem:[%s9 + $0x3] sm:$0x1]
          %v2438 = vlaneseq
          %v2439 = vshrl.u32 %v2438, 7
          %v2440 = vsub.s32 0, %v2439
          %v2441 = vrot.slane %v2437, %v2440
          %2443 = vrot.lane.b32.xlu0 %v2441, 24
          %v2444 = vpop.permute.xlu0 %2443
          %v2446 = vmul.f32 %v2386, %v2444
          %v2447 = vmul.f32 %v2387, %v2444
          %2450 = vrot.lane.b32.xlu0 %v2446, 104
          %v2451 = vpop.permute.xlu0 %2450
          %2452 = vrot.lane.b32.xlu0 %v2447, 104
          %v2453 = vpop.permute.xlu0 %2452
          %v2456 = vadd.f32 %v2435, %v2451
          %v2457 = vadd.f32 %v2436, %v2453
          %v2458 = vld [vmem:[%s9 + $0x4] sm:$0x1]
          %v2459 = vlaneseq
          %v2460 = vshrl.u32 %v2459, 7
          %v2461 = vsub.s32 0, %v2460
          %v2462 = vrot.slane %v2458, %v2461
          %2464 = vrot.lane.b32.xlu0 %v2462, 32
          %v2465 = vpop.permute.xlu0 %2464
          %v2467 = vmul.f32 %v2386, %v2465
          %v2468 = vmul.f32 %v2387, %v2465
          %2471 = vrot.lane.b32.xlu0 %v2467, 96
          %v2472 = vpop.permute.xlu0 %2471
          %2473 = vrot.lane.b32.xlu0 %v2468, 96
          %v2474 = vpop.permute.xlu0 %2473
          %v2477 = vadd.f32 %v2456, %v2472
          %v2478 = vadd.f32 %v2457, %v2474
          %v2479 = vld [vmem:[#allocation2 + $0x2] sm:$0xff]
          %v2480 = vld [vmem:[#allocation2 + $0xa] sm:$0xff]
          %v2481 = vld [vmem:[%s9 + $0x5] sm:$0x1]
          %v2482 = vlaneseq
          %v2483 = vshrl.u32 %v2482, 7
          %v2484 = vsub.s32 0, %v2483
          %v2485 = vrot.slane %v2481, %v2484
          %v2486 = vmul.f32 %v2479, %v2485
          %v2487 = vmul.f32 %v2480, %v2485
          %v2488 = vadd.f32 %v2477, %v2486
          %v2489 = vadd.f32 %v2478, %v2487
          %v2490 = vld [vmem:[%s9 + $0x6] sm:$0x1]
          %v2491 = vlaneseq
          %v2492 = vshrl.u32 %v2491, 7
          %v2493 = vsub.s32 0, %v2492
          %v2494 = vrot.slane %v2490, %v2493
          %2496 = vrot.lane.b32.xlu0 %v2494, 8
          %v2497 = vpop.permute.xlu0 %2496
          %v2499 = vmul.f32 %v2479, %v2497
          %v2500 = vmul.f32 %v2480, %v2497
          %2503 = vrot.lane.b32.xlu0 %v2499, 120
          %v2504 = vpop.permute.xlu0 %2503
          %2505 = vrot.lane.b32.xlu0 %v2500, 120
          %v2506 = vpop.permute.xlu0 %2505
          %v2509 = vadd.f32 %v2488, %v2504
          %v2510 = vadd.f32 %v2489, %v2506
          %v2511 = vld [vmem:[%s9 + $0x7] sm:$0x1]
          %v2512 = vlaneseq
          %v2513 = vshrl.u32 %v2512, 7
          %v2514 = vsub.s32 0, %v2513
          %v2515 = vrot.slane %v2511, %v2514
          %2517 = vrot.lane.b32.xlu0 %v2515, 16
          %v2518 = vpop.permute.xlu0 %2517
          %v2520 = vmul.f32 %v2479, %v2518
          %v2521 = vmul.f32 %v2480, %v2518
          %2524 = vrot.lane.b32.xlu0 %v2520, 112
          %v2525 = vpop.permute.xlu0 %2524
          %2526 = vrot.lane.b32.xlu0 %v2521, 112
          %v2527 = vpop.permute.xlu0 %2526
          %v2530 = vadd.f32 %v2509, %v2525
          %v2531 = vadd.f32 %v2510, %v2527
          %v2532 = vld [vmem:[%s9 + $0x8] sm:$0x1]
          %v2533 = vlaneseq
          %v2534 = vshrl.u32 %v2533, 7
          %v2535 = vsub.s32 0, %v2534
          %v2536 = vrot.slane %v2532, %v2535
          %2538 = vrot.lane.b32.xlu0 %v2536, 24
          %v2539 = vpop.permute.xlu0 %2538
          %v2541 = vmul.f32 %v2479, %v2539
          %v2542 = vmul.f32 %v2480, %v2539
          %2545 = vrot.lane.b32.xlu0 %v2541, 104
          %v2546 = vpop.permute.xlu0 %2545
          %2547 = vrot.lane.b32.xlu0 %v2542, 104
          %v2548 = vpop.permute.xlu0 %2547
          %v2551 = vadd.f32 %v2530, %v2546
          %v2552 = vadd.f32 %v2531, %v2548
          %v2553 = vld [vmem:[%s9 + $0x9] sm:$0x1]
          %v2554 = vlaneseq
          %v2555 = vshrl.u32 %v2554, 7
          %v2556 = vsub.s32 0, %v2555
          %v2557 = vrot.slane %v2553, %v2556
          %2559 = vrot.lane.b32.xlu0 %v2557, 32
          %v2560 = vpop.permute.xlu0 %2559
          %v2562 = vmul.f32 %v2479, %v2560
          %v2563 = vmul.f32 %v2480, %v2560
          %2566 = vrot.lane.b32.xlu0 %v2562, 96
          %v2567 = vpop.permute.xlu0 %2566
          %2568 = vrot.lane.b32.xlu0 %v2563, 96
          %v2569 = vpop.permute.xlu0 %2568
          %v2572 = vadd.f32 %v2551, %v2567
          %v2573 = vadd.f32 %v2552, %v2569
          %v2574 = vld [vmem:[#allocation2 + $0x4] sm:$0xff]
          %v2575 = vld [vmem:[#allocation2 + $0xc] sm:$0xff]
          %v2576 = vld [vmem:[%s9 + $0xa] sm:$0x1]
          %v2577 = vlaneseq
          %v2578 = vshrl.u32 %v2577, 7
          %v2579 = vsub.s32 0, %v2578
          %v2580 = vrot.slane %v2576, %v2579
          %v2581 = vmul.f32 %v2574, %v2580
          %v2582 = vmul.f32 %v2575, %v2580
          %v2583 = vadd.f32 %v2572, %v2581
          %v2584 = vadd.f32 %v2573, %v2582
          %v2585 = vld [vmem:[%s9 + $0xb] sm:$0x1]
          %v2586 = vlaneseq
          %v2587 = vshrl.u32 %v2586, 7
          %v2588 = vsub.s32 0, %v2587
          %v2589 = vrot.slane %v2585, %v2588
          %2591 = vrot.lane.b32.xlu0 %v2589, 8
          %v2592 = vpop.permute.xlu0 %2591
          %v2594 = vmul.f32 %v2574, %v2592
          %v2595 = vmul.f32 %v2575, %v2592
          %2598 = vrot.lane.b32.xlu0 %v2594, 120
          %v2599 = vpop.permute.xlu0 %2598
          %2600 = vrot.lane.b32.xlu0 %v2595, 120
          %v2601 = vpop.permute.xlu0 %2600
          %v2604 = vadd.f32 %v2583, %v2599
          %v2605 = vadd.f32 %v2584, %v2601
          %v2606 = vld [vmem:[%s9 + $0xc] sm:$0x1]
          %v2607 = vlaneseq
          %v2608 = vshrl.u32 %v2607, 7
          %v2609 = vsub.s32 0, %v2608
          %v2610 = vrot.slane %v2606, %v2609
          %2612 = vrot.lane.b32.xlu0 %v2610, 16
          %v2613 = vpop.permute.xlu0 %2612
          %v2615 = vmul.f32 %v2574, %v2613
          %v2616 = vmul.f32 %v2575, %v2613
          %2619 = vrot.lane.b32.xlu0 %v2615, 112
          %v2620 = vpop.permute.xlu0 %2619
          %2621 = vrot.lane.b32.xlu0 %v2616, 112
          %v2622 = vpop.permute.xlu0 %2621
          %v2625 = vadd.f32 %v2604, %v2620
          %v2626 = vadd.f32 %v2605, %v2622
          %v2627 = vld [vmem:[%s9 + $0xd] sm:$0x1]
          %v2628 = vlaneseq
          %v2629 = vshrl.u32 %v2628, 7
          %v2630 = vsub.s32 0, %v2629
          %v2631 = vrot.slane %v2627, %v2630
          %2633 = vrot.lane.b32.xlu0 %v2631, 24
          %v2634 = vpop.permute.xlu0 %2633
          %v2636 = vmul.f32 %v2574, %v2634
          %v2637 = vmul.f32 %v2575, %v2634
          %2640 = vrot.lane.b32.xlu0 %v2636, 104
          %v2641 = vpop.permute.xlu0 %2640
          %2642 = vrot.lane.b32.xlu0 %v2637, 104
          %v2643 = vpop.permute.xlu0 %2642
          %v2646 = vadd.f32 %v2625, %v2641
          %v2647 = vadd.f32 %v2626, %v2643
          %v2648 = vld [vmem:[%s9 + $0xe] sm:$0x1]
          %v2649 = vlaneseq
          %v2650 = vshrl.u32 %v2649, 7
          %v2651 = vsub.s32 0, %v2650
          %v2652 = vrot.slane %v2648, %v2651
          %2654 = vrot.lane.b32.xlu0 %v2652, 32
          %v2655 = vpop.permute.xlu0 %2654
          %v2657 = vmul.f32 %v2574, %v2655
          %v2658 = vmul.f32 %v2575, %v2655
          %2661 = vrot.lane.b32.xlu0 %v2657, 96
          %v2662 = vpop.permute.xlu0 %2661
          %2663 = vrot.lane.b32.xlu0 %v2658, 96
          %v2664 = vpop.permute.xlu0 %2663
          %v2667 = vadd.f32 %v2646, %v2662
          %v2668 = vadd.f32 %v2647, %v2664
          %v2669 = vld [vmem:[#allocation2 + $0x6] sm:$0xff]
          %v2670 = vld [vmem:[#allocation2 + $0xe] sm:$0xff]
          %v2671 = vld [vmem:[%s9 + $0xf] sm:$0x1]
          %v2672 = vlaneseq
          %v2673 = vshrl.u32 %v2672, 7
          %v2674 = vsub.s32 0, %v2673
          %v2675 = vrot.slane %v2671, %v2674
          %v2676 = vmul.f32 %v2669, %v2675
          %v2677 = vmul.f32 %v2670, %v2675
          %v2678 = vadd.f32 %v2667, %v2676
          %v2679 = vadd.f32 %v2668, %v2677
          %v2680 = vld [vmem:[%s9 + $0x10] sm:$0x1]
          %v2681 = vlaneseq
          %v2682 = vshrl.u32 %v2681, 7
          %v2683 = vsub.s32 0, %v2682
          %v2684 = vrot.slane %v2680, %v2683
          %2686 = vrot.lane.b32.xlu0 %v2684, 8
          %v2687 = vpop.permute.xlu0 %2686
          %v2689 = vmul.f32 %v2669, %v2687
          %v2690 = vmul.f32 %v2670, %v2687
          %2693 = vrot.lane.b32.xlu0 %v2689, 120
          %v2694 = vpop.permute.xlu0 %2693
          %2695 = vrot.lane.b32.xlu0 %v2690, 120
          %v2696 = vpop.permute.xlu0 %2695
          %v2699 = vadd.f32 %v2678, %v2694
          %v2700 = vadd.f32 %v2679, %v2696
          %v2701 = vld [vmem:[%s9 + $0x11] sm:$0x1]
          %v2702 = vlaneseq
          %v2703 = vshrl.u32 %v2702, 7
          %v2704 = vsub.s32 0, %v2703
          %v2705 = vrot.slane %v2701, %v2704
          %2707 = vrot.lane.b32.xlu0 %v2705, 16
          %v2708 = vpop.permute.xlu0 %2707
          %v2710 = vmul.f32 %v2669, %v2708
          %v2711 = vmul.f32 %v2670, %v2708
          %2714 = vrot.lane.b32.xlu0 %v2710, 112
          %v2715 = vpop.permute.xlu0 %2714
          %2716 = vrot.lane.b32.xlu0 %v2711, 112
          %v2717 = vpop.permute.xlu0 %2716
          %v2720 = vadd.f32 %v2699, %v2715
          %v2721 = vadd.f32 %v2700, %v2717
          %v2722 = vld [vmem:[%s9 + $0x12] sm:$0x1]
          %v2723 = vlaneseq
          %v2724 = vshrl.u32 %v2723, 7
          %v2725 = vsub.s32 0, %v2724
          %v2726 = vrot.slane %v2722, %v2725
          %2728 = vrot.lane.b32.xlu0 %v2726, 24
          %v2729 = vpop.permute.xlu0 %2728
          %v2731 = vmul.f32 %v2669, %v2729
          %v2732 = vmul.f32 %v2670, %v2729
          %2735 = vrot.lane.b32.xlu0 %v2731, 104
          %v2736 = vpop.permute.xlu0 %2735
          %2737 = vrot.lane.b32.xlu0 %v2732, 104
          %v2738 = vpop.permute.xlu0 %2737
          %v2741 = vadd.f32 %v2720, %v2736
          %v2742 = vadd.f32 %v2721, %v2738
          %v2743 = vld [vmem:[%s9 + $0x13] sm:$0x1]
          %v2744 = vlaneseq
          %v2745 = vshrl.u32 %v2744, 7
          %v2746 = vsub.s32 0, %v2745
          %v2747 = vrot.slane %v2743, %v2746
          %2749 = vrot.lane.b32.xlu0 %v2747, 32
          %v2750 = vpop.permute.xlu0 %2749
          %v2752 = vmul.f32 %v2669, %v2750
          %v2753 = vmul.f32 %v2670, %v2750
          %2756 = vrot.lane.b32.xlu0 %v2752, 96
          %v2757 = vpop.permute.xlu0 %2756
          %2758 = vrot.lane.b32.xlu0 %v2753, 96
          %v2759 = vpop.permute.xlu0 %2758
          %v2762 = vadd.f32 %v2741, %v2757
          %v2763 = vadd.f32 %v2742, %v2759
          %v2764 = vld [vmem:[#allocation2 + $0x10] sm:$0xff]
          %v2765 = vld [vmem:[%s9 + $0x14] sm:$0x1]
          %v2766 = vlaneseq
          %v2767 = vshrl.u32 %v2766, 7
          %v2768 = vsub.s32 0, %v2767
          %v2769 = vrot.slane %v2765, %v2768
          %v2770 = vmul.f32 %v2387, %v2769
          %v2771 = vmul.f32 %v2764, %v2769
          %v2772 = vadd.f32 %v2762, %v2770
          %v2773 = vadd.f32 %v2763, %v2771
          %v2774 = vld [vmem:[%s9 + $0x15] sm:$0x1]
          %v2775 = vlaneseq
          %v2776 = vshrl.u32 %v2775, 7
          %v2777 = vsub.s32 0, %v2776
          %v2778 = vrot.slane %v2774, %v2777
          %2780 = vrot.lane.b32.xlu0 %v2778, 8
          %v2781 = vpop.permute.xlu0 %2780
          %v2783 = vmul.f32 %v2387, %v2781
          %v2784 = vmul.f32 %v2764, %v2781
          %2787 = vrot.lane.b32.xlu0 %v2783, 120
          %v2788 = vpop.permute.xlu0 %2787
          %2789 = vrot.lane.b32.xlu0 %v2784, 120
          %v2790 = vpop.permute.xlu0 %2789
          %v2793 = vadd.f32 %v2772, %v2788
          %v2794 = vadd.f32 %v2773, %v2790
          %v2795 = vld [vmem:[%s9 + $0x16] sm:$0x1]
          %v2796 = vlaneseq
          %v2797 = vshrl.u32 %v2796, 7
          %v2798 = vsub.s32 0, %v2797
          %v2799 = vrot.slane %v2795, %v2798
          %2801 = vrot.lane.b32.xlu0 %v2799, 16
          %v2802 = vpop.permute.xlu0 %2801
          %v2804 = vmul.f32 %v2387, %v2802
          %v2805 = vmul.f32 %v2764, %v2802
          %2808 = vrot.lane.b32.xlu0 %v2804, 112
          %v2809 = vpop.permute.xlu0 %2808
          %2810 = vrot.lane.b32.xlu0 %v2805, 112
          %v2811 = vpop.permute.xlu0 %2810
          %v2814 = vadd.f32 %v2793, %v2809
          %v2815 = vadd.f32 %v2794, %v2811
          %v2816 = vld [vmem:[%s9 + $0x17] sm:$0x1]
          %v2817 = vlaneseq
          %v2818 = vshrl.u32 %v2817, 7
          %v2819 = vsub.s32 0, %v2818
          %v2820 = vrot.slane %v2816, %v2819
          %2822 = vrot.lane.b32.xlu0 %v2820, 24
          %v2823 = vpop.permute.xlu0 %2822
          %v2825 = vmul.f32 %v2387, %v2823
          %v2826 = vmul.f32 %v2764, %v2823
          %2829 = vrot.lane.b32.xlu0 %v2825, 104
          %v2830 = vpop.permute.xlu0 %2829
          %2831 = vrot.lane.b32.xlu0 %v2826, 104
          %v2832 = vpop.permute.xlu0 %2831
          %v2835 = vadd.f32 %v2814, %v2830
          %v2836 = vadd.f32 %v2815, %v2832
          %v2837 = vld [vmem:[%s9 + $0x18] sm:$0x1]
          %v2838 = vlaneseq
          %v2839 = vshrl.u32 %v2838, 7
          %v2840 = vsub.s32 0, %v2839
          %v2841 = vrot.slane %v2837, %v2840
          %2843 = vrot.lane.b32.xlu0 %v2841, 32
          %v2844 = vpop.permute.xlu0 %2843
          %v2846 = vmul.f32 %v2387, %v2844
          %v2847 = vmul.f32 %v2764, %v2844
          %2850 = vrot.lane.b32.xlu0 %v2846, 96
          %v2851 = vpop.permute.xlu0 %2850
          %2852 = vrot.lane.b32.xlu0 %v2847, 96
          %v2853 = vpop.permute.xlu0 %2852
          %v2856 = vadd.f32 %v2835, %v2851
          %v2857 = vadd.f32 %v2836, %v2853
          %vm2858 = vcmask 23552
          %2859 = vst.msk [vmem:[#allocation5] sm:$0xff] %vm2858, 0.0
          %2860 = vst.msk [vmem:[#allocation5 + $0x8] sm:$0xff] %vm2858, 0.0
          %vm2861 = vcmask 572952
          %2862 = vst.msk [vmem:[#allocation5] sm:$0xff] %vm2861, 0.0
          %2863 = vst.msk [vmem:[#allocation5 + $0x8] sm:$0xff] %vm2861, 0.0
          %2866 = vrot.lane.b32.xlu0 %v2856, 3
          %v2867 = vpop.permute.xlu0 %2866
          %2868 = vrot.lane.b32.xlu0 %v2857, 3
          %v2869 = vpop.permute.xlu0 %2868
          %vm2872 = vcmask 547864
          %2873 = vst.msk [vmem:[#allocation5] sm:$0xff] %vm2872, %v2867
          %2874 = vst.msk [vmem:[#allocation5 + $0x8] sm:$0xff] %vm2872, %v2869
          %v2875 = vld [vmem:[#allocation5] sm:$0xff]
          %v2876 = vld [vmem:[#allocation5 + $0x8] sm:$0xff]
          %v2877 = vld [vmem:[%s10] sm:$0x1]
          %v2878 = vlaneseq
          %v2879 = vshrl.u32 %v2878, 7
          %v2880 = vsub.s32 0, %v2879
          %v2881 = vrot.slane %v2877, %v2880
          %v2882 = vmul.f32 %v2875, %v2881
          %v2883 = vmul.f32 %v2876, %v2881
          %v2884 = vld [vmem:[%s10 + $0x1] sm:$0x1]
          %v2885 = vlaneseq
          %v2886 = vshrl.u32 %v2885, 7
          %v2887 = vsub.s32 0, %v2886
          %v2888 = vrot.slane %v2884, %v2887
          %2890 = vrot.lane.b32.xlu0 %v2888, 1
          %v2891 = vpop.permute.xlu0 %2890
          %v2893 = vmul.f32 %v2875, %v2891
          %v2894 = vmul.f32 %v2876, %v2891
          %2897 = vrot.lane.b32.xlu0 %v2893, 127
          %v2898 = vpop.permute.xlu0 %2897
          %2899 = vrot.lane.b32.xlu0 %v2894, 127
          %v2900 = vpop.permute.xlu0 %2899
          %v2903 = vadd.f32 %v2882, %v2898
          %v2904 = vadd.f32 %v2883, %v2900
          %v2905 = vld [vmem:[%s10 + $0x2] sm:$0x1]
          %v2906 = vlaneseq
          %v2907 = vshrl.u32 %v2906, 7
          %v2908 = vsub.s32 0, %v2907
          %v2909 = vrot.slane %v2905, %v2908
          %2911 = vrot.lane.b32.xlu0 %v2909, 2
          %v2912 = vpop.permute.xlu0 %2911
          %v2914 = vmul.f32 %v2875, %v2912
          %v2915 = vmul.f32 %v2876, %v2912
          %2918 = vrot.lane.b32.xlu0 %v2914, 126
          %v2919 = vpop.permute.xlu0 %2918
          %2920 = vrot.lane.b32.xlu0 %v2915, 126
          %v2921 = vpop.permute.xlu0 %2920
          %v2924 = vadd.f32 %v2903, %v2919
          %v2925 = vadd.f32 %v2904, %v2921
          %v2926 = vld [vmem:[%s10 + $0x3] sm:$0x1]
          %v2927 = vlaneseq
          %v2928 = vshrl.u32 %v2927, 7
          %v2929 = vsub.s32 0, %v2928
          %v2930 = vrot.slane %v2926, %v2929
          %2932 = vrot.lane.b32.xlu0 %v2930, 3
          %v2933 = vpop.permute.xlu0 %2932
          %v2935 = vmul.f32 %v2875, %v2933
          %v2936 = vmul.f32 %v2876, %v2933
          %2939 = vrot.lane.b32.xlu0 %v2935, 125
          %v2940 = vpop.permute.xlu0 %2939
          %2941 = vrot.lane.b32.xlu0 %v2936, 125
          %v2942 = vpop.permute.xlu0 %2941
          %v2945 = vadd.f32 %v2924, %v2940
          %v2946 = vadd.f32 %v2925, %v2942
          %v2947 = vld [vmem:[%s10 + $0x4] sm:$0x1]
          %v2948 = vlaneseq
          %v2949 = vshrl.u32 %v2948, 7
          %v2950 = vsub.s32 0, %v2949
          %v2951 = vrot.slane %v2947, %v2950
          %2953 = vrot.lane.b32.xlu0 %v2951, 4
          %v2954 = vpop.permute.xlu0 %2953
          %v2956 = vmul.f32 %v2875, %v2954
          %v2957 = vmul.f32 %v2876, %v2954
          %2960 = vrot.lane.b32.xlu0 %v2956, 124
          %v2961 = vpop.permute.xlu0 %2960
          %2962 = vrot.lane.b32.xlu0 %v2957, 124
          %v2963 = vpop.permute.xlu0 %2962
          %v2966 = vadd.f32 %v2945, %v2961
          %v2967 = vadd.f32 %v2946, %v2963
          %v2968 = vld [vmem:[%s10 + $0x5] sm:$0x1]
          %v2969 = vlaneseq
          %v2970 = vshrl.u32 %v2969, 7
          %v2971 = vsub.s32 0, %v2970
          %v2972 = vrot.slane %v2968, %v2971
          %2974 = vrot.lane.b32.xlu0 %v2972, 5
          %v2975 = vpop.permute.xlu0 %2974
          %v2977 = vmul.f32 %v2875, %v2975
          %v2978 = vmul.f32 %v2876, %v2975
          %2981 = vrot.lane.b32.xlu0 %v2977, 123
          %v2982 = vpop.permute.xlu0 %2981
          %2983 = vrot.lane.b32.xlu0 %v2978, 123
          %v2984 = vpop.permute.xlu0 %2983
          %v2987 = vadd.f32 %v2966, %v2982
          %v2988 = vadd.f32 %v2967, %v2984
          %v2989 = vld [vmem:[%s10 + $0x6] sm:$0x1]
          %v2990 = vlaneseq
          %v2991 = vshrl.u32 %v2990, 7
          %v2992 = vsub.s32 0, %v2991
          %v2993 = vrot.slane %v2989, %v2992
          %2995 = vrot.lane.b32.xlu0 %v2993, 6
          %v2996 = vpop.permute.xlu0 %2995
          %v2998 = vmul.f32 %v2875, %v2996
          %v2999 = vmul.f32 %v2876, %v2996
          %3002 = vrot.lane.b32.xlu0 %v2998, 122
          %v3003 = vpop.permute.xlu0 %3002
          %3004 = vrot.lane.b32.xlu0 %v2999, 122
          %v3005 = vpop.permute.xlu0 %3004
          %v3008 = vadd.f32 %v2987, %v3003
          %v3009 = vadd.f32 %v2988, %v3005
          %vm3010 = vcmask 523264
          %v3011 = vsel %vm3010, %v3008, 0.0
          %v3012 = vsel %vm3010, %v3009, 0.0
          %v3013 = vadd.f32 %v3011, %v3012
          %v3014 = vrot.slane %v3013, 4
          %v3015 = vadd.f32 %v3013, %v3014
          %v3016 = vrot.slane %v3015, 2
          %v3017 = vadd.f32 %v3015, %v3016
          %v3018 = vrot.slane %v3017, 1
          %v3019 = vadd.f32 %v3017, %v3018
          %vm3020 = vcmask 516096
          %3021 = vst.msk [vmem:[%s635 + $0xa] sm:$0x1] %vm3020, %v3019
          %v3022 = vmul.f32 %v3008, %v3008
          %v3023 = vmul.f32 %v3009, %v3009
          %v3024 = vsel %vm3010, %v3022, 0.0
          %v3025 = vsel %vm3010, %v3023, 0.0
          %v3026 = vadd.f32 %v3024, %v3025
          %v3027 = vrot.slane %v3026, 4
          %v3028 = vadd.f32 %v3026, %v3027
          %v3029 = vrot.slane %v3028, 2
          %v3030 = vadd.f32 %v3028, %v3029
          %v3031 = vrot.slane %v3030, 1
          %v3032 = vadd.f32 %v3030, %v3031
          %3033 = vst.msk [vmem:[%s635 + $0xb] sm:$0x1] %vm3020, %v3032
          %v3034 = vpack.c.bf16 %v3009, %v3008
          %v3036 = vunpack.c.l.b16 %v3034
          %v3037 = vunpack.c.h.b16 %v3034
          %v3038 = vpack.c.b16 %v3036, %v3036
          %v3039 = vpack.c.b16 %v3037, %v3037
          %vm3042 = vcmask 519168
          %3043 = vst.msk [vmem:[%s630] sm:$0xf] %vm3042, %v3038
          %3044 = vst.msk [vmem:[%s630 + $0x4] sm:$0xf] %vm3042, %v3039
        $region116: #{mixed_op_forward.3} parent=63 // pred_fallthru
          _
        %s3045 = sld [smem:[#allocation6 + $0x7]]
        %p3046 = scmp.eq.s32.totalorder %s3045, 0
        // Predicated region
        $region117: #{mixed_op_forward.3} parent=63 // pred_check
          %p3047 = pneg %p3046
        $region118: #{mixed_op_forward.3} parent=63 // pred_check_branch
          %3049 = sbr.rel (%p3047) target = $region120
        $region119: #{mixed_op_forward.3} parent=63 // pred_region
          %vm3050 = vcmask 517120
          %3051 = vst.msk [vmem:[%s635 + $0xa] sm:$0x3] %vm3050, 0.0
          %vm3052 = vcmask 519168
          %3053 = vst.msk [vmem:[%s630] sm:$0xf] %vm3052, 0
          %3054 = vst.msk [vmem:[%s630 + $0x4] sm:$0xf] %vm3052, 0
        $region120: #{mixed_op_forward.3} parent=63 // pred_fallthru
          _
        %p3055 = scmp.lt.s32.totalorder %s30, 1
        %s3056 = scalar_select %p3055, %s30, 1
        %s3057 = smul.addr %s3056, 2
        %s3058 = smul.addr %s3057, 4
        %s3059 = scalar_lea.vmem %s11, %s3058
        %p3060 = scmp.lt.s32.totalorder %s30, 1
        %s3061 = scalar_select %p3060, %s30, 1
        %s3062 = smul.addr %s3061, 2
        %s3063 = smul.addr %s3062, 4
        %s3064 = scalar_lea.vmem %s12, %s3063
        %p3065 = scmp.lt.s32.totalorder %s30, 1
        %s3066 = scalar_select %p3065, %s30, 1
        %s3067 = smul.addr %s3066, 2
        %s3068 = smul.addr %s3067, 4
        %s3069 = scalar_lea.vmem %s13, %s3068
        %p3070 = scmp.lt.s32.totalorder %s30, 1
        %s3071 = scalar_select %p3070, %s30, 1
        %s3072 = smul.addr %s3071, 2
        %s3073 = smul.addr %s3072, 4
        %s3074 = scalar_lea.vmem %s14, %s3073
        %p3075 = scmp.lt.s32.totalorder %s30, 1
        %s3076 = scalar_select %p3075, %s30, 1
        %s3077 = smul.addr %s3076, 2
        %s3078 = smul.addr %s3077, 4
        %s3079 = scalar_lea.vmem %s15, %s3078
        %p3080 = scmp.lt.s32.totalorder %s30, 1
        %s3081 = scalar_select %p3080, %s30, 1
        %s3082 = smul.addr %s3081, 2
        %s3083 = smul.addr %s3082, 4
        %s3084 = scalar_lea.vmem %s16, %s3083
        %p3085 = scmp.lt.s32.totalorder %s30, 1
        %s3086 = scalar_select %p3085, %s30, 1
        %s3087 = smul.addr %s3086, 2
        %s3088 = smul.addr %s3087, 8
        %s3089 = scalar_lea.vmem %s17, %s3088
        // Predicated region
        $region121: #{mixed_op_forward.3} parent=63 // pred_check
          %p3090 = pneg %p284
        $region122: #{mixed_op_forward.3} parent=63 // pred_check_branch
          %3092 = sbr.rel (%p3090) target = $region124
        $region123: #{mixed_op_forward.3} parent=63 // pred_region
          _
        $region124: #{mixed_op_forward.3} parent=63 // pred_fallthru
          _
        // Predicated region
        $region125: #{mixed_op_forward.3} parent=63 // pred_check
          %p3093 = pneg %p310
        $region126: #{mixed_op_forward.3} parent=63 // pred_check_branch
          %3095 = sbr.rel (%p3093) target = $region128
        $region127: #{mixed_op_forward.3} parent=63 // pred_region
          _
        $region128: #{mixed_op_forward.3} parent=63 // pred_fallthru
          _
        // Predicated region
        $region129: #{mixed_op_forward.3} parent=63 // pred_check
          %p3096 = pneg %p336
        $region130: #{mixed_op_forward.3} parent=63 // pred_check_branch
          %3098 = sbr.rel (%p3096) target = $region132
        $region131: #{mixed_op_forward.3} parent=63 // pred_region
          _
        $region132: #{mixed_op_forward.3} parent=63 // pred_fallthru
          _
        // Predicated region
        $region133: #{mixed_op_forward.3} parent=63 // pred_check
          %p3099 = pneg %p362
        $region134: #{mixed_op_forward.3} parent=63 // pred_check_branch
          %3101 = sbr.rel (%p3099) target = $region136
        $region135: #{mixed_op_forward.3} parent=63 // pred_region
          _
        $region136: #{mixed_op_forward.3} parent=63 // pred_fallthru
          _
        // Predicated region
        $region137: #{mixed_op_forward.3} parent=63 // pred_check
          %p3102 = pneg %p388
        $region138: #{mixed_op_forward.3} parent=63 // pred_check_branch
          %3104 = sbr.rel (%p3102) target = $region140
        $region139: #{mixed_op_forward.3} parent=63 // pred_region
          _
        $region140: #{mixed_op_forward.3} parent=63 // pred_fallthru
          _
        // Predicated region
        $region141: #{mixed_op_forward.3} parent=63 // pred_check
          %p3105 = pneg %p414
        $region142: #{mixed_op_forward.3} parent=63 // pred_check_branch
          %3107 = sbr.rel (%p3105) target = $region144
        $region143: #{mixed_op_forward.3} parent=63 // pred_region
          _
        $region144: #{mixed_op_forward.3} parent=63 // pred_fallthru
          _
        // Predicated region
        $region145: #{mixed_op_forward.3} parent=63 // pred_check
          %p3108 = pneg %p440
        $region146: #{mixed_op_forward.3} parent=63 // pred_check_branch
          %3110 = sbr.rel (%p3108) target = $region148
        $region147: #{mixed_op_forward.3} parent=63 // pred_region
          _
        $region148: #{mixed_op_forward.3} parent=63 // pred_fallthru
          _
      $region64: #{mixed_op_forward.3} parent=5 // pred_fallthru
        _
      %p3111 = scmp.le.s32.totalorder 2, %s25
      // Predicated region
      $region149: #{mixed_op_forward.3} parent=5 // pred_check
        %p3112 = pneg %p3111
      $region150: #{mixed_op_forward.3} parent=5 // pred_check_branch
        %3114 = sbr.rel (%p3112) target = $region152
      $region151: #{mixed_op_forward.3} parent=5 // pred_region
        %s3115 = ssub.s32 %s25, 2
        // Predicated region
        $region153: #{mixed_op_forward.3} parent=151 // pred_check
          %p3116 = pneg %p290
        $region154: #{mixed_op_forward.3} parent=151 // pred_check_branch
          %3118 = sbr.rel (%p3116) target = $region156
        $region155: #{mixed_op_forward.3} parent=151 // pred_region
          %p3119 = scmp.lt.s32.totalorder %s31, 1
          %s3120 = scalar_select %p3119, %s31, 1
          %s3121 = smul.addr %s3120, 2
          %s3122 = smul.addr %s3121, 4
          %s3123 = scalar_lea.vmem %s11, %s3122
        $region156: #{mixed_op_forward.3} parent=151 // pred_fallthru
          _
        // Predicated region
        $region157: #{mixed_op_forward.3} parent=151 // pred_check
          %p3124 = pneg %p316
        $region158: #{mixed_op_forward.3} parent=151 // pred_check_branch
          %3126 = sbr.rel (%p3124) target = $region160
        $region159: #{mixed_op_forward.3} parent=151 // pred_region
          %p3127 = scmp.lt.s32.totalorder %s31, 1
          %s3128 = scalar_select %p3127, %s31, 1
          %s3129 = smul.addr %s3128, 2
          %s3130 = smul.addr %s3129, 4
          %s3131 = scalar_lea.vmem %s12, %s3130
        $region160: #{mixed_op_forward.3} parent=151 // pred_fallthru
          _
        // Predicated region
        $region161: #{mixed_op_forward.3} parent=151 // pred_check
          %p3132 = pneg %p342
        $region162: #{mixed_op_forward.3} parent=151 // pred_check_branch
          %3134 = sbr.rel (%p3132) target = $region164
        $region163: #{mixed_op_forward.3} parent=151 // pred_region
          %p3135 = scmp.lt.s32.totalorder %s31, 1
          %s3136 = scalar_select %p3135, %s31, 1
          %s3137 = smul.addr %s3136, 2
          %s3138 = smul.addr %s3137, 4
          %s3139 = scalar_lea.vmem %s13, %s3138
        $region164: #{mixed_op_forward.3} parent=151 // pred_fallthru
          _
        // Predicated region
        $region165: #{mixed_op_forward.3} parent=151 // pred_check
          %p3140 = pneg %p368
        $region166: #{mixed_op_forward.3} parent=151 // pred_check_branch
          %3142 = sbr.rel (%p3140) target = $region168
        $region167: #{mixed_op_forward.3} parent=151 // pred_region
          %p3143 = scmp.lt.s32.totalorder %s31, 1
          %s3144 = scalar_select %p3143, %s31, 1
          %s3145 = smul.addr %s3144, 2
          %s3146 = smul.addr %s3145, 4
          %s3147 = scalar_lea.vmem %s14, %s3146
        $region168: #{mixed_op_forward.3} parent=151 // pred_fallthru
          _
        // Predicated region
        $region169: #{mixed_op_forward.3} parent=151 // pred_check
          %p3148 = pneg %p394
        $region170: #{mixed_op_forward.3} parent=151 // pred_check_branch
          %3150 = sbr.rel (%p3148) target = $region172
        $region171: #{mixed_op_forward.3} parent=151 // pred_region
          %p3151 = scmp.lt.s32.totalorder %s31, 1
          %s3152 = scalar_select %p3151, %s31, 1
          %s3153 = smul.addr %s3152, 2
          %s3154 = smul.addr %s3153, 4
          %s3155 = scalar_lea.vmem %s15, %s3154
        $region172: #{mixed_op_forward.3} parent=151 // pred_fallthru
          _
        // Predicated region
        $region173: #{mixed_op_forward.3} parent=151 // pred_check
          %p3156 = pneg %p420
        $region174: #{mixed_op_forward.3} parent=151 // pred_check_branch
          %3158 = sbr.rel (%p3156) target = $region176
        $region175: #{mixed_op_forward.3} parent=151 // pred_region
          %p3159 = scmp.lt.s32.totalorder %s31, 1
          %s3160 = scalar_select %p3159, %s31, 1
          %s3161 = smul.addr %s3160, 2
          %s3162 = smul.addr %s3161, 4
          %s3163 = scalar_lea.vmem %s16, %s3162
        $region176: #{mixed_op_forward.3} parent=151 // pred_fallthru
          _
        // Predicated region
        $region177: #{mixed_op_forward.3} parent=151 // pred_check
          %p3164 = pneg %p446
        $region178: #{mixed_op_forward.3} parent=151 // pred_check_branch
          %3166 = sbr.rel (%p3164) target = $region180
        $region179: #{mixed_op_forward.3} parent=151 // pred_region
          %p3167 = scmp.lt.s32.totalorder %s31, 1
          %s3168 = scalar_select %p3167, %s31, 1
          %s3169 = smul.addr %s3168, 2
          %s3170 = smul.addr %s3169, 8
          %s3171 = scalar_lea.vmem %s17, %s3170
        $region180: #{mixed_op_forward.3} parent=151 // pred_fallthru
          _
      $region152: #{mixed_op_forward.3} parent=5 // pred_fallthru
        _
    $region6: #{mixed_op_forward.3} parent=1 // loop_footer
      %s29 = sadd.s32 1, %s25
    $region7: #{mixed_op_forward.3} parent=1 // loop_footer_branch
      %24 = sbr.rel target = $region3
    $region8: #{mixed_op_forward.3} parent=1 // loop_exit
      _
    %3172 = vsyncpa [#allocation7], 1
    %s3173 = scalar_lea.sflag [#allocation7], 1
    %3174 = vsyncpa %s3173, 1

</llo_original>
